<compile_context>
chip_gen: v7x
topology: tpu7x:2x2x1
jax: 0.10.0
libtpu: 0.0.40
codegen_flags: <defaults>
</compile_context>

<pallas_src>
import functools

import jax
import jax.numpy as jnp
from jax import lax
from jax.experimental import pallas as pl
from jax.experimental.pallas import tpu as pltpu


def _round_up(x, m):
    return (x + m - 1) // m * m


# ------------------------------ fused kernel --------------------------------
def _fused_decoder_kernel(xm_ref, xp_ref, xn_ref, w1_ref, b1_ref, w2_ref,
                          b2_ref, o_ref, pbuf, hbuf, *,
                          TH, Hp, Wp, Wpad, C0, C1, C2):
    # xm_ref: (1, 2*TH, W, C0)  full-res rows of this tile (bf16)
    # xp_ref/xn_ref: (1, 4, W, C0) halo rows above / below (bf16)
    # w1_ref: (3, C0, 3*C1)  per-ky, kx-stacked conv1 weights (bf16)
    # w2_ref: (3*C1, 3*C2)   ky-im2col, kx-stacked conv2 weights (bf16)
    # b1_ref: (1, C1)  b2_ref: (1, C2)   (f32)
    # o_ref:  (1, C2, TH*Wp)             (f32, lane-dense)
    # pbuf:   (TH+4, Wpad, C0) bf16 VMEM pooled slab (1-col pad, 2-row halo each side)
    # hbuf:   (TH+2, Wpad, C1) bf16 VMEM conv1 slab  (1-col pad, 1-row halo each side)
    r0 = pl.program_id(1) * TH          # first pooled/output row of this tile

    # --- zero only the padding columns; interior/halo rows are overwritten below ---
    pbuf[:, 0:1, :] = jnp.zeros((TH + 4, 1, C0), pbuf.dtype)
    pbuf[:, Wp + 1:Wpad, :] = jnp.zeros((TH + 4, Wpad - Wp - 1, C0), pbuf.dtype)
    hbuf[:, 0:1, :] = jnp.zeros((TH + 2, 1, C1), hbuf.dtype)
    hbuf[:, Wp + 1:Wpad, :] = jnp.zeros((TH + 2, Wpad - Wp - 1, C1), hbuf.dtype)

    # ------------------------- vectorized max-pool 2x2 ----------------------
    def pool_block(block):                      # (2n, W, C0) -> (n, Wp, C0)
        n = block.shape[0] // 2
        b4 = block.reshape(n, 2, block.shape[1], C0)
        br = jnp.maximum(b4[:, 0], b4[:, 1])    # row-pair max (outer dim, cheap)
        bc = br.reshape(n, Wp, 2, C0)
        return jnp.maximum(bc[:, :, 0, :], bc[:, :, 1, :])   # column-pair max

    # interior pooled rows r0 .. r0+TH-1 (always inside the image): one bulk store
    pbuf[2:TH + 2, 1:Wp + 1, :] = pool_block(xm_ref[0]).astype(pbuf.dtype)

    # halo pooled rows: zero when they fall outside the image (= conv padding)
    ph = pool_block(xp_ref[0])                  # candidate pooled rows r0-2, r0-1
    nh = pool_block(xn_ref[0])                  # candidate pooled rows r0+TH, r0+TH+1
    pidx = lax.broadcasted_iota(jnp.int32, (2, 1, 1), 0) + (r0 - 2)
    nidx = lax.broadcasted_iota(jnp.int32, (2, 1, 1), 0) + (r0 + TH)
    pval = jnp.logical_and(pidx >= 0, pidx < Hp)
    nval = jnp.logical_and(nidx >= 0, nidx < Hp)
    pbuf[0:2, 1:Wp + 1, :] = jnp.where(pval, ph, jnp.zeros_like(ph)).astype(pbuf.dtype)
    pbuf[TH + 2:TH + 4, 1:Wp + 1, :] = jnp.where(
        nval, nh, jnp.zeros_like(nh)).astype(pbuf.dtype)

    # -------------------- conv1 3x3 (C0 -> C1) + ReLU -----------------------
    # One wide (K=C0, N=3*C1) matmul per ky; ky sums accumulate un-shifted (the row
    # shift lives in the pbuf slice); the kx column shift is applied to the narrow
    # f32 output only (2 misaligned shifts total).
    slab0 = pbuf[0:TH + 2, :, :].reshape((TH + 2) * Wpad, C0)
    sfull = jnp.dot(slab0, w1_ref[0], preferred_element_type=jnp.float32)
    for ky in (1, 2):
        slab = pbuf[ky:ky + TH + 2, :, :].reshape((TH + 2) * Wpad, C0)
        sfull = sfull + jnp.dot(slab, w1_ref[ky], preferred_element_type=jnp.float32)
    sfull = sfull.reshape(TH + 2, Wpad, 3 * C1)
    acc1 = (sfull[:, 0:Wp, 0:C1]
            + sfull[:, 1:Wp + 1, C1:2 * C1]
            + sfull[:, 2:Wp + 2, 2 * C1:3 * C1])
    h1 = jnp.maximum(acc1 + b1_ref[...], 0.0)
    # rows outside the image are conv2's zero padding -> mask them out
    rows = lax.broadcasted_iota(jnp.int32, (TH + 2, 1, 1), 0) + (r0 - 1)
    h1 = jnp.where(jnp.logical_and(rows >= 0, rows < Hp), h1, 0.0)
    hbuf[:, 1:Wp + 1, :] = h1.astype(hbuf.dtype)

    # ------------------------ conv2 3x3 (C1 -> C2) --------------------------
    # im2col over ky (K=3*C1) and kx-stacked outputs (N=3*C2): a single MXU pass.
    col = jnp.concatenate([hbuf[0:TH], hbuf[1:TH + 1], hbuf[2:TH + 2]], axis=-1)
    s2 = jnp.dot(col.reshape(TH * Wpad, 3 * C1), w2_ref[...],
                 preferred_element_type=jnp.float32).reshape(TH, Wpad, 3 * C2)
    acc2 = (s2[:, 0:Wp, 0:C2]
            + s2[:, 1:Wp + 1, C2:2 * C2]
            + s2[:, 2:Wp + 2, 2 * C2:3 * C2]) + b2_ref[...]

    # lane-dense NCHW store: (TH, Wp, C2) -> (C2, TH*Wp)
    o_ref[0] = jnp.transpose(acc2.reshape(TH * Wp, C2)).astype(o_ref.dtype)


# ------------------------------ host wrapper --------------------------------
def _vmem_bytes_estimate(TH, W, Wp, Wpad, C0, C1, C2):
    bf, f4 = 2, 4
    main = 2 * (2 * TH) * W * C0 * bf                 # double-buffered main block
    halo = 2 * 2 * (4 * W * C0 * bf)                  # two halo blocks, double-buffered
    wts = 2 * (3 * C0 * 3 * C1 + 3 * C1 * 3 * C2) * bf + 2 * (C1 + C2) * f4
    pb = (TH + 4) * Wpad * C0 * bf
    hb = (TH + 2) * Wpad * C1 * bf
    outb = 2 * C2 * TH * Wp * f4
    tmp = ((2 * TH) * W * C0 * bf                     # pooling intermediates
           + (TH + 2) * Wpad * 3 * C1 * f4            # sfull
           + 3 * (TH + 2) * Wp * C1 * f4              # kx slices / acc1 / h1
           + TH * Wpad * 3 * C1 * bf                  # conv2 im2col
           + TH * Wpad * 3 * C2 * f4)                 # conv2 matmul output
    return main + halo + wts + pb + hb + outb + tmp


def _pick_row_tile(Hp, Wp, W, C0, C1, C2, budget, max_rows=64):
    # TH must divide Hp, be even (halo-block arithmetic), keep the output block
    # lane-dense ((TH*Wp) % 128 == 0), and fit the per-step VMEM budget.
    wpad = _round_up(Wp + 2, 8)
    cands = [th for th in range(2, min(Hp, max_rows) + 1, 2)
             if Hp % th == 0 and (th * Wp) % 128 == 0]
    feasible = [th for th in cands
                if _vmem_bytes_estimate(th, W, Wp, wpad, C0, C1, C2) <= budget]
    if feasible:
        return max(feasible)
    if cands:
        return min(cands)          # best effort (may exceed budget, smallest tile)
    return Hp                       # tiny inputs: whole image, single tile


def decoder_conv_layers(feats_nhwc, conv1_w, conv1_b, conv2_w, conv2_b):
    """Fused MaxPool2d(2,2) -> Conv2d(C0,C1,3,p=1) -> ReLU -> Conv2d(C1,C2,3,p=1).

    feats_nhwc: (B, H, W, C0).  Returns NCHW (B, C2, H//2, W//2).
    """
    B, H, W, C0 = feats_nhwc.shape
    assert H % 2 == 0 and W % 2 == 0 and H >= 4, "even spatial dims expected"
    Hp, Wp = H // 2, W // 2
    C1, C2 = conv1_w.shape[0], conv2_w.shape[0]
    Wpad = _round_up(Wp + 2, 8)

    # Generation-aware VMEM budget: 64 MiB/core on v7x, 128 MiB on v5e/v6e.
    try:
        vmem_cap = int(pltpu.get_tpu_info().vmem_capacity_bytes)
    except Exception:
        vmem_cap = 64 << 20
    vmem_cap = min(max(vmem_cap, 32 << 20), 128 << 20)
    budget = int(vmem_cap * 0.55)

    TH = _pick_row_tile(Hp, Wp, W, C0, C1, C2, budget)
    T = Hp // TH
    hb = max(TH // 2, 1)                # halo block stride, in 4-row units
    nhb = max(H // 4, 1)                # number of 4-row halo blocks

    # PyTorch (Cout, Cin, 3, 3) -> MXU-friendly bf16 layouts:
    #   w1: (ky, Cin, kx*C1+co)        w2: (ky*C1+ci, kx*C2+co)
    w1 = jnp.transpose(conv1_w, (2, 1, 3, 0)).reshape(3, C0, 3 * C1).astype(jnp.bfloat16)
    w2 = jnp.transpose(conv2_w, (2, 1, 3, 0)).reshape(3 * C1, 3 * C2).astype(jnp.bfloat16)
    b1 = conv1_b.reshape(1, C1).astype(jnp.float32)
    b2 = conv2_b.reshape(1, C2).astype(jnp.float32)
    feats = feats_nhwc.astype(jnp.bfloat16)

    est = _vmem_bytes_estimate(TH, W, Wp, Wpad, C0, C1, C2)
    vmem_limit = int(min(max(2 * est, 32 << 20), int(vmem_cap * 0.9)))

    flops = 2 * B * Hp * Wp * 9 * (C0 * C1 + C1 * C2)
    bytes_accessed = int(B * T * (2 * TH + 8) * W * C0 * 2      # bf16 input (+halo refetch)
                         + B * C2 * Hp * Wp * 4                 # f32 output
                         + (w1.size + w2.size) * 2)

    kern = functools.partial(_fused_decoder_kernel, TH=TH, Hp=Hp, Wp=Wp,
                             Wpad=Wpad, C0=C0, C1=C1, C2=C2)
    out = pl.pallas_call(
        kern,
        out_shape=jax.ShapeDtypeStruct((B, C2, Hp * Wp), jnp.float32),
        grid=(B, T),
        in_specs=[
            pl.BlockSpec((1, 2 * TH, W, C0), lambda b, t: (b, t, 0, 0)),
            pl.BlockSpec((1, 4, W, C0),
                         lambda b, t: (b, jnp.clip(t * hb - 1, 0, nhb - 1), 0, 0)),
            pl.BlockSpec((1, 4, W, C0),
                         lambda b, t: (b, jnp.clip(t * hb + hb, 0, nhb - 1), 0, 0)),
            pl.BlockSpec((3, C0, 3 * C1), lambda b, t: (0, 0, 0)),
            pl.BlockSpec((1, C1), lambda b, t: (0, 0)),
            pl.BlockSpec((3 * C1, 3 * C2), lambda b, t: (0, 0)),
            pl.BlockSpec((1, C2), lambda b, t: (0, 0)),
        ],
        out_specs=pl.BlockSpec((1, C2, TH * Wp), lambda b, t: (b, 0, t)),
        scratch_shapes=[pltpu.VMEM((TH + 4, Wpad, C0), jnp.bfloat16),
                        pltpu.VMEM((TH + 2, Wpad, C1), jnp.bfloat16)],
        compiler_params=pltpu.CompilerParams(
            dimension_semantics=("parallel", "parallel"),
            vmem_limit_bytes=vmem_limit),
        cost_estimate=pl.CostEstimate(flops=flops, transcendentals=0,
                                      bytes_accessed=bytes_accessed),
    )(feats, feats, feats, w1, b1, w2, b2)
    return out.reshape(B, C2, Hp, Wp)


# ------------------------------ parameters ----------------------------------
def init_params(key):
    k0, k1, k2, k3, k4, k5 = jax.random.split(key, 6)
    p = {}
    # TODO(synk): `self.featup` is a pretrained torch.hub FeatUp ViT-S/14
    # upsampler (external checkpoint); it cannot be reproduced in-script.  A
    # deterministic 1x1 projection (3 -> 384 channels, full resolution) stands
    # in so the decoder path sees a 384-channel feature map.
    p["featup_w"] = 0.1 * jax.random.normal(k0, (384, 3), jnp.float32)
    p["featup_b"] = 0.1 * jax.random.normal(k1, (384,), jnp.float32)
    p["conv1_w"] = 0.05 * jax.random.normal(k2, (64, 384, 3, 3), jnp.float32)
    p["conv1_b"] = 0.05 * jax.random.normal(k3, (64,), jnp.float32)
    p["conv2_w"] = 0.05 * jax.random.normal(k4, (3, 64, 3, 3), jnp.float32)
    p["conv2_b"] = 0.05 * jax.random.normal(k5, (3,), jnp.float32)
    return p


# ------------------------------ forward pass --------------------------------
def decoder_vit_forward(params, x_nchw):
    # Featup stand-in done in NHWC (transpose the tiny 3-channel input, not the
    # large 384-channel map) so the biggest tensor is born channels-last.
    x_nhwc = jnp.transpose(x_nchw, (0, 2, 3, 1))
    feats = (jnp.einsum("bhwc,oc->bhwo", x_nhwc, params["featup_w"])
             + params["featup_b"])
    return decoder_conv_layers(feats, params["conv1_w"], params["conv1_b"],
                               params["conv2_w"], params["conv2_b"])


# ------------------------- pure-JAX reference (check) ------------------------
def reference_forward(params, x_nchw):
    feats = (jnp.einsum("bchw,oc->bohw", x_nchw, params["featup_w"])
             + params["featup_b"][None, :, None, None])
    p = lax.reduce_window(feats, -jnp.inf, lax.max,
                          (1, 1, 2, 2), (1, 1, 2, 2), "VALID")
    dn = ("NCHW", "OIHW", "NCHW")
    y = lax.conv_general_dilated(p, params["conv1_w"], (1, 1), "SAME",
                                 dimension_numbers=dn)
    y = jnp.maximum(y + params["conv1_b"][None, :, None, None], 0.0)
    y = lax.conv_general_dilated(y, params["conv2_w"], (1, 1), "SAME",
                                 dimension_numbers=dn)
    return y + params["conv2_b"][None, :, None, None]


if __name__ == "__main__":
    key = jax.random.PRNGKey(0)
    pkey, xkey = jax.random.split(key)
    params = init_params(pkey)

    # small, module-consistent shapes: batch=2, 3-channel 16x16 image
    x = jax.random.normal(xkey, (2, 3, 16, 16), jnp.float32)

    out = jax.jit(decoder_vit_forward)(params, x)
    out = jax.block_until_ready(out)

    assert out.shape == (2, 3, 8, 8), out.shape
    ref = reference_forward(params, x)
    err = float(jnp.max(jnp.abs(out - ref)))
    # bf16 matmul operands (f32 accumulation) -> looser tolerance than pure f32
    assert err < 1e-1, f"max abs err {err}"
    print("KERNEL_OK")
</pallas_src>

<mosaic_0001>
module attributes {stable_mosaic.version = 11 : i64} {
  func.func @_fused_decoder_kernel(%arg0: i32, %arg1: i32, %arg2: memref<1x16x16x384xbf16, #tpu.memory_space<vmem>>, %arg3: memref<1x4x16x384xbf16, #tpu.memory_space<vmem>>, %arg4: memref<1x4x16x384xbf16, #tpu.memory_space<vmem>>, %arg5: memref<3x384x192xbf16, #tpu.memory_space<vmem>>, %arg6: memref<1x64xf32, #tpu.memory_space<vmem>>, %arg7: memref<192x9xbf16, #tpu.memory_space<vmem>>, %arg8: memref<1x3xf32, #tpu.memory_space<vmem>>, %arg9: memref<1x3x64xf32, #tpu.memory_space<vmem>>, %arg10: memref<12x16x384xbf16, #tpu.memory_space<vmem>>, %arg11: memref<10x16x64xbf16, #tpu.memory_space<vmem>>) attributes {dimension_semantics = [#tpu.dimension_semantics<parallel>, #tpu.dimension_semantics<parallel>], iteration_bounds = array<i64: 2, 1>, scalar_prefetch = 0 : i64, scratch_operands = 2 : i64, tpu.core_type = #tpu.core_type<tc>, window_params = [{transform_indices = @transform_0, window_bounds = array<i64: 1, 16, 16, 384>}, {transform_indices = @transform_1, window_bounds = array<i64: 1, 4, 16, 384>}, {transform_indices = @transform_2, window_bounds = array<i64: 1, 4, 16, 384>}, {pipeline_mode = #tpu.pipeline_mode<synchronous>, transform_indices = @transform_3, window_bounds = array<i64: 3, 384, 192>}, {pipeline_mode = #tpu.pipeline_mode<synchronous>, transform_indices = @transform_4, window_bounds = array<i64: 1, 64>}, {pipeline_mode = #tpu.pipeline_mode<synchronous>, transform_indices = @transform_5, window_bounds = array<i64: 192, 9>}, {pipeline_mode = #tpu.pipeline_mode<synchronous>, transform_indices = @transform_6, window_bounds = array<i64: 1, 3>}, {transform_indices = @transform_7, window_bounds = array<i64: 1, 3, 64>}]} {
    %c8_i32 = arith.constant 8 : i32
    %0 = arith.muli %arg1, %c8_i32 : i32
    %cst = arith.constant 0.000000e+00 : bf16
    %1 = vector.broadcast %cst : bf16 to vector<12x1x384xbf16>
    %c0 = arith.constant 0 : index
    %c0_0 = arith.constant 0 : index
    %c0_1 = arith.constant 0 : index
    %2 = vector.load %arg10[%c0, %c0_0, %c0_1] : memref<12x16x384xbf16, #tpu.memory_space<vmem>>, vector<12x1x384xbf16>
    tpu.vector_store %arg10[%c0, %c0_0, %c0_1], %1 {strides = array<i32>} : memref<12x16x384xbf16, #tpu.memory_space<vmem>>, vector<12x1x384xbf16>,
    %cst_2 = arith.constant 0.000000e+00 : bf16
    %3 = vector.broadcast %cst_2 : bf16 to vector<12x7x384xbf16>
    %c0_3 = arith.constant 0 : index
    %c9 = arith.constant 9 : index
    %c0_4 = arith.constant 0 : index
    %4 = vector.load %arg10[%c0_3, %c9, %c0_4] : memref<12x16x384xbf16, #tpu.memory_space<vmem>>, vector<12x7x384xbf16>
    tpu.vector_store %arg10[%c0_3, %c9, %c0_4], %3 {strides = array<i32>} : memref<12x16x384xbf16, #tpu.memory_space<vmem>>, vector<12x7x384xbf16>,
    %cst_5 = arith.constant 0.000000e+00 : bf16
    %5 = vector.broadcast %cst_5 : bf16 to vector<10x1x64xbf16>
    %c0_6 = arith.constant 0 : index
    %c0_7 = arith.constant 0 : index
    %c0_8 = arith.constant 0 : index
    %6 = vector.load %arg11[%c0_6, %c0_7, %c0_8] : memref<10x16x64xbf16, #tpu.memory_space<vmem>>, vector<10x1x64xbf16>
    tpu.vector_store %arg11[%c0_6, %c0_7, %c0_8], %5 {strides = array<i32>} : memref<10x16x64xbf16, #tpu.memory_space<vmem>>, vector<10x1x64xbf16>,
    %cst_9 = arith.constant 0.000000e+00 : bf16
    %7 = vector.broadcast %cst_9 : bf16 to vector<10x7x64xbf16>
    %c0_10 = arith.constant 0 : index
    %c9_11 = arith.constant 9 : index
    %c0_12 = arith.constant 0 : index
    %8 = vector.load %arg11[%c0_10, %c9_11, %c0_12] : memref<10x16x64xbf16, #tpu.memory_space<vmem>>, vector<10x7x64xbf16>
    tpu.vector_store %arg11[%c0_10, %c9_11, %c0_12], %7 {strides = array<i32>} : memref<10x16x64xbf16, #tpu.memory_space<vmem>>, vector<10x7x64xbf16>,
    %c0_13 = arith.constant 0 : index
    %c0_14 = arith.constant 0 : index
    %c0_15 = arith.constant 0 : index
    %c0_16 = arith.constant 0 : index
    %9 = vector.load %arg2[%c0_13, %c0_14, %c0_15, %c0_16] : memref<1x16x16x384xbf16, #tpu.memory_space<vmem>>, vector<1x16x16x384xbf16>
    %10 = vector.shape_cast %9 : vector<1x16x16x384xbf16> to vector<16x16x384xbf16>
    %11 = vector.shape_cast %10 : vector<16x16x384xbf16> to vector<8x2x16x384xbf16>
    %12 = vector.extract_strided_slice %11 {offsets = [0, 0, 0, 0], sizes = [8, 1, 16, 384], strides = [1, 1, 1, 1]} : vector<8x2x16x384xbf16> to vector<8x1x16x384xbf16>
    %13 = vector.shape_cast %12 : vector<8x1x16x384xbf16> to vector<8x16x384xbf16>
    %14 = vector.extract_strided_slice %11 {offsets = [0, 1, 0, 0], sizes = [8, 1, 16, 384], strides = [1, 1, 1, 1]} : vector<8x2x16x384xbf16> to vector<8x1x16x384xbf16>
    %15 = vector.shape_cast %14 : vector<8x1x16x384xbf16> to vector<8x16x384xbf16>
    %16 = arith.maximumf %13, %15 : vector<8x16x384xbf16>
    %17 = vector.shape_cast %16 : vector<8x16x384xbf16> to vector<8x8x2x384xbf16>
    %18 = vector.extract_strided_slice %17 {offsets = [0, 0, 0, 0], sizes = [8, 8, 1, 384], strides = [1, 1, 1, 1]} : vector<8x8x2x384xbf16> to vector<8x8x1x384xbf16>
    %19 = vector.shape_cast %18 : vector<8x8x1x384xbf16> to vector<8x8x384xbf16>
    %20 = vector.extract_strided_slice %17 {offsets = [0, 0, 1, 0], sizes = [8, 8, 1, 384], strides = [1, 1, 1, 1]} : vector<8x8x2x384xbf16> to vector<8x8x1x384xbf16>
    %21 = vector.shape_cast %20 : vector<8x8x1x384xbf16> to vector<8x8x384xbf16>
    %22 = arith.maximumf %19, %21 : vector<8x8x384xbf16>
    %c2 = arith.constant 2 : index
    %c1 = arith.constant 1 : index
    %c0_17 = arith.constant 0 : index
    %23 = vector.load %arg10[%c2, %c1, %c0_17] : memref<12x16x384xbf16, #tpu.memory_space<vmem>>, vector<8x8x384xbf16>
    tpu.vector_store %arg10[%c2, %c1, %c0_17], %22 {strides = array<i32>} : memref<12x16x384xbf16, #tpu.memory_space<vmem>>, vector<8x8x384xbf16>,
    %c0_18 = arith.constant 0 : index
    %c0_19 = arith.constant 0 : index
    %c0_20 = arith.constant 0 : index
    %c0_21 = arith.constant 0 : index
    %24 = vector.load %arg3[%c0_18, %c0_19, %c0_20, %c0_21] : memref<1x4x16x384xbf16, #tpu.memory_space<vmem>>, vector<1x4x16x384xbf16>
    %25 = vector.shape_cast %24 : vector<1x4x16x384xbf16> to vector<4x16x384xbf16>
    %26 = vector.shape_cast %25 : vector<4x16x384xbf16> to vector<2x2x16x384xbf16>
    %27 = vector.extract_strided_slice %26 {offsets = [0, 0, 0, 0], sizes = [2, 1, 16, 384], strides = [1, 1, 1, 1]} : vector<2x2x16x384xbf16> to vector<2x1x16x384xbf16>
    %28 = vector.shape_cast %27 : vector<2x1x16x384xbf16> to vector<2x16x384xbf16>
    %29 = vector.extract_strided_slice %26 {offsets = [0, 1, 0, 0], sizes = [2, 1, 16, 384], strides = [1, 1, 1, 1]} : vector<2x2x16x384xbf16> to vector<2x1x16x384xbf16>
    %30 = vector.shape_cast %29 : vector<2x1x16x384xbf16> to vector<2x16x384xbf16>
    %31 = arith.maximumf %28, %30 : vector<2x16x384xbf16>
    %32 = vector.shape_cast %31 : vector<2x16x384xbf16> to vector<2x8x2x384xbf16>
    %33 = vector.extract_strided_slice %32 {offsets = [0, 0, 0, 0], sizes = [2, 8, 1, 384], strides = [1, 1, 1, 1]} : vector<2x8x2x384xbf16> to vector<2x8x1x384xbf16>
    %34 = vector.shape_cast %33 : vector<2x8x1x384xbf16> to vector<2x8x384xbf16>
    %35 = vector.extract_strided_slice %32 {offsets = [0, 0, 1, 0], sizes = [2, 8, 1, 384], strides = [1, 1, 1, 1]} : vector<2x8x2x384xbf16> to vector<2x8x1x384xbf16>
    %36 = vector.shape_cast %35 : vector<2x8x1x384xbf16> to vector<2x8x384xbf16>
    %37 = arith.maximumf %34, %36 : vector<2x8x384xbf16>
    %c0_22 = arith.constant 0 : index
    %c0_23 = arith.constant 0 : index
    %c0_24 = arith.constant 0 : index
    %c0_25 = arith.constant 0 : index
    %38 = vector.load %arg4[%c0_22, %c0_23, %c0_24, %c0_25] : memref<1x4x16x384xbf16, #tpu.memory_space<vmem>>, vector<1x4x16x384xbf16>
    %39 = vector.shape_cast %38 : vector<1x4x16x384xbf16> to vector<4x16x384xbf16>
    %40 = vector.shape_cast %39 : vector<4x16x384xbf16> to vector<2x2x16x384xbf16>
    %41 = vector.extract_strided_slice %40 {offsets = [0, 0, 0, 0], sizes = [2, 1, 16, 384], strides = [1, 1, 1, 1]} : vector<2x2x16x384xbf16> to vector<2x1x16x384xbf16>
    %42 = vector.shape_cast %41 : vector<2x1x16x384xbf16> to vector<2x16x384xbf16>
    %43 = vector.extract_strided_slice %40 {offsets = [0, 1, 0, 0], sizes = [2, 1, 16, 384], strides = [1, 1, 1, 1]} : vector<2x2x16x384xbf16> to vector<2x1x16x384xbf16>
    %44 = vector.shape_cast %43 : vector<2x1x16x384xbf16> to vector<2x16x384xbf16>
    %45 = arith.maximumf %42, %44 : vector<2x16x384xbf16>
    %46 = vector.shape_cast %45 : vector<2x16x384xbf16> to vector<2x8x2x384xbf16>
    %47 = vector.extract_strided_slice %46 {offsets = [0, 0, 0, 0], sizes = [2, 8, 1, 384], strides = [1, 1, 1, 1]} : vector<2x8x2x384xbf16> to vector<2x8x1x384xbf16>
    %48 = vector.shape_cast %47 : vector<2x8x1x384xbf16> to vector<2x8x384xbf16>
    %49 = vector.extract_strided_slice %46 {offsets = [0, 0, 1, 0], sizes = [2, 8, 1, 384], strides = [1, 1, 1, 1]} : vector<2x8x2x384xbf16> to vector<2x8x1x384xbf16>
    %50 = vector.shape_cast %49 : vector<2x8x1x384xbf16> to vector<2x8x384xbf16>
    %51 = arith.maximumf %48, %50 : vector<2x8x384xbf16>
    %52 = tpu.iota {dimensions = array<i32: 0>} : vector<2x1x1xi32>
    %c2_i32 = arith.constant 2 : i32
    %53 = arith.subi %0, %c2_i32 : i32
    %54 = vector.broadcast %53 : i32 to vector<2x1x1xi32>
    %55 = arith.addi %52, %54 : vector<2x1x1xi32>
    %56 = tpu.iota {dimensions = array<i32: 0>} : vector<2x1x1xi32>
    %c8_i32_26 = arith.constant 8 : i32
    %57 = arith.addi %0, %c8_i32_26 : i32
    %58 = vector.broadcast %57 : i32 to vector<2x1x1xi32>
    %59 = arith.addi %56, %58 : vector<2x1x1xi32>
    %c0_i32 = arith.constant 0 : i32
    %60 = vector.broadcast %c0_i32 : i32 to vector<2x1x1xi32>
    %61 = arith.cmpi sge, %55, %60 : vector<2x1x1xi32>
    %c8_i32_27 = arith.constant 8 : i32
    %62 = vector.broadcast %c8_i32_27 : i32 to vector<2x1x1xi32>
    %63 = arith.cmpi slt, %55, %62 : vector<2x1x1xi32>
    %64 = arith.andi %61, %63 : vector<2x1x1xi1>
    %c0_i32_28 = arith.constant 0 : i32
    %65 = vector.broadcast %c0_i32_28 : i32 to vector<2x1x1xi32>
    %66 = arith.cmpi sge, %59, %65 : vector<2x1x1xi32>
    %c8_i32_29 = arith.constant 8 : i32
    %67 = vector.broadcast %c8_i32_29 : i32 to vector<2x1x1xi32>
    %68 = arith.cmpi slt, %59, %67 : vector<2x1x1xi32>
    %69 = arith.andi %66, %68 : vector<2x1x1xi1>
    %cst_30 = arith.constant 0.000000e+00 : bf16
    %70 = vector.broadcast %cst_30 : bf16 to vector<2x8x384xbf16>
    %71 = vector.shape_cast %64 : vector<2x1x1xi1> to vector<2x1x1xi1>
    %72 = vector.broadcast %71 : vector<2x1x1xi1> to vector<2x8x384xi1>
    %73 = arith.select %72, %37, %70 : vector<2x8x384xi1>, vector<2x8x384xbf16>
    %c0_31 = arith.constant 0 : index
    %c1_32 = arith.constant 1 : index
    %c0_33 = arith.constant 0 : index
    %74 = vector.load %arg10[%c0_31, %c1_32, %c0_33] : memref<12x16x384xbf16, #tpu.memory_space<vmem>>, vector<2x8x384xbf16>
    tpu.vector_store %arg10[%c0_31, %c1_32, %c0_33], %73 {strides = array<i32>} : memref<12x16x384xbf16, #tpu.memory_space<vmem>>, vector<2x8x384xbf16>,
    %cst_34 = arith.constant 0.000000e+00 : bf16
    %75 = vector.broadcast %cst_34 : bf16 to vector<2x8x384xbf16>
    %76 = vector.shape_cast %69 : vector<2x1x1xi1> to vector<2x1x1xi1>
    %77 = vector.broadcast %76 : vector<2x1x1xi1> to vector<2x8x384xi1>
    %78 = arith.select %77, %51, %75 : vector<2x8x384xi1>, vector<2x8x384xbf16>
    %c10 = arith.constant 10 : index
    %c1_35 = arith.constant 1 : index
    %c0_36 = arith.constant 0 : index
    %79 = vector.load %arg10[%c10, %c1_35, %c0_36] : memref<12x16x384xbf16, #tpu.memory_space<vmem>>, vector<2x8x384xbf16>
    tpu.vector_store %arg10[%c10, %c1_35, %c0_36], %78 {strides = array<i32>} : memref<12x16x384xbf16, #tpu.memory_space<vmem>>, vector<2x8x384xbf16>,
    %c0_37 = arith.constant 0 : index
    %c0_38 = arith.constant 0 : index
    %c0_39 = arith.constant 0 : index
    %80 = vector.load %arg10[%c0_37, %c0_38, %c0_39] : memref<12x16x384xbf16, #tpu.memory_space<vmem>>, vector<10x16x384xbf16>
    %81 = vector.shape_cast %80 : vector<10x16x384xbf16> to vector<160x384xbf16>
    %c0_40 = arith.constant 0 : index
    %c0_41 = arith.constant 0 : index
    %c0_42 = arith.constant 0 : index
    %82 = vector.load %arg5[%c0_40, %c0_41, %c0_42] : memref<3x384x192xbf16, #tpu.memory_space<vmem>>, vector<1x384x192xbf16>
    %83 = vector.shape_cast %82 : vector<1x384x192xbf16> to vector<384x192xbf16>
    %cst_43 = arith.constant dense<0.000000e+00> : vector<160x192xf32>
    %84 = tpu.matmul %81, %83, %cst_43 {dimension_numbers = #tpu.dot_dimension_numbers<[1], [0], [0], [1], [0, 0, 1, 1], [], []>} : vector<160x384xbf16>, vector<384x192xbf16>, vector<160x192xf32> -> vector<160x192xf32>
    %c1_44 = arith.constant 1 : index
    %c0_45 = arith.constant 0 : index
    %c0_46 = arith.constant 0 : index
    %85 = vector.load %arg10[%c1_44, %c0_45, %c0_46] : memref<12x16x384xbf16, #tpu.memory_space<vmem>>, vector<10x16x384xbf16>
    %86 = vector.shape_cast %85 : vector<10x16x384xbf16> to vector<160x384xbf16>
    %c1_47 = arith.constant 1 : index
    %c0_48 = arith.constant 0 : index
    %c0_49 = arith.constant 0 : index
    %87 = vector.load %arg5[%c1_47, %c0_48, %c0_49] : memref<3x384x192xbf16, #tpu.memory_space<vmem>>, vector<1x384x192xbf16>
    %88 = vector.shape_cast %87 : vector<1x384x192xbf16> to vector<384x192xbf16>
    %cst_50 = arith.constant dense<0.000000e+00> : vector<160x192xf32>
    %89 = tpu.matmul %86, %88, %cst_50 {dimension_numbers = #tpu.dot_dimension_numbers<[1], [0], [0], [1], [0, 0, 1, 1], [], []>} : vector<160x384xbf16>, vector<384x192xbf16>, vector<160x192xf32> -> vector<160x192xf32>
    %90 = arith.addf %84, %89 : vector<160x192xf32>
    %c2_51 = arith.constant 2 : index
    %c0_52 = arith.constant 0 : index
    %c0_53 = arith.constant 0 : index
    %91 = vector.load %arg10[%c2_51, %c0_52, %c0_53] : memref<12x16x384xbf16, #tpu.memory_space<vmem>>, vector<10x16x384xbf16>
    %92 = vector.shape_cast %91 : vector<10x16x384xbf16> to vector<160x384xbf16>
    %c2_54 = arith.constant 2 : index
    %c0_55 = arith.constant 0 : index
    %c0_56 = arith.constant 0 : index
    %93 = vector.load %arg5[%c2_54, %c0_55, %c0_56] : memref<3x384x192xbf16, #tpu.memory_space<vmem>>, vector<1x384x192xbf16>
    %94 = vector.shape_cast %93 : vector<1x384x192xbf16> to vector<384x192xbf16>
    %cst_57 = arith.constant dense<0.000000e+00> : vector<160x192xf32>
    %95 = tpu.matmul %92, %94, %cst_57 {dimension_numbers = #tpu.dot_dimension_numbers<[1], [0], [0], [1], [0, 0, 1, 1], [], []>} : vector<160x384xbf16>, vector<384x192xbf16>, vector<160x192xf32> -> vector<160x192xf32>
    %96 = arith.addf %90, %95 : vector<160x192xf32>
    %97 = vector.shape_cast %96 : vector<160x192xf32> to vector<10x16x192xf32>
    %98 = vector.extract_strided_slice %97 {offsets = [0, 0, 0], sizes = [10, 8, 64], strides = [1, 1, 1]} : vector<10x16x192xf32> to vector<10x8x64xf32>
    %99 = vector.extract_strided_slice %97 {offsets = [0, 1, 64], sizes = [10, 8, 64], strides = [1, 1, 1]} : vector<10x16x192xf32> to vector<10x8x64xf32>
    %100 = arith.addf %98, %99 : vector<10x8x64xf32>
    %101 = vector.extract_strided_slice %97 {offsets = [0, 2, 128], sizes = [10, 8, 64], strides = [1, 1, 1]} : vector<10x16x192xf32> to vector<10x8x64xf32>
    %102 = arith.addf %100, %101 : vector<10x8x64xf32>
    %c0_58 = arith.constant 0 : index
    %c0_59 = arith.constant 0 : index
    %103 = vector.load %arg6[%c0_58, %c0_59] : memref<1x64xf32, #tpu.memory_space<vmem>>, vector<1x64xf32>
    %104 = vector.shape_cast %103 : vector<1x64xf32> to vector<1x1x64xf32>
    %105 = vector.broadcast %104 : vector<1x1x64xf32> to vector<10x8x64xf32>
    %106 = arith.addf %102, %105 : vector<10x8x64xf32>
    %cst_60 = arith.constant 0.000000e+00 : f32
    %107 = vector.broadcast %cst_60 : f32 to vector<10x8x64xf32>
    %108 = arith.maximumf %106, %107 : vector<10x8x64xf32>
    %109 = tpu.iota {dimensions = array<i32: 0>} : vector<10x1x1xi32>
    %c1_i32 = arith.constant 1 : i32
    %110 = arith.subi %0, %c1_i32 : i32
    %111 = vector.broadcast %110 : i32 to vector<10x1x1xi32>
    %112 = arith.addi %109, %111 : vector<10x1x1xi32>
    %c0_i32_61 = arith.constant 0 : i32
    %113 = vector.broadcast %c0_i32_61 : i32 to vector<10x1x1xi32>
    %114 = arith.cmpi sge, %112, %113 : vector<10x1x1xi32>
    %c8_i32_62 = arith.constant 8 : i32
    %115 = vector.broadcast %c8_i32_62 : i32 to vector<10x1x1xi32>
    %116 = arith.cmpi slt, %112, %115 : vector<10x1x1xi32>
    %117 = arith.andi %114, %116 : vector<10x1x1xi1>
    %cst_63 = arith.constant 0.000000e+00 : f32
    %118 = vector.shape_cast %117 : vector<10x1x1xi1> to vector<10x1x1xi1>
    %119 = vector.broadcast %118 : vector<10x1x1xi1> to vector<10x8x64xi1>
    %120 = vector.broadcast %cst_63 : f32 to vector<10x8x64xf32>
    %121 = arith.select %119, %108, %120 : vector<10x8x64xi1>, vector<10x8x64xf32>
    %122 = arith.truncf %121 : vector<10x8x64xf32> to vector<10x8x64xbf16>
    %c0_64 = arith.constant 0 : index
    %c1_65 = arith.constant 1 : index
    %c0_66 = arith.constant 0 : index
    %123 = vector.load %arg11[%c0_64, %c1_65, %c0_66] : memref<10x16x64xbf16, #tpu.memory_space<vmem>>, vector<10x8x64xbf16>
    tpu.vector_store %arg11[%c0_64, %c1_65, %c0_66], %122 {strides = array<i32>} : memref<10x16x64xbf16, #tpu.memory_space<vmem>>, vector<10x8x64xbf16>,
    %c0_67 = arith.constant 0 : index
    %c0_68 = arith.constant 0 : index
    %c0_69 = arith.constant 0 : index
    %124 = vector.load %arg11[%c0_67, %c0_68, %c0_69] : memref<10x16x64xbf16, #tpu.memory_space<vmem>>, vector<8x16x64xbf16>
    %c1_70 = arith.constant 1 : index
    %c0_71 = arith.constant 0 : index
    %c0_72 = arith.constant 0 : index
    %125 = vector.load %arg11[%c1_70, %c0_71, %c0_72] : memref<10x16x64xbf16, #tpu.memory_space<vmem>>, vector<8x16x64xbf16>
    %c2_73 = arith.constant 2 : index
    %c0_74 = arith.constant 0 : index
    %c0_75 = arith.constant 0 : index
    %126 = vector.load %arg11[%c2_73, %c0_74, %c0_75] : memref<10x16x64xbf16, #tpu.memory_space<vmem>>, vector<8x16x64xbf16>
    %127 = tpu.concatenate %124, %125, %126 in 2 : vector<8x16x64xbf16>, vector<8x16x64xbf16>, vector<8x16x64xbf16> -> vector<8x16x192xbf16>
    %128 = vector.shape_cast %127 : vector<8x16x192xbf16> to vector<128x192xbf16>
    %c0_76 = arith.constant 0 : index
    %c0_77 = arith.constant 0 : index
    %129 = vector.load %arg7[%c0_76, %c0_77] : memref<192x9xbf16, #tpu.memory_space<vmem>>, vector<192x9xbf16>
    %cst_78 = arith.constant dense<0.000000e+00> : vector<128x9xf32>
    %130 = tpu.matmul %128, %129, %cst_78 {dimension_numbers = #tpu.dot_dimension_numbers<[1], [0], [0], [1], [0, 0, 1, 1], [], []>} : vector<128x192xbf16>, vector<192x9xbf16>, vector<128x9xf32> -> vector<128x9xf32>
    %131 = vector.shape_cast %130 : vector<128x9xf32> to vector<8x16x9xf32>
    %132 = vector.extract_strided_slice %131 {offsets = [0, 0, 0], sizes = [8, 8, 3], strides = [1, 1, 1]} : vector<8x16x9xf32> to vector<8x8x3xf32>
    %133 = vector.extract_strided_slice %131 {offsets = [0, 1, 3], sizes = [8, 8, 3], strides = [1, 1, 1]} : vector<8x16x9xf32> to vector<8x8x3xf32>
    %134 = arith.addf %132, %133 : vector<8x8x3xf32>
    %135 = vector.extract_strided_slice %131 {offsets = [0, 2, 6], sizes = [8, 8, 3], strides = [1, 1, 1]} : vector<8x16x9xf32> to vector<8x8x3xf32>
    %136 = arith.addf %134, %135 : vector<8x8x3xf32>
    %c0_79 = arith.constant 0 : index
    %c0_80 = arith.constant 0 : index
    %137 = vector.load %arg8[%c0_79, %c0_80] : memref<1x3xf32, #tpu.memory_space<vmem>>, vector<1x3xf32>
    %138 = vector.shape_cast %137 : vector<1x3xf32> to vector<1x1x3xf32>
    %139 = vector.broadcast %138 : vector<1x1x3xf32> to vector<8x8x3xf32>
    %140 = arith.addf %136, %139 : vector<8x8x3xf32>
    %141 = vector.shape_cast %140 : vector<8x8x3xf32> to vector<64x3xf32>
    %142 = tpu.transpose %141, [1, 0] : vector<64x3xf32> -> vector<3x64xf32>
    %c0_81 = arith.constant 0 : index
    %c0_82 = arith.constant 0 : index
    %c0_83 = arith.constant 0 : index
    %143 = vector.load %arg9[%c0_81, %c0_82, %c0_83] : memref<1x3x64xf32, #tpu.memory_space<vmem>>, vector<1x3x64xf32>
    %144 = vector.shape_cast %143 : vector<1x3x64xf32> to vector<3x64xf32>
    %145 = vector.shape_cast %142 : vector<3x64xf32> to vector<1x3x64xf32>
    tpu.vector_store %arg9[%c0_81, %c0_82, %c0_83], %145 {strides = array<i32>} : memref<1x3x64xf32, #tpu.memory_space<vmem>>, vector<1x3x64xf32>,
    return
  }
  func.func @transform_0(%arg0: i32, %arg1: i32) -> (i32, i32, i32, i32) {
    %c0_i32 = arith.constant 0 : i32
    %c0_i32_0 = arith.constant 0 : i32
    %c0_i32_1 = arith.constant 0 : i32
    return %arg0, %arg1, %c0_i32, %c0_i32_0 : i32, i32, i32, i32
  }
  func.func @transform_1(%arg0: i32, %arg1: i32) -> (i32, i32, i32, i32) {
    %c4_i32 = arith.constant 4 : i32
    %0 = arith.muli %arg1, %c4_i32 : i32
    %c1_i32 = arith.constant 1 : i32
    %1 = arith.subi %0, %c1_i32 : i32
    %c0_i32 = arith.constant 0 : i32
    %c3_i32 = arith.constant 3 : i32
    %2 = arith.maxsi %c0_i32, %1 : i32
    %3 = arith.minsi %c3_i32, %2 : i32
    %c0_i32_0 = arith.constant 0 : i32
    %c0_i32_1 = arith.constant 0 : i32
    %c0_i32_2 = arith.constant 0 : i32
    return %arg0, %3, %c0_i32_0, %c0_i32_1 : i32, i32, i32, i32
  }
  func.func @transform_2(%arg0: i32, %arg1: i32) -> (i32, i32, i32, i32) {
    %c4_i32 = arith.constant 4 : i32
    %0 = arith.muli %arg1, %c4_i32 : i32
    %c4_i32_0 = arith.constant 4 : i32
    %1 = arith.addi %0, %c4_i32_0 : i32
    %c0_i32 = arith.constant 0 : i32
    %c3_i32 = arith.constant 3 : i32
    %2 = arith.maxsi %c0_i32, %1 : i32
    %3 = arith.minsi %c3_i32, %2 : i32
    %c0_i32_1 = arith.constant 0 : i32
    %c0_i32_2 = arith.constant 0 : i32
    %c0_i32_3 = arith.constant 0 : i32
    return %arg0, %3, %c0_i32_1, %c0_i32_2 : i32, i32, i32, i32
  }
  func.func @transform_3(%arg0: i32, %arg1: i32) -> (i32, i32, i32) {
    %c0_i32 = arith.constant 0 : i32
    %c0_i32_0 = arith.constant 0 : i32
    %c0_i32_1 = arith.constant 0 : i32
    %c0_i32_2 = arith.constant 0 : i32
    return %c0_i32, %c0_i32_0, %c0_i32_1 : i32, i32, i32
  }
  func.func @transform_4(%arg0: i32, %arg1: i32) -> (i32, i32) {
    %c0_i32 = arith.constant 0 : i32
    %c0_i32_0 = arith.constant 0 : i32
    %c0_i32_1 = arith.constant 0 : i32
    return %c0_i32, %c0_i32_0 : i32, i32
  }
  func.func @transform_5(%arg0: i32, %arg1: i32) -> (i32, i32) {
    %c0_i32 = arith.constant 0 : i32
    %c0_i32_0 = arith.constant 0 : i32
    %c0_i32_1 = arith.constant 0 : i32
    return %c0_i32, %c0_i32_0 : i32, i32
  }
  func.func @transform_6(%arg0: i32, %arg1: i32) -> (i32, i32) {
    %c0_i32 = arith.constant 0 : i32
    %c0_i32_0 = arith.constant 0 : i32
    %c0_i32_1 = arith.constant 0 : i32
    return %c0_i32, %c0_i32_0 : i32, i32
  }
  func.func @transform_7(%arg0: i32, %arg1: i32) -> (i32, i32, i32) {
    %c0_i32 = arith.constant 0 : i32
    %c0_i32_0 = arith.constant 0 : i32
    return %arg0, %c0_i32, %arg1 : i32, i32, i32
  }
}

</mosaic_0001>

<llo_original>
// kernel: decoder_vit_forward.1
$region0: #{decoder_vit_forward.1}
  #allocation0 [shape = 'u32[]', space=smem, size = 0x4, offset = 0x4, fixed_abs, tag = 'smem constant byte address 0x4 - core index']
  #allocation1 [shape = 'u32[144,128]{1,0:T(1,128)}', space=vmem, size = 0x12000, scoped, tag = 'internal scratch']
  #allocation2 [shape = 'bf16[12,16,384]{2,1,0:T(16,128)(2,1)}', space=vmem, size = 0x24000, scoped, tag = 'scratch operand']
  #allocation3 [shape = 'bf16[10,16,64]{2,1,0:T(16,128)(2,1)}', space=vmem, size = 0xa000, scoped, tag = 'scratch operand']
  %s0 = inlined_call_operand.vmem [shape: bf16[2,16,16,384], index: 0, kind: input, shape index: {}, may-alias: {0,1,2}]
  %s1 = inlined_call_operand.vmem [shape: bf16[2,16,16,384], index: 1, kind: input, shape index: {}, may-alias: {0,1,2}]
  %s2 = inlined_call_operand.vmem [shape: bf16[2,16,16,384], index: 2, kind: input, shape index: {}, may-alias: {0,1,2}]
  %s3 = inlined_call_operand.vmem [shape: bf16[3,384,192], index: 3, kind: input, shape index: {}]
  %s4 = inlined_call_operand.vmem [shape: f32[1,64], index: 4, kind: input, shape index: {}]
  %s5 = inlined_call_operand.vmem [shape: bf16[192,9], index: 5, kind: input, shape index: {}]
  %s6 = inlined_call_operand.vmem [shape: f32[1,3], index: 6, kind: input, shape index: {}]
  %s7 = inlined_call_operand.vmem [shape: f32[2,3,64], index: 7, kind: output, shape index: {}]
  %s8 = sld [smem:[#allocation0]]
  $region61: #{decoder_vit_forward.1} parent=0
    _
  %s10 = ssub.s32 1, %s8
  %s11 = scalar_select 0, %s10, %s8
  loop: start=0, step=1, limit=4
  $region2: #{decoder_vit_forward.1} parent=0 // loop_pre_header
    _
  $region3: #{decoder_vit_forward.1} parent=0 // loop_header
    %s13 = sphi 0, %s17
    %p14 = scmp.ge.s32.totalorder %s13, 4
    %s20 = sphi 0, %s32
    %s21 = sphi 0, %s28
    %s22 = sphi 0, %s20
    %s23 = sphi 0, %s21
    %s24 = sphi 0, %s22
    %s25 = sphi 0, %s23
    %s37 = sphi 0, %s39
    %s40 = sphi 0, %s37
    %s41 = sphi 0, %s40
    %s57 = sphi 0, %s41
    %s77 = sphi 0, %s79
    %s80 = sphi 0, %s77
    %s81 = sphi 0, %s80
    %s97 = sphi 0, %s81
    %s117 = sphi 0, %s119
    %s120 = sphi 0, %s117
    %s121 = sphi 0, %s120
    %s137 = sphi 0, %s121
    %s141 = sphi 0, %s141
    %s143 = sphi 0, %s141
    %s144 = sphi 0, %s143
    %s158 = sphi 0, %s144
    %s162 = sphi 0, %s162
    %s164 = sphi 0, %s162
    %s165 = sphi 0, %s164
    %s179 = sphi 0, %s165
    %s183 = sphi 0, %s183
    %s185 = sphi 0, %s183
    %s186 = sphi 0, %s185
    %s200 = sphi 0, %s186
    %s204 = sphi 0, %s204
    %s206 = sphi 0, %s204
    %s207 = sphi 0, %s206
    %s221 = sphi 0, %s207
    %s229 = sphi 0, %s231
    %s232 = sphi 0, %s229
    %s233 = sphi 0, %s232
    %s249 = sphi 0, %s233
  $region4: #{decoder_vit_forward.1} parent=0 // loop_header_branch
    %16 = sbr.rel (%p14) target = $region8
  $region5: #{decoder_vit_forward.1} parent=0 // loop_body
    %s18 = ssub.s32 %s13, 1
    %s19 = ssub.s32 %s13, 2
    %s26 = sadd.s32 1, %s21
    %p27 = scmp.ge.s32.totalorder %s26, 1
    %s28 = scalar_select %p27, 0, %s26
    %s29 = sadd.s32 1, %s20
    %s30 = scalar_select %p27, %s29, %s20
    %p31 = scmp.ge.s32.totalorder %s30, 2
    %s32 = scalar_select %p31, 0, %s30
    %s33 = ssub.s32 %s20, %s32
    %s34 = ssub.s32 %s21, %s28
    %s35 = sor.u32 %s33, %s34
    %p36 = scmp.eq.s32.totalorder %s35, 0
    %s38 = sadd.s32 %s37, 1
    %s39 = scalar_select %p36, %s37, %s38
    %p42 = pneg %p36
    %p43 = scmp.eq.s32.totalorder %s13, 1
    %p44 = por %p42, %p43
    %p45 = scmp.ne.s32.totalorder %s37, %s40
    %p46 = scmp.eq.s32.totalorder %s13, 0
    %p47 = por %p45, %p46
    %p48 = scmp.ne.s32.totalorder %s37, %s40
    %p49 = scmp.eq.s32.totalorder %s18, 1
    %p50 = por %p48, %p49
    %p51 = scmp.ne.s32.totalorder %s40, %s41
    %p52 = scmp.eq.s32.totalorder %s18, 0
    %p53 = por %p51, %p52
    %p54 = scmp.ne.s32.totalorder %s40, %s41
    %p55 = scmp.eq.s32.totalorder %s19, 1
    %p56 = por %p54, %p55
    %p58 = scmp.ne.s32.totalorder %s41, %s57
    %p59 = scmp.eq.s32.totalorder %s19, 0
    %p60 = por %p58, %p59
    %s61 = smul.u32 %s21, 4
    %s62 = ssub.s32 %s61, 1
    %p63 = scmp.gt.s32.totalorder %s62, 0
    %s64 = scalar_select %p63, %s62, 0
    %p65 = scmp.lt.s32.totalorder %s64, 3
    %s66 = scalar_select %p65, %s64, 3
    %s67 = smul.u32 %s28, 4
    %s68 = ssub.s32 %s67, 1
    %p69 = scmp.gt.s32.totalorder %s68, 0
    %s70 = scalar_select %p69, %s68, 0
    %p71 = scmp.lt.s32.totalorder %s70, 3
    %s72 = scalar_select %p71, %s70, 3
    %s73 = ssub.s32 %s20, %s32
    %s74 = ssub.s32 %s66, %s72
    %s75 = sor.u32 %s73, %s74
    %p76 = scmp.eq.s32.totalorder %s75, 0
    %s78 = sadd.s32 %s77, 1
    %s79 = scalar_select %p76, %s77, %s78
    %p82 = pneg %p76
    %p83 = scmp.eq.s32.totalorder %s13, 1
    %p84 = por %p82, %p83
    %p85 = scmp.ne.s32.totalorder %s77, %s80
    %p86 = scmp.eq.s32.totalorder %s13, 0
    %p87 = por %p85, %p86
    %p88 = scmp.ne.s32.totalorder %s77, %s80
    %p89 = scmp.eq.s32.totalorder %s18, 1
    %p90 = por %p88, %p89
    %p91 = scmp.ne.s32.totalorder %s80, %s81
    %p92 = scmp.eq.s32.totalorder %s18, 0
    %p93 = por %p91, %p92
    %p94 = scmp.ne.s32.totalorder %s80, %s81
    %p95 = scmp.eq.s32.totalorder %s19, 1
    %p96 = por %p94, %p95
    %p98 = scmp.ne.s32.totalorder %s81, %s97
    %p99 = scmp.eq.s32.totalorder %s19, 0
    %p100 = por %p98, %p99
    %s101 = smul.u32 %s21, 4
    %s102 = sadd.s32 %s101, 4
    %p103 = scmp.gt.s32.totalorder %s102, 0
    %s104 = scalar_select %p103, %s102, 0
    %p105 = scmp.lt.s32.totalorder %s104, 3
    %s106 = scalar_select %p105, %s104, 3
    %s107 = smul.u32 %s28, 4
    %s108 = sadd.s32 %s107, 4
    %p109 = scmp.gt.s32.totalorder %s108, 0
    %s110 = scalar_select %p109, %s108, 0
    %p111 = scmp.lt.s32.totalorder %s110, 3
    %s112 = scalar_select %p111, %s110, 3
    %s113 = ssub.s32 %s20, %s32
    %s114 = ssub.s32 %s106, %s112
    %s115 = sor.u32 %s113, %s114
    %p116 = scmp.eq.s32.totalorder %s115, 0
    %s118 = sadd.s32 %s117, 1
    %s119 = scalar_select %p116, %s117, %s118
    %p122 = pneg %p116
    %p123 = scmp.eq.s32.totalorder %s13, 1
    %p124 = por %p122, %p123
    %p125 = scmp.ne.s32.totalorder %s117, %s120
    %p126 = scmp.eq.s32.totalorder %s13, 0
    %p127 = por %p125, %p126
    %p128 = scmp.ne.s32.totalorder %s117, %s120
    %p129 = scmp.eq.s32.totalorder %s18, 1
    %p130 = por %p128, %p129
    %p131 = scmp.ne.s32.totalorder %s120, %s121
    %p132 = scmp.eq.s32.totalorder %s18, 0
    %p133 = por %p131, %p132
    %p134 = scmp.ne.s32.totalorder %s120, %s121
    %p135 = scmp.eq.s32.totalorder %s19, 1
    %p136 = por %p134, %p135
    %p138 = scmp.ne.s32.totalorder %s121, %s137
    %p139 = scmp.eq.s32.totalorder %s19, 0
    %p140 = por %p138, %p139
    %s142 = sadd.s32 %s141, 1
    %p145 = scmp.eq.s32.totalorder %s13, 1
    %p146 = scmp.ne.s32.totalorder %s141, %s143
    %p147 = scmp.eq.s32.totalorder %s13, 0
    %p148 = por %p146, %p147
    %p149 = scmp.ne.s32.totalorder %s141, %s143
    %p150 = scmp.eq.s32.totalorder %s18, 1
    %p151 = por %p149, %p150
    %p152 = scmp.ne.s32.totalorder %s143, %s144
    %p153 = scmp.eq.s32.totalorder %s18, 0
    %p154 = por %p152, %p153
    %p155 = scmp.ne.s32.totalorder %s143, %s144
    %p156 = scmp.eq.s32.totalorder %s19, 1
    %p157 = por %p155, %p156
    %p159 = scmp.ne.s32.totalorder %s144, %s158
    %p160 = scmp.eq.s32.totalorder %s19, 0
    %p161 = por %p159, %p160
    %s163 = sadd.s32 %s162, 1
    %p166 = scmp.eq.s32.totalorder %s13, 1
    %p167 = scmp.ne.s32.totalorder %s162, %s164
    %p168 = scmp.eq.s32.totalorder %s13, 0
    %p169 = por %p167, %p168
    %p170 = scmp.ne.s32.totalorder %s162, %s164
    %p171 = scmp.eq.s32.totalorder %s18, 1
    %p172 = por %p170, %p171
    %p173 = scmp.ne.s32.totalorder %s164, %s165
    %p174 = scmp.eq.s32.totalorder %s18, 0
    %p175 = por %p173, %p174
    %p176 = scmp.ne.s32.totalorder %s164, %s165
    %p177 = scmp.eq.s32.totalorder %s19, 1
    %p178 = por %p176, %p177
    %p180 = scmp.ne.s32.totalorder %s165, %s179
    %p181 = scmp.eq.s32.totalorder %s19, 0
    %p182 = por %p180, %p181
    %s184 = sadd.s32 %s183, 1
    %p187 = scmp.eq.s32.totalorder %s13, 1
    %p188 = scmp.ne.s32.totalorder %s183, %s185
    %p189 = scmp.eq.s32.totalorder %s13, 0
    %p190 = por %p188, %p189
    %p191 = scmp.ne.s32.totalorder %s183, %s185
    %p192 = scmp.eq.s32.totalorder %s18, 1
    %p193 = por %p191, %p192
    %p194 = scmp.ne.s32.totalorder %s185, %s186
    %p195 = scmp.eq.s32.totalorder %s18, 0
    %p196 = por %p194, %p195
    %p197 = scmp.ne.s32.totalorder %s185, %s186
    %p198 = scmp.eq.s32.totalorder %s19, 1
    %p199 = por %p197, %p198
    %p201 = scmp.ne.s32.totalorder %s186, %s200
    %p202 = scmp.eq.s32.totalorder %s19, 0
    %p203 = por %p201, %p202
    %s205 = sadd.s32 %s204, 1
    %p208 = scmp.eq.s32.totalorder %s13, 1
    %p209 = scmp.ne.s32.totalorder %s204, %s206
    %p210 = scmp.eq.s32.totalorder %s13, 0
    %p211 = por %p209, %p210
    %p212 = scmp.ne.s32.totalorder %s204, %s206
    %p213 = scmp.eq.s32.totalorder %s18, 1
    %p214 = por %p212, %p213
    %p215 = scmp.ne.s32.totalorder %s206, %s207
    %p216 = scmp.eq.s32.totalorder %s18, 0
    %p217 = por %p215, %p216
    %p218 = scmp.ne.s32.totalorder %s206, %s207
    %p219 = scmp.eq.s32.totalorder %s19, 1
    %p220 = por %p218, %p219
    %p222 = scmp.ne.s32.totalorder %s207, %s221
    %p223 = scmp.eq.s32.totalorder %s19, 0
    %p224 = por %p222, %p223
    %s225 = ssub.s32 %s20, %s32
    %s226 = ssub.s32 %s21, %s28
    %s227 = sor.u32 %s225, %s226
    %p228 = scmp.eq.s32.totalorder %s227, 0
    %s230 = sadd.s32 %s229, 1
    %s231 = scalar_select %p228, %s229, %s230
    %p234 = pneg %p228
    %p235 = scmp.eq.s32.totalorder %s13, 1
    %p236 = por %p234, %p235
    %p237 = scmp.ne.s32.totalorder %s229, %s232
    %p238 = scmp.eq.s32.totalorder %s13, 0
    %p239 = por %p237, %p238
    %p240 = scmp.ne.s32.totalorder %s229, %s232
    %p241 = scmp.eq.s32.totalorder %s18, 1
    %p242 = por %p240, %p241
    %p243 = scmp.ne.s32.totalorder %s232, %s233
    %p244 = scmp.eq.s32.totalorder %s18, 0
    %p245 = por %p243, %p244
    %p246 = scmp.ne.s32.totalorder %s232, %s233
    %p247 = scmp.eq.s32.totalorder %s19, 1
    %p248 = por %p246, %p247
    %p250 = scmp.ne.s32.totalorder %s233, %s249
    %p251 = scmp.eq.s32.totalorder %s19, 0
    %p252 = por %p250, %p251
    %p253 = scmp.le.s32.totalorder 1, %s13
    %p254 = scmp.lt.s32.totalorder %s13, 3
    %p255 = pnand %p253, %p254
    %p256 = pneg %p255
    // Predicated region
    $region9: #{decoder_vit_forward.1} parent=5 // pred_check
      _
    $region10: #{decoder_vit_forward.1} parent=5 // pred_check_branch
      %258 = sbr.rel (%p255) target = $region12
    $region11: #{decoder_vit_forward.1} parent=5 // pred_region
      %s259 = ssub.s32 %s13, 1
      // Predicated region
      $region13: #{decoder_vit_forward.1} parent=11 // pred_check
        %p260 = pneg %p154
      $region14: #{decoder_vit_forward.1} parent=11 // pred_check_branch
        %262 = sbr.rel (%p260) target = $region16
      $region15: #{decoder_vit_forward.1} parent=11 // pred_region
        _
      $region16: #{decoder_vit_forward.1} parent=11 // pred_fallthru
        _
      // Predicated region
      $region17: #{decoder_vit_forward.1} parent=11 // pred_check
        %p263 = pneg %p175
      $region18: #{decoder_vit_forward.1} parent=11 // pred_check_branch
        %265 = sbr.rel (%p263) target = $region20
      $region19: #{decoder_vit_forward.1} parent=11 // pred_region
        _
      $region20: #{decoder_vit_forward.1} parent=11 // pred_fallthru
        _
      // Predicated region
      $region21: #{decoder_vit_forward.1} parent=11 // pred_check
        %p266 = pneg %p196
      $region22: #{decoder_vit_forward.1} parent=11 // pred_check_branch
        %268 = sbr.rel (%p266) target = $region24
      $region23: #{decoder_vit_forward.1} parent=11 // pred_region
        _
      $region24: #{decoder_vit_forward.1} parent=11 // pred_fallthru
        _
      // Predicated region
      $region25: #{decoder_vit_forward.1} parent=11 // pred_check
        %p269 = pneg %p217
      $region26: #{decoder_vit_forward.1} parent=11 // pred_check_branch
        %271 = sbr.rel (%p269) target = $region28
      $region27: #{decoder_vit_forward.1} parent=11 // pred_region
        _
      $region28: #{decoder_vit_forward.1} parent=11 // pred_fallthru
        _
    $region12: #{decoder_vit_forward.1} parent=5 // pred_fallthru
      _
    %p272 = scmp.lt.s32.totalorder %s13, 2
    // Predicated region
    $region29: #{decoder_vit_forward.1} parent=5 // pred_check
      %p273 = pneg %p272
    $region30: #{decoder_vit_forward.1} parent=5 // pred_check_branch
      %275 = sbr.rel (%p273) target = $region32
    $region31: #{decoder_vit_forward.1} parent=5 // pred_region
      // Predicated region
      $region33: #{decoder_vit_forward.1} parent=31 // pred_check
        %p276 = pneg %p47
      $region34: #{decoder_vit_forward.1} parent=31 // pred_check_branch
        %278 = sbr.rel (%p276) target = $region36
      $region35: #{decoder_vit_forward.1} parent=31 // pred_region
        %s279 = smul.u32 16, %s21
        %p280 = scmp.lt.s32.totalorder %s20, 1
        %s281 = scalar_select %p280, %s20, 1
        %p282 = scmp.lt.s32.totalorder %s279, 15
        %s283 = scalar_select %p282, %s279, 15
        %s284 = smul.addr %s283, 6
        %s285 = smul.addr %s281, 96
        %s286 = sadd.s32 %s284, %s285
        %s287 = smul.addr %s286, 4
        %s288 = scalar_lea.vmem %s0, %s287
        %s289 = smul.u32 16, %s21
      $region36: #{decoder_vit_forward.1} parent=31 // pred_fallthru
        _
      // Predicated region
      $region37: #{decoder_vit_forward.1} parent=31 // pred_check
        %p290 = pneg %p87
      $region38: #{decoder_vit_forward.1} parent=31 // pred_check_branch
        %292 = sbr.rel (%p290) target = $region40
      $region39: #{decoder_vit_forward.1} parent=31 // pred_region
        %s293 = smul.u32 %s21, 4
        %s294 = ssub.s32 %s293, 1
        %p295 = scmp.gt.s32.totalorder %s294, 0
        %s296 = scalar_select %p295, %s294, 0
        %p297 = scmp.lt.s32.totalorder %s296, 3
        %s298 = scalar_select %p297, %s296, 3
        %s299 = smul.u32 4, %s298
        %p300 = scmp.lt.s32.totalorder %s20, 1
        %s301 = scalar_select %p300, %s20, 1
        %p302 = scmp.lt.s32.totalorder %s299, 15
        %s303 = scalar_select %p302, %s299, 15
        %s304 = smul.addr %s303, 6
        %s305 = smul.addr %s301, 96
        %s306 = sadd.s32 %s304, %s305
        %s307 = smul.addr %s306, 4
        %s308 = scalar_lea.vmem %s1, %s307
        %s309 = smul.u32 %s21, 4
        %s310 = ssub.s32 %s309, 1
        %p311 = scmp.gt.s32.totalorder %s310, 0
        %s312 = scalar_select %p311, %s310, 0
        %p313 = scmp.lt.s32.totalorder %s312, 3
        %s314 = scalar_select %p313, %s312, 3
        %s315 = smul.u32 4, %s314
      $region40: #{decoder_vit_forward.1} parent=31 // pred_fallthru
        _
      // Predicated region
      $region41: #{decoder_vit_forward.1} parent=31 // pred_check
        %p316 = pneg %p127
      $region42: #{decoder_vit_forward.1} parent=31 // pred_check_branch
        %318 = sbr.rel (%p316) target = $region44
      $region43: #{decoder_vit_forward.1} parent=31 // pred_region
        %s319 = smul.u32 %s21, 4
        %s320 = sadd.s32 %s319, 4
        %p321 = scmp.gt.s32.totalorder %s320, 0
        %s322 = scalar_select %p321, %s320, 0
        %p323 = scmp.lt.s32.totalorder %s322, 3
        %s324 = scalar_select %p323, %s322, 3
        %s325 = smul.u32 4, %s324
        %p326 = scmp.lt.s32.totalorder %s20, 1
        %s327 = scalar_select %p326, %s20, 1
        %p328 = scmp.lt.s32.totalorder %s325, 15
        %s329 = scalar_select %p328, %s325, 15
        %s330 = smul.addr %s329, 6
        %s331 = smul.addr %s327, 96
        %s332 = sadd.s32 %s330, %s331
        %s333 = smul.addr %s332, 4
        %s334 = scalar_lea.vmem %s2, %s333
        %s335 = smul.u32 %s21, 4
        %s336 = sadd.s32 %s335, 4
        %p337 = scmp.gt.s32.totalorder %s336, 0
        %s338 = scalar_select %p337, %s336, 0
        %p339 = scmp.lt.s32.totalorder %s338, 3
        %s340 = scalar_select %p339, %s338, 3
        %s341 = smul.u32 4, %s340
      $region44: #{decoder_vit_forward.1} parent=31 // pred_fallthru
        _
    $region32: #{decoder_vit_forward.1} parent=5 // pred_fallthru
      _
    %p342 = scmp.le.s32.totalorder 1, %s13
    %p343 = scmp.lt.s32.totalorder %s13, 3
    %p344 = pnand %p342, %p343
    %p345 = pneg %p344
    // Predicated region
    $region45: #{decoder_vit_forward.1} parent=5 // pred_check
      _
    $region46: #{decoder_vit_forward.1} parent=5 // pred_check_branch
      %347 = sbr.rel (%p344) target = $region48
    $region47: #{decoder_vit_forward.1} parent=5 // pred_region
      %s348 = ssub.s32 %s13, 1
      %s349 = smul.u32 16, %s23
      %p350 = scmp.lt.s32.totalorder %s22, 1
      %s351 = scalar_select %p350, %s22, 1
      %p352 = scmp.lt.s32.totalorder %s349, 15
      %s353 = scalar_select %p352, %s349, 15
      %s354 = smul.addr %s353, 6
      %s355 = smul.addr %s351, 96
      %s356 = sadd.s32 %s354, %s355
      %s357 = smul.addr %s356, 4
      %s358 = scalar_lea.vmem %s0, %s357
      %p359 = pneg %p53
      %p360 = pneg %p50
      %s361 = smul.u32 %s23, 4
      %s362 = ssub.s32 %s361, 1
      %p363 = scmp.gt.s32.totalorder %s362, 0
      %s364 = scalar_select %p363, %s362, 0
      %p365 = scmp.lt.s32.totalorder %s364, 3
      %s366 = scalar_select %p365, %s364, 3
      %s367 = smul.u32 4, %s366
      %p368 = scmp.lt.s32.totalorder %s22, 1
      %s369 = scalar_select %p368, %s22, 1
      %p370 = scmp.lt.s32.totalorder %s367, 15
      %s371 = scalar_select %p370, %s367, 15
      %s372 = smul.addr %s371, 6
      %s373 = smul.addr %s369, 96
      %s374 = sadd.s32 %s372, %s373
      %s375 = smul.addr %s374, 4
      %s376 = scalar_lea.vmem %s1, %s375
      %p377 = pneg %p93
      %p378 = pneg %p90
      %s379 = smul.u32 %s23, 4
      %s380 = sadd.s32 %s379, 4
      %p381 = scmp.gt.s32.totalorder %s380, 0
      %s382 = scalar_select %p381, %s380, 0
      %p383 = scmp.lt.s32.totalorder %s382, 3
      %s384 = scalar_select %p383, %s382, 3
      %s385 = smul.u32 4, %s384
      %p386 = scmp.lt.s32.totalorder %s22, 1
      %s387 = scalar_select %p386, %s22, 1
      %p388 = scmp.lt.s32.totalorder %s385, 15
      %s389 = scalar_select %p388, %s385, 15
      %s390 = smul.addr %s389, 6
      %s391 = smul.addr %s387, 96
      %s392 = sadd.s32 %s390, %s391
      %s393 = smul.addr %s392, 4
      %s394 = scalar_lea.vmem %s2, %s393
      %p395 = pneg %p133
      %p396 = pneg %p130
      %p397 = pneg %p154
      %p398 = pneg %p151
      %p399 = pneg %p175
      %p400 = pneg %p172
      %p401 = pneg %p196
      %p402 = pneg %p193
      %p403 = pneg %p217
      %p404 = pneg %p214
      %p405 = pneg %p245
      %p406 = pneg %p242
      %p407 = scmp.lt.s32.totalorder %s22, 1
      %s408 = scalar_select %p407, %s22, 1
      %p409 = scmp.lt.s32.totalorder %s23, 0
      %s410 = scalar_select %p409, %s23, 0
      %s411 = sadd.s32 %s410, %s408
      %s412 = smul.addr %s411, 4
      %s413 = scalar_lea.vmem %s7, %s412
      %s414 = smul.u32 16, %s23
      %p415 = scmp.lt.s32.totalorder %s22, 1
      %s416 = scalar_select %p415, %s22, 1
      %p417 = scmp.lt.s32.totalorder %s414, 15
      %s418 = scalar_select %p417, %s414, 15
      %s419 = smul.addr %s418, 6
      %s420 = smul.addr %s416, 96
      %s421 = sadd.s32 %s419, %s420
      %s422 = smul.addr %s421, 4
      %s423 = scalar_lea.vmem %s0, %s422
      %s424 = smul.u32 16, %s23
      %s425 = smul.u32 %s23, 4
      %s426 = ssub.s32 %s425, 1
      %p427 = scmp.gt.s32.totalorder %s426, 0
      %s428 = scalar_select %p427, %s426, 0
      %p429 = scmp.lt.s32.totalorder %s428, 3
      %s430 = scalar_select %p429, %s428, 3
      %s431 = smul.u32 4, %s430
      %p432 = scmp.lt.s32.totalorder %s22, 1
      %s433 = scalar_select %p432, %s22, 1
      %p434 = scmp.lt.s32.totalorder %s431, 15
      %s435 = scalar_select %p434, %s431, 15
      %s436 = smul.addr %s435, 6
      %s437 = smul.addr %s433, 96
      %s438 = sadd.s32 %s436, %s437
      %s439 = smul.addr %s438, 4
      %s440 = scalar_lea.vmem %s1, %s439
      %s441 = smul.u32 %s23, 4
      %s442 = ssub.s32 %s441, 1
      %p443 = scmp.gt.s32.totalorder %s442, 0
      %s444 = scalar_select %p443, %s442, 0
      %p445 = scmp.lt.s32.totalorder %s444, 3
      %s446 = scalar_select %p445, %s444, 3
      %s447 = smul.u32 4, %s446
      %s448 = smul.u32 %s23, 4
      %s449 = sadd.s32 %s448, 4
      %p450 = scmp.gt.s32.totalorder %s449, 0
      %s451 = scalar_select %p450, %s449, 0
      %p452 = scmp.lt.s32.totalorder %s451, 3
      %s453 = scalar_select %p452, %s451, 3
      %s454 = smul.u32 4, %s453
      %p455 = scmp.lt.s32.totalorder %s22, 1
      %s456 = scalar_select %p455, %s22, 1
      %p457 = scmp.lt.s32.totalorder %s454, 15
      %s458 = scalar_select %p457, %s454, 15
      %s459 = smul.addr %s458, 6
      %s460 = smul.addr %s456, 96
      %s461 = sadd.s32 %s459, %s460
      %s462 = smul.addr %s461, 4
      %s463 = scalar_lea.vmem %s2, %s462
      %s464 = smul.u32 %s23, 4
      %s465 = sadd.s32 %s464, 4
      %p466 = scmp.gt.s32.totalorder %s465, 0
      %s467 = scalar_select %p466, %s465, 0
      %p468 = scmp.lt.s32.totalorder %s467, 3
      %s469 = scalar_select %p468, %s467, 3
      %s470 = smul.u32 4, %s469
      %p471 = scmp.lt.s32.totalorder %s22, 1
      %s472 = scalar_select %p471, %s22, 1
      %p473 = scmp.lt.s32.totalorder %s23, 0
      %s474 = scalar_select %p473, %s23, 0
      %s475 = sadd.s32 %s474, %s472
      %s476 = smul.addr %s475, 4
      %s477 = scalar_lea.vmem %s7, %s476
      %s480 = smul.u32 %s23, 8
      %vm481 = vcmask 1040384
      %vm482 = vsmask.f32 256
      %vm483 = vmand %vm481, %vm482
      %v484 = vld [vmem:[#allocation2] sm:$0x1]
      %v485 = vsel %vm483, 0, %v484
      %486 = vst [vmem:[#allocation2] sm:$0x1] %v485
      %v487 = vld [vmem:[#allocation2 + $0x8] sm:$0x1]
      %v488 = vsel %vm483, 0, %v487
      %489 = vst [vmem:[#allocation2 + $0x8] sm:$0x1] %v488
      %v490 = vld [vmem:[#allocation2 + $0x10] sm:$0x1]
      %v491 = vsel %vm483, 0, %v490
      %492 = vst [vmem:[#allocation2 + $0x10] sm:$0x1] %v491
      %v493 = vld [vmem:[#allocation2 + $0x18] sm:$0x1]
      %v494 = vsel %vm483, 0, %v493
      %495 = vst [vmem:[#allocation2 + $0x18] sm:$0x1] %v494
      %v496 = vld [vmem:[#allocation2 + $0x20] sm:$0x1]
      %v497 = vsel %vm483, 0, %v496
      %498 = vst [vmem:[#allocation2 + $0x20] sm:$0x1] %v497
      %v499 = vld [vmem:[#allocation2 + $0x28] sm:$0x1]
      %v500 = vsel %vm483, 0, %v499
      %501 = vst [vmem:[#allocation2 + $0x28] sm:$0x1] %v500
      %v502 = vld [vmem:[#allocation2 + $0x30] sm:$0x1]
      %v503 = vsel %vm483, 0, %v502
      %504 = vst [vmem:[#allocation2 + $0x30] sm:$0x1] %v503
      %v505 = vld [vmem:[#allocation2 + $0x38] sm:$0x1]
      %v506 = vsel %vm483, 0, %v505
      %507 = vst [vmem:[#allocation2 + $0x38] sm:$0x1] %v506
      %v508 = vld [vmem:[#allocation2 + $0x40] sm:$0x1]
      %v509 = vsel %vm483, 0, %v508
      %510 = vst [vmem:[#allocation2 + $0x40] sm:$0x1] %v509
      %v511 = vld [vmem:[#allocation2 + $0x48] sm:$0x1]
      %v512 = vsel %vm483, 0, %v511
      %513 = vst [vmem:[#allocation2 + $0x48] sm:$0x1] %v512
      %v514 = vld [vmem:[#allocation2 + $0x50] sm:$0x1]
      %v515 = vsel %vm483, 0, %v514
      %516 = vst [vmem:[#allocation2 + $0x50] sm:$0x1] %v515
      %v517 = vld [vmem:[#allocation2 + $0x58] sm:$0x1]
      %v518 = vsel %vm483, 0, %v517
      %519 = vst [vmem:[#allocation2 + $0x58] sm:$0x1] %v518
      %v520 = vld [vmem:[#allocation2 + $0x60] sm:$0x1]
      %v521 = vsel %vm483, 0, %v520
      %522 = vst [vmem:[#allocation2 + $0x60] sm:$0x1] %v521
      %v523 = vld [vmem:[#allocation2 + $0x68] sm:$0x1]
      %v524 = vsel %vm483, 0, %v523
      %525 = vst [vmem:[#allocation2 + $0x68] sm:$0x1] %v524
      %v526 = vld [vmem:[#allocation2 + $0x70] sm:$0x1]
      %v527 = vsel %vm483, 0, %v526
      %528 = vst [vmem:[#allocation2 + $0x70] sm:$0x1] %v527
      %v529 = vld [vmem:[#allocation2 + $0x78] sm:$0x1]
      %v530 = vsel %vm483, 0, %v529
      %531 = vst [vmem:[#allocation2 + $0x78] sm:$0x1] %v530
      %v532 = vld [vmem:[#allocation2 + $0x80] sm:$0x1]
      %v533 = vsel %vm483, 0, %v532
      %534 = vst [vmem:[#allocation2 + $0x80] sm:$0x1] %v533
      %v535 = vld [vmem:[#allocation2 + $0x88] sm:$0x1]
      %v536 = vsel %vm483, 0, %v535
      %537 = vst [vmem:[#allocation2 + $0x88] sm:$0x1] %v536
      %v538 = vld [vmem:[#allocation2 + $0x90] sm:$0x1]
      %v539 = vsel %vm483, 0, %v538
      %540 = vst [vmem:[#allocation2 + $0x90] sm:$0x1] %v539
      %v541 = vld [vmem:[#allocation2 + $0x98] sm:$0x1]
      %v542 = vsel %vm483, 0, %v541
      %543 = vst [vmem:[#allocation2 + $0x98] sm:$0x1] %v542
      %v544 = vld [vmem:[#allocation2 + $0xa0] sm:$0x1]
      %v545 = vsel %vm483, 0, %v544
      %546 = vst [vmem:[#allocation2 + $0xa0] sm:$0x1] %v545
      %v547 = vld [vmem:[#allocation2 + $0xa8] sm:$0x1]
      %v548 = vsel %vm483, 0, %v547
      %549 = vst [vmem:[#allocation2 + $0xa8] sm:$0x1] %v548
      %v550 = vld [vmem:[#allocation2 + $0xb0] sm:$0x1]
      %v551 = vsel %vm483, 0, %v550
      %552 = vst [vmem:[#allocation2 + $0xb0] sm:$0x1] %v551
      %v553 = vld [vmem:[#allocation2 + $0xb8] sm:$0x1]
      %v554 = vsel %vm483, 0, %v553
      %555 = vst [vmem:[#allocation2 + $0xb8] sm:$0x1] %v554
      %v556 = vld [vmem:[#allocation2 + $0xc0] sm:$0x1]
      %v557 = vsel %vm483, 0, %v556
      %558 = vst [vmem:[#allocation2 + $0xc0] sm:$0x1] %v557
      %v559 = vld [vmem:[#allocation2 + $0xc8] sm:$0x1]
      %v560 = vsel %vm483, 0, %v559
      %561 = vst [vmem:[#allocation2 + $0xc8] sm:$0x1] %v560
      %v562 = vld [vmem:[#allocation2 + $0xd0] sm:$0x1]
      %v563 = vsel %vm483, 0, %v562
      %564 = vst [vmem:[#allocation2 + $0xd0] sm:$0x1] %v563
      %v565 = vld [vmem:[#allocation2 + $0xd8] sm:$0x1]
      %v566 = vsel %vm483, 0, %v565
      %567 = vst [vmem:[#allocation2 + $0xd8] sm:$0x1] %v566
      %v568 = vld [vmem:[#allocation2 + $0xe0] sm:$0x1]
      %v569 = vsel %vm483, 0, %v568
      %570 = vst [vmem:[#allocation2 + $0xe0] sm:$0x1] %v569
      %v571 = vld [vmem:[#allocation2 + $0xe8] sm:$0x1]
      %v572 = vsel %vm483, 0, %v571
      %573 = vst [vmem:[#allocation2 + $0xe8] sm:$0x1] %v572
      %v574 = vld [vmem:[#allocation2 + $0xf0] sm:$0x1]
      %v575 = vsel %vm483, 0, %v574
      %576 = vst [vmem:[#allocation2 + $0xf0] sm:$0x1] %v575
      %v577 = vld [vmem:[#allocation2 + $0xf8] sm:$0x1]
      %v578 = vsel %vm483, 0, %v577
      %579 = vst [vmem:[#allocation2 + $0xf8] sm:$0x1] %v578
      %v580 = vld [vmem:[#allocation2 + $0x100] sm:$0x1]
      %v581 = vsel %vm483, 0, %v580
      %582 = vst [vmem:[#allocation2 + $0x100] sm:$0x1] %v581
      %v583 = vld [vmem:[#allocation2 + $0x108] sm:$0x1]
      %v584 = vsel %vm483, 0, %v583
      %585 = vst [vmem:[#allocation2 + $0x108] sm:$0x1] %v584
      %v586 = vld [vmem:[#allocation2 + $0x110] sm:$0x1]
      %v587 = vsel %vm483, 0, %v586
      %588 = vst [vmem:[#allocation2 + $0x110] sm:$0x1] %v587
      %v589 = vld [vmem:[#allocation2 + $0x118] sm:$0x1]
      %v590 = vsel %vm483, 0, %v589
      %591 = vst [vmem:[#allocation2 + $0x118] sm:$0x1] %v590
      %vm592 = vcmask 1047556
      %vm593 = vsmask.f32 7954
      %vm594 = vmand %vm592, %vm593
      %v595 = vld [vmem:[#allocation2] sm:$0xf0]
      %v596 = vsel %vm594, 0, %v595
      %597 = vst [vmem:[#allocation2] sm:$0xf0] %v596
      %v598 = vld [vmem:[#allocation2 + $0x8] sm:$0xf0]
      %v599 = vsel %vm594, 0, %v598
      %600 = vst [vmem:[#allocation2 + $0x8] sm:$0xf0] %v599
      %v601 = vld [vmem:[#allocation2 + $0x10] sm:$0xf0]
      %v602 = vsel %vm594, 0, %v601
      %603 = vst [vmem:[#allocation2 + $0x10] sm:$0xf0] %v602
      %v604 = vld [vmem:[#allocation2 + $0x18] sm:$0xf0]
      %v605 = vsel %vm594, 0, %v604
      %606 = vst [vmem:[#allocation2 + $0x18] sm:$0xf0] %v605
      %v607 = vld [vmem:[#allocation2 + $0x20] sm:$0xf0]
      %v608 = vsel %vm594, 0, %v607
      %609 = vst [vmem:[#allocation2 + $0x20] sm:$0xf0] %v608
      %v610 = vld [vmem:[#allocation2 + $0x28] sm:$0xf0]
      %v611 = vsel %vm594, 0, %v610
      %612 = vst [vmem:[#allocation2 + $0x28] sm:$0xf0] %v611
      %v613 = vld [vmem:[#allocation2 + $0x30] sm:$0xf0]
      %v614 = vsel %vm594, 0, %v613
      %615 = vst [vmem:[#allocation2 + $0x30] sm:$0xf0] %v614
      %v616 = vld [vmem:[#allocation2 + $0x38] sm:$0xf0]
      %v617 = vsel %vm594, 0, %v616
      %618 = vst [vmem:[#allocation2 + $0x38] sm:$0xf0] %v617
      %v619 = vld [vmem:[#allocation2 + $0x40] sm:$0xf0]
      %v620 = vsel %vm594, 0, %v619
      %621 = vst [vmem:[#allocation2 + $0x40] sm:$0xf0] %v620
      %v622 = vld [vmem:[#allocation2 + $0x48] sm:$0xf0]
      %v623 = vsel %vm594, 0, %v622
      %624 = vst [vmem:[#allocation2 + $0x48] sm:$0xf0] %v623
      %v625 = vld [vmem:[#allocation2 + $0x50] sm:$0xf0]
      %v626 = vsel %vm594, 0, %v625
      %627 = vst [vmem:[#allocation2 + $0x50] sm:$0xf0] %v626
      %v628 = vld [vmem:[#allocation2 + $0x58] sm:$0xf0]
      %v629 = vsel %vm594, 0, %v628
      %630 = vst [vmem:[#allocation2 + $0x58] sm:$0xf0] %v629
      %v631 = vld [vmem:[#allocation2 + $0x60] sm:$0xf0]
      %v632 = vsel %vm594, 0, %v631
      %633 = vst [vmem:[#allocation2 + $0x60] sm:$0xf0] %v632
      %v634 = vld [vmem:[#allocation2 + $0x68] sm:$0xf0]
      %v635 = vsel %vm594, 0, %v634
      %636 = vst [vmem:[#allocation2 + $0x68] sm:$0xf0] %v635
      %v637 = vld [vmem:[#allocation2 + $0x70] sm:$0xf0]
      %v638 = vsel %vm594, 0, %v637
      %639 = vst [vmem:[#allocation2 + $0x70] sm:$0xf0] %v638
      %v640 = vld [vmem:[#allocation2 + $0x78] sm:$0xf0]
      %v641 = vsel %vm594, 0, %v640
      %642 = vst [vmem:[#allocation2 + $0x78] sm:$0xf0] %v641
      %v643 = vld [vmem:[#allocation2 + $0x80] sm:$0xf0]
      %v644 = vsel %vm594, 0, %v643
      %645 = vst [vmem:[#allocation2 + $0x80] sm:$0xf0] %v644
      %v646 = vld [vmem:[#allocation2 + $0x88] sm:$0xf0]
      %v647 = vsel %vm594, 0, %v646
      %648 = vst [vmem:[#allocation2 + $0x88] sm:$0xf0] %v647
      %v649 = vld [vmem:[#allocation2 + $0x90] sm:$0xf0]
      %v650 = vsel %vm594, 0, %v649
      %651 = vst [vmem:[#allocation2 + $0x90] sm:$0xf0] %v650
      %v652 = vld [vmem:[#allocation2 + $0x98] sm:$0xf0]
      %v653 = vsel %vm594, 0, %v652
      %654 = vst [vmem:[#allocation2 + $0x98] sm:$0xf0] %v653
      %v655 = vld [vmem:[#allocation2 + $0xa0] sm:$0xf0]
      %v656 = vsel %vm594, 0, %v655
      %657 = vst [vmem:[#allocation2 + $0xa0] sm:$0xf0] %v656
      %v658 = vld [vmem:[#allocation2 + $0xa8] sm:$0xf0]
      %v659 = vsel %vm594, 0, %v658
      %660 = vst [vmem:[#allocation2 + $0xa8] sm:$0xf0] %v659
      %v661 = vld [vmem:[#allocation2 + $0xb0] sm:$0xf0]
      %v662 = vsel %vm594, 0, %v661
      %663 = vst [vmem:[#allocation2 + $0xb0] sm:$0xf0] %v662
      %v664 = vld [vmem:[#allocation2 + $0xb8] sm:$0xf0]
      %v665 = vsel %vm594, 0, %v664
      %666 = vst [vmem:[#allocation2 + $0xb8] sm:$0xf0] %v665
      %v667 = vld [vmem:[#allocation2 + $0xc0] sm:$0xf0]
      %v668 = vsel %vm594, 0, %v667
      %669 = vst [vmem:[#allocation2 + $0xc0] sm:$0xf0] %v668
      %v670 = vld [vmem:[#allocation2 + $0xc8] sm:$0xf0]
      %v671 = vsel %vm594, 0, %v670
      %672 = vst [vmem:[#allocation2 + $0xc8] sm:$0xf0] %v671
      %v673 = vld [vmem:[#allocation2 + $0xd0] sm:$0xf0]
      %v674 = vsel %vm594, 0, %v673
      %675 = vst [vmem:[#allocation2 + $0xd0] sm:$0xf0] %v674
      %v676 = vld [vmem:[#allocation2 + $0xd8] sm:$0xf0]
      %v677 = vsel %vm594, 0, %v676
      %678 = vst [vmem:[#allocation2 + $0xd8] sm:$0xf0] %v677
      %v679 = vld [vmem:[#allocation2 + $0xe0] sm:$0xf0]
      %v680 = vsel %vm594, 0, %v679
      %681 = vst [vmem:[#allocation2 + $0xe0] sm:$0xf0] %v680
      %v682 = vld [vmem:[#allocation2 + $0xe8] sm:$0xf0]
      %v683 = vsel %vm594, 0, %v682
      %684 = vst [vmem:[#allocation2 + $0xe8] sm:$0xf0] %v683
      %v685 = vld [vmem:[#allocation2 + $0xf0] sm:$0xf0]
      %v686 = vsel %vm594, 0, %v685
      %687 = vst [vmem:[#allocation2 + $0xf0] sm:$0xf0] %v686
      %v688 = vld [vmem:[#allocation2 + $0xf8] sm:$0xf0]
      %v689 = vsel %vm594, 0, %v688
      %690 = vst [vmem:[#allocation2 + $0xf8] sm:$0xf0] %v689
      %v691 = vld [vmem:[#allocation2 + $0x100] sm:$0xf0]
      %v692 = vsel %vm594, 0, %v691
      %693 = vst [vmem:[#allocation2 + $0x100] sm:$0xf0] %v692
      %v694 = vld [vmem:[#allocation2 + $0x108] sm:$0xf0]
      %v695 = vsel %vm594, 0, %v694
      %696 = vst [vmem:[#allocation2 + $0x108] sm:$0xf0] %v695
      %v697 = vld [vmem:[#allocation2 + $0x110] sm:$0xf0]
      %v698 = vsel %vm594, 0, %v697
      %699 = vst [vmem:[#allocation2 + $0x110] sm:$0xf0] %v698
      %v700 = vld [vmem:[#allocation2 + $0x118] sm:$0xf0]
      %v701 = vsel %vm594, 0, %v700
      %702 = vst [vmem:[#allocation2 + $0x118] sm:$0xf0] %v701
      %vm703 = vcmask 516096
      %vm704 = vmand %vm703, %vm482
      %v705 = vld [vmem:[#allocation3] sm:$0x1]
      %v706 = vsel %vm704, 0, %v705
      %707 = vst [vmem:[#allocation3] sm:$0x1] %v706
      %v708 = vld [vmem:[#allocation3 + $0x8] sm:$0x1]
      %v709 = vsel %vm704, 0, %v708
      %710 = vst [vmem:[#allocation3 + $0x8] sm:$0x1] %v709
      %v711 = vld [vmem:[#allocation3 + $0x10] sm:$0x1]
      %v712 = vsel %vm704, 0, %v711
      %713 = vst [vmem:[#allocation3 + $0x10] sm:$0x1] %v712
      %v714 = vld [vmem:[#allocation3 + $0x18] sm:$0x1]
      %v715 = vsel %vm704, 0, %v714
      %716 = vst [vmem:[#allocation3 + $0x18] sm:$0x1] %v715
      %v717 = vld [vmem:[#allocation3 + $0x20] sm:$0x1]
      %v718 = vsel %vm704, 0, %v717
      %719 = vst [vmem:[#allocation3 + $0x20] sm:$0x1] %v718
      %v720 = vld [vmem:[#allocation3 + $0x28] sm:$0x1]
      %v721 = vsel %vm704, 0, %v720
      %722 = vst [vmem:[#allocation3 + $0x28] sm:$0x1] %v721
      %v723 = vld [vmem:[#allocation3 + $0x30] sm:$0x1]
      %v724 = vsel %vm704, 0, %v723
      %725 = vst [vmem:[#allocation3 + $0x30] sm:$0x1] %v724
      %v726 = vld [vmem:[#allocation3 + $0x38] sm:$0x1]
      %v727 = vsel %vm704, 0, %v726
      %728 = vst [vmem:[#allocation3 + $0x38] sm:$0x1] %v727
      %v729 = vld [vmem:[#allocation3 + $0x40] sm:$0x1]
      %v730 = vsel %vm704, 0, %v729
      %731 = vst [vmem:[#allocation3 + $0x40] sm:$0x1] %v730
      %v732 = vld [vmem:[#allocation3 + $0x48] sm:$0x1]
      %v733 = vsel %vm704, 0, %v732
      %734 = vst [vmem:[#allocation3 + $0x48] sm:$0x1] %v733
      %vm735 = vcmask 523268
      %vm736 = vmand %vm735, %vm593
      %v737 = vld [vmem:[#allocation3] sm:$0xf0]
      %v738 = vsel %vm736, 0, %v737
      %739 = vst [vmem:[#allocation3] sm:$0xf0] %v738
      %v740 = vld [vmem:[#allocation3 + $0x8] sm:$0xf0]
      %v741 = vsel %vm736, 0, %v740
      %742 = vst [vmem:[#allocation3 + $0x8] sm:$0xf0] %v741
      %v743 = vld [vmem:[#allocation3 + $0x10] sm:$0xf0]
      %v744 = vsel %vm736, 0, %v743
      %745 = vst [vmem:[#allocation3 + $0x10] sm:$0xf0] %v744
      %v746 = vld [vmem:[#allocation3 + $0x18] sm:$0xf0]
      %v747 = vsel %vm736, 0, %v746
      %748 = vst [vmem:[#allocation3 + $0x18] sm:$0xf0] %v747
      %v749 = vld [vmem:[#allocation3 + $0x20] sm:$0xf0]
      %v750 = vsel %vm736, 0, %v749
      %751 = vst [vmem:[#allocation3 + $0x20] sm:$0xf0] %v750
      %v752 = vld [vmem:[#allocation3 + $0x28] sm:$0xf0]
      %v753 = vsel %vm736, 0, %v752
      %754 = vst [vmem:[#allocation3 + $0x28] sm:$0xf0] %v753
      %v755 = vld [vmem:[#allocation3 + $0x30] sm:$0xf0]
      %v756 = vsel %vm736, 0, %v755
      %757 = vst [vmem:[#allocation3 + $0x30] sm:$0xf0] %v756
      %v758 = vld [vmem:[#allocation3 + $0x38] sm:$0xf0]
      %v759 = vsel %vm736, 0, %v758
      %760 = vst [vmem:[#allocation3 + $0x38] sm:$0xf0] %v759
      %v761 = vld [vmem:[#allocation3 + $0x40] sm:$0xf0]
      %v762 = vsel %vm736, 0, %v761
      %763 = vst [vmem:[#allocation3 + $0x40] sm:$0xf0] %v762
      %v764 = vld [vmem:[#allocation3 + $0x48] sm:$0xf0]
      %v765 = vsel %vm736, 0, %v764
      %766 = vst [vmem:[#allocation3 + $0x48] sm:$0xf0] %v765
      %v767 = vld [vmem:[%s423] sm:$0xff]
      %v768 = vld [vmem:[%s423 + $0x8] sm:$0xf]
      %v769 = vld [vmem:[%s423 + $0xc] sm:$0xff]
      %v770 = vld [vmem:[%s423 + $0x14] sm:$0xf]
      %v771 = vld [vmem:[%s423 + $0x18] sm:$0xff]
      %v772 = vld [vmem:[%s423 + $0x20] sm:$0xf]
      %v773 = vld [vmem:[%s423 + $0x24] sm:$0xff]
      %v774 = vld [vmem:[%s423 + $0x2c] sm:$0xf]
      %v775 = vld [vmem:[%s423 + $0x30] sm:$0xff]
      %v776 = vld [vmem:[%s423 + $0x38] sm:$0xf]
      %v777 = vld [vmem:[%s423 + $0x3c] sm:$0xff]
      %v778 = vld [vmem:[%s423 + $0x44] sm:$0xf]
      %v779 = vld [vmem:[%s423 + $0x48] sm:$0xff]
      %v780 = vld [vmem:[%s423 + $0x50] sm:$0xf]
      %v781 = vld [vmem:[%s423 + $0x54] sm:$0xff]
      %v782 = vld [vmem:[%s423 + $0x5c] sm:$0xf]
      %v783 = vld [vmem:[%s423 + $0x60] sm:$0xff]
      %v784 = vld [vmem:[%s423 + $0x68] sm:$0xf]
      %v785 = vld [vmem:[%s423 + $0x6c] sm:$0xff]
      %v786 = vld [vmem:[%s423 + $0x74] sm:$0xf]
      %v787 = vld [vmem:[%s423 + $0x78] sm:$0xff]
      %v788 = vld [vmem:[%s423 + $0x80] sm:$0xf]
      %v789 = vld [vmem:[%s423 + $0x84] sm:$0xff]
      %v790 = vld [vmem:[%s423 + $0x8c] sm:$0xf]
      %v791 = vld [vmem:[%s423 + $0x90] sm:$0xff]
      %v792 = vld [vmem:[%s423 + $0x98] sm:$0xf]
      %v793 = vld [vmem:[%s423 + $0x9c] sm:$0xff]
      %v794 = vld [vmem:[%s423 + $0xa4] sm:$0xf]
      %v795 = vld [vmem:[%s423 + $0xa8] sm:$0xff]
      %v796 = vld [vmem:[%s423 + $0xb0] sm:$0xf]
      %v797 = vld [vmem:[%s423 + $0xb4] sm:$0xff]
      %v798 = vld [vmem:[%s423 + $0xbc] sm:$0xf]
      %v799 = vld [vmem:[%s423 + $0xc0] sm:$0xff]
      %v800 = vld [vmem:[%s423 + $0xc8] sm:$0xf]
      %v801 = vld [vmem:[%s423 + $0xcc] sm:$0xff]
      %v802 = vld [vmem:[%s423 + $0xd4] sm:$0xf]
      %v803 = vld [vmem:[%s423 + $0xd8] sm:$0xff]
      %v804 = vld [vmem:[%s423 + $0xe0] sm:$0xf]
      %v805 = vld [vmem:[%s423 + $0xe4] sm:$0xff]
      %v806 = vld [vmem:[%s423 + $0xec] sm:$0xf]
      %v807 = vld [vmem:[%s423 + $0xf0] sm:$0xff]
      %v808 = vld [vmem:[%s423 + $0xf8] sm:$0xf]
      %v809 = vld [vmem:[%s423 + $0xfc] sm:$0xff]
      %v810 = vld [vmem:[%s423 + $0x104] sm:$0xf]
      %v811 = vld [vmem:[%s423 + $0x108] sm:$0xff]
      %v812 = vld [vmem:[%s423 + $0x110] sm:$0xf]
      %v813 = vld [vmem:[%s423 + $0x114] sm:$0xff]
      %v814 = vld [vmem:[%s423 + $0x11c] sm:$0xf]
      %v815 = vld [vmem:[%s423 + $0x120] sm:$0xff]
      %v816 = vld [vmem:[%s423 + $0x128] sm:$0xf]
      %v817 = vld [vmem:[%s423 + $0x12c] sm:$0xff]
      %v818 = vld [vmem:[%s423 + $0x134] sm:$0xf]
      %v819 = vld [vmem:[%s423 + $0x138] sm:$0xff]
      %v820 = vld [vmem:[%s423 + $0x140] sm:$0xf]
      %v821 = vld [vmem:[%s423 + $0x144] sm:$0xff]
      %v822 = vld [vmem:[%s423 + $0x14c] sm:$0xf]
      %v823 = vld [vmem:[%s423 + $0x150] sm:$0xff]
      %v824 = vld [vmem:[%s423 + $0x158] sm:$0xf]
      %v825 = vld [vmem:[%s423 + $0x15c] sm:$0xff]
      %v826 = vld [vmem:[%s423 + $0x164] sm:$0xf]
      %v827 = vld [vmem:[%s423 + $0x168] sm:$0xff]
      %v828 = vld [vmem:[%s423 + $0x170] sm:$0xf]
      %v829 = vld [vmem:[%s423 + $0x174] sm:$0xff]
      %v830 = vld [vmem:[%s423 + $0x17c] sm:$0xf]
      %v831 = vmax.bf16 %v767, %v771
      %v832 = vmax.bf16 %v768, %v772
      %v833 = vmax.bf16 %v769, %v773
      %v834 = vmax.bf16 %v770, %v774
      %v835 = vmax.bf16 %v775, %v779
      %v836 = vmax.bf16 %v776, %v780
      %v837 = vmax.bf16 %v777, %v781
      %v838 = vmax.bf16 %v778, %v782
      %v839 = vmax.bf16 %v783, %v787
      %v840 = vmax.bf16 %v784, %v788
      %v841 = vmax.bf16 %v785, %v789
      %v842 = vmax.bf16 %v786, %v790
      %v843 = vmax.bf16 %v791, %v795
      %v844 = vmax.bf16 %v792, %v796
      %v845 = vmax.bf16 %v793, %v797
      %v846 = vmax.bf16 %v794, %v798
      %v847 = vmax.bf16 %v799, %v803
      %v848 = vmax.bf16 %v800, %v804
      %v849 = vmax.bf16 %v801, %v805
      %v850 = vmax.bf16 %v802, %v806
      %v851 = vmax.bf16 %v807, %v811
      %v852 = vmax.bf16 %v808, %v812
      %v853 = vmax.bf16 %v809, %v813
      %v854 = vmax.bf16 %v810, %v814
      %v855 = vmax.bf16 %v815, %v819
      %v856 = vmax.bf16 %v816, %v820
      %v857 = vmax.bf16 %v817, %v821
      %v858 = vmax.bf16 %v818, %v822
      %v859 = vmax.bf16 %v823, %v827
      %v860 = vmax.bf16 %v824, %v828
      %v861 = vmax.bf16 %v825, %v829
      %v862 = vmax.bf16 %v826, %v830
      %v896 = vunpack.c.l.s4 1966171168
      %v897 = vunpack.c.0.s8 %v896
      %v898 = vlaneseq
      %v899 = vshrl.u32 %v898, 7
      %v900 = vsub.s32 %v897, %v899
      %v901 = vrot.slane %v831, %v900
      %v903 = vunpack.c.l.s4 1966171168
      %v904 = vunpack.c.0.s8 %v903
      %v905 = vlaneseq
      %v906 = vshrl.u32 %v905, 7
      %v907 = vsub.s32 %v904, %v906
      %v908 = vrot.slane %v832, %v907
      %v909 = vcombine.low %v901, %v908
      %v910 = vcombine.high %v901, %v908
      %v912 = vunpack.c.l.s4 1966171168
      %v913 = vunpack.c.0.s8 %v912
      %v914 = vlaneseq
      %v915 = vshrl.u32 %v914, 7
      %v916 = vsub.s32 %v913, %v915
      %v917 = vrot.slane %v909, %v916
      %v919 = vunpack.c.l.s4 1966171168
      %v920 = vunpack.c.0.s8 %v919
      %v921 = vlaneseq
      %v922 = vshrl.u32 %v921, 7
      %v923 = vsub.s32 %v920, %v922
      %v924 = vrot.slane %v910, %v923
      %v925 = vcombine.high %v917, %v917
      %v926 = vcombine.high %v924, %v924
      %v928 = vunpack.c.l.s4 1966171168
      %v929 = vunpack.c.0.s8 %v928
      %v930 = vlaneseq
      %v931 = vshrl.u32 %v930, 7
      %v932 = vsub.s32 %v929, %v931
      %v933 = vrot.slane %v833, %v932
      %v935 = vunpack.c.l.s4 1966171168
      %v936 = vunpack.c.0.s8 %v935
      %v937 = vlaneseq
      %v938 = vshrl.u32 %v937, 7
      %v939 = vsub.s32 %v936, %v938
      %v940 = vrot.slane %v834, %v939
      %v941 = vcombine.low %v933, %v940
      %v942 = vcombine.high %v933, %v940
      %v944 = vunpack.c.l.s4 1966171168
      %v945 = vunpack.c.0.s8 %v944
      %v946 = vlaneseq
      %v947 = vshrl.u32 %v946, 7
      %v948 = vsub.s32 %v945, %v947
      %v949 = vrot.slane %v941, %v948
      %v951 = vunpack.c.l.s4 1966171168
      %v952 = vunpack.c.0.s8 %v951
      %v953 = vlaneseq
      %v954 = vshrl.u32 %v953, 7
      %v955 = vsub.s32 %v952, %v954
      %v956 = vrot.slane %v942, %v955
      %v957 = vcombine.high %v949, %v949
      %v958 = vcombine.high %v956, %v956
      %v960 = vunpack.c.l.s4 1966171168
      %v961 = vunpack.c.0.s8 %v960
      %v962 = vlaneseq
      %v963 = vshrl.u32 %v962, 7
      %v964 = vsub.s32 %v961, %v963
      %v965 = vrot.slane %v835, %v964
      %v967 = vunpack.c.l.s4 1966171168
      %v968 = vunpack.c.0.s8 %v967
      %v969 = vlaneseq
      %v970 = vshrl.u32 %v969, 7
      %v971 = vsub.s32 %v968, %v970
      %v972 = vrot.slane %v836, %v971
      %v973 = vcombine.low %v965, %v972
      %v974 = vcombine.high %v965, %v972
      %v976 = vunpack.c.l.s4 1966171168
      %v977 = vunpack.c.0.s8 %v976
      %v978 = vlaneseq
      %v979 = vshrl.u32 %v978, 7
      %v980 = vsub.s32 %v977, %v979
      %v981 = vrot.slane %v973, %v980
      %v983 = vunpack.c.l.s4 1966171168
      %v984 = vunpack.c.0.s8 %v983
      %v985 = vlaneseq
      %v986 = vshrl.u32 %v985, 7
      %v987 = vsub.s32 %v984, %v986
      %v988 = vrot.slane %v974, %v987
      %v989 = vcombine.high %v981, %v981
      %v990 = vcombine.high %v988, %v988
      %v992 = vunpack.c.l.s4 1966171168
      %v993 = vunpack.c.0.s8 %v992
      %v994 = vlaneseq
      %v995 = vshrl.u32 %v994, 7
      %v996 = vsub.s32 %v993, %v995
      %v997 = vrot.slane %v837, %v996
      %v999 = vunpack.c.l.s4 1966171168
      %v1000 = vunpack.c.0.s8 %v999
      %v1001 = vlaneseq
      %v1002 = vshrl.u32 %v1001, 7
      %v1003 = vsub.s32 %v1000, %v1002
      %v1004 = vrot.slane %v838, %v1003
      %v1005 = vcombine.low %v997, %v1004
      %v1006 = vcombine.high %v997, %v1004
      %v1008 = vunpack.c.l.s4 1966171168
      %v1009 = vunpack.c.0.s8 %v1008
      %v1010 = vlaneseq
      %v1011 = vshrl.u32 %v1010, 7
      %v1012 = vsub.s32 %v1009, %v1011
      %v1013 = vrot.slane %v1005, %v1012
      %v1015 = vunpack.c.l.s4 1966171168
      %v1016 = vunpack.c.0.s8 %v1015
      %v1017 = vlaneseq
      %v1018 = vshrl.u32 %v1017, 7
      %v1019 = vsub.s32 %v1016, %v1018
      %v1020 = vrot.slane %v1006, %v1019
      %v1021 = vcombine.high %v1013, %v1013
      %v1022 = vcombine.high %v1020, %v1020
      %v1024 = vunpack.c.l.s4 1966171168
      %v1025 = vunpack.c.0.s8 %v1024
      %v1026 = vlaneseq
      %v1027 = vshrl.u32 %v1026, 7
      %v1028 = vsub.s32 %v1025, %v1027
      %v1029 = vrot.slane %v839, %v1028
      %v1031 = vunpack.c.l.s4 1966171168
      %v1032 = vunpack.c.0.s8 %v1031
      %v1033 = vlaneseq
      %v1034 = vshrl.u32 %v1033, 7
      %v1035 = vsub.s32 %v1032, %v1034
      %v1036 = vrot.slane %v840, %v1035
      %v1037 = vcombine.low %v1029, %v1036
      %v1038 = vcombine.high %v1029, %v1036
      %v1040 = vunpack.c.l.s4 1966171168
      %v1041 = vunpack.c.0.s8 %v1040
      %v1042 = vlaneseq
      %v1043 = vshrl.u32 %v1042, 7
      %v1044 = vsub.s32 %v1041, %v1043
      %v1045 = vrot.slane %v1037, %v1044
      %v1047 = vunpack.c.l.s4 1966171168
      %v1048 = vunpack.c.0.s8 %v1047
      %v1049 = vlaneseq
      %v1050 = vshrl.u32 %v1049, 7
      %v1051 = vsub.s32 %v1048, %v1050
      %v1052 = vrot.slane %v1038, %v1051
      %v1053 = vcombine.high %v1045, %v1045
      %v1054 = vcombine.high %v1052, %v1052
      %v1056 = vunpack.c.l.s4 1966171168
      %v1057 = vunpack.c.0.s8 %v1056
      %v1058 = vlaneseq
      %v1059 = vshrl.u32 %v1058, 7
      %v1060 = vsub.s32 %v1057, %v1059
      %v1061 = vrot.slane %v841, %v1060
      %v1063 = vunpack.c.l.s4 1966171168
      %v1064 = vunpack.c.0.s8 %v1063
      %v1065 = vlaneseq
      %v1066 = vshrl.u32 %v1065, 7
      %v1067 = vsub.s32 %v1064, %v1066
      %v1068 = vrot.slane %v842, %v1067
      %v1069 = vcombine.low %v1061, %v1068
      %v1070 = vcombine.high %v1061, %v1068
      %v1072 = vunpack.c.l.s4 1966171168
      %v1073 = vunpack.c.0.s8 %v1072
      %v1074 = vlaneseq
      %v1075 = vshrl.u32 %v1074, 7
      %v1076 = vsub.s32 %v1073, %v1075
      %v1077 = vrot.slane %v1069, %v1076
      %v1079 = vunpack.c.l.s4 1966171168
      %v1080 = vunpack.c.0.s8 %v1079
      %v1081 = vlaneseq
      %v1082 = vshrl.u32 %v1081, 7
      %v1083 = vsub.s32 %v1080, %v1082
      %v1084 = vrot.slane %v1070, %v1083
      %v1085 = vcombine.high %v1077, %v1077
      %v1086 = vcombine.high %v1084, %v1084
      %v1088 = vunpack.c.l.s4 1966171168
      %v1089 = vunpack.c.0.s8 %v1088
      %v1090 = vlaneseq
      %v1091 = vshrl.u32 %v1090, 7
      %v1092 = vsub.s32 %v1089, %v1091
      %v1093 = vrot.slane %v843, %v1092
      %v1095 = vunpack.c.l.s4 1966171168
      %v1096 = vunpack.c.0.s8 %v1095
      %v1097 = vlaneseq
      %v1098 = vshrl.u32 %v1097, 7
      %v1099 = vsub.s32 %v1096, %v1098
      %v1100 = vrot.slane %v844, %v1099
      %v1101 = vcombine.low %v1093, %v1100
      %v1102 = vcombine.high %v1093, %v1100
      %v1104 = vunpack.c.l.s4 1966171168
      %v1105 = vunpack.c.0.s8 %v1104
      %v1106 = vlaneseq
      %v1107 = vshrl.u32 %v1106, 7
      %v1108 = vsub.s32 %v1105, %v1107
      %v1109 = vrot.slane %v1101, %v1108
      %v1111 = vunpack.c.l.s4 1966171168
      %v1112 = vunpack.c.0.s8 %v1111
      %v1113 = vlaneseq
      %v1114 = vshrl.u32 %v1113, 7
      %v1115 = vsub.s32 %v1112, %v1114
      %v1116 = vrot.slane %v1102, %v1115
      %v1117 = vcombine.high %v1109, %v1109
      %v1118 = vcombine.high %v1116, %v1116
      %v1120 = vunpack.c.l.s4 1966171168
      %v1121 = vunpack.c.0.s8 %v1120
      %v1122 = vlaneseq
      %v1123 = vshrl.u32 %v1122, 7
      %v1124 = vsub.s32 %v1121, %v1123
      %v1125 = vrot.slane %v845, %v1124
      %v1127 = vunpack.c.l.s4 1966171168
      %v1128 = vunpack.c.0.s8 %v1127
      %v1129 = vlaneseq
      %v1130 = vshrl.u32 %v1129, 7
      %v1131 = vsub.s32 %v1128, %v1130
      %v1132 = vrot.slane %v846, %v1131
      %v1133 = vcombine.low %v1125, %v1132
      %v1134 = vcombine.high %v1125, %v1132
      %v1136 = vunpack.c.l.s4 1966171168
      %v1137 = vunpack.c.0.s8 %v1136
      %v1138 = vlaneseq
      %v1139 = vshrl.u32 %v1138, 7
      %v1140 = vsub.s32 %v1137, %v1139
      %v1141 = vrot.slane %v1133, %v1140
      %v1143 = vunpack.c.l.s4 1966171168
      %v1144 = vunpack.c.0.s8 %v1143
      %v1145 = vlaneseq
      %v1146 = vshrl.u32 %v1145, 7
      %v1147 = vsub.s32 %v1144, %v1146
      %v1148 = vrot.slane %v1134, %v1147
      %v1149 = vcombine.high %v1141, %v1141
      %v1150 = vcombine.high %v1148, %v1148
      %v1152 = vunpack.c.l.s4 1966171168
      %v1153 = vunpack.c.0.s8 %v1152
      %v1154 = vlaneseq
      %v1155 = vshrl.u32 %v1154, 7
      %v1156 = vsub.s32 %v1153, %v1155
      %v1157 = vrot.slane %v847, %v1156
      %v1159 = vunpack.c.l.s4 1966171168
      %v1160 = vunpack.c.0.s8 %v1159
      %v1161 = vlaneseq
      %v1162 = vshrl.u32 %v1161, 7
      %v1163 = vsub.s32 %v1160, %v1162
      %v1164 = vrot.slane %v848, %v1163
      %v1165 = vcombine.low %v1157, %v1164
      %v1166 = vcombine.high %v1157, %v1164
      %v1168 = vunpack.c.l.s4 1966171168
      %v1169 = vunpack.c.0.s8 %v1168
      %v1170 = vlaneseq
      %v1171 = vshrl.u32 %v1170, 7
      %v1172 = vsub.s32 %v1169, %v1171
      %v1173 = vrot.slane %v1165, %v1172
      %v1175 = vunpack.c.l.s4 1966171168
      %v1176 = vunpack.c.0.s8 %v1175
      %v1177 = vlaneseq
      %v1178 = vshrl.u32 %v1177, 7
      %v1179 = vsub.s32 %v1176, %v1178
      %v1180 = vrot.slane %v1166, %v1179
      %v1181 = vcombine.high %v1173, %v1173
      %v1182 = vcombine.high %v1180, %v1180
      %v1184 = vunpack.c.l.s4 1966171168
      %v1185 = vunpack.c.0.s8 %v1184
      %v1186 = vlaneseq
      %v1187 = vshrl.u32 %v1186, 7
      %v1188 = vsub.s32 %v1185, %v1187
      %v1189 = vrot.slane %v849, %v1188
      %v1191 = vunpack.c.l.s4 1966171168
      %v1192 = vunpack.c.0.s8 %v1191
      %v1193 = vlaneseq
      %v1194 = vshrl.u32 %v1193, 7
      %v1195 = vsub.s32 %v1192, %v1194
      %v1196 = vrot.slane %v850, %v1195
      %v1197 = vcombine.low %v1189, %v1196
      %v1198 = vcombine.high %v1189, %v1196
      %v1200 = vunpack.c.l.s4 1966171168
      %v1201 = vunpack.c.0.s8 %v1200
      %v1202 = vlaneseq
      %v1203 = vshrl.u32 %v1202, 7
      %v1204 = vsub.s32 %v1201, %v1203
      %v1205 = vrot.slane %v1197, %v1204
      %v1207 = vunpack.c.l.s4 1966171168
      %v1208 = vunpack.c.0.s8 %v1207
      %v1209 = vlaneseq
      %v1210 = vshrl.u32 %v1209, 7
      %v1211 = vsub.s32 %v1208, %v1210
      %v1212 = vrot.slane %v1198, %v1211
      %v1213 = vcombine.high %v1205, %v1205
      %v1214 = vcombine.high %v1212, %v1212
      %v1216 = vunpack.c.l.s4 1966171168
      %v1217 = vunpack.c.0.s8 %v1216
      %v1218 = vlaneseq
      %v1219 = vshrl.u32 %v1218, 7
      %v1220 = vsub.s32 %v1217, %v1219
      %v1221 = vrot.slane %v851, %v1220
      %v1223 = vunpack.c.l.s4 1966171168
      %v1224 = vunpack.c.0.s8 %v1223
      %v1225 = vlaneseq
      %v1226 = vshrl.u32 %v1225, 7
      %v1227 = vsub.s32 %v1224, %v1226
      %v1228 = vrot.slane %v852, %v1227
      %v1229 = vcombine.low %v1221, %v1228
      %v1230 = vcombine.high %v1221, %v1228
      %v1232 = vunpack.c.l.s4 1966171168
      %v1233 = vunpack.c.0.s8 %v1232
      %v1234 = vlaneseq
      %v1235 = vshrl.u32 %v1234, 7
      %v1236 = vsub.s32 %v1233, %v1235
      %v1237 = vrot.slane %v1229, %v1236
      %v1239 = vunpack.c.l.s4 1966171168
      %v1240 = vunpack.c.0.s8 %v1239
      %v1241 = vlaneseq
      %v1242 = vshrl.u32 %v1241, 7
      %v1243 = vsub.s32 %v1240, %v1242
      %v1244 = vrot.slane %v1230, %v1243
      %v1245 = vcombine.high %v1237, %v1237
      %v1246 = vcombine.high %v1244, %v1244
      %v1248 = vunpack.c.l.s4 1966171168
      %v1249 = vunpack.c.0.s8 %v1248
      %v1250 = vlaneseq
      %v1251 = vshrl.u32 %v1250, 7
      %v1252 = vsub.s32 %v1249, %v1251
      %v1253 = vrot.slane %v853, %v1252
      %v1255 = vunpack.c.l.s4 1966171168
      %v1256 = vunpack.c.0.s8 %v1255
      %v1257 = vlaneseq
      %v1258 = vshrl.u32 %v1257, 7
      %v1259 = vsub.s32 %v1256, %v1258
      %v1260 = vrot.slane %v854, %v1259
      %v1261 = vcombine.low %v1253, %v1260
      %v1262 = vcombine.high %v1253, %v1260
      %v1264 = vunpack.c.l.s4 1966171168
      %v1265 = vunpack.c.0.s8 %v1264
      %v1266 = vlaneseq
      %v1267 = vshrl.u32 %v1266, 7
      %v1268 = vsub.s32 %v1265, %v1267
      %v1269 = vrot.slane %v1261, %v1268
      %v1271 = vunpack.c.l.s4 1966171168
      %v1272 = vunpack.c.0.s8 %v1271
      %v1273 = vlaneseq
      %v1274 = vshrl.u32 %v1273, 7
      %v1275 = vsub.s32 %v1272, %v1274
      %v1276 = vrot.slane %v1262, %v1275
      %v1277 = vcombine.high %v1269, %v1269
      %v1278 = vcombine.high %v1276, %v1276
      %v1280 = vunpack.c.l.s4 1966171168
      %v1281 = vunpack.c.0.s8 %v1280
      %v1282 = vlaneseq
      %v1283 = vshrl.u32 %v1282, 7
      %v1284 = vsub.s32 %v1281, %v1283
      %v1285 = vrot.slane %v855, %v1284
      %v1287 = vunpack.c.l.s4 1966171168
      %v1288 = vunpack.c.0.s8 %v1287
      %v1289 = vlaneseq
      %v1290 = vshrl.u32 %v1289, 7
      %v1291 = vsub.s32 %v1288, %v1290
      %v1292 = vrot.slane %v856, %v1291
      %v1293 = vcombine.low %v1285, %v1292
      %v1294 = vcombine.high %v1285, %v1292
      %v1296 = vunpack.c.l.s4 1966171168
      %v1297 = vunpack.c.0.s8 %v1296
      %v1298 = vlaneseq
      %v1299 = vshrl.u32 %v1298, 7
      %v1300 = vsub.s32 %v1297, %v1299
      %v1301 = vrot.slane %v1293, %v1300
      %v1303 = vunpack.c.l.s4 1966171168
      %v1304 = vunpack.c.0.s8 %v1303
      %v1305 = vlaneseq
      %v1306 = vshrl.u32 %v1305, 7
      %v1307 = vsub.s32 %v1304, %v1306
      %v1308 = vrot.slane %v1294, %v1307
      %v1309 = vcombine.high %v1301, %v1301
      %v1310 = vcombine.high %v1308, %v1308
      %v1312 = vunpack.c.l.s4 1966171168
      %v1313 = vunpack.c.0.s8 %v1312
      %v1314 = vlaneseq
      %v1315 = vshrl.u32 %v1314, 7
      %v1316 = vsub.s32 %v1313, %v1315
      %v1317 = vrot.slane %v857, %v1316
      %v1319 = vunpack.c.l.s4 1966171168
      %v1320 = vunpack.c.0.s8 %v1319
      %v1321 = vlaneseq
      %v1322 = vshrl.u32 %v1321, 7
      %v1323 = vsub.s32 %v1320, %v1322
      %v1324 = vrot.slane %v858, %v1323
      %v1325 = vcombine.low %v1317, %v1324
      %v1326 = vcombine.high %v1317, %v1324
      %v1328 = vunpack.c.l.s4 1966171168
      %v1329 = vunpack.c.0.s8 %v1328
      %v1330 = vlaneseq
      %v1331 = vshrl.u32 %v1330, 7
      %v1332 = vsub.s32 %v1329, %v1331
      %v1333 = vrot.slane %v1325, %v1332
      %v1335 = vunpack.c.l.s4 1966171168
      %v1336 = vunpack.c.0.s8 %v1335
      %v1337 = vlaneseq
      %v1338 = vshrl.u32 %v1337, 7
      %v1339 = vsub.s32 %v1336, %v1338
      %v1340 = vrot.slane %v1326, %v1339
      %v1341 = vcombine.high %v1333, %v1333
      %v1342 = vcombine.high %v1340, %v1340
      %v1344 = vunpack.c.l.s4 1966171168
      %v1345 = vunpack.c.0.s8 %v1344
      %v1346 = vlaneseq
      %v1347 = vshrl.u32 %v1346, 7
      %v1348 = vsub.s32 %v1345, %v1347
      %v1349 = vrot.slane %v859, %v1348
      %v1351 = vunpack.c.l.s4 1966171168
      %v1352 = vunpack.c.0.s8 %v1351
      %v1353 = vlaneseq
      %v1354 = vshrl.u32 %v1353, 7
      %v1355 = vsub.s32 %v1352, %v1354
      %v1356 = vrot.slane %v860, %v1355
      %v1357 = vcombine.low %v1349, %v1356
      %v1358 = vcombine.high %v1349, %v1356
      %v1360 = vunpack.c.l.s4 1966171168
      %v1361 = vunpack.c.0.s8 %v1360
      %v1362 = vlaneseq
      %v1363 = vshrl.u32 %v1362, 7
      %v1364 = vsub.s32 %v1361, %v1363
      %v1365 = vrot.slane %v1357, %v1364
      %v1367 = vunpack.c.l.s4 1966171168
      %v1368 = vunpack.c.0.s8 %v1367
      %v1369 = vlaneseq
      %v1370 = vshrl.u32 %v1369, 7
      %v1371 = vsub.s32 %v1368, %v1370
      %v1372 = vrot.slane %v1358, %v1371
      %v1373 = vcombine.high %v1365, %v1365
      %v1374 = vcombine.high %v1372, %v1372
      %v1376 = vunpack.c.l.s4 1966171168
      %v1377 = vunpack.c.0.s8 %v1376
      %v1378 = vlaneseq
      %v1379 = vshrl.u32 %v1378, 7
      %v1380 = vsub.s32 %v1377, %v1379
      %v1381 = vrot.slane %v861, %v1380
      %v1383 = vunpack.c.l.s4 1966171168
      %v1384 = vunpack.c.0.s8 %v1383
      %v1385 = vlaneseq
      %v1386 = vshrl.u32 %v1385, 7
      %v1387 = vsub.s32 %v1384, %v1386
      %v1388 = vrot.slane %v862, %v1387
      %v1389 = vcombine.low %v1381, %v1388
      %v1390 = vcombine.high %v1381, %v1388
      %v1392 = vunpack.c.l.s4 1966171168
      %v1393 = vunpack.c.0.s8 %v1392
      %v1394 = vlaneseq
      %v1395 = vshrl.u32 %v1394, 7
      %v1396 = vsub.s32 %v1393, %v1395
      %v1397 = vrot.slane %v1389, %v1396
      %v1399 = vunpack.c.l.s4 1966171168
      %v1400 = vunpack.c.0.s8 %v1399
      %v1401 = vlaneseq
      %v1402 = vshrl.u32 %v1401, 7
      %v1403 = vsub.s32 %v1400, %v1402
      %v1404 = vrot.slane %v1390, %v1403
      %v1405 = vcombine.high %v1397, %v1397
      %v1406 = vcombine.high %v1404, %v1404
      %v1472 = vshrl.u32 %v917, 16
      %v1474 = vrot.slane %v1472, 7
      %v1475 = vrot.slane %v1474, 1
      %v1477 = vshrl.u32 %v924, 16
      %v1479 = vrot.slane %v1477, 7
      %v1480 = vrot.slane %v1479, 1
      %v1482 = vshrl.u32 %v925, 16
      %v1484 = vrot.slane %v1482, 7
      %v1485 = vrot.slane %v1484, 1
      %v1487 = vshrl.u32 %v926, 16
      %v1489 = vrot.slane %v1487, 7
      %v1490 = vrot.slane %v1489, 1
      %v1492 = vshrl.u32 %v949, 16
      %v1494 = vrot.slane %v1492, 7
      %v1495 = vrot.slane %v1494, 1
      %v1497 = vshrl.u32 %v956, 16
      %v1499 = vrot.slane %v1497, 7
      %v1500 = vrot.slane %v1499, 1
      %v1502 = vshrl.u32 %v957, 16
      %v1504 = vrot.slane %v1502, 7
      %v1505 = vrot.slane %v1504, 1
      %v1507 = vshrl.u32 %v958, 16
      %v1509 = vrot.slane %v1507, 7
      %v1510 = vrot.slane %v1509, 1
      %v1512 = vshrl.u32 %v981, 16
      %v1514 = vrot.slane %v1512, 7
      %v1515 = vrot.slane %v1514, 1
      %v1517 = vshrl.u32 %v988, 16
      %v1519 = vrot.slane %v1517, 7
      %v1520 = vrot.slane %v1519, 1
      %v1522 = vshrl.u32 %v989, 16
      %v1524 = vrot.slane %v1522, 7
      %v1525 = vrot.slane %v1524, 1
      %v1527 = vshrl.u32 %v990, 16
      %v1529 = vrot.slane %v1527, 7
      %v1530 = vrot.slane %v1529, 1
      %v1532 = vshrl.u32 %v1013, 16
      %v1534 = vrot.slane %v1532, 7
      %v1535 = vrot.slane %v1534, 1
      %v1537 = vshrl.u32 %v1020, 16
      %v1539 = vrot.slane %v1537, 7
      %v1540 = vrot.slane %v1539, 1
      %v1542 = vshrl.u32 %v1021, 16
      %v1544 = vrot.slane %v1542, 7
      %v1545 = vrot.slane %v1544, 1
      %v1547 = vshrl.u32 %v1022, 16
      %v1549 = vrot.slane %v1547, 7
      %v1550 = vrot.slane %v1549, 1
      %v1552 = vshrl.u32 %v1045, 16
      %v1554 = vrot.slane %v1552, 7
      %v1555 = vrot.slane %v1554, 1
      %v1557 = vshrl.u32 %v1052, 16
      %v1559 = vrot.slane %v1557, 7
      %v1560 = vrot.slane %v1559, 1
      %v1562 = vshrl.u32 %v1053, 16
      %v1564 = vrot.slane %v1562, 7
      %v1565 = vrot.slane %v1564, 1
      %v1567 = vshrl.u32 %v1054, 16
      %v1569 = vrot.slane %v1567, 7
      %v1570 = vrot.slane %v1569, 1
      %v1572 = vshrl.u32 %v1077, 16
      %v1574 = vrot.slane %v1572, 7
      %v1575 = vrot.slane %v1574, 1
      %v1577 = vshrl.u32 %v1084, 16
      %v1579 = vrot.slane %v1577, 7
      %v1580 = vrot.slane %v1579, 1
      %v1582 = vshrl.u32 %v1085, 16
      %v1584 = vrot.slane %v1582, 7
      %v1585 = vrot.slane %v1584, 1
      %v1587 = vshrl.u32 %v1086, 16
      %v1589 = vrot.slane %v1587, 7
      %v1590 = vrot.slane %v1589, 1
      %v1592 = vshrl.u32 %v1109, 16
      %v1594 = vrot.slane %v1592, 7
      %v1595 = vrot.slane %v1594, 1
      %v1597 = vshrl.u32 %v1116, 16
      %v1599 = vrot.slane %v1597, 7
      %v1600 = vrot.slane %v1599, 1
      %v1602 = vshrl.u32 %v1117, 16
      %v1604 = vrot.slane %v1602, 7
      %v1605 = vrot.slane %v1604, 1
      %v1607 = vshrl.u32 %v1118, 16
      %v1609 = vrot.slane %v1607, 7
      %v1610 = vrot.slane %v1609, 1
      %v1612 = vshrl.u32 %v1141, 16
      %v1614 = vrot.slane %v1612, 7
      %v1615 = vrot.slane %v1614, 1
      %v1617 = vshrl.u32 %v1148, 16
      %v1619 = vrot.slane %v1617, 7
      %v1620 = vrot.slane %v1619, 1
      %v1622 = vshrl.u32 %v1149, 16
      %v1624 = vrot.slane %v1622, 7
      %v1625 = vrot.slane %v1624, 1
      %v1627 = vshrl.u32 %v1150, 16
      %v1629 = vrot.slane %v1627, 7
      %v1630 = vrot.slane %v1629, 1
      %v1632 = vshrl.u32 %v1173, 16
      %v1634 = vrot.slane %v1632, 7
      %v1635 = vrot.slane %v1634, 1
      %v1637 = vshrl.u32 %v1180, 16
      %v1639 = vrot.slane %v1637, 7
      %v1640 = vrot.slane %v1639, 1
      %v1642 = vshrl.u32 %v1181, 16
      %v1644 = vrot.slane %v1642, 7
      %v1645 = vrot.slane %v1644, 1
      %v1647 = vshrl.u32 %v1182, 16
      %v1649 = vrot.slane %v1647, 7
      %v1650 = vrot.slane %v1649, 1
      %v1652 = vshrl.u32 %v1205, 16
      %v1654 = vrot.slane %v1652, 7
      %v1655 = vrot.slane %v1654, 1
      %v1657 = vshrl.u32 %v1212, 16
      %v1659 = vrot.slane %v1657, 7
      %v1660 = vrot.slane %v1659, 1
      %v1662 = vshrl.u32 %v1213, 16
      %v1664 = vrot.slane %v1662, 7
      %v1665 = vrot.slane %v1664, 1
      %v1667 = vshrl.u32 %v1214, 16
      %v1669 = vrot.slane %v1667, 7
      %v1670 = vrot.slane %v1669, 1
      %v1672 = vshrl.u32 %v1237, 16
      %v1674 = vrot.slane %v1672, 7
      %v1675 = vrot.slane %v1674, 1
      %v1677 = vshrl.u32 %v1244, 16
      %v1679 = vrot.slane %v1677, 7
      %v1680 = vrot.slane %v1679, 1
      %v1682 = vshrl.u32 %v1245, 16
      %v1684 = vrot.slane %v1682, 7
      %v1685 = vrot.slane %v1684, 1
      %v1687 = vshrl.u32 %v1246, 16
      %v1689 = vrot.slane %v1687, 7
      %v1690 = vrot.slane %v1689, 1
      %v1692 = vshrl.u32 %v1269, 16
      %v1694 = vrot.slane %v1692, 7
      %v1695 = vrot.slane %v1694, 1
      %v1697 = vshrl.u32 %v1276, 16
      %v1699 = vrot.slane %v1697, 7
      %v1700 = vrot.slane %v1699, 1
      %v1702 = vshrl.u32 %v1277, 16
      %v1704 = vrot.slane %v1702, 7
      %v1705 = vrot.slane %v1704, 1
      %v1707 = vshrl.u32 %v1278, 16
      %v1709 = vrot.slane %v1707, 7
      %v1710 = vrot.slane %v1709, 1
      %v1712 = vshrl.u32 %v1301, 16
      %v1714 = vrot.slane %v1712, 7
      %v1715 = vrot.slane %v1714, 1
      %v1717 = vshrl.u32 %v1308, 16
      %v1719 = vrot.slane %v1717, 7
      %v1720 = vrot.slane %v1719, 1
      %v1722 = vshrl.u32 %v1309, 16
      %v1724 = vrot.slane %v1722, 7
      %v1725 = vrot.slane %v1724, 1
      %v1727 = vshrl.u32 %v1310, 16
      %v1729 = vrot.slane %v1727, 7
      %v1730 = vrot.slane %v1729, 1
      %v1732 = vshrl.u32 %v1333, 16
      %v1734 = vrot.slane %v1732, 7
      %v1735 = vrot.slane %v1734, 1
      %v1737 = vshrl.u32 %v1340, 16
      %v1739 = vrot.slane %v1737, 7
      %v1740 = vrot.slane %v1739, 1
      %v1742 = vshrl.u32 %v1341, 16
      %v1744 = vrot.slane %v1742, 7
      %v1745 = vrot.slane %v1744, 1
      %v1747 = vshrl.u32 %v1342, 16
      %v1749 = vrot.slane %v1747, 7
      %v1750 = vrot.slane %v1749, 1
      %v1752 = vshrl.u32 %v1365, 16
      %v1754 = vrot.slane %v1752, 7
      %v1755 = vrot.slane %v1754, 1
      %v1757 = vshrl.u32 %v1372, 16
      %v1759 = vrot.slane %v1757, 7
      %v1760 = vrot.slane %v1759, 1
      %v1762 = vshrl.u32 %v1373, 16
      %v1764 = vrot.slane %v1762, 7
      %v1765 = vrot.slane %v1764, 1
      %v1767 = vshrl.u32 %v1374, 16
      %v1769 = vrot.slane %v1767, 7
      %v1770 = vrot.slane %v1769, 1
      %v1772 = vshrl.u32 %v1397, 16
      %v1774 = vrot.slane %v1772, 7
      %v1775 = vrot.slane %v1774, 1
      %v1777 = vshrl.u32 %v1404, 16
      %v1779 = vrot.slane %v1777, 7
      %v1780 = vrot.slane %v1779, 1
      %v1782 = vshrl.u32 %v1405, 16
      %v1784 = vrot.slane %v1782, 7
      %v1785 = vrot.slane %v1784, 1
      %v1787 = vshrl.u32 %v1406, 16
      %v1789 = vrot.slane %v1787, 7
      %v1790 = vrot.slane %v1789, 1
      %v1855 = vmax.bf16 %v917, %v1475
      %v1856 = vmax.bf16 %v924, %v1480
      %v1857 = vmax.bf16 %v925, %v1485
      %v1858 = vmax.bf16 %v926, %v1490
      %v1859 = vmax.bf16 %v949, %v1495
      %v1860 = vmax.bf16 %v956, %v1500
      %v1861 = vmax.bf16 %v957, %v1505
      %v1862 = vmax.bf16 %v958, %v1510
      %v1863 = vmax.bf16 %v981, %v1515
      %v1864 = vmax.bf16 %v988, %v1520
      %v1865 = vmax.bf16 %v989, %v1525
      %v1866 = vmax.bf16 %v990, %v1530
      %v1867 = vmax.bf16 %v1013, %v1535
      %v1868 = vmax.bf16 %v1020, %v1540
      %v1869 = vmax.bf16 %v1021, %v1545
      %v1870 = vmax.bf16 %v1022, %v1550
      %v1871 = vmax.bf16 %v1045, %v1555
      %v1872 = vmax.bf16 %v1052, %v1560
      %v1873 = vmax.bf16 %v1053, %v1565
      %v1874 = vmax.bf16 %v1054, %v1570
      %v1875 = vmax.bf16 %v1077, %v1575
      %v1876 = vmax.bf16 %v1084, %v1580
      %v1877 = vmax.bf16 %v1085, %v1585
      %v1878 = vmax.bf16 %v1086, %v1590
      %v1879 = vmax.bf16 %v1109, %v1595
      %v1880 = vmax.bf16 %v1116, %v1600
      %v1881 = vmax.bf16 %v1117, %v1605
      %v1882 = vmax.bf16 %v1118, %v1610
      %v1883 = vmax.bf16 %v1141, %v1615
      %v1884 = vmax.bf16 %v1148, %v1620
      %v1885 = vmax.bf16 %v1149, %v1625
      %v1886 = vmax.bf16 %v1150, %v1630
      %v1887 = vmax.bf16 %v1173, %v1635
      %v1888 = vmax.bf16 %v1180, %v1640
      %v1889 = vmax.bf16 %v1181, %v1645
      %v1890 = vmax.bf16 %v1182, %v1650
      %v1891 = vmax.bf16 %v1205, %v1655
      %v1892 = vmax.bf16 %v1212, %v1660
      %v1893 = vmax.bf16 %v1213, %v1665
      %v1894 = vmax.bf16 %v1214, %v1670
      %v1895 = vmax.bf16 %v1237, %v1675
      %v1896 = vmax.bf16 %v1244, %v1680
      %v1897 = vmax.bf16 %v1245, %v1685
      %v1898 = vmax.bf16 %v1246, %v1690
      %v1899 = vmax.bf16 %v1269, %v1695
      %v1900 = vmax.bf16 %v1276, %v1700
      %v1901 = vmax.bf16 %v1277, %v1705
      %v1902 = vmax.bf16 %v1278, %v1710
      %v1903 = vmax.bf16 %v1301, %v1715
      %v1904 = vmax.bf16 %v1308, %v1720
      %v1905 = vmax.bf16 %v1309, %v1725
      %v1906 = vmax.bf16 %v1310, %v1730
      %v1907 = vmax.bf16 %v1333, %v1735
      %v1908 = vmax.bf16 %v1340, %v1740
      %v1909 = vmax.bf16 %v1341, %v1745
      %v1910 = vmax.bf16 %v1342, %v1750
      %v1911 = vmax.bf16 %v1365, %v1755
      %v1912 = vmax.bf16 %v1372, %v1760
      %v1913 = vmax.bf16 %v1373, %v1765
      %v1914 = vmax.bf16 %v1374, %v1770
      %v1915 = vmax.bf16 %v1397, %v1775
      %v1916 = vmax.bf16 %v1404, %v1780
      %v1917 = vmax.bf16 %v1405, %v1785
      %v1918 = vmax.bf16 %v1406, %v1790
      %v1984 = vunpack.c.l.s4 1966171168
      %v1985 = vunpack.c.0.s8 %v1984
      %v1986 = vlaneseq
      %v1987 = vshrl.u32 %v1986, 7
      %v1988 = vsub.s32 %v1985, %v1987
      %v1989 = vrot.slane %v1855, %v1988
      %v1990 = vcombine.high %v1989, %v1989
      %v1992 = vunpack.c.l.s4 1966171168
      %v1993 = vunpack.c.0.s8 %v1992
      %v1994 = vlaneseq
      %v1995 = vshrl.u32 %v1994, 7
      %v1996 = vsub.s32 %v1993, %v1995
      %v1997 = vrot.slane %v1989, %v1996
      %v1999 = vunpack.c.l.s4 1966171168
      %v2000 = vunpack.c.0.s8 %v1999
      %v2001 = vlaneseq
      %v2002 = vshrl.u32 %v2001, 7
      %v2003 = vsub.s32 %v2000, %v2002
      %v2004 = vrot.slane %v1990, %v2003
      %v2005 = vcombine.high %v1997, %v1997
      %v2007 = vunpack.c.l.s4 1966171168
      %v2008 = vunpack.c.0.s8 %v2007
      %v2009 = vlaneseq
      %v2010 = vshrl.u32 %v2009, 7
      %v2011 = vsub.s32 %v2008, %v2010
      %v2012 = vrot.slane %v1856, %v2011
      %v2013 = vcombine.high %v2012, %v2012
      %v2015 = vunpack.c.l.s4 1966171168
      %v2016 = vunpack.c.0.s8 %v2015
      %v2017 = vlaneseq
      %v2018 = vshrl.u32 %v2017, 7
      %v2019 = vsub.s32 %v2016, %v2018
      %v2020 = vrot.slane %v2012, %v2019
      %v2022 = vunpack.c.l.s4 1966171168
      %v2023 = vunpack.c.0.s8 %v2022
      %v2024 = vlaneseq
      %v2025 = vshrl.u32 %v2024, 7
      %v2026 = vsub.s32 %v2023, %v2025
      %v2027 = vrot.slane %v2013, %v2026
      %v2028 = vcombine.high %v2020, %v2020
      %v2030 = vunpack.c.l.s4 1966171168
      %v2031 = vunpack.c.0.s8 %v2030
      %v2032 = vlaneseq
      %v2033 = vshrl.u32 %v2032, 7
      %v2034 = vsub.s32 %v2031, %v2033
      %v2035 = vrot.slane %v1857, %v2034
      %v2036 = vcombine.high %v2035, %v2035
      %v2038 = vunpack.c.l.s4 1966171168
      %v2039 = vunpack.c.0.s8 %v2038
      %v2040 = vlaneseq
      %v2041 = vshrl.u32 %v2040, 7
      %v2042 = vsub.s32 %v2039, %v2041
      %v2043 = vrot.slane %v2035, %v2042
      %v2045 = vunpack.c.l.s4 1966171168
      %v2046 = vunpack.c.0.s8 %v2045
      %v2047 = vlaneseq
      %v2048 = vshrl.u32 %v2047, 7
      %v2049 = vsub.s32 %v2046, %v2048
      %v2050 = vrot.slane %v2036, %v2049
      %v2051 = vcombine.high %v2043, %v2043
      %v2053 = vunpack.c.l.s4 1966171168
      %v2054 = vunpack.c.0.s8 %v2053
      %v2055 = vlaneseq
      %v2056 = vshrl.u32 %v2055, 7
      %v2057 = vsub.s32 %v2054, %v2056
      %v2058 = vrot.slane %v1858, %v2057
      %v2059 = vcombine.high %v2058, %v2058
      %v2061 = vunpack.c.l.s4 1966171168
      %v2062 = vunpack.c.0.s8 %v2061
      %v2063 = vlaneseq
      %v2064 = vshrl.u32 %v2063, 7
      %v2065 = vsub.s32 %v2062, %v2064
      %v2066 = vrot.slane %v2058, %v2065
      %v2068 = vunpack.c.l.s4 1966171168
      %v2069 = vunpack.c.0.s8 %v2068
      %v2070 = vlaneseq
      %v2071 = vshrl.u32 %v2070, 7
      %v2072 = vsub.s32 %v2069, %v2071
      %v2073 = vrot.slane %v2059, %v2072
      %v2074 = vcombine.high %v2066, %v2066
      %v2076 = vunpack.c.l.s4 1966171168
      %v2077 = vunpack.c.0.s8 %v2076
      %v2078 = vlaneseq
      %v2079 = vshrl.u32 %v2078, 7
      %v2080 = vsub.s32 %v2077, %v2079
      %v2081 = vrot.slane %v1859, %v2080
      %v2082 = vcombine.high %v2081, %v2081
      %v2084 = vunpack.c.l.s4 1966171168
      %v2085 = vunpack.c.0.s8 %v2084
      %v2086 = vlaneseq
      %v2087 = vshrl.u32 %v2086, 7
      %v2088 = vsub.s32 %v2085, %v2087
      %v2089 = vrot.slane %v2081, %v2088
      %v2091 = vunpack.c.l.s4 1966171168
      %v2092 = vunpack.c.0.s8 %v2091
      %v2093 = vlaneseq
      %v2094 = vshrl.u32 %v2093, 7
      %v2095 = vsub.s32 %v2092, %v2094
      %v2096 = vrot.slane %v2082, %v2095
      %v2097 = vcombine.high %v2089, %v2089
      %v2099 = vunpack.c.l.s4 1966171168
      %v2100 = vunpack.c.0.s8 %v2099
      %v2101 = vlaneseq
      %v2102 = vshrl.u32 %v2101, 7
      %v2103 = vsub.s32 %v2100, %v2102
      %v2104 = vrot.slane %v1860, %v2103
      %v2105 = vcombine.high %v2104, %v2104
      %v2107 = vunpack.c.l.s4 1966171168
      %v2108 = vunpack.c.0.s8 %v2107
      %v2109 = vlaneseq
      %v2110 = vshrl.u32 %v2109, 7
      %v2111 = vsub.s32 %v2108, %v2110
      %v2112 = vrot.slane %v2104, %v2111
      %v2114 = vunpack.c.l.s4 1966171168
      %v2115 = vunpack.c.0.s8 %v2114
      %v2116 = vlaneseq
      %v2117 = vshrl.u32 %v2116, 7
      %v2118 = vsub.s32 %v2115, %v2117
      %v2119 = vrot.slane %v2105, %v2118
      %v2120 = vcombine.high %v2112, %v2112
      %v2122 = vunpack.c.l.s4 1966171168
      %v2123 = vunpack.c.0.s8 %v2122
      %v2124 = vlaneseq
      %v2125 = vshrl.u32 %v2124, 7
      %v2126 = vsub.s32 %v2123, %v2125
      %v2127 = vrot.slane %v1861, %v2126
      %v2128 = vcombine.high %v2127, %v2127
      %v2130 = vunpack.c.l.s4 1966171168
      %v2131 = vunpack.c.0.s8 %v2130
      %v2132 = vlaneseq
      %v2133 = vshrl.u32 %v2132, 7
      %v2134 = vsub.s32 %v2131, %v2133
      %v2135 = vrot.slane %v2127, %v2134
      %v2137 = vunpack.c.l.s4 1966171168
      %v2138 = vunpack.c.0.s8 %v2137
      %v2139 = vlaneseq
      %v2140 = vshrl.u32 %v2139, 7
      %v2141 = vsub.s32 %v2138, %v2140
      %v2142 = vrot.slane %v2128, %v2141
      %v2143 = vcombine.high %v2135, %v2135
      %v2145 = vunpack.c.l.s4 1966171168
      %v2146 = vunpack.c.0.s8 %v2145
      %v2147 = vlaneseq
      %v2148 = vshrl.u32 %v2147, 7
      %v2149 = vsub.s32 %v2146, %v2148
      %v2150 = vrot.slane %v1862, %v2149
      %v2151 = vcombine.high %v2150, %v2150
      %v2153 = vunpack.c.l.s4 1966171168
      %v2154 = vunpack.c.0.s8 %v2153
      %v2155 = vlaneseq
      %v2156 = vshrl.u32 %v2155, 7
      %v2157 = vsub.s32 %v2154, %v2156
      %v2158 = vrot.slane %v2150, %v2157
      %v2160 = vunpack.c.l.s4 1966171168
      %v2161 = vunpack.c.0.s8 %v2160
      %v2162 = vlaneseq
      %v2163 = vshrl.u32 %v2162, 7
      %v2164 = vsub.s32 %v2161, %v2163
      %v2165 = vrot.slane %v2151, %v2164
      %v2166 = vcombine.high %v2158, %v2158
      %v2168 = vunpack.c.l.s4 1966171168
      %v2169 = vunpack.c.0.s8 %v2168
      %v2170 = vlaneseq
      %v2171 = vshrl.u32 %v2170, 7
      %v2172 = vsub.s32 %v2169, %v2171
      %v2173 = vrot.slane %v1863, %v2172
      %v2174 = vcombine.high %v2173, %v2173
      %v2176 = vunpack.c.l.s4 1966171168
      %v2177 = vunpack.c.0.s8 %v2176
      %v2178 = vlaneseq
      %v2179 = vshrl.u32 %v2178, 7
      %v2180 = vsub.s32 %v2177, %v2179
      %v2181 = vrot.slane %v2173, %v2180
      %v2183 = vunpack.c.l.s4 1966171168
      %v2184 = vunpack.c.0.s8 %v2183
      %v2185 = vlaneseq
      %v2186 = vshrl.u32 %v2185, 7
      %v2187 = vsub.s32 %v2184, %v2186
      %v2188 = vrot.slane %v2174, %v2187
      %v2189 = vcombine.high %v2181, %v2181
      %v2191 = vunpack.c.l.s4 1966171168
      %v2192 = vunpack.c.0.s8 %v2191
      %v2193 = vlaneseq
      %v2194 = vshrl.u32 %v2193, 7
      %v2195 = vsub.s32 %v2192, %v2194
      %v2196 = vrot.slane %v1864, %v2195
      %v2197 = vcombine.high %v2196, %v2196
      %v2199 = vunpack.c.l.s4 1966171168
      %v2200 = vunpack.c.0.s8 %v2199
      %v2201 = vlaneseq
      %v2202 = vshrl.u32 %v2201, 7
      %v2203 = vsub.s32 %v2200, %v2202
      %v2204 = vrot.slane %v2196, %v2203
      %v2206 = vunpack.c.l.s4 1966171168
      %v2207 = vunpack.c.0.s8 %v2206
      %v2208 = vlaneseq
      %v2209 = vshrl.u32 %v2208, 7
      %v2210 = vsub.s32 %v2207, %v2209
      %v2211 = vrot.slane %v2197, %v2210
      %v2212 = vcombine.high %v2204, %v2204
      %v2214 = vunpack.c.l.s4 1966171168
      %v2215 = vunpack.c.0.s8 %v2214
      %v2216 = vlaneseq
      %v2217 = vshrl.u32 %v2216, 7
      %v2218 = vsub.s32 %v2215, %v2217
      %v2219 = vrot.slane %v1865, %v2218
      %v2220 = vcombine.high %v2219, %v2219
      %v2222 = vunpack.c.l.s4 1966171168
      %v2223 = vunpack.c.0.s8 %v2222
      %v2224 = vlaneseq
      %v2225 = vshrl.u32 %v2224, 7
      %v2226 = vsub.s32 %v2223, %v2225
      %v2227 = vrot.slane %v2219, %v2226
      %v2229 = vunpack.c.l.s4 1966171168
      %v2230 = vunpack.c.0.s8 %v2229
      %v2231 = vlaneseq
      %v2232 = vshrl.u32 %v2231, 7
      %v2233 = vsub.s32 %v2230, %v2232
      %v2234 = vrot.slane %v2220, %v2233
      %v2235 = vcombine.high %v2227, %v2227
      %v2237 = vunpack.c.l.s4 1966171168
      %v2238 = vunpack.c.0.s8 %v2237
      %v2239 = vlaneseq
      %v2240 = vshrl.u32 %v2239, 7
      %v2241 = vsub.s32 %v2238, %v2240
      %v2242 = vrot.slane %v1866, %v2241
      %v2243 = vcombine.high %v2242, %v2242
      %v2245 = vunpack.c.l.s4 1966171168
      %v2246 = vunpack.c.0.s8 %v2245
      %v2247 = vlaneseq
      %v2248 = vshrl.u32 %v2247, 7
      %v2249 = vsub.s32 %v2246, %v2248
      %v2250 = vrot.slane %v2242, %v2249
      %v2252 = vunpack.c.l.s4 1966171168
      %v2253 = vunpack.c.0.s8 %v2252
      %v2254 = vlaneseq
      %v2255 = vshrl.u32 %v2254, 7
      %v2256 = vsub.s32 %v2253, %v2255
      %v2257 = vrot.slane %v2243, %v2256
      %v2258 = vcombine.high %v2250, %v2250
      %v2260 = vunpack.c.l.s4 1966171168
      %v2261 = vunpack.c.0.s8 %v2260
      %v2262 = vlaneseq
      %v2263 = vshrl.u32 %v2262, 7
      %v2264 = vsub.s32 %v2261, %v2263
      %v2265 = vrot.slane %v1867, %v2264
      %v2266 = vcombine.high %v2265, %v2265
      %v2268 = vunpack.c.l.s4 1966171168
      %v2269 = vunpack.c.0.s8 %v2268
      %v2270 = vlaneseq
      %v2271 = vshrl.u32 %v2270, 7
      %v2272 = vsub.s32 %v2269, %v2271
      %v2273 = vrot.slane %v2265, %v2272
      %v2275 = vunpack.c.l.s4 1966171168
      %v2276 = vunpack.c.0.s8 %v2275
      %v2277 = vlaneseq
      %v2278 = vshrl.u32 %v2277, 7
      %v2279 = vsub.s32 %v2276, %v2278
      %v2280 = vrot.slane %v2266, %v2279
      %v2281 = vcombine.high %v2273, %v2273
      %v2283 = vunpack.c.l.s4 1966171168
      %v2284 = vunpack.c.0.s8 %v2283
      %v2285 = vlaneseq
      %v2286 = vshrl.u32 %v2285, 7
      %v2287 = vsub.s32 %v2284, %v2286
      %v2288 = vrot.slane %v1868, %v2287
      %v2289 = vcombine.high %v2288, %v2288
      %v2291 = vunpack.c.l.s4 1966171168
      %v2292 = vunpack.c.0.s8 %v2291
      %v2293 = vlaneseq
      %v2294 = vshrl.u32 %v2293, 7
      %v2295 = vsub.s32 %v2292, %v2294
      %v2296 = vrot.slane %v2288, %v2295
      %v2298 = vunpack.c.l.s4 1966171168
      %v2299 = vunpack.c.0.s8 %v2298
      %v2300 = vlaneseq
      %v2301 = vshrl.u32 %v2300, 7
      %v2302 = vsub.s32 %v2299, %v2301
      %v2303 = vrot.slane %v2289, %v2302
      %v2304 = vcombine.high %v2296, %v2296
      %v2306 = vunpack.c.l.s4 1966171168
      %v2307 = vunpack.c.0.s8 %v2306
      %v2308 = vlaneseq
      %v2309 = vshrl.u32 %v2308, 7
      %v2310 = vsub.s32 %v2307, %v2309
      %v2311 = vrot.slane %v1869, %v2310
      %v2312 = vcombine.high %v2311, %v2311
      %v2314 = vunpack.c.l.s4 1966171168
      %v2315 = vunpack.c.0.s8 %v2314
      %v2316 = vlaneseq
      %v2317 = vshrl.u32 %v2316, 7
      %v2318 = vsub.s32 %v2315, %v2317
      %v2319 = vrot.slane %v2311, %v2318
      %v2321 = vunpack.c.l.s4 1966171168
      %v2322 = vunpack.c.0.s8 %v2321
      %v2323 = vlaneseq
      %v2324 = vshrl.u32 %v2323, 7
      %v2325 = vsub.s32 %v2322, %v2324
      %v2326 = vrot.slane %v2312, %v2325
      %v2327 = vcombine.high %v2319, %v2319
      %v2329 = vunpack.c.l.s4 1966171168
      %v2330 = vunpack.c.0.s8 %v2329
      %v2331 = vlaneseq
      %v2332 = vshrl.u32 %v2331, 7
      %v2333 = vsub.s32 %v2330, %v2332
      %v2334 = vrot.slane %v1870, %v2333
      %v2335 = vcombine.high %v2334, %v2334
      %v2337 = vunpack.c.l.s4 1966171168
      %v2338 = vunpack.c.0.s8 %v2337
      %v2339 = vlaneseq
      %v2340 = vshrl.u32 %v2339, 7
      %v2341 = vsub.s32 %v2338, %v2340
      %v2342 = vrot.slane %v2334, %v2341
      %v2344 = vunpack.c.l.s4 1966171168
      %v2345 = vunpack.c.0.s8 %v2344
      %v2346 = vlaneseq
      %v2347 = vshrl.u32 %v2346, 7
      %v2348 = vsub.s32 %v2345, %v2347
      %v2349 = vrot.slane %v2335, %v2348
      %v2350 = vcombine.high %v2342, %v2342
      %v2352 = vunpack.c.l.s4 1966171168
      %v2353 = vunpack.c.0.s8 %v2352
      %v2354 = vlaneseq
      %v2355 = vshrl.u32 %v2354, 7
      %v2356 = vsub.s32 %v2353, %v2355
      %v2357 = vrot.slane %v1871, %v2356
      %v2358 = vcombine.high %v2357, %v2357
      %v2360 = vunpack.c.l.s4 1966171168
      %v2361 = vunpack.c.0.s8 %v2360
      %v2362 = vlaneseq
      %v2363 = vshrl.u32 %v2362, 7
      %v2364 = vsub.s32 %v2361, %v2363
      %v2365 = vrot.slane %v2357, %v2364
      %v2367 = vunpack.c.l.s4 1966171168
      %v2368 = vunpack.c.0.s8 %v2367
      %v2369 = vlaneseq
      %v2370 = vshrl.u32 %v2369, 7
      %v2371 = vsub.s32 %v2368, %v2370
      %v2372 = vrot.slane %v2358, %v2371
      %v2373 = vcombine.high %v2365, %v2365
      %v2375 = vunpack.c.l.s4 1966171168
      %v2376 = vunpack.c.0.s8 %v2375
      %v2377 = vlaneseq
      %v2378 = vshrl.u32 %v2377, 7
      %v2379 = vsub.s32 %v2376, %v2378
      %v2380 = vrot.slane %v1872, %v2379
      %v2381 = vcombine.high %v2380, %v2380
      %v2383 = vunpack.c.l.s4 1966171168
      %v2384 = vunpack.c.0.s8 %v2383
      %v2385 = vlaneseq
      %v2386 = vshrl.u32 %v2385, 7
      %v2387 = vsub.s32 %v2384, %v2386
      %v2388 = vrot.slane %v2380, %v2387
      %v2390 = vunpack.c.l.s4 1966171168
      %v2391 = vunpack.c.0.s8 %v2390
      %v2392 = vlaneseq
      %v2393 = vshrl.u32 %v2392, 7
      %v2394 = vsub.s32 %v2391, %v2393
      %v2395 = vrot.slane %v2381, %v2394
      %v2396 = vcombine.high %v2388, %v2388
      %v2398 = vunpack.c.l.s4 1966171168
      %v2399 = vunpack.c.0.s8 %v2398
      %v2400 = vlaneseq
      %v2401 = vshrl.u32 %v2400, 7
      %v2402 = vsub.s32 %v2399, %v2401
      %v2403 = vrot.slane %v1873, %v2402
      %v2404 = vcombine.high %v2403, %v2403
      %v2406 = vunpack.c.l.s4 1966171168
      %v2407 = vunpack.c.0.s8 %v2406
      %v2408 = vlaneseq
      %v2409 = vshrl.u32 %v2408, 7
      %v2410 = vsub.s32 %v2407, %v2409
      %v2411 = vrot.slane %v2403, %v2410
      %v2413 = vunpack.c.l.s4 1966171168
      %v2414 = vunpack.c.0.s8 %v2413
      %v2415 = vlaneseq
      %v2416 = vshrl.u32 %v2415, 7
      %v2417 = vsub.s32 %v2414, %v2416
      %v2418 = vrot.slane %v2404, %v2417
      %v2419 = vcombine.high %v2411, %v2411
      %v2421 = vunpack.c.l.s4 1966171168
      %v2422 = vunpack.c.0.s8 %v2421
      %v2423 = vlaneseq
      %v2424 = vshrl.u32 %v2423, 7
      %v2425 = vsub.s32 %v2422, %v2424
      %v2426 = vrot.slane %v1874, %v2425
      %v2427 = vcombine.high %v2426, %v2426
      %v2429 = vunpack.c.l.s4 1966171168
      %v2430 = vunpack.c.0.s8 %v2429
      %v2431 = vlaneseq
      %v2432 = vshrl.u32 %v2431, 7
      %v2433 = vsub.s32 %v2430, %v2432
      %v2434 = vrot.slane %v2426, %v2433
      %v2436 = vunpack.c.l.s4 1966171168
      %v2437 = vunpack.c.0.s8 %v2436
      %v2438 = vlaneseq
      %v2439 = vshrl.u32 %v2438, 7
      %v2440 = vsub.s32 %v2437, %v2439
      %v2441 = vrot.slane %v2427, %v2440
      %v2442 = vcombine.high %v2434, %v2434
      %v2444 = vunpack.c.l.s4 1966171168
      %v2445 = vunpack.c.0.s8 %v2444
      %v2446 = vlaneseq
      %v2447 = vshrl.u32 %v2446, 7
      %v2448 = vsub.s32 %v2445, %v2447
      %v2449 = vrot.slane %v1875, %v2448
      %v2450 = vcombine.high %v2449, %v2449
      %v2452 = vunpack.c.l.s4 1966171168
      %v2453 = vunpack.c.0.s8 %v2452
      %v2454 = vlaneseq
      %v2455 = vshrl.u32 %v2454, 7
      %v2456 = vsub.s32 %v2453, %v2455
      %v2457 = vrot.slane %v2449, %v2456
      %v2459 = vunpack.c.l.s4 1966171168
      %v2460 = vunpack.c.0.s8 %v2459
      %v2461 = vlaneseq
      %v2462 = vshrl.u32 %v2461, 7
      %v2463 = vsub.s32 %v2460, %v2462
      %v2464 = vrot.slane %v2450, %v2463
      %v2465 = vcombine.high %v2457, %v2457
      %v2467 = vunpack.c.l.s4 1966171168
      %v2468 = vunpack.c.0.s8 %v2467
      %v2469 = vlaneseq
      %v2470 = vshrl.u32 %v2469, 7
      %v2471 = vsub.s32 %v2468, %v2470
      %v2472 = vrot.slane %v1876, %v2471
      %v2473 = vcombine.high %v2472, %v2472
      %v2475 = vunpack.c.l.s4 1966171168
      %v2476 = vunpack.c.0.s8 %v2475
      %v2477 = vlaneseq
      %v2478 = vshrl.u32 %v2477, 7
      %v2479 = vsub.s32 %v2476, %v2478
      %v2480 = vrot.slane %v2472, %v2479
      %v2482 = vunpack.c.l.s4 1966171168
      %v2483 = vunpack.c.0.s8 %v2482
      %v2484 = vlaneseq
      %v2485 = vshrl.u32 %v2484, 7
      %v2486 = vsub.s32 %v2483, %v2485
      %v2487 = vrot.slane %v2473, %v2486
      %v2488 = vcombine.high %v2480, %v2480
      %v2490 = vunpack.c.l.s4 1966171168
      %v2491 = vunpack.c.0.s8 %v2490
      %v2492 = vlaneseq
      %v2493 = vshrl.u32 %v2492, 7
      %v2494 = vsub.s32 %v2491, %v2493
      %v2495 = vrot.slane %v1877, %v2494
      %v2496 = vcombine.high %v2495, %v2495
      %v2498 = vunpack.c.l.s4 1966171168
      %v2499 = vunpack.c.0.s8 %v2498
      %v2500 = vlaneseq
      %v2501 = vshrl.u32 %v2500, 7
      %v2502 = vsub.s32 %v2499, %v2501
      %v2503 = vrot.slane %v2495, %v2502
      %v2505 = vunpack.c.l.s4 1966171168
      %v2506 = vunpack.c.0.s8 %v2505
      %v2507 = vlaneseq
      %v2508 = vshrl.u32 %v2507, 7
      %v2509 = vsub.s32 %v2506, %v2508
      %v2510 = vrot.slane %v2496, %v2509
      %v2511 = vcombine.high %v2503, %v2503
      %v2513 = vunpack.c.l.s4 1966171168
      %v2514 = vunpack.c.0.s8 %v2513
      %v2515 = vlaneseq
      %v2516 = vshrl.u32 %v2515, 7
      %v2517 = vsub.s32 %v2514, %v2516
      %v2518 = vrot.slane %v1878, %v2517
      %v2519 = vcombine.high %v2518, %v2518
      %v2521 = vunpack.c.l.s4 1966171168
      %v2522 = vunpack.c.0.s8 %v2521
      %v2523 = vlaneseq
      %v2524 = vshrl.u32 %v2523, 7
      %v2525 = vsub.s32 %v2522, %v2524
      %v2526 = vrot.slane %v2518, %v2525
      %v2528 = vunpack.c.l.s4 1966171168
      %v2529 = vunpack.c.0.s8 %v2528
      %v2530 = vlaneseq
      %v2531 = vshrl.u32 %v2530, 7
      %v2532 = vsub.s32 %v2529, %v2531
      %v2533 = vrot.slane %v2519, %v2532
      %v2534 = vcombine.high %v2526, %v2526
      %v2536 = vunpack.c.l.s4 1966171168
      %v2537 = vunpack.c.0.s8 %v2536
      %v2538 = vlaneseq
      %v2539 = vshrl.u32 %v2538, 7
      %v2540 = vsub.s32 %v2537, %v2539
      %v2541 = vrot.slane %v1879, %v2540
      %v2542 = vcombine.high %v2541, %v2541
      %v2544 = vunpack.c.l.s4 1966171168
      %v2545 = vunpack.c.0.s8 %v2544
      %v2546 = vlaneseq
      %v2547 = vshrl.u32 %v2546, 7
      %v2548 = vsub.s32 %v2545, %v2547
      %v2549 = vrot.slane %v2541, %v2548
      %v2551 = vunpack.c.l.s4 1966171168
      %v2552 = vunpack.c.0.s8 %v2551
      %v2553 = vlaneseq
      %v2554 = vshrl.u32 %v2553, 7
      %v2555 = vsub.s32 %v2552, %v2554
      %v2556 = vrot.slane %v2542, %v2555
      %v2557 = vcombine.high %v2549, %v2549
      %v2559 = vunpack.c.l.s4 1966171168
      %v2560 = vunpack.c.0.s8 %v2559
      %v2561 = vlaneseq
      %v2562 = vshrl.u32 %v2561, 7
      %v2563 = vsub.s32 %v2560, %v2562
      %v2564 = vrot.slane %v1880, %v2563
      %v2565 = vcombine.high %v2564, %v2564
      %v2567 = vunpack.c.l.s4 1966171168
      %v2568 = vunpack.c.0.s8 %v2567
      %v2569 = vlaneseq
      %v2570 = vshrl.u32 %v2569, 7
      %v2571 = vsub.s32 %v2568, %v2570
      %v2572 = vrot.slane %v2564, %v2571
      %v2574 = vunpack.c.l.s4 1966171168
      %v2575 = vunpack.c.0.s8 %v2574
      %v2576 = vlaneseq
      %v2577 = vshrl.u32 %v2576, 7
      %v2578 = vsub.s32 %v2575, %v2577
      %v2579 = vrot.slane %v2565, %v2578
      %v2580 = vcombine.high %v2572, %v2572
      %v2582 = vunpack.c.l.s4 1966171168
      %v2583 = vunpack.c.0.s8 %v2582
      %v2584 = vlaneseq
      %v2585 = vshrl.u32 %v2584, 7
      %v2586 = vsub.s32 %v2583, %v2585
      %v2587 = vrot.slane %v1881, %v2586
      %v2588 = vcombine.high %v2587, %v2587
      %v2590 = vunpack.c.l.s4 1966171168
      %v2591 = vunpack.c.0.s8 %v2590
      %v2592 = vlaneseq
      %v2593 = vshrl.u32 %v2592, 7
      %v2594 = vsub.s32 %v2591, %v2593
      %v2595 = vrot.slane %v2587, %v2594
      %v2597 = vunpack.c.l.s4 1966171168
      %v2598 = vunpack.c.0.s8 %v2597
      %v2599 = vlaneseq
      %v2600 = vshrl.u32 %v2599, 7
      %v2601 = vsub.s32 %v2598, %v2600
      %v2602 = vrot.slane %v2588, %v2601
      %v2603 = vcombine.high %v2595, %v2595
      %v2605 = vunpack.c.l.s4 1966171168
      %v2606 = vunpack.c.0.s8 %v2605
      %v2607 = vlaneseq
      %v2608 = vshrl.u32 %v2607, 7
      %v2609 = vsub.s32 %v2606, %v2608
      %v2610 = vrot.slane %v1882, %v2609
      %v2611 = vcombine.high %v2610, %v2610
      %v2613 = vunpack.c.l.s4 1966171168
      %v2614 = vunpack.c.0.s8 %v2613
      %v2615 = vlaneseq
      %v2616 = vshrl.u32 %v2615, 7
      %v2617 = vsub.s32 %v2614, %v2616
      %v2618 = vrot.slane %v2610, %v2617
      %v2620 = vunpack.c.l.s4 1966171168
      %v2621 = vunpack.c.0.s8 %v2620
      %v2622 = vlaneseq
      %v2623 = vshrl.u32 %v2622, 7
      %v2624 = vsub.s32 %v2621, %v2623
      %v2625 = vrot.slane %v2611, %v2624
      %v2626 = vcombine.high %v2618, %v2618
      %v2628 = vunpack.c.l.s4 1966171168
      %v2629 = vunpack.c.0.s8 %v2628
      %v2630 = vlaneseq
      %v2631 = vshrl.u32 %v2630, 7
      %v2632 = vsub.s32 %v2629, %v2631
      %v2633 = vrot.slane %v1883, %v2632
      %v2634 = vcombine.high %v2633, %v2633
      %v2636 = vunpack.c.l.s4 1966171168
      %v2637 = vunpack.c.0.s8 %v2636
      %v2638 = vlaneseq
      %v2639 = vshrl.u32 %v2638, 7
      %v2640 = vsub.s32 %v2637, %v2639
      %v2641 = vrot.slane %v2633, %v2640
      %v2643 = vunpack.c.l.s4 1966171168
      %v2644 = vunpack.c.0.s8 %v2643
      %v2645 = vlaneseq
      %v2646 = vshrl.u32 %v2645, 7
      %v2647 = vsub.s32 %v2644, %v2646
      %v2648 = vrot.slane %v2634, %v2647
      %v2649 = vcombine.high %v2641, %v2641
      %v2651 = vunpack.c.l.s4 1966171168
      %v2652 = vunpack.c.0.s8 %v2651
      %v2653 = vlaneseq
      %v2654 = vshrl.u32 %v2653, 7
      %v2655 = vsub.s32 %v2652, %v2654
      %v2656 = vrot.slane %v1884, %v2655
      %v2657 = vcombine.high %v2656, %v2656
      %v2659 = vunpack.c.l.s4 1966171168
      %v2660 = vunpack.c.0.s8 %v2659
      %v2661 = vlaneseq
      %v2662 = vshrl.u32 %v2661, 7
      %v2663 = vsub.s32 %v2660, %v2662
      %v2664 = vrot.slane %v2656, %v2663
      %v2666 = vunpack.c.l.s4 1966171168
      %v2667 = vunpack.c.0.s8 %v2666
      %v2668 = vlaneseq
      %v2669 = vshrl.u32 %v2668, 7
      %v2670 = vsub.s32 %v2667, %v2669
      %v2671 = vrot.slane %v2657, %v2670
      %v2672 = vcombine.high %v2664, %v2664
      %v2674 = vunpack.c.l.s4 1966171168
      %v2675 = vunpack.c.0.s8 %v2674
      %v2676 = vlaneseq
      %v2677 = vshrl.u32 %v2676, 7
      %v2678 = vsub.s32 %v2675, %v2677
      %v2679 = vrot.slane %v1885, %v2678
      %v2680 = vcombine.high %v2679, %v2679
      %v2682 = vunpack.c.l.s4 1966171168
      %v2683 = vunpack.c.0.s8 %v2682
      %v2684 = vlaneseq
      %v2685 = vshrl.u32 %v2684, 7
      %v2686 = vsub.s32 %v2683, %v2685
      %v2687 = vrot.slane %v2679, %v2686
      %v2689 = vunpack.c.l.s4 1966171168
      %v2690 = vunpack.c.0.s8 %v2689
      %v2691 = vlaneseq
      %v2692 = vshrl.u32 %v2691, 7
      %v2693 = vsub.s32 %v2690, %v2692
      %v2694 = vrot.slane %v2680, %v2693
      %v2695 = vcombine.high %v2687, %v2687
      %v2697 = vunpack.c.l.s4 1966171168
      %v2698 = vunpack.c.0.s8 %v2697
      %v2699 = vlaneseq
      %v2700 = vshrl.u32 %v2699, 7
      %v2701 = vsub.s32 %v2698, %v2700
      %v2702 = vrot.slane %v1886, %v2701
      %v2703 = vcombine.high %v2702, %v2702
      %v2705 = vunpack.c.l.s4 1966171168
      %v2706 = vunpack.c.0.s8 %v2705
      %v2707 = vlaneseq
      %v2708 = vshrl.u32 %v2707, 7
      %v2709 = vsub.s32 %v2706, %v2708
      %v2710 = vrot.slane %v2702, %v2709
      %v2712 = vunpack.c.l.s4 1966171168
      %v2713 = vunpack.c.0.s8 %v2712
      %v2714 = vlaneseq
      %v2715 = vshrl.u32 %v2714, 7
      %v2716 = vsub.s32 %v2713, %v2715
      %v2717 = vrot.slane %v2703, %v2716
      %v2718 = vcombine.high %v2710, %v2710
      %v2720 = vunpack.c.l.s4 1966171168
      %v2721 = vunpack.c.0.s8 %v2720
      %v2722 = vlaneseq
      %v2723 = vshrl.u32 %v2722, 7
      %v2724 = vsub.s32 %v2721, %v2723
      %v2725 = vrot.slane %v1887, %v2724
      %v2726 = vcombine.high %v2725, %v2725
      %v2728 = vunpack.c.l.s4 1966171168
      %v2729 = vunpack.c.0.s8 %v2728
      %v2730 = vlaneseq
      %v2731 = vshrl.u32 %v2730, 7
      %v2732 = vsub.s32 %v2729, %v2731
      %v2733 = vrot.slane %v2725, %v2732
      %v2735 = vunpack.c.l.s4 1966171168
      %v2736 = vunpack.c.0.s8 %v2735
      %v2737 = vlaneseq
      %v2738 = vshrl.u32 %v2737, 7
      %v2739 = vsub.s32 %v2736, %v2738
      %v2740 = vrot.slane %v2726, %v2739
      %v2741 = vcombine.high %v2733, %v2733
      %v2743 = vunpack.c.l.s4 1966171168
      %v2744 = vunpack.c.0.s8 %v2743
      %v2745 = vlaneseq
      %v2746 = vshrl.u32 %v2745, 7
      %v2747 = vsub.s32 %v2744, %v2746
      %v2748 = vrot.slane %v1888, %v2747
      %v2749 = vcombine.high %v2748, %v2748
      %v2751 = vunpack.c.l.s4 1966171168
      %v2752 = vunpack.c.0.s8 %v2751
      %v2753 = vlaneseq
      %v2754 = vshrl.u32 %v2753, 7
      %v2755 = vsub.s32 %v2752, %v2754
      %v2756 = vrot.slane %v2748, %v2755
      %v2758 = vunpack.c.l.s4 1966171168
      %v2759 = vunpack.c.0.s8 %v2758
      %v2760 = vlaneseq
      %v2761 = vshrl.u32 %v2760, 7
      %v2762 = vsub.s32 %v2759, %v2761
      %v2763 = vrot.slane %v2749, %v2762
      %v2764 = vcombine.high %v2756, %v2756
      %v2766 = vunpack.c.l.s4 1966171168
      %v2767 = vunpack.c.0.s8 %v2766
      %v2768 = vlaneseq
      %v2769 = vshrl.u32 %v2768, 7
      %v2770 = vsub.s32 %v2767, %v2769
      %v2771 = vrot.slane %v1889, %v2770
      %v2772 = vcombine.high %v2771, %v2771
      %v2774 = vunpack.c.l.s4 1966171168
      %v2775 = vunpack.c.0.s8 %v2774
      %v2776 = vlaneseq
      %v2777 = vshrl.u32 %v2776, 7
      %v2778 = vsub.s32 %v2775, %v2777
      %v2779 = vrot.slane %v2771, %v2778
      %v2781 = vunpack.c.l.s4 1966171168
      %v2782 = vunpack.c.0.s8 %v2781
      %v2783 = vlaneseq
      %v2784 = vshrl.u32 %v2783, 7
      %v2785 = vsub.s32 %v2782, %v2784
      %v2786 = vrot.slane %v2772, %v2785
      %v2787 = vcombine.high %v2779, %v2779
      %v2789 = vunpack.c.l.s4 1966171168
      %v2790 = vunpack.c.0.s8 %v2789
      %v2791 = vlaneseq
      %v2792 = vshrl.u32 %v2791, 7
      %v2793 = vsub.s32 %v2790, %v2792
      %v2794 = vrot.slane %v1890, %v2793
      %v2795 = vcombine.high %v2794, %v2794
      %v2797 = vunpack.c.l.s4 1966171168
      %v2798 = vunpack.c.0.s8 %v2797
      %v2799 = vlaneseq
      %v2800 = vshrl.u32 %v2799, 7
      %v2801 = vsub.s32 %v2798, %v2800
      %v2802 = vrot.slane %v2794, %v2801
      %v2804 = vunpack.c.l.s4 1966171168
      %v2805 = vunpack.c.0.s8 %v2804
      %v2806 = vlaneseq
      %v2807 = vshrl.u32 %v2806, 7
      %v2808 = vsub.s32 %v2805, %v2807
      %v2809 = vrot.slane %v2795, %v2808
      %v2810 = vcombine.high %v2802, %v2802
      %v2812 = vunpack.c.l.s4 1966171168
      %v2813 = vunpack.c.0.s8 %v2812
      %v2814 = vlaneseq
      %v2815 = vshrl.u32 %v2814, 7
      %v2816 = vsub.s32 %v2813, %v2815
      %v2817 = vrot.slane %v1891, %v2816
      %v2818 = vcombine.high %v2817, %v2817
      %v2820 = vunpack.c.l.s4 1966171168
      %v2821 = vunpack.c.0.s8 %v2820
      %v2822 = vlaneseq
      %v2823 = vshrl.u32 %v2822, 7
      %v2824 = vsub.s32 %v2821, %v2823
      %v2825 = vrot.slane %v2817, %v2824
      %v2827 = vunpack.c.l.s4 1966171168
      %v2828 = vunpack.c.0.s8 %v2827
      %v2829 = vlaneseq
      %v2830 = vshrl.u32 %v2829, 7
      %v2831 = vsub.s32 %v2828, %v2830
      %v2832 = vrot.slane %v2818, %v2831
      %v2833 = vcombine.high %v2825, %v2825
      %v2835 = vunpack.c.l.s4 1966171168
      %v2836 = vunpack.c.0.s8 %v2835
      %v2837 = vlaneseq
      %v2838 = vshrl.u32 %v2837, 7
      %v2839 = vsub.s32 %v2836, %v2838
      %v2840 = vrot.slane %v1892, %v2839
      %v2841 = vcombine.high %v2840, %v2840
      %v2843 = vunpack.c.l.s4 1966171168
      %v2844 = vunpack.c.0.s8 %v2843
      %v2845 = vlaneseq
      %v2846 = vshrl.u32 %v2845, 7
      %v2847 = vsub.s32 %v2844, %v2846
      %v2848 = vrot.slane %v2840, %v2847
      %v2850 = vunpack.c.l.s4 1966171168
      %v2851 = vunpack.c.0.s8 %v2850
      %v2852 = vlaneseq
      %v2853 = vshrl.u32 %v2852, 7
      %v2854 = vsub.s32 %v2851, %v2853
      %v2855 = vrot.slane %v2841, %v2854
      %v2856 = vcombine.high %v2848, %v2848
      %v2858 = vunpack.c.l.s4 1966171168
      %v2859 = vunpack.c.0.s8 %v2858
      %v2860 = vlaneseq
      %v2861 = vshrl.u32 %v2860, 7
      %v2862 = vsub.s32 %v2859, %v2861
      %v2863 = vrot.slane %v1893, %v2862
      %v2864 = vcombine.high %v2863, %v2863
      %v2866 = vunpack.c.l.s4 1966171168
      %v2867 = vunpack.c.0.s8 %v2866
      %v2868 = vlaneseq
      %v2869 = vshrl.u32 %v2868, 7
      %v2870 = vsub.s32 %v2867, %v2869
      %v2871 = vrot.slane %v2863, %v2870
      %v2873 = vunpack.c.l.s4 1966171168
      %v2874 = vunpack.c.0.s8 %v2873
      %v2875 = vlaneseq
      %v2876 = vshrl.u32 %v2875, 7
      %v2877 = vsub.s32 %v2874, %v2876
      %v2878 = vrot.slane %v2864, %v2877
      %v2879 = vcombine.high %v2871, %v2871
      %v2881 = vunpack.c.l.s4 1966171168
      %v2882 = vunpack.c.0.s8 %v2881
      %v2883 = vlaneseq
      %v2884 = vshrl.u32 %v2883, 7
      %v2885 = vsub.s32 %v2882, %v2884
      %v2886 = vrot.slane %v1894, %v2885
      %v2887 = vcombine.high %v2886, %v2886
      %v2889 = vunpack.c.l.s4 1966171168
      %v2890 = vunpack.c.0.s8 %v2889
      %v2891 = vlaneseq
      %v2892 = vshrl.u32 %v2891, 7
      %v2893 = vsub.s32 %v2890, %v2892
      %v2894 = vrot.slane %v2886, %v2893
      %v2896 = vunpack.c.l.s4 1966171168
      %v2897 = vunpack.c.0.s8 %v2896
      %v2898 = vlaneseq
      %v2899 = vshrl.u32 %v2898, 7
      %v2900 = vsub.s32 %v2897, %v2899
      %v2901 = vrot.slane %v2887, %v2900
      %v2902 = vcombine.high %v2894, %v2894
      %v2904 = vunpack.c.l.s4 1966171168
      %v2905 = vunpack.c.0.s8 %v2904
      %v2906 = vlaneseq
      %v2907 = vshrl.u32 %v2906, 7
      %v2908 = vsub.s32 %v2905, %v2907
      %v2909 = vrot.slane %v1895, %v2908
      %v2910 = vcombine.high %v2909, %v2909
      %v2912 = vunpack.c.l.s4 1966171168
      %v2913 = vunpack.c.0.s8 %v2912
      %v2914 = vlaneseq
      %v2915 = vshrl.u32 %v2914, 7
      %v2916 = vsub.s32 %v2913, %v2915
      %v2917 = vrot.slane %v2909, %v2916
      %v2919 = vunpack.c.l.s4 1966171168
      %v2920 = vunpack.c.0.s8 %v2919
      %v2921 = vlaneseq
      %v2922 = vshrl.u32 %v2921, 7
      %v2923 = vsub.s32 %v2920, %v2922
      %v2924 = vrot.slane %v2910, %v2923
      %v2925 = vcombine.high %v2917, %v2917
      %v2927 = vunpack.c.l.s4 1966171168
      %v2928 = vunpack.c.0.s8 %v2927
      %v2929 = vlaneseq
      %v2930 = vshrl.u32 %v2929, 7
      %v2931 = vsub.s32 %v2928, %v2930
      %v2932 = vrot.slane %v1896, %v2931
      %v2933 = vcombine.high %v2932, %v2932
      %v2935 = vunpack.c.l.s4 1966171168
      %v2936 = vunpack.c.0.s8 %v2935
      %v2937 = vlaneseq
      %v2938 = vshrl.u32 %v2937, 7
      %v2939 = vsub.s32 %v2936, %v2938
      %v2940 = vrot.slane %v2932, %v2939
      %v2942 = vunpack.c.l.s4 1966171168
      %v2943 = vunpack.c.0.s8 %v2942
      %v2944 = vlaneseq
      %v2945 = vshrl.u32 %v2944, 7
      %v2946 = vsub.s32 %v2943, %v2945
      %v2947 = vrot.slane %v2933, %v2946
      %v2948 = vcombine.high %v2940, %v2940
      %v2950 = vunpack.c.l.s4 1966171168
      %v2951 = vunpack.c.0.s8 %v2950
      %v2952 = vlaneseq
      %v2953 = vshrl.u32 %v2952, 7
      %v2954 = vsub.s32 %v2951, %v2953
      %v2955 = vrot.slane %v1897, %v2954
      %v2956 = vcombine.high %v2955, %v2955
      %v2958 = vunpack.c.l.s4 1966171168
      %v2959 = vunpack.c.0.s8 %v2958
      %v2960 = vlaneseq
      %v2961 = vshrl.u32 %v2960, 7
      %v2962 = vsub.s32 %v2959, %v2961
      %v2963 = vrot.slane %v2955, %v2962
      %v2965 = vunpack.c.l.s4 1966171168
      %v2966 = vunpack.c.0.s8 %v2965
      %v2967 = vlaneseq
      %v2968 = vshrl.u32 %v2967, 7
      %v2969 = vsub.s32 %v2966, %v2968
      %v2970 = vrot.slane %v2956, %v2969
      %v2971 = vcombine.high %v2963, %v2963
      %v2973 = vunpack.c.l.s4 1966171168
      %v2974 = vunpack.c.0.s8 %v2973
      %v2975 = vlaneseq
      %v2976 = vshrl.u32 %v2975, 7
      %v2977 = vsub.s32 %v2974, %v2976
      %v2978 = vrot.slane %v1898, %v2977
      %v2979 = vcombine.high %v2978, %v2978
      %v2981 = vunpack.c.l.s4 1966171168
      %v2982 = vunpack.c.0.s8 %v2981
      %v2983 = vlaneseq
      %v2984 = vshrl.u32 %v2983, 7
      %v2985 = vsub.s32 %v2982, %v2984
      %v2986 = vrot.slane %v2978, %v2985
      %v2988 = vunpack.c.l.s4 1966171168
      %v2989 = vunpack.c.0.s8 %v2988
      %v2990 = vlaneseq
      %v2991 = vshrl.u32 %v2990, 7
      %v2992 = vsub.s32 %v2989, %v2991
      %v2993 = vrot.slane %v2979, %v2992
      %v2994 = vcombine.high %v2986, %v2986
      %v2996 = vunpack.c.l.s4 1966171168
      %v2997 = vunpack.c.0.s8 %v2996
      %v2998 = vlaneseq
      %v2999 = vshrl.u32 %v2998, 7
      %v3000 = vsub.s32 %v2997, %v2999
      %v3001 = vrot.slane %v1899, %v3000
      %v3002 = vcombine.high %v3001, %v3001
      %v3004 = vunpack.c.l.s4 1966171168
      %v3005 = vunpack.c.0.s8 %v3004
      %v3006 = vlaneseq
      %v3007 = vshrl.u32 %v3006, 7
      %v3008 = vsub.s32 %v3005, %v3007
      %v3009 = vrot.slane %v3001, %v3008
      %v3011 = vunpack.c.l.s4 1966171168
      %v3012 = vunpack.c.0.s8 %v3011
      %v3013 = vlaneseq
      %v3014 = vshrl.u32 %v3013, 7
      %v3015 = vsub.s32 %v3012, %v3014
      %v3016 = vrot.slane %v3002, %v3015
      %v3017 = vcombine.high %v3009, %v3009
      %v3019 = vunpack.c.l.s4 1966171168
      %v3020 = vunpack.c.0.s8 %v3019
      %v3021 = vlaneseq
      %v3022 = vshrl.u32 %v3021, 7
      %v3023 = vsub.s32 %v3020, %v3022
      %v3024 = vrot.slane %v1900, %v3023
      %v3025 = vcombine.high %v3024, %v3024
      %v3027 = vunpack.c.l.s4 1966171168
      %v3028 = vunpack.c.0.s8 %v3027
      %v3029 = vlaneseq
      %v3030 = vshrl.u32 %v3029, 7
      %v3031 = vsub.s32 %v3028, %v3030
      %v3032 = vrot.slane %v3024, %v3031
      %v3034 = vunpack.c.l.s4 1966171168
      %v3035 = vunpack.c.0.s8 %v3034
      %v3036 = vlaneseq
      %v3037 = vshrl.u32 %v3036, 7
      %v3038 = vsub.s32 %v3035, %v3037
      %v3039 = vrot.slane %v3025, %v3038
      %v3040 = vcombine.high %v3032, %v3032
      %v3042 = vunpack.c.l.s4 1966171168
      %v3043 = vunpack.c.0.s8 %v3042
      %v3044 = vlaneseq
      %v3045 = vshrl.u32 %v3044, 7
      %v3046 = vsub.s32 %v3043, %v3045
      %v3047 = vrot.slane %v1901, %v3046
      %v3048 = vcombine.high %v3047, %v3047
      %v3050 = vunpack.c.l.s4 1966171168
      %v3051 = vunpack.c.0.s8 %v3050
      %v3052 = vlaneseq
      %v3053 = vshrl.u32 %v3052, 7
      %v3054 = vsub.s32 %v3051, %v3053
      %v3055 = vrot.slane %v3047, %v3054
      %v3057 = vunpack.c.l.s4 1966171168
      %v3058 = vunpack.c.0.s8 %v3057
      %v3059 = vlaneseq
      %v3060 = vshrl.u32 %v3059, 7
      %v3061 = vsub.s32 %v3058, %v3060
      %v3062 = vrot.slane %v3048, %v3061
      %v3063 = vcombine.high %v3055, %v3055
      %v3065 = vunpack.c.l.s4 1966171168
      %v3066 = vunpack.c.0.s8 %v3065
      %v3067 = vlaneseq
      %v3068 = vshrl.u32 %v3067, 7
      %v3069 = vsub.s32 %v3066, %v3068
      %v3070 = vrot.slane %v1902, %v3069
      %v3071 = vcombine.high %v3070, %v3070
      %v3073 = vunpack.c.l.s4 1966171168
      %v3074 = vunpack.c.0.s8 %v3073
      %v3075 = vlaneseq
      %v3076 = vshrl.u32 %v3075, 7
      %v3077 = vsub.s32 %v3074, %v3076
      %v3078 = vrot.slane %v3070, %v3077
      %v3080 = vunpack.c.l.s4 1966171168
      %v3081 = vunpack.c.0.s8 %v3080
      %v3082 = vlaneseq
      %v3083 = vshrl.u32 %v3082, 7
      %v3084 = vsub.s32 %v3081, %v3083
      %v3085 = vrot.slane %v3071, %v3084
      %v3086 = vcombine.high %v3078, %v3078
      %v3088 = vunpack.c.l.s4 1966171168
      %v3089 = vunpack.c.0.s8 %v3088
      %v3090 = vlaneseq
      %v3091 = vshrl.u32 %v3090, 7
      %v3092 = vsub.s32 %v3089, %v3091
      %v3093 = vrot.slane %v1903, %v3092
      %v3094 = vcombine.high %v3093, %v3093
      %v3096 = vunpack.c.l.s4 1966171168
      %v3097 = vunpack.c.0.s8 %v3096
      %v3098 = vlaneseq
      %v3099 = vshrl.u32 %v3098, 7
      %v3100 = vsub.s32 %v3097, %v3099
      %v3101 = vrot.slane %v3093, %v3100
      %v3103 = vunpack.c.l.s4 1966171168
      %v3104 = vunpack.c.0.s8 %v3103
      %v3105 = vlaneseq
      %v3106 = vshrl.u32 %v3105, 7
      %v3107 = vsub.s32 %v3104, %v3106
      %v3108 = vrot.slane %v3094, %v3107
      %v3109 = vcombine.high %v3101, %v3101
      %v3111 = vunpack.c.l.s4 1966171168
      %v3112 = vunpack.c.0.s8 %v3111
      %v3113 = vlaneseq
      %v3114 = vshrl.u32 %v3113, 7
      %v3115 = vsub.s32 %v3112, %v3114
      %v3116 = vrot.slane %v1904, %v3115
      %v3117 = vcombine.high %v3116, %v3116
      %v3119 = vunpack.c.l.s4 1966171168
      %v3120 = vunpack.c.0.s8 %v3119
      %v3121 = vlaneseq
      %v3122 = vshrl.u32 %v3121, 7
      %v3123 = vsub.s32 %v3120, %v3122
      %v3124 = vrot.slane %v3116, %v3123
      %v3126 = vunpack.c.l.s4 1966171168
      %v3127 = vunpack.c.0.s8 %v3126
      %v3128 = vlaneseq
      %v3129 = vshrl.u32 %v3128, 7
      %v3130 = vsub.s32 %v3127, %v3129
      %v3131 = vrot.slane %v3117, %v3130
      %v3132 = vcombine.high %v3124, %v3124
      %v3134 = vunpack.c.l.s4 1966171168
      %v3135 = vunpack.c.0.s8 %v3134
      %v3136 = vlaneseq
      %v3137 = vshrl.u32 %v3136, 7
      %v3138 = vsub.s32 %v3135, %v3137
      %v3139 = vrot.slane %v1905, %v3138
      %v3140 = vcombine.high %v3139, %v3139
      %v3142 = vunpack.c.l.s4 1966171168
      %v3143 = vunpack.c.0.s8 %v3142
      %v3144 = vlaneseq
      %v3145 = vshrl.u32 %v3144, 7
      %v3146 = vsub.s32 %v3143, %v3145
      %v3147 = vrot.slane %v3139, %v3146
      %v3149 = vunpack.c.l.s4 1966171168
      %v3150 = vunpack.c.0.s8 %v3149
      %v3151 = vlaneseq
      %v3152 = vshrl.u32 %v3151, 7
      %v3153 = vsub.s32 %v3150, %v3152
      %v3154 = vrot.slane %v3140, %v3153
      %v3155 = vcombine.high %v3147, %v3147
      %v3157 = vunpack.c.l.s4 1966171168
      %v3158 = vunpack.c.0.s8 %v3157
      %v3159 = vlaneseq
      %v3160 = vshrl.u32 %v3159, 7
      %v3161 = vsub.s32 %v3158, %v3160
      %v3162 = vrot.slane %v1906, %v3161
      %v3163 = vcombine.high %v3162, %v3162
      %v3165 = vunpack.c.l.s4 1966171168
      %v3166 = vunpack.c.0.s8 %v3165
      %v3167 = vlaneseq
      %v3168 = vshrl.u32 %v3167, 7
      %v3169 = vsub.s32 %v3166, %v3168
      %v3170 = vrot.slane %v3162, %v3169
      %v3172 = vunpack.c.l.s4 1966171168
      %v3173 = vunpack.c.0.s8 %v3172
      %v3174 = vlaneseq
      %v3175 = vshrl.u32 %v3174, 7
      %v3176 = vsub.s32 %v3173, %v3175
      %v3177 = vrot.slane %v3163, %v3176
      %v3178 = vcombine.high %v3170, %v3170
      %v3180 = vunpack.c.l.s4 1966171168
      %v3181 = vunpack.c.0.s8 %v3180
      %v3182 = vlaneseq
      %v3183 = vshrl.u32 %v3182, 7
      %v3184 = vsub.s32 %v3181, %v3183
      %v3185 = vrot.slane %v1907, %v3184
      %v3186 = vcombine.high %v3185, %v3185
      %v3188 = vunpack.c.l.s4 1966171168
      %v3189 = vunpack.c.0.s8 %v3188
      %v3190 = vlaneseq
      %v3191 = vshrl.u32 %v3190, 7
      %v3192 = vsub.s32 %v3189, %v3191
      %v3193 = vrot.slane %v3185, %v3192
      %v3195 = vunpack.c.l.s4 1966171168
      %v3196 = vunpack.c.0.s8 %v3195
      %v3197 = vlaneseq
      %v3198 = vshrl.u32 %v3197, 7
      %v3199 = vsub.s32 %v3196, %v3198
      %v3200 = vrot.slane %v3186, %v3199
      %v3201 = vcombine.high %v3193, %v3193
      %v3203 = vunpack.c.l.s4 1966171168
      %v3204 = vunpack.c.0.s8 %v3203
      %v3205 = vlaneseq
      %v3206 = vshrl.u32 %v3205, 7
      %v3207 = vsub.s32 %v3204, %v3206
      %v3208 = vrot.slane %v1908, %v3207
      %v3209 = vcombine.high %v3208, %v3208
      %v3211 = vunpack.c.l.s4 1966171168
      %v3212 = vunpack.c.0.s8 %v3211
      %v3213 = vlaneseq
      %v3214 = vshrl.u32 %v3213, 7
      %v3215 = vsub.s32 %v3212, %v3214
      %v3216 = vrot.slane %v3208, %v3215
      %v3218 = vunpack.c.l.s4 1966171168
      %v3219 = vunpack.c.0.s8 %v3218
      %v3220 = vlaneseq
      %v3221 = vshrl.u32 %v3220, 7
      %v3222 = vsub.s32 %v3219, %v3221
      %v3223 = vrot.slane %v3209, %v3222
      %v3224 = vcombine.high %v3216, %v3216
      %v3226 = vunpack.c.l.s4 1966171168
      %v3227 = vunpack.c.0.s8 %v3226
      %v3228 = vlaneseq
      %v3229 = vshrl.u32 %v3228, 7
      %v3230 = vsub.s32 %v3227, %v3229
      %v3231 = vrot.slane %v1909, %v3230
      %v3232 = vcombine.high %v3231, %v3231
      %v3234 = vunpack.c.l.s4 1966171168
      %v3235 = vunpack.c.0.s8 %v3234
      %v3236 = vlaneseq
      %v3237 = vshrl.u32 %v3236, 7
      %v3238 = vsub.s32 %v3235, %v3237
      %v3239 = vrot.slane %v3231, %v3238
      %v3241 = vunpack.c.l.s4 1966171168
      %v3242 = vunpack.c.0.s8 %v3241
      %v3243 = vlaneseq
      %v3244 = vshrl.u32 %v3243, 7
      %v3245 = vsub.s32 %v3242, %v3244
      %v3246 = vrot.slane %v3232, %v3245
      %v3247 = vcombine.high %v3239, %v3239
      %v3249 = vunpack.c.l.s4 1966171168
      %v3250 = vunpack.c.0.s8 %v3249
      %v3251 = vlaneseq
      %v3252 = vshrl.u32 %v3251, 7
      %v3253 = vsub.s32 %v3250, %v3252
      %v3254 = vrot.slane %v1910, %v3253
      %v3255 = vcombine.high %v3254, %v3254
      %v3257 = vunpack.c.l.s4 1966171168
      %v3258 = vunpack.c.0.s8 %v3257
      %v3259 = vlaneseq
      %v3260 = vshrl.u32 %v3259, 7
      %v3261 = vsub.s32 %v3258, %v3260
      %v3262 = vrot.slane %v3254, %v3261
      %v3264 = vunpack.c.l.s4 1966171168
      %v3265 = vunpack.c.0.s8 %v3264
      %v3266 = vlaneseq
      %v3267 = vshrl.u32 %v3266, 7
      %v3268 = vsub.s32 %v3265, %v3267
      %v3269 = vrot.slane %v3255, %v3268
      %v3270 = vcombine.high %v3262, %v3262
      %v3272 = vunpack.c.l.s4 1966171168
      %v3273 = vunpack.c.0.s8 %v3272
      %v3274 = vlaneseq
      %v3275 = vshrl.u32 %v3274, 7
      %v3276 = vsub.s32 %v3273, %v3275
      %v3277 = vrot.slane %v1911, %v3276
      %v3278 = vcombine.high %v3277, %v3277
      %v3280 = vunpack.c.l.s4 1966171168
      %v3281 = vunpack.c.0.s8 %v3280
      %v3282 = vlaneseq
      %v3283 = vshrl.u32 %v3282, 7
      %v3284 = vsub.s32 %v3281, %v3283
      %v3285 = vrot.slane %v3277, %v3284
      %v3287 = vunpack.c.l.s4 1966171168
      %v3288 = vunpack.c.0.s8 %v3287
      %v3289 = vlaneseq
      %v3290 = vshrl.u32 %v3289, 7
      %v3291 = vsub.s32 %v3288, %v3290
      %v3292 = vrot.slane %v3278, %v3291
      %v3293 = vcombine.high %v3285, %v3285
      %v3295 = vunpack.c.l.s4 1966171168
      %v3296 = vunpack.c.0.s8 %v3295
      %v3297 = vlaneseq
      %v3298 = vshrl.u32 %v3297, 7
      %v3299 = vsub.s32 %v3296, %v3298
      %v3300 = vrot.slane %v1912, %v3299
      %v3301 = vcombine.high %v3300, %v3300
      %v3303 = vunpack.c.l.s4 1966171168
      %v3304 = vunpack.c.0.s8 %v3303
      %v3305 = vlaneseq
      %v3306 = vshrl.u32 %v3305, 7
      %v3307 = vsub.s32 %v3304, %v3306
      %v3308 = vrot.slane %v3300, %v3307
      %v3310 = vunpack.c.l.s4 1966171168
      %v3311 = vunpack.c.0.s8 %v3310
      %v3312 = vlaneseq
      %v3313 = vshrl.u32 %v3312, 7
      %v3314 = vsub.s32 %v3311, %v3313
      %v3315 = vrot.slane %v3301, %v3314
      %v3316 = vcombine.high %v3308, %v3308
      %v3318 = vunpack.c.l.s4 1966171168
      %v3319 = vunpack.c.0.s8 %v3318
      %v3320 = vlaneseq
      %v3321 = vshrl.u32 %v3320, 7
      %v3322 = vsub.s32 %v3319, %v3321
      %v3323 = vrot.slane %v1913, %v3322
      %v3324 = vcombine.high %v3323, %v3323
      %v3326 = vunpack.c.l.s4 1966171168
      %v3327 = vunpack.c.0.s8 %v3326
      %v3328 = vlaneseq
      %v3329 = vshrl.u32 %v3328, 7
      %v3330 = vsub.s32 %v3327, %v3329
      %v3331 = vrot.slane %v3323, %v3330
      %v3333 = vunpack.c.l.s4 1966171168
      %v3334 = vunpack.c.0.s8 %v3333
      %v3335 = vlaneseq
      %v3336 = vshrl.u32 %v3335, 7
      %v3337 = vsub.s32 %v3334, %v3336
      %v3338 = vrot.slane %v3324, %v3337
      %v3339 = vcombine.high %v3331, %v3331
      %v3341 = vunpack.c.l.s4 1966171168
      %v3342 = vunpack.c.0.s8 %v3341
      %v3343 = vlaneseq
      %v3344 = vshrl.u32 %v3343, 7
      %v3345 = vsub.s32 %v3342, %v3344
      %v3346 = vrot.slane %v1914, %v3345
      %v3347 = vcombine.high %v3346, %v3346
      %v3349 = vunpack.c.l.s4 1966171168
      %v3350 = vunpack.c.0.s8 %v3349
      %v3351 = vlaneseq
      %v3352 = vshrl.u32 %v3351, 7
      %v3353 = vsub.s32 %v3350, %v3352
      %v3354 = vrot.slane %v3346, %v3353
      %v3356 = vunpack.c.l.s4 1966171168
      %v3357 = vunpack.c.0.s8 %v3356
      %v3358 = vlaneseq
      %v3359 = vshrl.u32 %v3358, 7
      %v3360 = vsub.s32 %v3357, %v3359
      %v3361 = vrot.slane %v3347, %v3360
      %v3362 = vcombine.high %v3354, %v3354
      %v3364 = vunpack.c.l.s4 1966171168
      %v3365 = vunpack.c.0.s8 %v3364
      %v3366 = vlaneseq
      %v3367 = vshrl.u32 %v3366, 7
      %v3368 = vsub.s32 %v3365, %v3367
      %v3369 = vrot.slane %v1915, %v3368
      %v3370 = vcombine.high %v3369, %v3369
      %v3372 = vunpack.c.l.s4 1966171168
      %v3373 = vunpack.c.0.s8 %v3372
      %v3374 = vlaneseq
      %v3375 = vshrl.u32 %v3374, 7
      %v3376 = vsub.s32 %v3373, %v3375
      %v3377 = vrot.slane %v3369, %v3376
      %v3379 = vunpack.c.l.s4 1966171168
      %v3380 = vunpack.c.0.s8 %v3379
      %v3381 = vlaneseq
      %v3382 = vshrl.u32 %v3381, 7
      %v3383 = vsub.s32 %v3380, %v3382
      %v3384 = vrot.slane %v3370, %v3383
      %v3385 = vcombine.high %v3377, %v3377
      %v3387 = vunpack.c.l.s4 1966171168
      %v3388 = vunpack.c.0.s8 %v3387
      %v3389 = vlaneseq
      %v3390 = vshrl.u32 %v3389, 7
      %v3391 = vsub.s32 %v3388, %v3390
      %v3392 = vrot.slane %v1916, %v3391
      %v3393 = vcombine.high %v3392, %v3392
      %v3395 = vunpack.c.l.s4 1966171168
      %v3396 = vunpack.c.0.s8 %v3395
      %v3397 = vlaneseq
      %v3398 = vshrl.u32 %v3397, 7
      %v3399 = vsub.s32 %v3396, %v3398
      %v3400 = vrot.slane %v3392, %v3399
      %v3402 = vunpack.c.l.s4 1966171168
      %v3403 = vunpack.c.0.s8 %v3402
      %v3404 = vlaneseq
      %v3405 = vshrl.u32 %v3404, 7
      %v3406 = vsub.s32 %v3403, %v3405
      %v3407 = vrot.slane %v3393, %v3406
      %v3408 = vcombine.high %v3400, %v3400
      %v3410 = vunpack.c.l.s4 1966171168
      %v3411 = vunpack.c.0.s8 %v3410
      %v3412 = vlaneseq
      %v3413 = vshrl.u32 %v3412, 7
      %v3414 = vsub.s32 %v3411, %v3413
      %v3415 = vrot.slane %v1917, %v3414
      %v3416 = vcombine.high %v3415, %v3415
      %v3418 = vunpack.c.l.s4 1966171168
      %v3419 = vunpack.c.0.s8 %v3418
      %v3420 = vlaneseq
      %v3421 = vshrl.u32 %v3420, 7
      %v3422 = vsub.s32 %v3419, %v3421
      %v3423 = vrot.slane %v3415, %v3422
      %v3425 = vunpack.c.l.s4 1966171168
      %v3426 = vunpack.c.0.s8 %v3425
      %v3427 = vlaneseq
      %v3428 = vshrl.u32 %v3427, 7
      %v3429 = vsub.s32 %v3426, %v3428
      %v3430 = vrot.slane %v3416, %v3429
      %v3431 = vcombine.high %v3423, %v3423
      %v3433 = vunpack.c.l.s4 1966171168
      %v3434 = vunpack.c.0.s8 %v3433
      %v3435 = vlaneseq
      %v3436 = vshrl.u32 %v3435, 7
      %v3437 = vsub.s32 %v3434, %v3436
      %v3438 = vrot.slane %v1918, %v3437
      %v3439 = vcombine.high %v3438, %v3438
      %v3441 = vunpack.c.l.s4 1966171168
      %v3442 = vunpack.c.0.s8 %v3441
      %v3443 = vlaneseq
      %v3444 = vshrl.u32 %v3443, 7
      %v3445 = vsub.s32 %v3442, %v3444
      %v3446 = vrot.slane %v3438, %v3445
      %v3448 = vunpack.c.l.s4 1966171168
      %v3449 = vunpack.c.0.s8 %v3448
      %v3450 = vlaneseq
      %v3451 = vshrl.u32 %v3450, 7
      %v3452 = vsub.s32 %v3449, %v3451
      %v3453 = vrot.slane %v3439, %v3452
      %v3454 = vcombine.high %v3446, %v3446
      %v3455 = vunpack.c.l.b16 %v1997
      %v3456 = vunpack.c.l.b16 %v2004
      %v3457 = vunpack.c.l.b16 %v2005
      %v3458 = vunpack.c.l.b16 %v2020
      %v3459 = vunpack.c.l.b16 %v2027
      %v3460 = vunpack.c.l.b16 %v2028
      %v3461 = vunpack.c.l.b16 %v2043
      %v3462 = vunpack.c.l.b16 %v2050
      %v3463 = vunpack.c.l.b16 %v2051
      %v3464 = vunpack.c.l.b16 %v2066
      %v3465 = vunpack.c.l.b16 %v2073
      %v3466 = vunpack.c.l.b16 %v2074
      %v3467 = vunpack.c.l.b16 %v2089
      %v3468 = vunpack.c.l.b16 %v2096
      %v3469 = vunpack.c.l.b16 %v2097
      %v3470 = vunpack.c.l.b16 %v2112
      %v3471 = vunpack.c.l.b16 %v2119
      %v3472 = vunpack.c.l.b16 %v2120
      %v3473 = vunpack.c.l.b16 %v2135
      %v3474 = vunpack.c.l.b16 %v2142
      %v3475 = vunpack.c.l.b16 %v2143
      %v3476 = vunpack.c.l.b16 %v2158
      %v3477 = vunpack.c.l.b16 %v2165
      %v3478 = vunpack.c.l.b16 %v2166
      %v3479 = vunpack.c.l.b16 %v2181
      %v3480 = vunpack.c.l.b16 %v2188
      %v3481 = vunpack.c.l.b16 %v2189
      %v3482 = vunpack.c.l.b16 %v2204
      %v3483 = vunpack.c.l.b16 %v2211
      %v3484 = vunpack.c.l.b16 %v2212
      %v3485 = vunpack.c.l.b16 %v2227
      %v3486 = vunpack.c.l.b16 %v2234
      %v3487 = vunpack.c.l.b16 %v2235
      %v3488 = vunpack.c.l.b16 %v2250
      %v3489 = vunpack.c.l.b16 %v2257
      %v3490 = vunpack.c.l.b16 %v2258
      %v3491 = vunpack.c.l.b16 %v2273
      %v3492 = vunpack.c.l.b16 %v2280
      %v3493 = vunpack.c.l.b16 %v2281
      %v3494 = vunpack.c.l.b16 %v2296
      %v3495 = vunpack.c.l.b16 %v2303
      %v3496 = vunpack.c.l.b16 %v2304
      %v3497 = vunpack.c.l.b16 %v2319
      %v3498 = vunpack.c.l.b16 %v2326
      %v3499 = vunpack.c.l.b16 %v2327
      %v3500 = vunpack.c.l.b16 %v2342
      %v3501 = vunpack.c.l.b16 %v2349
      %v3502 = vunpack.c.l.b16 %v2350
      %v3503 = vunpack.c.l.b16 %v2365
      %v3504 = vunpack.c.l.b16 %v2372
      %v3505 = vunpack.c.l.b16 %v2373
      %v3506 = vunpack.c.l.b16 %v2388
      %v3507 = vunpack.c.l.b16 %v2395
      %v3508 = vunpack.c.l.b16 %v2396
      %v3509 = vunpack.c.l.b16 %v2411
      %v3510 = vunpack.c.l.b16 %v2418
      %v3511 = vunpack.c.l.b16 %v2419
      %v3512 = vunpack.c.l.b16 %v2434
      %v3513 = vunpack.c.l.b16 %v2441
      %v3514 = vunpack.c.l.b16 %v2442
      %v3515 = vunpack.c.l.b16 %v2457
      %v3516 = vunpack.c.l.b16 %v2464
      %v3517 = vunpack.c.l.b16 %v2465
      %v3518 = vunpack.c.l.b16 %v2480
      %v3519 = vunpack.c.l.b16 %v2487
      %v3520 = vunpack.c.l.b16 %v2488
      %v3521 = vunpack.c.l.b16 %v2503
      %v3522 = vunpack.c.l.b16 %v2510
      %v3523 = vunpack.c.l.b16 %v2511
      %v3524 = vunpack.c.l.b16 %v2526
      %v3525 = vunpack.c.l.b16 %v2533
      %v3526 = vunpack.c.l.b16 %v2534
      %v3527 = vunpack.c.l.b16 %v2549
      %v3528 = vunpack.c.l.b16 %v2556
      %v3529 = vunpack.c.l.b16 %v2557
      %v3530 = vunpack.c.l.b16 %v2572
      %v3531 = vunpack.c.l.b16 %v2579
      %v3532 = vunpack.c.l.b16 %v2580
      %v3533 = vunpack.c.l.b16 %v2595
      %v3534 = vunpack.c.l.b16 %v2602
      %v3535 = vunpack.c.l.b16 %v2603
      %v3536 = vunpack.c.l.b16 %v2618
      %v3537 = vunpack.c.l.b16 %v2625
      %v3538 = vunpack.c.l.b16 %v2626
      %v3539 = vunpack.c.l.b16 %v2641
      %v3540 = vunpack.c.l.b16 %v2648
      %v3541 = vunpack.c.l.b16 %v2649
      %v3542 = vunpack.c.l.b16 %v2664
      %v3543 = vunpack.c.l.b16 %v2671
      %v3544 = vunpack.c.l.b16 %v2672
      %v3545 = vunpack.c.l.b16 %v2687
      %v3546 = vunpack.c.l.b16 %v2694
      %v3547 = vunpack.c.l.b16 %v2695
      %v3548 = vunpack.c.l.b16 %v2710
      %v3549 = vunpack.c.l.b16 %v2717
      %v3550 = vunpack.c.l.b16 %v2718
      %v3551 = vunpack.c.l.b16 %v2733
      %v3552 = vunpack.c.l.b16 %v2740
      %v3553 = vunpack.c.l.b16 %v2741
      %v3554 = vunpack.c.l.b16 %v2756
      %v3555 = vunpack.c.l.b16 %v2763
      %v3556 = vunpack.c.l.b16 %v2764
      %v3557 = vunpack.c.l.b16 %v2779
      %v3558 = vunpack.c.l.b16 %v2786
      %v3559 = vunpack.c.l.b16 %v2787
      %v3560 = vunpack.c.l.b16 %v2802
      %v3561 = vunpack.c.l.b16 %v2809
      %v3562 = vunpack.c.l.b16 %v2810
      %v3563 = vunpack.c.l.b16 %v2825
      %v3564 = vunpack.c.l.b16 %v2832
      %v3565 = vunpack.c.l.b16 %v2833
      %v3566 = vunpack.c.l.b16 %v2848
      %v3567 = vunpack.c.l.b16 %v2855
      %v3568 = vunpack.c.l.b16 %v2856
      %v3569 = vunpack.c.l.b16 %v2871
      %v3570 = vunpack.c.l.b16 %v2878
      %v3571 = vunpack.c.l.b16 %v2879
      %v3572 = vunpack.c.l.b16 %v2894
      %v3573 = vunpack.c.l.b16 %v2901
      %v3574 = vunpack.c.l.b16 %v2902
      %v3575 = vunpack.c.l.b16 %v2917
      %v3576 = vunpack.c.l.b16 %v2924
      %v3577 = vunpack.c.l.b16 %v2925
      %v3578 = vunpack.c.l.b16 %v2940
      %v3579 = vunpack.c.l.b16 %v2947
      %v3580 = vunpack.c.l.b16 %v2948
      %v3581 = vunpack.c.l.b16 %v2963
      %v3582 = vunpack.c.l.b16 %v2970
      %v3583 = vunpack.c.l.b16 %v2971
      %v3584 = vunpack.c.l.b16 %v2986
      %v3585 = vunpack.c.l.b16 %v2993
      %v3586 = vunpack.c.l.b16 %v2994
      %v3587 = vunpack.c.l.b16 %v3009
      %v3588 = vunpack.c.l.b16 %v3016
      %v3589 = vunpack.c.l.b16 %v3017
      %v3590 = vunpack.c.l.b16 %v3032
      %v3591 = vunpack.c.l.b16 %v3039
      %v3592 = vunpack.c.l.b16 %v3040
      %v3593 = vunpack.c.l.b16 %v3055
      %v3594 = vunpack.c.l.b16 %v3062
      %v3595 = vunpack.c.l.b16 %v3063
      %v3596 = vunpack.c.l.b16 %v3078
      %v3597 = vunpack.c.l.b16 %v3085
      %v3598 = vunpack.c.l.b16 %v3086
      %v3599 = vunpack.c.l.b16 %v3101
      %v3600 = vunpack.c.l.b16 %v3108
      %v3601 = vunpack.c.l.b16 %v3109
      %v3602 = vunpack.c.l.b16 %v3124
      %v3603 = vunpack.c.l.b16 %v3131
      %v3604 = vunpack.c.l.b16 %v3132
      %v3605 = vunpack.c.l.b16 %v3147
      %v3606 = vunpack.c.l.b16 %v3154
      %v3607 = vunpack.c.l.b16 %v3155
      %v3608 = vunpack.c.l.b16 %v3170
      %v3609 = vunpack.c.l.b16 %v3177
      %v3610 = vunpack.c.l.b16 %v3178
      %v3611 = vunpack.c.l.b16 %v3193
      %v3612 = vunpack.c.l.b16 %v3200
      %v3613 = vunpack.c.l.b16 %v3201
      %v3614 = vunpack.c.l.b16 %v3216
      %v3615 = vunpack.c.l.b16 %v3223
      %v3616 = vunpack.c.l.b16 %v3224
      %v3617 = vunpack.c.l.b16 %v3239
      %v3618 = vunpack.c.l.b16 %v3246
      %v3619 = vunpack.c.l.b16 %v3247
      %v3620 = vunpack.c.l.b16 %v3262
      %v3621 = vunpack.c.l.b16 %v3269
      %v3622 = vunpack.c.l.b16 %v3270
      %v3623 = vunpack.c.l.b16 %v3285
      %v3624 = vunpack.c.l.b16 %v3292
      %v3625 = vunpack.c.l.b16 %v3293
      %v3626 = vunpack.c.l.b16 %v3308
      %v3627 = vunpack.c.l.b16 %v3315
      %v3628 = vunpack.c.l.b16 %v3316
      %v3629 = vunpack.c.l.b16 %v3331
      %v3630 = vunpack.c.l.b16 %v3338
      %v3631 = vunpack.c.l.b16 %v3339
      %v3632 = vunpack.c.l.b16 %v3354
      %v3633 = vunpack.c.l.b16 %v3361
      %v3634 = vunpack.c.l.b16 %v3362
      %v3635 = vunpack.c.l.b16 %v3377
      %v3636 = vunpack.c.l.b16 %v3384
      %v3637 = vunpack.c.l.b16 %v3385
      %v3638 = vunpack.c.l.b16 %v3400
      %v3639 = vunpack.c.l.b16 %v3407
      %v3640 = vunpack.c.l.b16 %v3408
      %v3641 = vunpack.c.l.b16 %v3423
      %v3642 = vunpack.c.l.b16 %v3430
      %v3643 = vunpack.c.l.b16 %v3431
      %v3644 = vunpack.c.l.b16 %v3446
      %v3645 = vunpack.c.l.b16 %v3453
      %v3646 = vunpack.c.l.b16 %v3454
      %v3647 = vrot.slane %v3455, 7
      %v3648 = vrot.slane %v3458, 6
      %vm3649 = vcmask 1042434
      %v3650 = vsel %vm3649, %v3648, %v3647
      %v3651 = vrot.slane %v3461, 5
      %vm3652 = vcmask 1043459
      %v3653 = vsel %vm3652, %v3651, %v3650
      %v3654 = vrot.slane %v3464, 4
      %vm3655 = vcmask 1044484
      %v3656 = vsel %vm3655, %v3654, %v3653
      %v3657 = vrot.slane %v3467, 3
      %vm3658 = vcmask 1045509
      %v3659 = vsel %vm3658, %v3657, %v3656
      %v3660 = vrot.slane %v3470, 2
      %vm3661 = vcmask 1046534
      %v3662 = vsel %vm3661, %v3660, %v3659
      %v3663 = vrot.slane %v3473, 1
      %vm3664 = vcmask 1047559
      %v3665 = vsel %vm3664, %v3663, %v3662
      %v3666 = vrot.slane %v3456, 7
      %v3667 = vrot.slane %v3459, 6
      %v3668 = vsel %vm3649, %v3667, %v3666
      %v3669 = vrot.slane %v3462, 5
      %v3670 = vsel %vm3652, %v3669, %v3668
      %v3671 = vrot.slane %v3465, 4
      %v3672 = vsel %vm3655, %v3671, %v3670
      %v3673 = vrot.slane %v3468, 3
      %v3674 = vsel %vm3658, %v3673, %v3672
      %v3675 = vrot.slane %v3471, 2
      %v3676 = vsel %vm3661, %v3675, %v3674
      %v3677 = vrot.slane %v3474, 1
      %v3678 = vsel %vm3664, %v3677, %v3676
      %v3679 = vrot.slane %v3457, 7
      %v3680 = vrot.slane %v3460, 6
      %v3681 = vsel %vm3649, %v3680, %v3679
      %v3682 = vrot.slane %v3463, 5
      %v3683 = vsel %vm3652, %v3682, %v3681
      %v3684 = vrot.slane %v3466, 4
      %v3685 = vsel %vm3655, %v3684, %v3683
      %v3686 = vrot.slane %v3469, 3
      %v3687 = vsel %vm3658, %v3686, %v3685
      %v3688 = vrot.slane %v3472, 2
      %v3689 = vsel %vm3661, %v3688, %v3687
      %v3690 = vrot.slane %v3475, 1
      %v3691 = vsel %vm3664, %v3690, %v3689
      %v3692 = vrot.slane %v3479, 7
      %v3693 = vrot.slane %v3482, 6
      %v3694 = vsel %vm3649, %v3693, %v3692
      %v3695 = vrot.slane %v3485, 5
      %v3696 = vsel %vm3652, %v3695, %v3694
      %v3697 = vrot.slane %v3488, 4
      %v3698 = vsel %vm3655, %v3697, %v3696
      %v3699 = vrot.slane %v3491, 3
      %v3700 = vsel %vm3658, %v3699, %v3698
      %v3701 = vrot.slane %v3494, 2
      %v3702 = vsel %vm3661, %v3701, %v3700
      %v3703 = vrot.slane %v3497, 1
      %v3704 = vsel %vm3664, %v3703, %v3702
      %v3705 = vrot.slane %v3480, 7
      %v3706 = vrot.slane %v3483, 6
      %v3707 = vsel %vm3649, %v3706, %v3705
      %v3708 = vrot.slane %v3486, 5
      %v3709 = vsel %vm3652, %v3708, %v3707
      %v3710 = vrot.slane %v3489, 4
      %v3711 = vsel %vm3655, %v3710, %v3709
      %v3712 = vrot.slane %v3492, 3
      %v3713 = vsel %vm3658, %v3712, %v3711
      %v3714 = vrot.slane %v3495, 2
      %v3715 = vsel %vm3661, %v3714, %v3713
      %v3716 = vrot.slane %v3498, 1
      %v3717 = vsel %vm3664, %v3716, %v3715
      %v3718 = vrot.slane %v3481, 7
      %v3719 = vrot.slane %v3484, 6
      %v3720 = vsel %vm3649, %v3719, %v3718
      %v3721 = vrot.slane %v3487, 5
      %v3722 = vsel %vm3652, %v3721, %v3720
      %v3723 = vrot.slane %v3490, 4
      %v3724 = vsel %vm3655, %v3723, %v3722
      %v3725 = vrot.slane %v3493, 3
      %v3726 = vsel %vm3658, %v3725, %v3724
      %v3727 = vrot.slane %v3496, 2
      %v3728 = vsel %vm3661, %v3727, %v3726
      %v3729 = vrot.slane %v3499, 1
      %v3730 = vsel %vm3664, %v3729, %v3728
      %v3731 = vrot.slane %v3503, 7
      %v3732 = vrot.slane %v3506, 6
      %v3733 = vsel %vm3649, %v3732, %v3731
      %v3734 = vrot.slane %v3509, 5
      %v3735 = vsel %vm3652, %v3734, %v3733
      %v3736 = vrot.slane %v3512, 4
      %v3737 = vsel %vm3655, %v3736, %v3735
      %v3738 = vrot.slane %v3515, 3
      %v3739 = vsel %vm3658, %v3738, %v3737
      %v3740 = vrot.slane %v3518, 2
      %v3741 = vsel %vm3661, %v3740, %v3739
      %v3742 = vrot.slane %v3521, 1
      %v3743 = vsel %vm3664, %v3742, %v3741
      %v3744 = vrot.slane %v3504, 7
      %v3745 = vrot.slane %v3507, 6
      %v3746 = vsel %vm3649, %v3745, %v3744
      %v3747 = vrot.slane %v3510, 5
      %v3748 = vsel %vm3652, %v3747, %v3746
      %v3749 = vrot.slane %v3513, 4
      %v3750 = vsel %vm3655, %v3749, %v3748
      %v3751 = vrot.slane %v3516, 3
      %v3752 = vsel %vm3658, %v3751, %v3750
      %v3753 = vrot.slane %v3519, 2
      %v3754 = vsel %vm3661, %v3753, %v3752
      %v3755 = vrot.slane %v3522, 1
      %v3756 = vsel %vm3664, %v3755, %v3754
      %v3757 = vrot.slane %v3505, 7
      %v3758 = vrot.slane %v3508, 6
      %v3759 = vsel %vm3649, %v3758, %v3757
      %v3760 = vrot.slane %v3511, 5
      %v3761 = vsel %vm3652, %v3760, %v3759
      %v3762 = vrot.slane %v3514, 4
      %v3763 = vsel %vm3655, %v3762, %v3761
      %v3764 = vrot.slane %v3517, 3
      %v3765 = vsel %vm3658, %v3764, %v3763
      %v3766 = vrot.slane %v3520, 2
      %v3767 = vsel %vm3661, %v3766, %v3765
      %v3768 = vrot.slane %v3523, 1
      %v3769 = vsel %vm3664, %v3768, %v3767
      %v3770 = vrot.slane %v3527, 7
      %v3771 = vrot.slane %v3530, 6
      %v3772 = vsel %vm3649, %v3771, %v3770
      %v3773 = vrot.slane %v3533, 5
      %v3774 = vsel %vm3652, %v3773, %v3772
      %v3775 = vrot.slane %v3536, 4
      %v3776 = vsel %vm3655, %v3775, %v3774
      %v3777 = vrot.slane %v3539, 3
      %v3778 = vsel %vm3658, %v3777, %v3776
      %v3779 = vrot.slane %v3542, 2
      %v3780 = vsel %vm3661, %v3779, %v3778
      %v3781 = vrot.slane %v3545, 1
      %v3782 = vsel %vm3664, %v3781, %v3780
      %v3783 = vrot.slane %v3528, 7
      %v3784 = vrot.slane %v3531, 6
      %v3785 = vsel %vm3649, %v3784, %v3783
      %v3786 = vrot.slane %v3534, 5
      %v3787 = vsel %vm3652, %v3786, %v3785
      %v3788 = vrot.slane %v3537, 4
      %v3789 = vsel %vm3655, %v3788, %v3787
      %v3790 = vrot.slane %v3540, 3
      %v3791 = vsel %vm3658, %v3790, %v3789
      %v3792 = vrot.slane %v3543, 2
      %v3793 = vsel %vm3661, %v3792, %v3791
      %v3794 = vrot.slane %v3546, 1
      %v3795 = vsel %vm3664, %v3794, %v3793
      %v3796 = vrot.slane %v3529, 7
      %v3797 = vrot.slane %v3532, 6
      %v3798 = vsel %vm3649, %v3797, %v3796
      %v3799 = vrot.slane %v3535, 5
      %v3800 = vsel %vm3652, %v3799, %v3798
      %v3801 = vrot.slane %v3538, 4
      %v3802 = vsel %vm3655, %v3801, %v3800
      %v3803 = vrot.slane %v3541, 3
      %v3804 = vsel %vm3658, %v3803, %v3802
      %v3805 = vrot.slane %v3544, 2
      %v3806 = vsel %vm3661, %v3805, %v3804
      %v3807 = vrot.slane %v3547, 1
      %v3808 = vsel %vm3664, %v3807, %v3806
      %v3809 = vrot.slane %v3551, 7
      %v3810 = vrot.slane %v3554, 6
      %v3811 = vsel %vm3649, %v3810, %v3809
      %v3812 = vrot.slane %v3557, 5
      %v3813 = vsel %vm3652, %v3812, %v3811
      %v3814 = vrot.slane %v3560, 4
      %v3815 = vsel %vm3655, %v3814, %v3813
      %v3816 = vrot.slane %v3563, 3
      %v3817 = vsel %vm3658, %v3816, %v3815
      %v3818 = vrot.slane %v3566, 2
      %v3819 = vsel %vm3661, %v3818, %v3817
      %v3820 = vrot.slane %v3569, 1
      %v3821 = vsel %vm3664, %v3820, %v3819
      %v3822 = vrot.slane %v3552, 7
      %v3823 = vrot.slane %v3555, 6
      %v3824 = vsel %vm3649, %v3823, %v3822
      %v3825 = vrot.slane %v3558, 5
      %v3826 = vsel %vm3652, %v3825, %v3824
      %v3827 = vrot.slane %v3561, 4
      %v3828 = vsel %vm3655, %v3827, %v3826
      %v3829 = vrot.slane %v3564, 3
      %v3830 = vsel %vm3658, %v3829, %v3828
      %v3831 = vrot.slane %v3567, 2
      %v3832 = vsel %vm3661, %v3831, %v3830
      %v3833 = vrot.slane %v3570, 1
      %v3834 = vsel %vm3664, %v3833, %v3832
      %v3835 = vrot.slane %v3553, 7
      %v3836 = vrot.slane %v3556, 6
      %v3837 = vsel %vm3649, %v3836, %v3835
      %v3838 = vrot.slane %v3559, 5
      %v3839 = vsel %vm3652, %v3838, %v3837
      %v3840 = vrot.slane %v3562, 4
      %v3841 = vsel %vm3655, %v3840, %v3839
      %v3842 = vrot.slane %v3565, 3
      %v3843 = vsel %vm3658, %v3842, %v3841
      %v3844 = vrot.slane %v3568, 2
      %v3845 = vsel %vm3661, %v3844, %v3843
      %v3846 = vrot.slane %v3571, 1
      %v3847 = vsel %vm3664, %v3846, %v3845
      %v3848 = vrot.slane %v3575, 7
      %v3849 = vrot.slane %v3578, 6
      %v3850 = vsel %vm3649, %v3849, %v3848
      %v3851 = vrot.slane %v3581, 5
      %v3852 = vsel %vm3652, %v3851, %v3850
      %v3853 = vrot.slane %v3584, 4
      %v3854 = vsel %vm3655, %v3853, %v3852
      %v3855 = vrot.slane %v3587, 3
      %v3856 = vsel %vm3658, %v3855, %v3854
      %v3857 = vrot.slane %v3590, 2
      %v3858 = vsel %vm3661, %v3857, %v3856
      %v3859 = vrot.slane %v3593, 1
      %v3860 = vsel %vm3664, %v3859, %v3858
      %v3861 = vrot.slane %v3576, 7
      %v3862 = vrot.slane %v3579, 6
      %v3863 = vsel %vm3649, %v3862, %v3861
      %v3864 = vrot.slane %v3582, 5
      %v3865 = vsel %vm3652, %v3864, %v3863
      %v3866 = vrot.slane %v3585, 4
      %v3867 = vsel %vm3655, %v3866, %v3865
      %v3868 = vrot.slane %v3588, 3
      %v3869 = vsel %vm3658, %v3868, %v3867
      %v3870 = vrot.slane %v3591, 2
      %v3871 = vsel %vm3661, %v3870, %v3869
      %v3872 = vrot.slane %v3594, 1
      %v3873 = vsel %vm3664, %v3872, %v3871
      %v3874 = vrot.slane %v3577, 7
      %v3875 = vrot.slane %v3580, 6
      %v3876 = vsel %vm3649, %v3875, %v3874
      %v3877 = vrot.slane %v3583, 5
      %v3878 = vsel %vm3652, %v3877, %v3876
      %v3879 = vrot.slane %v3586, 4
      %v3880 = vsel %vm3655, %v3879, %v3878
      %v3881 = vrot.slane %v3589, 3
      %v3882 = vsel %vm3658, %v3881, %v3880
      %v3883 = vrot.slane %v3592, 2
      %v3884 = vsel %vm3661, %v3883, %v3882
      %v3885 = vrot.slane %v3595, 1
      %v3886 = vsel %vm3664, %v3885, %v3884
      %v3887 = vrot.slane %v3599, 7
      %v3888 = vrot.slane %v3602, 6
      %v3889 = vsel %vm3649, %v3888, %v3887
      %v3890 = vrot.slane %v3605, 5
      %v3891 = vsel %vm3652, %v3890, %v3889
      %v3892 = vrot.slane %v3608, 4
      %v3893 = vsel %vm3655, %v3892, %v3891
      %v3894 = vrot.slane %v3611, 3
      %v3895 = vsel %vm3658, %v3894, %v3893
      %v3896 = vrot.slane %v3614, 2
      %v3897 = vsel %vm3661, %v3896, %v3895
      %v3898 = vrot.slane %v3617, 1
      %v3899 = vsel %vm3664, %v3898, %v3897
      %v3900 = vrot.slane %v3600, 7
      %v3901 = vrot.slane %v3603, 6
      %v3902 = vsel %vm3649, %v3901, %v3900
      %v3903 = vrot.slane %v3606, 5
      %v3904 = vsel %vm3652, %v3903, %v3902
      %v3905 = vrot.slane %v3609, 4
      %v3906 = vsel %vm3655, %v3905, %v3904
      %v3907 = vrot.slane %v3612, 3
      %v3908 = vsel %vm3658, %v3907, %v3906
      %v3909 = vrot.slane %v3615, 2
      %v3910 = vsel %vm3661, %v3909, %v3908
      %v3911 = vrot.slane %v3618, 1
      %v3912 = vsel %vm3664, %v3911, %v3910
      %v3913 = vrot.slane %v3601, 7
      %v3914 = vrot.slane %v3604, 6
      %v3915 = vsel %vm3649, %v3914, %v3913
      %v3916 = vrot.slane %v3607, 5
      %v3917 = vsel %vm3652, %v3916, %v3915
      %v3918 = vrot.slane %v3610, 4
      %v3919 = vsel %vm3655, %v3918, %v3917
      %v3920 = vrot.slane %v3613, 3
      %v3921 = vsel %vm3658, %v3920, %v3919
      %v3922 = vrot.slane %v3616, 2
      %v3923 = vsel %vm3661, %v3922, %v3921
      %v3924 = vrot.slane %v3619, 1
      %v3925 = vsel %vm3664, %v3924, %v3923
      %v3926 = vrot.slane %v3623, 7
      %v3927 = vrot.slane %v3626, 6
      %v3928 = vsel %vm3649, %v3927, %v3926
      %v3929 = vrot.slane %v3629, 5
      %v3930 = vsel %vm3652, %v3929, %v3928
      %v3931 = vrot.slane %v3632, 4
      %v3932 = vsel %vm3655, %v3931, %v3930
      %v3933 = vrot.slane %v3635, 3
      %v3934 = vsel %vm3658, %v3933, %v3932
      %v3935 = vrot.slane %v3638, 2
      %v3936 = vsel %vm3661, %v3935, %v3934
      %v3937 = vrot.slane %v3641, 1
      %v3938 = vsel %vm3664, %v3937, %v3936
      %v3939 = vrot.slane %v3624, 7
      %v3940 = vrot.slane %v3627, 6
      %v3941 = vsel %vm3649, %v3940, %v3939
      %v3942 = vrot.slane %v3630, 5
      %v3943 = vsel %vm3652, %v3942, %v3941
      %v3944 = vrot.slane %v3633, 4
      %v3945 = vsel %vm3655, %v3944, %v3943
      %v3946 = vrot.slane %v3636, 3
      %v3947 = vsel %vm3658, %v3946, %v3945
      %v3948 = vrot.slane %v3639, 2
      %v3949 = vsel %vm3661, %v3948, %v3947
      %v3950 = vrot.slane %v3642, 1
      %v3951 = vsel %vm3664, %v3950, %v3949
      %v3952 = vrot.slane %v3625, 7
      %v3953 = vrot.slane %v3628, 6
      %v3954 = vsel %vm3649, %v3953, %v3952
      %v3955 = vrot.slane %v3631, 5
      %v3956 = vsel %vm3652, %v3955, %v3954
      %v3957 = vrot.slane %v3634, 4
      %v3958 = vsel %vm3655, %v3957, %v3956
      %v3959 = vrot.slane %v3637, 3
      %v3960 = vsel %vm3658, %v3959, %v3958
      %v3961 = vrot.slane %v3640, 2
      %v3962 = vsel %vm3661, %v3961, %v3960
      %v3963 = vrot.slane %v3643, 1
      %v3964 = vsel %vm3664, %v3963, %v3962
      %v3965 = vpack.c.b16 %v3476, %v3665
      %v3966 = vpack.c.b16 %v3477, %v3678
      %v3967 = vpack.c.b16 %v3478, %v3691
      %v3968 = vpack.c.b16 %v3500, %v3704
      %v3969 = vpack.c.b16 %v3501, %v3717
      %v3970 = vpack.c.b16 %v3502, %v3730
      %v3971 = vpack.c.b16 %v3524, %v3743
      %v3972 = vpack.c.b16 %v3525, %v3756
      %v3973 = vpack.c.b16 %v3526, %v3769
      %v3974 = vpack.c.b16 %v3548, %v3782
      %v3975 = vpack.c.b16 %v3549, %v3795
      %v3976 = vpack.c.b16 %v3550, %v3808
      %v3977 = vpack.c.b16 %v3572, %v3821
      %v3978 = vpack.c.b16 %v3573, %v3834
      %v3979 = vpack.c.b16 %v3574, %v3847
      %v3980 = vpack.c.b16 %v3596, %v3860
      %v3981 = vpack.c.b16 %v3597, %v3873
      %v3982 = vpack.c.b16 %v3598, %v3886
      %v3983 = vpack.c.b16 %v3620, %v3899
      %v3984 = vpack.c.b16 %v3621, %v3912
      %v3985 = vpack.c.b16 %v3622, %v3925
      %v3986 = vpack.c.b16 %v3644, %v3938
      %v3987 = vpack.c.b16 %v3645, %v3951
      %v3988 = vpack.c.b16 %v3646, %v3964
      %s4013 = scalar_lea.vmem [#allocation2], 48
      %vm4014 = vcmask 1044480
      %vm4015 = vsmask.f32 4354
      %vm4016 = vmand %vm4014, %vm4015
      %v4017 = vld [vmem:[%s4013] sm:$0x1f]
      %v4018 = vsel %vm4016, %v3965, %v4017
      %4019 = vst [vmem:[%s4013] sm:$0x1f] %v4018
      %v4020 = vld [vmem:[%s4013 + $0x8] sm:$0x1f]
      %v4021 = vsel %vm4016, %v3966, %v4020
      %4022 = vst [vmem:[%s4013 + $0x8] sm:$0x1f] %v4021
      %v4023 = vld [vmem:[%s4013 + $0x10] sm:$0x1f]
      %v4024 = vsel %vm4016, %v3967, %v4023
      %4025 = vst [vmem:[%s4013 + $0x10] sm:$0x1f] %v4024
      %v4026 = vld [vmem:[%s4013 + $0x18] sm:$0x1f]
      %v4027 = vsel %vm4016, %v3968, %v4026
      %4028 = vst [vmem:[%s4013 + $0x18] sm:$0x1f] %v4027
      %v4029 = vld [vmem:[%s4013 + $0x20] sm:$0x1f]
      %v4030 = vsel %vm4016, %v3969, %v4029
      %4031 = vst [vmem:[%s4013 + $0x20] sm:$0x1f] %v4030
      %v4032 = vld [vmem:[%s4013 + $0x28] sm:$0x1f]
      %v4033 = vsel %vm4016, %v3970, %v4032
      %4034 = vst [vmem:[%s4013 + $0x28] sm:$0x1f] %v4033
      %v4035 = vld [vmem:[%s4013 + $0x30] sm:$0x1f]
      %v4036 = vsel %vm4016, %v3971, %v4035
      %4037 = vst [vmem:[%s4013 + $0x30] sm:$0x1f] %v4036
      %v4038 = vld [vmem:[%s4013 + $0x38] sm:$0x1f]
      %v4039 = vsel %vm4016, %v3972, %v4038
      %4040 = vst [vmem:[%s4013 + $0x38] sm:$0x1f] %v4039
      %v4041 = vld [vmem:[%s4013 + $0x40] sm:$0x1f]
      %v4042 = vsel %vm4016, %v3973, %v4041
      %4043 = vst [vmem:[%s4013 + $0x40] sm:$0x1f] %v4042
      %v4044 = vld [vmem:[%s4013 + $0x48] sm:$0x1f]
      %v4045 = vsel %vm4016, %v3974, %v4044
      %4046 = vst [vmem:[%s4013 + $0x48] sm:$0x1f] %v4045
      %v4047 = vld [vmem:[%s4013 + $0x50] sm:$0x1f]
      %v4048 = vsel %vm4016, %v3975, %v4047
      %4049 = vst [vmem:[%s4013 + $0x50] sm:$0x1f] %v4048
      %v4050 = vld [vmem:[%s4013 + $0x58] sm:$0x1f]
      %v4051 = vsel %vm4016, %v3976, %v4050
      %4052 = vst [vmem:[%s4013 + $0x58] sm:$0x1f] %v4051
      %v4053 = vld [vmem:[%s4013 + $0x60] sm:$0x1f]
      %v4054 = vsel %vm4016, %v3977, %v4053
      %4055 = vst [vmem:[%s4013 + $0x60] sm:$0x1f] %v4054
      %v4056 = vld [vmem:[%s4013 + $0x68] sm:$0x1f]
      %v4057 = vsel %vm4016, %v3978, %v4056
      %4058 = vst [vmem:[%s4013 + $0x68] sm:$0x1f] %v4057
      %v4059 = vld [vmem:[%s4013 + $0x70] sm:$0x1f]
      %v4060 = vsel %vm4016, %v3979, %v4059
      %4061 = vst [vmem:[%s4013 + $0x70] sm:$0x1f] %v4060
      %v4062 = vld [vmem:[%s4013 + $0x78] sm:$0x1f]
      %v4063 = vsel %vm4016, %v3980, %v4062
      %4064 = vst [vmem:[%s4013 + $0x78] sm:$0x1f] %v4063
      %v4065 = vld [vmem:[%s4013 + $0x80] sm:$0x1f]
      %v4066 = vsel %vm4016, %v3981, %v4065
      %4067 = vst [vmem:[%s4013 + $0x80] sm:$0x1f] %v4066
      %v4068 = vld [vmem:[%s4013 + $0x88] sm:$0x1f]
      %v4069 = vsel %vm4016, %v3982, %v4068
      %4070 = vst [vmem:[%s4013 + $0x88] sm:$0x1f] %v4069
      %v4071 = vld [vmem:[%s4013 + $0x90] sm:$0x1f]
      %v4072 = vsel %vm4016, %v3983, %v4071
      %4073 = vst [vmem:[%s4013 + $0x90] sm:$0x1f] %v4072
      %v4074 = vld [vmem:[%s4013 + $0x98] sm:$0x1f]
      %v4075 = vsel %vm4016, %v3984, %v4074
      %4076 = vst [vmem:[%s4013 + $0x98] sm:$0x1f] %v4075
      %v4077 = vld [vmem:[%s4013 + $0xa0] sm:$0x1f]
      %v4078 = vsel %vm4016, %v3985, %v4077
      %4079 = vst [vmem:[%s4013 + $0xa0] sm:$0x1f] %v4078
      %v4080 = vld [vmem:[%s4013 + $0xa8] sm:$0x1f]
      %v4081 = vsel %vm4016, %v3986, %v4080
      %4082 = vst [vmem:[%s4013 + $0xa8] sm:$0x1f] %v4081
      %v4083 = vld [vmem:[%s4013 + $0xb0] sm:$0x1f]
      %v4084 = vsel %vm4016, %v3987, %v4083
      %4085 = vst [vmem:[%s4013 + $0xb0] sm:$0x1f] %v4084
      %v4086 = vld [vmem:[%s4013 + $0xb8] sm:$0x1f]
      %v4087 = vsel %vm4016, %v3988, %v4086
      %4088 = vst [vmem:[%s4013 + $0xb8] sm:$0x1f] %v4087
      %v4089 = vld [vmem:[%s440] sm:$0xff]
      %v4090 = vld [vmem:[%s440 + $0x8] sm:$0xf]
      %v4091 = vld [vmem:[%s440 + $0xc] sm:$0xff]
      %v4092 = vld [vmem:[%s440 + $0x14] sm:$0xf]
      %v4093 = vld [vmem:[%s440 + $0x18] sm:$0xff]
      %v4094 = vld [vmem:[%s440 + $0x20] sm:$0xf]
      %v4095 = vld [vmem:[%s440 + $0x24] sm:$0xff]
      %v4096 = vld [vmem:[%s440 + $0x2c] sm:$0xf]
      %v4097 = vld [vmem:[%s440 + $0x30] sm:$0xff]
      %v4098 = vld [vmem:[%s440 + $0x38] sm:$0xf]
      %v4099 = vld [vmem:[%s440 + $0x3c] sm:$0xff]
      %v4100 = vld [vmem:[%s440 + $0x44] sm:$0xf]
      %v4101 = vld [vmem:[%s440 + $0x48] sm:$0xff]
      %v4102 = vld [vmem:[%s440 + $0x50] sm:$0xf]
      %v4103 = vld [vmem:[%s440 + $0x54] sm:$0xff]
      %v4104 = vld [vmem:[%s440 + $0x5c] sm:$0xf]
      %v4105 = vmax.bf16 %v4089, %v4093
      %v4106 = vmax.bf16 %v4090, %v4094
      %v4107 = vmax.bf16 %v4091, %v4095
      %v4108 = vmax.bf16 %v4092, %v4096
      %v4109 = vmax.bf16 %v4097, %v4101
      %v4110 = vmax.bf16 %v4098, %v4102
      %v4111 = vmax.bf16 %v4099, %v4103
      %v4112 = vmax.bf16 %v4100, %v4104
      %v4122 = vunpack.c.l.s4 1966171168
      %v4123 = vunpack.c.0.s8 %v4122
      %v4124 = vlaneseq
      %v4125 = vshrl.u32 %v4124, 7
      %v4126 = vsub.s32 %v4123, %v4125
      %v4127 = vrot.slane %v4105, %v4126
      %v4129 = vunpack.c.l.s4 1966171168
      %v4130 = vunpack.c.0.s8 %v4129
      %v4131 = vlaneseq
      %v4132 = vshrl.u32 %v4131, 7
      %v4133 = vsub.s32 %v4130, %v4132
      %v4134 = vrot.slane %v4106, %v4133
      %v4135 = vcombine.low %v4127, %v4134
      %v4136 = vcombine.high %v4127, %v4134
      %v4138 = vunpack.c.l.s4 1966171168
      %v4139 = vunpack.c.0.s8 %v4138
      %v4140 = vlaneseq
      %v4141 = vshrl.u32 %v4140, 7
      %v4142 = vsub.s32 %v4139, %v4141
      %v4143 = vrot.slane %v4135, %v4142
      %v4145 = vunpack.c.l.s4 1966171168
      %v4146 = vunpack.c.0.s8 %v4145
      %v4147 = vlaneseq
      %v4148 = vshrl.u32 %v4147, 7
      %v4149 = vsub.s32 %v4146, %v4148
      %v4150 = vrot.slane %v4136, %v4149
      %v4151 = vcombine.high %v4143, %v4143
      %v4152 = vcombine.high %v4150, %v4150
      %v4154 = vunpack.c.l.s4 1966171168
      %v4155 = vunpack.c.0.s8 %v4154
      %v4156 = vlaneseq
      %v4157 = vshrl.u32 %v4156, 7
      %v4158 = vsub.s32 %v4155, %v4157
      %v4159 = vrot.slane %v4107, %v4158
      %v4161 = vunpack.c.l.s4 1966171168
      %v4162 = vunpack.c.0.s8 %v4161
      %v4163 = vlaneseq
      %v4164 = vshrl.u32 %v4163, 7
      %v4165 = vsub.s32 %v4162, %v4164
      %v4166 = vrot.slane %v4108, %v4165
      %v4167 = vcombine.low %v4159, %v4166
      %v4168 = vcombine.high %v4159, %v4166
      %v4170 = vunpack.c.l.s4 1966171168
      %v4171 = vunpack.c.0.s8 %v4170
      %v4172 = vlaneseq
      %v4173 = vshrl.u32 %v4172, 7
      %v4174 = vsub.s32 %v4171, %v4173
      %v4175 = vrot.slane %v4167, %v4174
      %v4177 = vunpack.c.l.s4 1966171168
      %v4178 = vunpack.c.0.s8 %v4177
      %v4179 = vlaneseq
      %v4180 = vshrl.u32 %v4179, 7
      %v4181 = vsub.s32 %v4178, %v4180
      %v4182 = vrot.slane %v4168, %v4181
      %v4183 = vcombine.high %v4175, %v4175
      %v4184 = vcombine.high %v4182, %v4182
      %v4186 = vunpack.c.l.s4 1966171168
      %v4187 = vunpack.c.0.s8 %v4186
      %v4188 = vlaneseq
      %v4189 = vshrl.u32 %v4188, 7
      %v4190 = vsub.s32 %v4187, %v4189
      %v4191 = vrot.slane %v4109, %v4190
      %v4193 = vunpack.c.l.s4 1966171168
      %v4194 = vunpack.c.0.s8 %v4193
      %v4195 = vlaneseq
      %v4196 = vshrl.u32 %v4195, 7
      %v4197 = vsub.s32 %v4194, %v4196
      %v4198 = vrot.slane %v4110, %v4197
      %v4199 = vcombine.low %v4191, %v4198
      %v4200 = vcombine.high %v4191, %v4198
      %v4202 = vunpack.c.l.s4 1966171168
      %v4203 = vunpack.c.0.s8 %v4202
      %v4204 = vlaneseq
      %v4205 = vshrl.u32 %v4204, 7
      %v4206 = vsub.s32 %v4203, %v4205
      %v4207 = vrot.slane %v4199, %v4206
      %v4209 = vunpack.c.l.s4 1966171168
      %v4210 = vunpack.c.0.s8 %v4209
      %v4211 = vlaneseq
      %v4212 = vshrl.u32 %v4211, 7
      %v4213 = vsub.s32 %v4210, %v4212
      %v4214 = vrot.slane %v4200, %v4213
      %v4215 = vcombine.high %v4207, %v4207
      %v4216 = vcombine.high %v4214, %v4214
      %v4218 = vunpack.c.l.s4 1966171168
      %v4219 = vunpack.c.0.s8 %v4218
      %v4220 = vlaneseq
      %v4221 = vshrl.u32 %v4220, 7
      %v4222 = vsub.s32 %v4219, %v4221
      %v4223 = vrot.slane %v4111, %v4222
      %v4225 = vunpack.c.l.s4 1966171168
      %v4226 = vunpack.c.0.s8 %v4225
      %v4227 = vlaneseq
      %v4228 = vshrl.u32 %v4227, 7
      %v4229 = vsub.s32 %v4226, %v4228
      %v4230 = vrot.slane %v4112, %v4229
      %v4231 = vcombine.low %v4223, %v4230
      %v4232 = vcombine.high %v4223, %v4230
      %v4234 = vunpack.c.l.s4 1966171168
      %v4235 = vunpack.c.0.s8 %v4234
      %v4236 = vlaneseq
      %v4237 = vshrl.u32 %v4236, 7
      %v4238 = vsub.s32 %v4235, %v4237
      %v4239 = vrot.slane %v4231, %v4238
      %v4241 = vunpack.c.l.s4 1966171168
      %v4242 = vunpack.c.0.s8 %v4241
      %v4243 = vlaneseq
      %v4244 = vshrl.u32 %v4243, 7
      %v4245 = vsub.s32 %v4242, %v4244
      %v4246 = vrot.slane %v4232, %v4245
      %v4247 = vcombine.high %v4239, %v4239
      %v4248 = vcombine.high %v4246, %v4246
      %v4266 = vshrl.u32 %v4143, 16
      %v4268 = vrot.slane %v4266, 7
      %v4269 = vrot.slane %v4268, 1
      %v4271 = vshrl.u32 %v4150, 16
      %v4273 = vrot.slane %v4271, 7
      %v4274 = vrot.slane %v4273, 1
      %v4276 = vshrl.u32 %v4151, 16
      %v4278 = vrot.slane %v4276, 7
      %v4279 = vrot.slane %v4278, 1
      %v4281 = vshrl.u32 %v4152, 16
      %v4283 = vrot.slane %v4281, 7
      %v4284 = vrot.slane %v4283, 1
      %v4286 = vshrl.u32 %v4175, 16
      %v4288 = vrot.slane %v4286, 7
      %v4289 = vrot.slane %v4288, 1
      %v4291 = vshrl.u32 %v4182, 16
      %v4293 = vrot.slane %v4291, 7
      %v4294 = vrot.slane %v4293, 1
      %v4296 = vshrl.u32 %v4183, 16
      %v4298 = vrot.slane %v4296, 7
      %v4299 = vrot.slane %v4298, 1
      %v4301 = vshrl.u32 %v4184, 16
      %v4303 = vrot.slane %v4301, 7
      %v4304 = vrot.slane %v4303, 1
      %v4306 = vshrl.u32 %v4207, 16
      %v4308 = vrot.slane %v4306, 7
      %v4309 = vrot.slane %v4308, 1
      %v4311 = vshrl.u32 %v4214, 16
      %v4313 = vrot.slane %v4311, 7
      %v4314 = vrot.slane %v4313, 1
      %v4316 = vshrl.u32 %v4215, 16
      %v4318 = vrot.slane %v4316, 7
      %v4319 = vrot.slane %v4318, 1
      %v4321 = vshrl.u32 %v4216, 16
      %v4323 = vrot.slane %v4321, 7
      %v4324 = vrot.slane %v4323, 1
      %v4326 = vshrl.u32 %v4239, 16
      %v4328 = vrot.slane %v4326, 7
      %v4329 = vrot.slane %v4328, 1
      %v4331 = vshrl.u32 %v4246, 16
      %v4333 = vrot.slane %v4331, 7
      %v4334 = vrot.slane %v4333, 1
      %v4336 = vshrl.u32 %v4247, 16
      %v4338 = vrot.slane %v4336, 7
      %v4339 = vrot.slane %v4338, 1
      %v4341 = vshrl.u32 %v4248, 16
      %v4343 = vrot.slane %v4341, 7
      %v4344 = vrot.slane %v4343, 1
      %v4361 = vmax.bf16 %v4143, %v4269
      %v4362 = vmax.bf16 %v4150, %v4274
      %v4363 = vmax.bf16 %v4151, %v4279
      %v4364 = vmax.bf16 %v4152, %v4284
      %v4365 = vmax.bf16 %v4175, %v4289
      %v4366 = vmax.bf16 %v4182, %v4294
      %v4367 = vmax.bf16 %v4183, %v4299
      %v4368 = vmax.bf16 %v4184, %v4304
      %v4369 = vmax.bf16 %v4207, %v4309
      %v4370 = vmax.bf16 %v4214, %v4314
      %v4371 = vmax.bf16 %v4215, %v4319
      %v4372 = vmax.bf16 %v4216, %v4324
      %v4373 = vmax.bf16 %v4239, %v4329
      %v4374 = vmax.bf16 %v4246, %v4334
      %v4375 = vmax.bf16 %v4247, %v4339
      %v4376 = vmax.bf16 %v4248, %v4344
      %v4377 = vld [vmem:[%s463] sm:$0xff]
      %v4378 = vld [vmem:[%s463 + $0x8] sm:$0xf]
      %v4379 = vld [vmem:[%s463 + $0xc] sm:$0xff]
      %v4380 = vld [vmem:[%s463 + $0x14] sm:$0xf]
      %v4381 = vld [vmem:[%s463 + $0x18] sm:$0xff]
      %v4382 = vld [vmem:[%s463 + $0x20] sm:$0xf]
      %v4383 = vld [vmem:[%s463 + $0x24] sm:$0xff]
      %v4384 = vld [vmem:[%s463 + $0x2c] sm:$0xf]
      %v4385 = vld [vmem:[%s463 + $0x30] sm:$0xff]
      %v4386 = vld [vmem:[%s463 + $0x38] sm:$0xf]
      %v4387 = vld [vmem:[%s463 + $0x3c] sm:$0xff]
      %v4388 = vld [vmem:[%s463 + $0x44] sm:$0xf]
      %v4389 = vld [vmem:[%s463 + $0x48] sm:$0xff]
      %v4390 = vld [vmem:[%s463 + $0x50] sm:$0xf]
      %v4391 = vld [vmem:[%s463 + $0x54] sm:$0xff]
      %v4392 = vld [vmem:[%s463 + $0x5c] sm:$0xf]
      %v4393 = vmax.bf16 %v4377, %v4381
      %v4394 = vmax.bf16 %v4378, %v4382
      %v4395 = vmax.bf16 %v4379, %v4383
      %v4396 = vmax.bf16 %v4380, %v4384
      %v4397 = vmax.bf16 %v4385, %v4389
      %v4398 = vmax.bf16 %v4386, %v4390
      %v4399 = vmax.bf16 %v4387, %v4391
      %v4400 = vmax.bf16 %v4388, %v4392
      %v4410 = vunpack.c.l.s4 1966171168
      %v4411 = vunpack.c.0.s8 %v4410
      %v4412 = vlaneseq
      %v4413 = vshrl.u32 %v4412, 7
      %v4414 = vsub.s32 %v4411, %v4413
      %v4415 = vrot.slane %v4393, %v4414
      %v4417 = vunpack.c.l.s4 1966171168
      %v4418 = vunpack.c.0.s8 %v4417
      %v4419 = vlaneseq
      %v4420 = vshrl.u32 %v4419, 7
      %v4421 = vsub.s32 %v4418, %v4420
      %v4422 = vrot.slane %v4394, %v4421
      %v4423 = vcombine.low %v4415, %v4422
      %v4424 = vcombine.high %v4415, %v4422
      %v4426 = vunpack.c.l.s4 1966171168
      %v4427 = vunpack.c.0.s8 %v4426
      %v4428 = vlaneseq
      %v4429 = vshrl.u32 %v4428, 7
      %v4430 = vsub.s32 %v4427, %v4429
      %v4431 = vrot.slane %v4423, %v4430
      %v4433 = vunpack.c.l.s4 1966171168
      %v4434 = vunpack.c.0.s8 %v4433
      %v4435 = vlaneseq
      %v4436 = vshrl.u32 %v4435, 7
      %v4437 = vsub.s32 %v4434, %v4436
      %v4438 = vrot.slane %v4424, %v4437
      %v4439 = vcombine.high %v4431, %v4431
      %v4440 = vcombine.high %v4438, %v4438
      %v4442 = vunpack.c.l.s4 1966171168
      %v4443 = vunpack.c.0.s8 %v4442
      %v4444 = vlaneseq
      %v4445 = vshrl.u32 %v4444, 7
      %v4446 = vsub.s32 %v4443, %v4445
      %v4447 = vrot.slane %v4395, %v4446
      %v4449 = vunpack.c.l.s4 1966171168
      %v4450 = vunpack.c.0.s8 %v4449
      %v4451 = vlaneseq
      %v4452 = vshrl.u32 %v4451, 7
      %v4453 = vsub.s32 %v4450, %v4452
      %v4454 = vrot.slane %v4396, %v4453
      %v4455 = vcombine.low %v4447, %v4454
      %v4456 = vcombine.high %v4447, %v4454
      %v4458 = vunpack.c.l.s4 1966171168
      %v4459 = vunpack.c.0.s8 %v4458
      %v4460 = vlaneseq
      %v4461 = vshrl.u32 %v4460, 7
      %v4462 = vsub.s32 %v4459, %v4461
      %v4463 = vrot.slane %v4455, %v4462
      %v4465 = vunpack.c.l.s4 1966171168
      %v4466 = vunpack.c.0.s8 %v4465
      %v4467 = vlaneseq
      %v4468 = vshrl.u32 %v4467, 7
      %v4469 = vsub.s32 %v4466, %v4468
      %v4470 = vrot.slane %v4456, %v4469
      %v4471 = vcombine.high %v4463, %v4463
      %v4472 = vcombine.high %v4470, %v4470
      %v4474 = vunpack.c.l.s4 1966171168
      %v4475 = vunpack.c.0.s8 %v4474
      %v4476 = vlaneseq
      %v4477 = vshrl.u32 %v4476, 7
      %v4478 = vsub.s32 %v4475, %v4477
      %v4479 = vrot.slane %v4397, %v4478
      %v4481 = vunpack.c.l.s4 1966171168
      %v4482 = vunpack.c.0.s8 %v4481
      %v4483 = vlaneseq
      %v4484 = vshrl.u32 %v4483, 7
      %v4485 = vsub.s32 %v4482, %v4484
      %v4486 = vrot.slane %v4398, %v4485
      %v4487 = vcombine.low %v4479, %v4486
      %v4488 = vcombine.high %v4479, %v4486
      %v4490 = vunpack.c.l.s4 1966171168
      %v4491 = vunpack.c.0.s8 %v4490
      %v4492 = vlaneseq
      %v4493 = vshrl.u32 %v4492, 7
      %v4494 = vsub.s32 %v4491, %v4493
      %v4495 = vrot.slane %v4487, %v4494
      %v4497 = vunpack.c.l.s4 1966171168
      %v4498 = vunpack.c.0.s8 %v4497
      %v4499 = vlaneseq
      %v4500 = vshrl.u32 %v4499, 7
      %v4501 = vsub.s32 %v4498, %v4500
      %v4502 = vrot.slane %v4488, %v4501
      %v4503 = vcombine.high %v4495, %v4495
      %v4504 = vcombine.high %v4502, %v4502
      %v4506 = vunpack.c.l.s4 1966171168
      %v4507 = vunpack.c.0.s8 %v4506
      %v4508 = vlaneseq
      %v4509 = vshrl.u32 %v4508, 7
      %v4510 = vsub.s32 %v4507, %v4509
      %v4511 = vrot.slane %v4399, %v4510
      %v4513 = vunpack.c.l.s4 1966171168
      %v4514 = vunpack.c.0.s8 %v4513
      %v4515 = vlaneseq
      %v4516 = vshrl.u32 %v4515, 7
      %v4517 = vsub.s32 %v4514, %v4516
      %v4518 = vrot.slane %v4400, %v4517
      %v4519 = vcombine.low %v4511, %v4518
      %v4520 = vcombine.high %v4511, %v4518
      %v4522 = vunpack.c.l.s4 1966171168
      %v4523 = vunpack.c.0.s8 %v4522
      %v4524 = vlaneseq
      %v4525 = vshrl.u32 %v4524, 7
      %v4526 = vsub.s32 %v4523, %v4525
      %v4527 = vrot.slane %v4519, %v4526
      %v4529 = vunpack.c.l.s4 1966171168
      %v4530 = vunpack.c.0.s8 %v4529
      %v4531 = vlaneseq
      %v4532 = vshrl.u32 %v4531, 7
      %v4533 = vsub.s32 %v4530, %v4532
      %v4534 = vrot.slane %v4520, %v4533
      %v4535 = vcombine.high %v4527, %v4527
      %v4536 = vcombine.high %v4534, %v4534
      %v4554 = vshrl.u32 %v4431, 16
      %v4556 = vrot.slane %v4554, 7
      %v4557 = vrot.slane %v4556, 1
      %v4559 = vshrl.u32 %v4438, 16
      %v4561 = vrot.slane %v4559, 7
      %v4562 = vrot.slane %v4561, 1
      %v4564 = vshrl.u32 %v4439, 16
      %v4566 = vrot.slane %v4564, 7
      %v4567 = vrot.slane %v4566, 1
      %v4569 = vshrl.u32 %v4440, 16
      %v4571 = vrot.slane %v4569, 7
      %v4572 = vrot.slane %v4571, 1
      %v4574 = vshrl.u32 %v4463, 16
      %v4576 = vrot.slane %v4574, 7
      %v4577 = vrot.slane %v4576, 1
      %v4579 = vshrl.u32 %v4470, 16
      %v4581 = vrot.slane %v4579, 7
      %v4582 = vrot.slane %v4581, 1
      %v4584 = vshrl.u32 %v4471, 16
      %v4586 = vrot.slane %v4584, 7
      %v4587 = vrot.slane %v4586, 1
      %v4589 = vshrl.u32 %v4472, 16
      %v4591 = vrot.slane %v4589, 7
      %v4592 = vrot.slane %v4591, 1
      %v4594 = vshrl.u32 %v4495, 16
      %v4596 = vrot.slane %v4594, 7
      %v4597 = vrot.slane %v4596, 1
      %v4599 = vshrl.u32 %v4502, 16
      %v4601 = vrot.slane %v4599, 7
      %v4602 = vrot.slane %v4601, 1
      %v4604 = vshrl.u32 %v4503, 16
      %v4606 = vrot.slane %v4604, 7
      %v4607 = vrot.slane %v4606, 1
      %v4609 = vshrl.u32 %v4504, 16
      %v4611 = vrot.slane %v4609, 7
      %v4612 = vrot.slane %v4611, 1
      %v4614 = vshrl.u32 %v4527, 16
      %v4616 = vrot.slane %v4614, 7
      %v4617 = vrot.slane %v4616, 1
      %v4619 = vshrl.u32 %v4534, 16
      %v4621 = vrot.slane %v4619, 7
      %v4622 = vrot.slane %v4621, 1
      %v4624 = vshrl.u32 %v4535, 16
      %v4626 = vrot.slane %v4624, 7
      %v4627 = vrot.slane %v4626, 1
      %v4629 = vshrl.u32 %v4536, 16
      %v4631 = vrot.slane %v4629, 7
      %v4632 = vrot.slane %v4631, 1
      %v4649 = vmax.bf16 %v4431, %v4557
      %v4650 = vmax.bf16 %v4438, %v4562
      %v4651 = vmax.bf16 %v4439, %v4567
      %v4652 = vmax.bf16 %v4440, %v4572
      %v4653 = vmax.bf16 %v4463, %v4577
      %v4654 = vmax.bf16 %v4470, %v4582
      %v4655 = vmax.bf16 %v4471, %v4587
      %v4656 = vmax.bf16 %v4472, %v4592
      %v4657 = vmax.bf16 %v4495, %v4597
      %v4658 = vmax.bf16 %v4502, %v4602
      %v4659 = vmax.bf16 %v4503, %v4607
      %v4660 = vmax.bf16 %v4504, %v4612
      %v4661 = vmax.bf16 %v4527, %v4617
      %v4662 = vmax.bf16 %v4534, %v4622
      %v4663 = vmax.bf16 %v4535, %v4627
      %v4664 = vmax.bf16 %v4536, %v4632
      %s4665 = ssub.s32 %s480, 2
      %v4666 = vstv %s4665
      %v4667 = vadd.s32 %v4666, 1
      %s4668 = sadd.s32 %s480, 8
      %v4669 = vstv %s4668
      %v4670 = vadd.s32 %v4669, 1
      %vm4671 = vcmp.ge.s32.totalorder %v4666, 0
      %vm4672 = vcmp.ge.s32.totalorder %v4667, 0
      %vm4673 = vcmp.lt.s32.totalorder %v4666, 8
      %vm4674 = vcmp.lt.s32.totalorder %v4667, 8
      %vm4675 = vmand %vm4671, %vm4673
      %vm4676 = vmand %vm4672, %vm4674
      %vm4677 = vcmp.ge.s32.totalorder %v4669, 0
      %vm4678 = vcmp.ge.s32.totalorder %v4670, 0
      %vm4679 = vcmp.lt.s32.totalorder %v4669, 8
      %vm4680 = vcmp.lt.s32.totalorder %v4670, 8
      %vm4681 = vmand %vm4677, %vm4679
      %vm4682 = vmand %vm4678, %vm4680
      %v4683 = vsel %vm4675, 1, 0
      %v4684 = vsel %vm4676, 1, 0
      %vm4685 = vcmp.eq.s32.totalorder %v4683, 1
      %vm4686 = vcmp.eq.s32.totalorder %v4684, 1
      %v4687 = vsel %vm4685, 1, 0
      %v4688 = vsel %vm4686, 1, 0
      %v4689 = vpack.c.b16 %v4687, %v4687
      %v4690 = vpack.c.b16 %v4688, %v4688
      %vm4691 = vcmp.ne.s16.totalorder %v4689, 0
      %vm4692 = vcmp.ne.s16.totalorder %v4690, 0
      %v4693 = vsel %vm4691, %v4361, 0
      %v4694 = vsel %vm4691, %v4362, 0
      %v4695 = vsel %vm4691, %v4363, 0
      %v4696 = vsel %vm4691, %v4364, 0
      %v4697 = vsel %vm4691, %v4365, 0
      %v4698 = vsel %vm4691, %v4366, 0
      %v4699 = vsel %vm4691, %v4367, 0
      %v4700 = vsel %vm4691, %v4368, 0
      %v4701 = vsel %vm4692, %v4369, 0
      %v4702 = vsel %vm4692, %v4370, 0
      %v4703 = vsel %vm4692, %v4371, 0
      %v4704 = vsel %vm4692, %v4372, 0
      %v4705 = vsel %vm4692, %v4373, 0
      %v4706 = vsel %vm4692, %v4374, 0
      %v4707 = vsel %vm4692, %v4375, 0
      %v4708 = vsel %vm4692, %v4376, 0
      %v4726 = vunpack.c.l.s4 1966171168
      %v4727 = vunpack.c.0.s8 %v4726
      %v4728 = vlaneseq
      %v4729 = vshrl.u32 %v4728, 7
      %v4730 = vsub.s32 %v4727, %v4729
      %v4731 = vrot.slane %v4693, %v4730
      %v4732 = vcombine.high %v4731, %v4731
      %v4734 = vunpack.c.l.s4 1966171168
      %v4735 = vunpack.c.0.s8 %v4734
      %v4736 = vlaneseq
      %v4737 = vshrl.u32 %v4736, 7
      %v4738 = vsub.s32 %v4735, %v4737
      %v4739 = vrot.slane %v4731, %v4738
      %v4741 = vunpack.c.l.s4 1966171168
      %v4742 = vunpack.c.0.s8 %v4741
      %v4743 = vlaneseq
      %v4744 = vshrl.u32 %v4743, 7
      %v4745 = vsub.s32 %v4742, %v4744
      %v4746 = vrot.slane %v4732, %v4745
      %v4747 = vcombine.high %v4739, %v4739
      %v4749 = vunpack.c.l.s4 1966171168
      %v4750 = vunpack.c.0.s8 %v4749
      %v4751 = vlaneseq
      %v4752 = vshrl.u32 %v4751, 7
      %v4753 = vsub.s32 %v4750, %v4752
      %v4754 = vrot.slane %v4694, %v4753
      %v4755 = vcombine.high %v4754, %v4754
      %v4757 = vunpack.c.l.s4 1966171168
      %v4758 = vunpack.c.0.s8 %v4757
      %v4759 = vlaneseq
      %v4760 = vshrl.u32 %v4759, 7
      %v4761 = vsub.s32 %v4758, %v4760
      %v4762 = vrot.slane %v4754, %v4761
      %v4764 = vunpack.c.l.s4 1966171168
      %v4765 = vunpack.c.0.s8 %v4764
      %v4766 = vlaneseq
      %v4767 = vshrl.u32 %v4766, 7
      %v4768 = vsub.s32 %v4765, %v4767
      %v4769 = vrot.slane %v4755, %v4768
      %v4770 = vcombine.high %v4762, %v4762
      %v4772 = vunpack.c.l.s4 1966171168
      %v4773 = vunpack.c.0.s8 %v4772
      %v4774 = vlaneseq
      %v4775 = vshrl.u32 %v4774, 7
      %v4776 = vsub.s32 %v4773, %v4775
      %v4777 = vrot.slane %v4695, %v4776
      %v4778 = vcombine.high %v4777, %v4777
      %v4780 = vunpack.c.l.s4 1966171168
      %v4781 = vunpack.c.0.s8 %v4780
      %v4782 = vlaneseq
      %v4783 = vshrl.u32 %v4782, 7
      %v4784 = vsub.s32 %v4781, %v4783
      %v4785 = vrot.slane %v4777, %v4784
      %v4787 = vunpack.c.l.s4 1966171168
      %v4788 = vunpack.c.0.s8 %v4787
      %v4789 = vlaneseq
      %v4790 = vshrl.u32 %v4789, 7
      %v4791 = vsub.s32 %v4788, %v4790
      %v4792 = vrot.slane %v4778, %v4791
      %v4793 = vcombine.high %v4785, %v4785
      %v4795 = vunpack.c.l.s4 1966171168
      %v4796 = vunpack.c.0.s8 %v4795
      %v4797 = vlaneseq
      %v4798 = vshrl.u32 %v4797, 7
      %v4799 = vsub.s32 %v4796, %v4798
      %v4800 = vrot.slane %v4696, %v4799
      %v4801 = vcombine.high %v4800, %v4800
      %v4803 = vunpack.c.l.s4 1966171168
      %v4804 = vunpack.c.0.s8 %v4803
      %v4805 = vlaneseq
      %v4806 = vshrl.u32 %v4805, 7
      %v4807 = vsub.s32 %v4804, %v4806
      %v4808 = vrot.slane %v4800, %v4807
      %v4810 = vunpack.c.l.s4 1966171168
      %v4811 = vunpack.c.0.s8 %v4810
      %v4812 = vlaneseq
      %v4813 = vshrl.u32 %v4812, 7
      %v4814 = vsub.s32 %v4811, %v4813
      %v4815 = vrot.slane %v4801, %v4814
      %v4816 = vcombine.high %v4808, %v4808
      %v4818 = vunpack.c.l.s4 1966171168
      %v4819 = vunpack.c.0.s8 %v4818
      %v4820 = vlaneseq
      %v4821 = vshrl.u32 %v4820, 7
      %v4822 = vsub.s32 %v4819, %v4821
      %v4823 = vrot.slane %v4697, %v4822
      %v4824 = vcombine.high %v4823, %v4823
      %v4826 = vunpack.c.l.s4 1966171168
      %v4827 = vunpack.c.0.s8 %v4826
      %v4828 = vlaneseq
      %v4829 = vshrl.u32 %v4828, 7
      %v4830 = vsub.s32 %v4827, %v4829
      %v4831 = vrot.slane %v4823, %v4830
      %v4833 = vunpack.c.l.s4 1966171168
      %v4834 = vunpack.c.0.s8 %v4833
      %v4835 = vlaneseq
      %v4836 = vshrl.u32 %v4835, 7
      %v4837 = vsub.s32 %v4834, %v4836
      %v4838 = vrot.slane %v4824, %v4837
      %v4839 = vcombine.high %v4831, %v4831
      %v4841 = vunpack.c.l.s4 1966171168
      %v4842 = vunpack.c.0.s8 %v4841
      %v4843 = vlaneseq
      %v4844 = vshrl.u32 %v4843, 7
      %v4845 = vsub.s32 %v4842, %v4844
      %v4846 = vrot.slane %v4698, %v4845
      %v4847 = vcombine.high %v4846, %v4846
      %v4849 = vunpack.c.l.s4 1966171168
      %v4850 = vunpack.c.0.s8 %v4849
      %v4851 = vlaneseq
      %v4852 = vshrl.u32 %v4851, 7
      %v4853 = vsub.s32 %v4850, %v4852
      %v4854 = vrot.slane %v4846, %v4853
      %v4856 = vunpack.c.l.s4 1966171168
      %v4857 = vunpack.c.0.s8 %v4856
      %v4858 = vlaneseq
      %v4859 = vshrl.u32 %v4858, 7
      %v4860 = vsub.s32 %v4857, %v4859
      %v4861 = vrot.slane %v4847, %v4860
      %v4862 = vcombine.high %v4854, %v4854
      %v4864 = vunpack.c.l.s4 1966171168
      %v4865 = vunpack.c.0.s8 %v4864
      %v4866 = vlaneseq
      %v4867 = vshrl.u32 %v4866, 7
      %v4868 = vsub.s32 %v4865, %v4867
      %v4869 = vrot.slane %v4699, %v4868
      %v4870 = vcombine.high %v4869, %v4869
      %v4872 = vunpack.c.l.s4 1966171168
      %v4873 = vunpack.c.0.s8 %v4872
      %v4874 = vlaneseq
      %v4875 = vshrl.u32 %v4874, 7
      %v4876 = vsub.s32 %v4873, %v4875
      %v4877 = vrot.slane %v4869, %v4876
      %v4879 = vunpack.c.l.s4 1966171168
      %v4880 = vunpack.c.0.s8 %v4879
      %v4881 = vlaneseq
      %v4882 = vshrl.u32 %v4881, 7
      %v4883 = vsub.s32 %v4880, %v4882
      %v4884 = vrot.slane %v4870, %v4883
      %v4885 = vcombine.high %v4877, %v4877
      %v4887 = vunpack.c.l.s4 1966171168
      %v4888 = vunpack.c.0.s8 %v4887
      %v4889 = vlaneseq
      %v4890 = vshrl.u32 %v4889, 7
      %v4891 = vsub.s32 %v4888, %v4890
      %v4892 = vrot.slane %v4700, %v4891
      %v4893 = vcombine.high %v4892, %v4892
      %v4895 = vunpack.c.l.s4 1966171168
      %v4896 = vunpack.c.0.s8 %v4895
      %v4897 = vlaneseq
      %v4898 = vshrl.u32 %v4897, 7
      %v4899 = vsub.s32 %v4896, %v4898
      %v4900 = vrot.slane %v4892, %v4899
      %v4902 = vunpack.c.l.s4 1966171168
      %v4903 = vunpack.c.0.s8 %v4902
      %v4904 = vlaneseq
      %v4905 = vshrl.u32 %v4904, 7
      %v4906 = vsub.s32 %v4903, %v4905
      %v4907 = vrot.slane %v4893, %v4906
      %v4908 = vcombine.high %v4900, %v4900
      %v4910 = vunpack.c.l.s4 1966171168
      %v4911 = vunpack.c.0.s8 %v4910
      %v4912 = vlaneseq
      %v4913 = vshrl.u32 %v4912, 7
      %v4914 = vsub.s32 %v4911, %v4913
      %v4915 = vrot.slane %v4701, %v4914
      %v4916 = vcombine.high %v4915, %v4915
      %v4918 = vunpack.c.l.s4 1966171168
      %v4919 = vunpack.c.0.s8 %v4918
      %v4920 = vlaneseq
      %v4921 = vshrl.u32 %v4920, 7
      %v4922 = vsub.s32 %v4919, %v4921
      %v4923 = vrot.slane %v4915, %v4922
      %v4925 = vunpack.c.l.s4 1966171168
      %v4926 = vunpack.c.0.s8 %v4925
      %v4927 = vlaneseq
      %v4928 = vshrl.u32 %v4927, 7
      %v4929 = vsub.s32 %v4926, %v4928
      %v4930 = vrot.slane %v4916, %v4929
      %v4931 = vcombine.high %v4923, %v4923
      %v4933 = vunpack.c.l.s4 1966171168
      %v4934 = vunpack.c.0.s8 %v4933
      %v4935 = vlaneseq
      %v4936 = vshrl.u32 %v4935, 7
      %v4937 = vsub.s32 %v4934, %v4936
      %v4938 = vrot.slane %v4702, %v4937
      %v4939 = vcombine.high %v4938, %v4938
      %v4941 = vunpack.c.l.s4 1966171168
      %v4942 = vunpack.c.0.s8 %v4941
      %v4943 = vlaneseq
      %v4944 = vshrl.u32 %v4943, 7
      %v4945 = vsub.s32 %v4942, %v4944
      %v4946 = vrot.slane %v4938, %v4945
      %v4948 = vunpack.c.l.s4 1966171168
      %v4949 = vunpack.c.0.s8 %v4948
      %v4950 = vlaneseq
      %v4951 = vshrl.u32 %v4950, 7
      %v4952 = vsub.s32 %v4949, %v4951
      %v4953 = vrot.slane %v4939, %v4952
      %v4954 = vcombine.high %v4946, %v4946
      %v4956 = vunpack.c.l.s4 1966171168
      %v4957 = vunpack.c.0.s8 %v4956
      %v4958 = vlaneseq
      %v4959 = vshrl.u32 %v4958, 7
      %v4960 = vsub.s32 %v4957, %v4959
      %v4961 = vrot.slane %v4703, %v4960
      %v4962 = vcombine.high %v4961, %v4961
      %v4964 = vunpack.c.l.s4 1966171168
      %v4965 = vunpack.c.0.s8 %v4964
      %v4966 = vlaneseq
      %v4967 = vshrl.u32 %v4966, 7
      %v4968 = vsub.s32 %v4965, %v4967
      %v4969 = vrot.slane %v4961, %v4968
      %v4971 = vunpack.c.l.s4 1966171168
      %v4972 = vunpack.c.0.s8 %v4971
      %v4973 = vlaneseq
      %v4974 = vshrl.u32 %v4973, 7
      %v4975 = vsub.s32 %v4972, %v4974
      %v4976 = vrot.slane %v4962, %v4975
      %v4977 = vcombine.high %v4969, %v4969
      %v4979 = vunpack.c.l.s4 1966171168
      %v4980 = vunpack.c.0.s8 %v4979
      %v4981 = vlaneseq
      %v4982 = vshrl.u32 %v4981, 7
      %v4983 = vsub.s32 %v4980, %v4982
      %v4984 = vrot.slane %v4704, %v4983
      %v4985 = vcombine.high %v4984, %v4984
      %v4987 = vunpack.c.l.s4 1966171168
      %v4988 = vunpack.c.0.s8 %v4987
      %v4989 = vlaneseq
      %v4990 = vshrl.u32 %v4989, 7
      %v4991 = vsub.s32 %v4988, %v4990
      %v4992 = vrot.slane %v4984, %v4991
      %v4994 = vunpack.c.l.s4 1966171168
      %v4995 = vunpack.c.0.s8 %v4994
      %v4996 = vlaneseq
      %v4997 = vshrl.u32 %v4996, 7
      %v4998 = vsub.s32 %v4995, %v4997
      %v4999 = vrot.slane %v4985, %v4998
      %v5000 = vcombine.high %v4992, %v4992
      %v5002 = vunpack.c.l.s4 1966171168
      %v5003 = vunpack.c.0.s8 %v5002
      %v5004 = vlaneseq
      %v5005 = vshrl.u32 %v5004, 7
      %v5006 = vsub.s32 %v5003, %v5005
      %v5007 = vrot.slane %v4705, %v5006
      %v5008 = vcombine.high %v5007, %v5007
      %v5010 = vunpack.c.l.s4 1966171168
      %v5011 = vunpack.c.0.s8 %v5010
      %v5012 = vlaneseq
      %v5013 = vshrl.u32 %v5012, 7
      %v5014 = vsub.s32 %v5011, %v5013
      %v5015 = vrot.slane %v5007, %v5014
      %v5017 = vunpack.c.l.s4 1966171168
      %v5018 = vunpack.c.0.s8 %v5017
      %v5019 = vlaneseq
      %v5020 = vshrl.u32 %v5019, 7
      %v5021 = vsub.s32 %v5018, %v5020
      %v5022 = vrot.slane %v5008, %v5021
      %v5023 = vcombine.high %v5015, %v5015
      %v5025 = vunpack.c.l.s4 1966171168
      %v5026 = vunpack.c.0.s8 %v5025
      %v5027 = vlaneseq
      %v5028 = vshrl.u32 %v5027, 7
      %v5029 = vsub.s32 %v5026, %v5028
      %v5030 = vrot.slane %v4706, %v5029
      %v5031 = vcombine.high %v5030, %v5030
      %v5033 = vunpack.c.l.s4 1966171168
      %v5034 = vunpack.c.0.s8 %v5033
      %v5035 = vlaneseq
      %v5036 = vshrl.u32 %v5035, 7
      %v5037 = vsub.s32 %v5034, %v5036
      %v5038 = vrot.slane %v5030, %v5037
      %v5040 = vunpack.c.l.s4 1966171168
      %v5041 = vunpack.c.0.s8 %v5040
      %v5042 = vlaneseq
      %v5043 = vshrl.u32 %v5042, 7
      %v5044 = vsub.s32 %v5041, %v5043
      %v5045 = vrot.slane %v5031, %v5044
      %v5046 = vcombine.high %v5038, %v5038
      %v5048 = vunpack.c.l.s4 1966171168
      %v5049 = vunpack.c.0.s8 %v5048
      %v5050 = vlaneseq
      %v5051 = vshrl.u32 %v5050, 7
      %v5052 = vsub.s32 %v5049, %v5051
      %v5053 = vrot.slane %v4707, %v5052
      %v5054 = vcombine.high %v5053, %v5053
      %v5056 = vunpack.c.l.s4 1966171168
      %v5057 = vunpack.c.0.s8 %v5056
      %v5058 = vlaneseq
      %v5059 = vshrl.u32 %v5058, 7
      %v5060 = vsub.s32 %v5057, %v5059
      %v5061 = vrot.slane %v5053, %v5060
      %v5063 = vunpack.c.l.s4 1966171168
      %v5064 = vunpack.c.0.s8 %v5063
      %v5065 = vlaneseq
      %v5066 = vshrl.u32 %v5065, 7
      %v5067 = vsub.s32 %v5064, %v5066
      %v5068 = vrot.slane %v5054, %v5067
      %v5069 = vcombine.high %v5061, %v5061
      %v5071 = vunpack.c.l.s4 1966171168
      %v5072 = vunpack.c.0.s8 %v5071
      %v5073 = vlaneseq
      %v5074 = vshrl.u32 %v5073, 7
      %v5075 = vsub.s32 %v5072, %v5074
      %v5076 = vrot.slane %v4708, %v5075
      %v5077 = vcombine.high %v5076, %v5076
      %v5079 = vunpack.c.l.s4 1966171168
      %v5080 = vunpack.c.0.s8 %v5079
      %v5081 = vlaneseq
      %v5082 = vshrl.u32 %v5081, 7
      %v5083 = vsub.s32 %v5080, %v5082
      %v5084 = vrot.slane %v5076, %v5083
      %v5086 = vunpack.c.l.s4 1966171168
      %v5087 = vunpack.c.0.s8 %v5086
      %v5088 = vlaneseq
      %v5089 = vshrl.u32 %v5088, 7
      %v5090 = vsub.s32 %v5087, %v5089
      %v5091 = vrot.slane %v5077, %v5090
      %v5092 = vcombine.high %v5084, %v5084
      %v5093 = vunpack.c.l.b16 %v4739
      %v5094 = vunpack.c.l.b16 %v4746
      %v5095 = vunpack.c.l.b16 %v4747
      %v5096 = vunpack.c.l.b16 %v4762
      %v5097 = vunpack.c.l.b16 %v4769
      %v5098 = vunpack.c.l.b16 %v4770
      %v5099 = vunpack.c.l.b16 %v4785
      %v5100 = vunpack.c.l.b16 %v4792
      %v5101 = vunpack.c.l.b16 %v4793
      %v5102 = vunpack.c.l.b16 %v4808
      %v5103 = vunpack.c.l.b16 %v4815
      %v5104 = vunpack.c.l.b16 %v4816
      %v5105 = vunpack.c.l.b16 %v4831
      %v5106 = vunpack.c.l.b16 %v4838
      %v5107 = vunpack.c.l.b16 %v4839
      %v5108 = vunpack.c.l.b16 %v4854
      %v5109 = vunpack.c.l.b16 %v4861
      %v5110 = vunpack.c.l.b16 %v4862
      %v5111 = vunpack.c.l.b16 %v4877
      %v5112 = vunpack.c.l.b16 %v4884
      %v5113 = vunpack.c.l.b16 %v4885
      %v5114 = vunpack.c.l.b16 %v4900
      %v5115 = vunpack.c.l.b16 %v4907
      %v5116 = vunpack.c.l.b16 %v4908
      %v5117 = vunpack.c.l.b16 %v4923
      %v5118 = vunpack.c.l.b16 %v4930
      %v5119 = vunpack.c.l.b16 %v4931
      %v5120 = vunpack.c.l.b16 %v4946
      %v5121 = vunpack.c.l.b16 %v4953
      %v5122 = vunpack.c.l.b16 %v4954
      %v5123 = vunpack.c.l.b16 %v4969
      %v5124 = vunpack.c.l.b16 %v4976
      %v5125 = vunpack.c.l.b16 %v4977
      %v5126 = vunpack.c.l.b16 %v4992
      %v5127 = vunpack.c.l.b16 %v4999
      %v5128 = vunpack.c.l.b16 %v5000
      %v5129 = vunpack.c.l.b16 %v5015
      %v5130 = vunpack.c.l.b16 %v5022
      %v5131 = vunpack.c.l.b16 %v5023
      %v5132 = vunpack.c.l.b16 %v5038
      %v5133 = vunpack.c.l.b16 %v5045
      %v5134 = vunpack.c.l.b16 %v5046
      %v5135 = vunpack.c.l.b16 %v5061
      %v5136 = vunpack.c.l.b16 %v5068
      %v5137 = vunpack.c.l.b16 %v5069
      %v5138 = vunpack.c.l.b16 %v5084
      %v5139 = vunpack.c.l.b16 %v5091
      %v5140 = vunpack.c.l.b16 %v5092
      %v5141 = vrot.slane %v5093, 7
      %v5142 = vrot.slane %v5096, 6
      %v5143 = vsel %vm3649, %v5142, %v5141
      %v5144 = vrot.slane %v5099, 5
      %v5145 = vsel %vm3652, %v5144, %v5143
      %v5146 = vrot.slane %v5102, 4
      %v5147 = vsel %vm3655, %v5146, %v5145
      %v5148 = vrot.slane %v5105, 3
      %v5149 = vsel %vm3658, %v5148, %v5147
      %v5150 = vrot.slane %v5108, 2
      %v5151 = vsel %vm3661, %v5150, %v5149
      %v5152 = vrot.slane %v5111, 1
      %v5153 = vsel %vm3664, %v5152, %v5151
      %v5154 = vrot.slane %v5094, 7
      %v5155 = vrot.slane %v5097, 6
      %v5156 = vsel %vm3649, %v5155, %v5154
      %v5157 = vrot.slane %v5100, 5
      %v5158 = vsel %vm3652, %v5157, %v5156
      %v5159 = vrot.slane %v5103, 4
      %v5160 = vsel %vm3655, %v5159, %v5158
      %v5161 = vrot.slane %v5106, 3
      %v5162 = vsel %vm3658, %v5161, %v5160
      %v5163 = vrot.slane %v5109, 2
      %v5164 = vsel %vm3661, %v5163, %v5162
      %v5165 = vrot.slane %v5112, 1
      %v5166 = vsel %vm3664, %v5165, %v5164
      %v5167 = vrot.slane %v5095, 7
      %v5168 = vrot.slane %v5098, 6
      %v5169 = vsel %vm3649, %v5168, %v5167
      %v5170 = vrot.slane %v5101, 5
      %v5171 = vsel %vm3652, %v5170, %v5169
      %v5172 = vrot.slane %v5104, 4
      %v5173 = vsel %vm3655, %v5172, %v5171
      %v5174 = vrot.slane %v5107, 3
      %v5175 = vsel %vm3658, %v5174, %v5173
      %v5176 = vrot.slane %v5110, 2
      %v5177 = vsel %vm3661, %v5176, %v5175
      %v5178 = vrot.slane %v5113, 1
      %v5179 = vsel %vm3664, %v5178, %v5177
      %v5180 = vrot.slane %v5117, 7
      %v5181 = vrot.slane %v5120, 6
      %v5182 = vsel %vm3649, %v5181, %v5180
      %v5183 = vrot.slane %v5123, 5
      %v5184 = vsel %vm3652, %v5183, %v5182
      %v5185 = vrot.slane %v5126, 4
      %v5186 = vsel %vm3655, %v5185, %v5184
      %v5187 = vrot.slane %v5129, 3
      %v5188 = vsel %vm3658, %v5187, %v5186
      %v5189 = vrot.slane %v5132, 2
      %v5190 = vsel %vm3661, %v5189, %v5188
      %v5191 = vrot.slane %v5135, 1
      %v5192 = vsel %vm3664, %v5191, %v5190
      %v5193 = vrot.slane %v5118, 7
      %v5194 = vrot.slane %v5121, 6
      %v5195 = vsel %vm3649, %v5194, %v5193
      %v5196 = vrot.slane %v5124, 5
      %v5197 = vsel %vm3652, %v5196, %v5195
      %v5198 = vrot.slane %v5127, 4
      %v5199 = vsel %vm3655, %v5198, %v5197
      %v5200 = vrot.slane %v5130, 3
      %v5201 = vsel %vm3658, %v5200, %v5199
      %v5202 = vrot.slane %v5133, 2
      %v5203 = vsel %vm3661, %v5202, %v5201
      %v5204 = vrot.slane %v5136, 1
      %v5205 = vsel %vm3664, %v5204, %v5203
      %v5206 = vrot.slane %v5119, 7
      %v5207 = vrot.slane %v5122, 6
      %v5208 = vsel %vm3649, %v5207, %v5206
      %v5209 = vrot.slane %v5125, 5
      %v5210 = vsel %vm3652, %v5209, %v5208
      %v5211 = vrot.slane %v5128, 4
      %v5212 = vsel %vm3655, %v5211, %v5210
      %v5213 = vrot.slane %v5131, 3
      %v5214 = vsel %vm3658, %v5213, %v5212
      %v5215 = vrot.slane %v5134, 2
      %v5216 = vsel %vm3661, %v5215, %v5214
      %v5217 = vrot.slane %v5137, 1
      %v5218 = vsel %vm3664, %v5217, %v5216
      %v5219 = vpack.c.b16 %v5114, %v5153
      %v5220 = vpack.c.b16 %v5115, %v5166
      %v5221 = vpack.c.b16 %v5116, %v5179
      %v5222 = vpack.c.b16 %v5138, %v5192
      %v5223 = vpack.c.b16 %v5139, %v5205
      %v5224 = vpack.c.b16 %v5140, %v5218
      %v5231 = vld [vmem:[#allocation2] sm:$0x1f]
      %v5232 = vsel %vm4016, %v5219, %v5231
      %5233 = vst [vmem:[#allocation2] sm:$0x1f] %v5232
      %v5234 = vld [vmem:[#allocation2 + $0x8] sm:$0x1f]
      %v5235 = vsel %vm4016, %v5220, %v5234
      %5236 = vst [vmem:[#allocation2 + $0x8] sm:$0x1f] %v5235
      %v5237 = vld [vmem:[#allocation2 + $0x10] sm:$0x1f]
      %v5238 = vsel %vm4016, %v5221, %v5237
      %5239 = vst [vmem:[#allocation2 + $0x10] sm:$0x1f] %v5238
      %v5240 = vld [vmem:[#allocation2 + $0x18] sm:$0x1f]
      %v5241 = vsel %vm4016, %v5222, %v5240
      %5242 = vst [vmem:[#allocation2 + $0x18] sm:$0x1f] %v5241
      %v5243 = vld [vmem:[#allocation2 + $0x20] sm:$0x1f]
      %v5244 = vsel %vm4016, %v5223, %v5243
      %5245 = vst [vmem:[#allocation2 + $0x20] sm:$0x1f] %v5244
      %v5246 = vld [vmem:[#allocation2 + $0x28] sm:$0x1f]
      %v5247 = vsel %vm4016, %v5224, %v5246
      %5248 = vst [vmem:[#allocation2 + $0x28] sm:$0x1f] %v5247
      %v5249 = vsel %vm4681, 1, 0
      %v5250 = vsel %vm4682, 1, 0
      %vm5251 = vcmp.eq.s32.totalorder %v5249, 1
      %vm5252 = vcmp.eq.s32.totalorder %v5250, 1
      %v5253 = vsel %vm5251, 1, 0
      %v5254 = vsel %vm5252, 1, 0
      %v5255 = vpack.c.b16 %v5253, %v5253
      %v5256 = vpack.c.b16 %v5254, %v5254
      %vm5257 = vcmp.ne.s16.totalorder %v5255, 0
      %vm5258 = vcmp.ne.s16.totalorder %v5256, 0
      %v5259 = vsel %vm5257, %v4649, 0
      %v5260 = vsel %vm5257, %v4650, 0
      %v5261 = vsel %vm5257, %v4651, 0
      %v5262 = vsel %vm5257, %v4652, 0
      %v5263 = vsel %vm5257, %v4653, 0
      %v5264 = vsel %vm5257, %v4654, 0
      %v5265 = vsel %vm5257, %v4655, 0
      %v5266 = vsel %vm5257, %v4656, 0
      %v5267 = vsel %vm5258, %v4657, 0
      %v5268 = vsel %vm5258, %v4658, 0
      %v5269 = vsel %vm5258, %v4659, 0
      %v5270 = vsel %vm5258, %v4660, 0
      %v5271 = vsel %vm5258, %v4661, 0
      %v5272 = vsel %vm5258, %v4662, 0
      %v5273 = vsel %vm5258, %v4663, 0
      %v5274 = vsel %vm5258, %v4664, 0
      %v5292 = vunpack.c.l.s4 1966171168
      %v5293 = vunpack.c.0.s8 %v5292
      %v5294 = vlaneseq
      %v5295 = vshrl.u32 %v5294, 7
      %v5296 = vsub.s32 %v5293, %v5295
      %v5297 = vrot.slane %v5259, %v5296
      %v5298 = vcombine.high %v5297, %v5297
      %v5300 = vunpack.c.l.s4 1966171168
      %v5301 = vunpack.c.0.s8 %v5300
      %v5302 = vlaneseq
      %v5303 = vshrl.u32 %v5302, 7
      %v5304 = vsub.s32 %v5301, %v5303
      %v5305 = vrot.slane %v5297, %v5304
      %v5307 = vunpack.c.l.s4 1966171168
      %v5308 = vunpack.c.0.s8 %v5307
      %v5309 = vlaneseq
      %v5310 = vshrl.u32 %v5309, 7
      %v5311 = vsub.s32 %v5308, %v5310
      %v5312 = vrot.slane %v5298, %v5311
      %v5313 = vcombine.high %v5305, %v5305
      %v5315 = vunpack.c.l.s4 1966171168
      %v5316 = vunpack.c.0.s8 %v5315
      %v5317 = vlaneseq
      %v5318 = vshrl.u32 %v5317, 7
      %v5319 = vsub.s32 %v5316, %v5318
      %v5320 = vrot.slane %v5260, %v5319
      %v5321 = vcombine.high %v5320, %v5320
      %v5323 = vunpack.c.l.s4 1966171168
      %v5324 = vunpack.c.0.s8 %v5323
      %v5325 = vlaneseq
      %v5326 = vshrl.u32 %v5325, 7
      %v5327 = vsub.s32 %v5324, %v5326
      %v5328 = vrot.slane %v5320, %v5327
      %v5330 = vunpack.c.l.s4 1966171168
      %v5331 = vunpack.c.0.s8 %v5330
      %v5332 = vlaneseq
      %v5333 = vshrl.u32 %v5332, 7
      %v5334 = vsub.s32 %v5331, %v5333
      %v5335 = vrot.slane %v5321, %v5334
      %v5336 = vcombine.high %v5328, %v5328
      %v5338 = vunpack.c.l.s4 1966171168
      %v5339 = vunpack.c.0.s8 %v5338
      %v5340 = vlaneseq
      %v5341 = vshrl.u32 %v5340, 7
      %v5342 = vsub.s32 %v5339, %v5341
      %v5343 = vrot.slane %v5261, %v5342
      %v5344 = vcombine.high %v5343, %v5343
      %v5346 = vunpack.c.l.s4 1966171168
      %v5347 = vunpack.c.0.s8 %v5346
      %v5348 = vlaneseq
      %v5349 = vshrl.u32 %v5348, 7
      %v5350 = vsub.s32 %v5347, %v5349
      %v5351 = vrot.slane %v5343, %v5350
      %v5353 = vunpack.c.l.s4 1966171168
      %v5354 = vunpack.c.0.s8 %v5353
      %v5355 = vlaneseq
      %v5356 = vshrl.u32 %v5355, 7
      %v5357 = vsub.s32 %v5354, %v5356
      %v5358 = vrot.slane %v5344, %v5357
      %v5359 = vcombine.high %v5351, %v5351
      %v5361 = vunpack.c.l.s4 1966171168
      %v5362 = vunpack.c.0.s8 %v5361
      %v5363 = vlaneseq
      %v5364 = vshrl.u32 %v5363, 7
      %v5365 = vsub.s32 %v5362, %v5364
      %v5366 = vrot.slane %v5262, %v5365
      %v5367 = vcombine.high %v5366, %v5366
      %v5369 = vunpack.c.l.s4 1966171168
      %v5370 = vunpack.c.0.s8 %v5369
      %v5371 = vlaneseq
      %v5372 = vshrl.u32 %v5371, 7
      %v5373 = vsub.s32 %v5370, %v5372
      %v5374 = vrot.slane %v5366, %v5373
      %v5376 = vunpack.c.l.s4 1966171168
      %v5377 = vunpack.c.0.s8 %v5376
      %v5378 = vlaneseq
      %v5379 = vshrl.u32 %v5378, 7
      %v5380 = vsub.s32 %v5377, %v5379
      %v5381 = vrot.slane %v5367, %v5380
      %v5382 = vcombine.high %v5374, %v5374
      %v5384 = vunpack.c.l.s4 1966171168
      %v5385 = vunpack.c.0.s8 %v5384
      %v5386 = vlaneseq
      %v5387 = vshrl.u32 %v5386, 7
      %v5388 = vsub.s32 %v5385, %v5387
      %v5389 = vrot.slane %v5263, %v5388
      %v5390 = vcombine.high %v5389, %v5389
      %v5392 = vunpack.c.l.s4 1966171168
      %v5393 = vunpack.c.0.s8 %v5392
      %v5394 = vlaneseq
      %v5395 = vshrl.u32 %v5394, 7
      %v5396 = vsub.s32 %v5393, %v5395
      %v5397 = vrot.slane %v5389, %v5396
      %v5399 = vunpack.c.l.s4 1966171168
      %v5400 = vunpack.c.0.s8 %v5399
      %v5401 = vlaneseq
      %v5402 = vshrl.u32 %v5401, 7
      %v5403 = vsub.s32 %v5400, %v5402
      %v5404 = vrot.slane %v5390, %v5403
      %v5405 = vcombine.high %v5397, %v5397
      %v5407 = vunpack.c.l.s4 1966171168
      %v5408 = vunpack.c.0.s8 %v5407
      %v5409 = vlaneseq
      %v5410 = vshrl.u32 %v5409, 7
      %v5411 = vsub.s32 %v5408, %v5410
      %v5412 = vrot.slane %v5264, %v5411
      %v5413 = vcombine.high %v5412, %v5412
      %v5415 = vunpack.c.l.s4 1966171168
      %v5416 = vunpack.c.0.s8 %v5415
      %v5417 = vlaneseq
      %v5418 = vshrl.u32 %v5417, 7
      %v5419 = vsub.s32 %v5416, %v5418
      %v5420 = vrot.slane %v5412, %v5419
      %v5422 = vunpack.c.l.s4 1966171168
      %v5423 = vunpack.c.0.s8 %v5422
      %v5424 = vlaneseq
      %v5425 = vshrl.u32 %v5424, 7
      %v5426 = vsub.s32 %v5423, %v5425
      %v5427 = vrot.slane %v5413, %v5426
      %v5428 = vcombine.high %v5420, %v5420
      %v5430 = vunpack.c.l.s4 1966171168
      %v5431 = vunpack.c.0.s8 %v5430
      %v5432 = vlaneseq
      %v5433 = vshrl.u32 %v5432, 7
      %v5434 = vsub.s32 %v5431, %v5433
      %v5435 = vrot.slane %v5265, %v5434
      %v5436 = vcombine.high %v5435, %v5435
      %v5438 = vunpack.c.l.s4 1966171168
      %v5439 = vunpack.c.0.s8 %v5438
      %v5440 = vlaneseq
      %v5441 = vshrl.u32 %v5440, 7
      %v5442 = vsub.s32 %v5439, %v5441
      %v5443 = vrot.slane %v5435, %v5442
      %v5445 = vunpack.c.l.s4 1966171168
      %v5446 = vunpack.c.0.s8 %v5445
      %v5447 = vlaneseq
      %v5448 = vshrl.u32 %v5447, 7
      %v5449 = vsub.s32 %v5446, %v5448
      %v5450 = vrot.slane %v5436, %v5449
      %v5451 = vcombine.high %v5443, %v5443
      %v5453 = vunpack.c.l.s4 1966171168
      %v5454 = vunpack.c.0.s8 %v5453
      %v5455 = vlaneseq
      %v5456 = vshrl.u32 %v5455, 7
      %v5457 = vsub.s32 %v5454, %v5456
      %v5458 = vrot.slane %v5266, %v5457
      %v5459 = vcombine.high %v5458, %v5458
      %v5461 = vunpack.c.l.s4 1966171168
      %v5462 = vunpack.c.0.s8 %v5461
      %v5463 = vlaneseq
      %v5464 = vshrl.u32 %v5463, 7
      %v5465 = vsub.s32 %v5462, %v5464
      %v5466 = vrot.slane %v5458, %v5465
      %v5468 = vunpack.c.l.s4 1966171168
      %v5469 = vunpack.c.0.s8 %v5468
      %v5470 = vlaneseq
      %v5471 = vshrl.u32 %v5470, 7
      %v5472 = vsub.s32 %v5469, %v5471
      %v5473 = vrot.slane %v5459, %v5472
      %v5474 = vcombine.high %v5466, %v5466
      %v5476 = vunpack.c.l.s4 1966171168
      %v5477 = vunpack.c.0.s8 %v5476
      %v5478 = vlaneseq
      %v5479 = vshrl.u32 %v5478, 7
      %v5480 = vsub.s32 %v5477, %v5479
      %v5481 = vrot.slane %v5267, %v5480
      %v5482 = vcombine.high %v5481, %v5481
      %v5484 = vunpack.c.l.s4 1966171168
      %v5485 = vunpack.c.0.s8 %v5484
      %v5486 = vlaneseq
      %v5487 = vshrl.u32 %v5486, 7
      %v5488 = vsub.s32 %v5485, %v5487
      %v5489 = vrot.slane %v5481, %v5488
      %v5491 = vunpack.c.l.s4 1966171168
      %v5492 = vunpack.c.0.s8 %v5491
      %v5493 = vlaneseq
      %v5494 = vshrl.u32 %v5493, 7
      %v5495 = vsub.s32 %v5492, %v5494
      %v5496 = vrot.slane %v5482, %v5495
      %v5497 = vcombine.high %v5489, %v5489
      %v5499 = vunpack.c.l.s4 1966171168
      %v5500 = vunpack.c.0.s8 %v5499
      %v5501 = vlaneseq
      %v5502 = vshrl.u32 %v5501, 7
      %v5503 = vsub.s32 %v5500, %v5502
      %v5504 = vrot.slane %v5268, %v5503
      %v5505 = vcombine.high %v5504, %v5504
      %v5507 = vunpack.c.l.s4 1966171168
      %v5508 = vunpack.c.0.s8 %v5507
      %v5509 = vlaneseq
      %v5510 = vshrl.u32 %v5509, 7
      %v5511 = vsub.s32 %v5508, %v5510
      %v5512 = vrot.slane %v5504, %v5511
      %v5514 = vunpack.c.l.s4 1966171168
      %v5515 = vunpack.c.0.s8 %v5514
      %v5516 = vlaneseq
      %v5517 = vshrl.u32 %v5516, 7
      %v5518 = vsub.s32 %v5515, %v5517
      %v5519 = vrot.slane %v5505, %v5518
      %v5520 = vcombine.high %v5512, %v5512
      %v5522 = vunpack.c.l.s4 1966171168
      %v5523 = vunpack.c.0.s8 %v5522
      %v5524 = vlaneseq
      %v5525 = vshrl.u32 %v5524, 7
      %v5526 = vsub.s32 %v5523, %v5525
      %v5527 = vrot.slane %v5269, %v5526
      %v5528 = vcombine.high %v5527, %v5527
      %v5530 = vunpack.c.l.s4 1966171168
      %v5531 = vunpack.c.0.s8 %v5530
      %v5532 = vlaneseq
      %v5533 = vshrl.u32 %v5532, 7
      %v5534 = vsub.s32 %v5531, %v5533
      %v5535 = vrot.slane %v5527, %v5534
      %v5537 = vunpack.c.l.s4 1966171168
      %v5538 = vunpack.c.0.s8 %v5537
      %v5539 = vlaneseq
      %v5540 = vshrl.u32 %v5539, 7
      %v5541 = vsub.s32 %v5538, %v5540
      %v5542 = vrot.slane %v5528, %v5541
      %v5543 = vcombine.high %v5535, %v5535
      %v5545 = vunpack.c.l.s4 1966171168
      %v5546 = vunpack.c.0.s8 %v5545
      %v5547 = vlaneseq
      %v5548 = vshrl.u32 %v5547, 7
      %v5549 = vsub.s32 %v5546, %v5548
      %v5550 = vrot.slane %v5270, %v5549
      %v5551 = vcombine.high %v5550, %v5550
      %v5553 = vunpack.c.l.s4 1966171168
      %v5554 = vunpack.c.0.s8 %v5553
      %v5555 = vlaneseq
      %v5556 = vshrl.u32 %v5555, 7
      %v5557 = vsub.s32 %v5554, %v5556
      %v5558 = vrot.slane %v5550, %v5557
      %v5560 = vunpack.c.l.s4 1966171168
      %v5561 = vunpack.c.0.s8 %v5560
      %v5562 = vlaneseq
      %v5563 = vshrl.u32 %v5562, 7
      %v5564 = vsub.s32 %v5561, %v5563
      %v5565 = vrot.slane %v5551, %v5564
      %v5566 = vcombine.high %v5558, %v5558
      %v5568 = vunpack.c.l.s4 1966171168
      %v5569 = vunpack.c.0.s8 %v5568
      %v5570 = vlaneseq
      %v5571 = vshrl.u32 %v5570, 7
      %v5572 = vsub.s32 %v5569, %v5571
      %v5573 = vrot.slane %v5271, %v5572
      %v5574 = vcombine.high %v5573, %v5573
      %v5576 = vunpack.c.l.s4 1966171168
      %v5577 = vunpack.c.0.s8 %v5576
      %v5578 = vlaneseq
      %v5579 = vshrl.u32 %v5578, 7
      %v5580 = vsub.s32 %v5577, %v5579
      %v5581 = vrot.slane %v5573, %v5580
      %v5583 = vunpack.c.l.s4 1966171168
      %v5584 = vunpack.c.0.s8 %v5583
      %v5585 = vlaneseq
      %v5586 = vshrl.u32 %v5585, 7
      %v5587 = vsub.s32 %v5584, %v5586
      %v5588 = vrot.slane %v5574, %v5587
      %v5589 = vcombine.high %v5581, %v5581
      %v5591 = vunpack.c.l.s4 1966171168
      %v5592 = vunpack.c.0.s8 %v5591
      %v5593 = vlaneseq
      %v5594 = vshrl.u32 %v5593, 7
      %v5595 = vsub.s32 %v5592, %v5594
      %v5596 = vrot.slane %v5272, %v5595
      %v5597 = vcombine.high %v5596, %v5596
      %v5599 = vunpack.c.l.s4 1966171168
      %v5600 = vunpack.c.0.s8 %v5599
      %v5601 = vlaneseq
      %v5602 = vshrl.u32 %v5601, 7
      %v5603 = vsub.s32 %v5600, %v5602
      %v5604 = vrot.slane %v5596, %v5603
      %v5606 = vunpack.c.l.s4 1966171168
      %v5607 = vunpack.c.0.s8 %v5606
      %v5608 = vlaneseq
      %v5609 = vshrl.u32 %v5608, 7
      %v5610 = vsub.s32 %v5607, %v5609
      %v5611 = vrot.slane %v5597, %v5610
      %v5612 = vcombine.high %v5604, %v5604
      %v5614 = vunpack.c.l.s4 1966171168
      %v5615 = vunpack.c.0.s8 %v5614
      %v5616 = vlaneseq
      %v5617 = vshrl.u32 %v5616, 7
      %v5618 = vsub.s32 %v5615, %v5617
      %v5619 = vrot.slane %v5273, %v5618
      %v5620 = vcombine.high %v5619, %v5619
      %v5622 = vunpack.c.l.s4 1966171168
      %v5623 = vunpack.c.0.s8 %v5622
      %v5624 = vlaneseq
      %v5625 = vshrl.u32 %v5624, 7
      %v5626 = vsub.s32 %v5623, %v5625
      %v5627 = vrot.slane %v5619, %v5626
      %v5629 = vunpack.c.l.s4 1966171168
      %v5630 = vunpack.c.0.s8 %v5629
      %v5631 = vlaneseq
      %v5632 = vshrl.u32 %v5631, 7
      %v5633 = vsub.s32 %v5630, %v5632
      %v5634 = vrot.slane %v5620, %v5633
      %v5635 = vcombine.high %v5627, %v5627
      %v5637 = vunpack.c.l.s4 1966171168
      %v5638 = vunpack.c.0.s8 %v5637
      %v5639 = vlaneseq
      %v5640 = vshrl.u32 %v5639, 7
      %v5641 = vsub.s32 %v5638, %v5640
      %v5642 = vrot.slane %v5274, %v5641
      %v5643 = vcombine.high %v5642, %v5642
      %v5645 = vunpack.c.l.s4 1966171168
      %v5646 = vunpack.c.0.s8 %v5645
      %v5647 = vlaneseq
      %v5648 = vshrl.u32 %v5647, 7
      %v5649 = vsub.s32 %v5646, %v5648
      %v5650 = vrot.slane %v5642, %v5649
      %v5652 = vunpack.c.l.s4 1966171168
      %v5653 = vunpack.c.0.s8 %v5652
      %v5654 = vlaneseq
      %v5655 = vshrl.u32 %v5654, 7
      %v5656 = vsub.s32 %v5653, %v5655
      %v5657 = vrot.slane %v5643, %v5656
      %v5658 = vcombine.high %v5650, %v5650
      %v5659 = vunpack.c.l.b16 %v5305
      %v5660 = vunpack.c.l.b16 %v5312
      %v5661 = vunpack.c.l.b16 %v5313
      %v5662 = vunpack.c.l.b16 %v5328
      %v5663 = vunpack.c.l.b16 %v5335
      %v5664 = vunpack.c.l.b16 %v5336
      %v5665 = vunpack.c.l.b16 %v5351
      %v5666 = vunpack.c.l.b16 %v5358
      %v5667 = vunpack.c.l.b16 %v5359
      %v5668 = vunpack.c.l.b16 %v5374
      %v5669 = vunpack.c.l.b16 %v5381
      %v5670 = vunpack.c.l.b16 %v5382
      %v5671 = vunpack.c.l.b16 %v5397
      %v5672 = vunpack.c.l.b16 %v5404
      %v5673 = vunpack.c.l.b16 %v5405
      %v5674 = vunpack.c.l.b16 %v5420
      %v5675 = vunpack.c.l.b16 %v5427
      %v5676 = vunpack.c.l.b16 %v5428
      %v5677 = vunpack.c.l.b16 %v5443
      %v5678 = vunpack.c.l.b16 %v5450
      %v5679 = vunpack.c.l.b16 %v5451
      %v5680 = vunpack.c.l.b16 %v5466
      %v5681 = vunpack.c.l.b16 %v5473
      %v5682 = vunpack.c.l.b16 %v5474
      %v5683 = vunpack.c.l.b16 %v5489
      %v5684 = vunpack.c.l.b16 %v5496
      %v5685 = vunpack.c.l.b16 %v5497
      %v5686 = vunpack.c.l.b16 %v5512
      %v5687 = vunpack.c.l.b16 %v5519
      %v5688 = vunpack.c.l.b16 %v5520
      %v5689 = vunpack.c.l.b16 %v5535
      %v5690 = vunpack.c.l.b16 %v5542
      %v5691 = vunpack.c.l.b16 %v5543
      %v5692 = vunpack.c.l.b16 %v5558
      %v5693 = vunpack.c.l.b16 %v5565
      %v5694 = vunpack.c.l.b16 %v5566
      %v5695 = vunpack.c.l.b16 %v5581
      %v5696 = vunpack.c.l.b16 %v5588
      %v5697 = vunpack.c.l.b16 %v5589
      %v5698 = vunpack.c.l.b16 %v5604
      %v5699 = vunpack.c.l.b16 %v5611
      %v5700 = vunpack.c.l.b16 %v5612
      %v5701 = vunpack.c.l.b16 %v5627
      %v5702 = vunpack.c.l.b16 %v5634
      %v5703 = vunpack.c.l.b16 %v5635
      %v5704 = vunpack.c.l.b16 %v5650
      %v5705 = vunpack.c.l.b16 %v5657
      %v5706 = vunpack.c.l.b16 %v5658
      %v5707 = vrot.slane %v5659, 7
      %v5708 = vrot.slane %v5662, 6
      %v5709 = vsel %vm3649, %v5708, %v5707
      %v5710 = vrot.slane %v5665, 5
      %v5711 = vsel %vm3652, %v5710, %v5709
      %v5712 = vrot.slane %v5668, 4
      %v5713 = vsel %vm3655, %v5712, %v5711
      %v5714 = vrot.slane %v5671, 3
      %v5715 = vsel %vm3658, %v5714, %v5713
      %v5716 = vrot.slane %v5674, 2
      %v5717 = vsel %vm3661, %v5716, %v5715
      %v5718 = vrot.slane %v5677, 1
      %v5719 = vsel %vm3664, %v5718, %v5717
      %v5720 = vrot.slane %v5660, 7
      %v5721 = vrot.slane %v5663, 6
      %v5722 = vsel %vm3649, %v5721, %v5720
      %v5723 = vrot.slane %v5666, 5
      %v5724 = vsel %vm3652, %v5723, %v5722
      %v5725 = vrot.slane %v5669, 4
      %v5726 = vsel %vm3655, %v5725, %v5724
      %v5727 = vrot.slane %v5672, 3
      %v5728 = vsel %vm3658, %v5727, %v5726
      %v5729 = vrot.slane %v5675, 2
      %v5730 = vsel %vm3661, %v5729, %v5728
      %v5731 = vrot.slane %v5678, 1
      %v5732 = vsel %vm3664, %v5731, %v5730
      %v5733 = vrot.slane %v5661, 7
      %v5734 = vrot.slane %v5664, 6
      %v5735 = vsel %vm3649, %v5734, %v5733
      %v5736 = vrot.slane %v5667, 5
      %v5737 = vsel %vm3652, %v5736, %v5735
      %v5738 = vrot.slane %v5670, 4
      %v5739 = vsel %vm3655, %v5738, %v5737
      %v5740 = vrot.slane %v5673, 3
      %v5741 = vsel %vm3658, %v5740, %v5739
      %v5742 = vrot.slane %v5676, 2
      %v5743 = vsel %vm3661, %v5742, %v5741
      %v5744 = vrot.slane %v5679, 1
      %v5745 = vsel %vm3664, %v5744, %v5743
      %v5746 = vrot.slane %v5683, 7
      %v5747 = vrot.slane %v5686, 6
      %v5748 = vsel %vm3649, %v5747, %v5746
      %v5749 = vrot.slane %v5689, 5
      %v5750 = vsel %vm3652, %v5749, %v5748
      %v5751 = vrot.slane %v5692, 4
      %v5752 = vsel %vm3655, %v5751, %v5750
      %v5753 = vrot.slane %v5695, 3
      %v5754 = vsel %vm3658, %v5753, %v5752
      %v5755 = vrot.slane %v5698, 2
      %v5756 = vsel %vm3661, %v5755, %v5754
      %v5757 = vrot.slane %v5701, 1
      %v5758 = vsel %vm3664, %v5757, %v5756
      %v5759 = vrot.slane %v5684, 7
      %v5760 = vrot.slane %v5687, 6
      %v5761 = vsel %vm3649, %v5760, %v5759
      %v5762 = vrot.slane %v5690, 5
      %v5763 = vsel %vm3652, %v5762, %v5761
      %v5764 = vrot.slane %v5693, 4
      %v5765 = vsel %vm3655, %v5764, %v5763
      %v5766 = vrot.slane %v5696, 3
      %v5767 = vsel %vm3658, %v5766, %v5765
      %v5768 = vrot.slane %v5699, 2
      %v5769 = vsel %vm3661, %v5768, %v5767
      %v5770 = vrot.slane %v5702, 1
      %v5771 = vsel %vm3664, %v5770, %v5769
      %v5772 = vrot.slane %v5685, 7
      %v5773 = vrot.slane %v5688, 6
      %v5774 = vsel %vm3649, %v5773, %v5772
      %v5775 = vrot.slane %v5691, 5
      %v5776 = vsel %vm3652, %v5775, %v5774
      %v5777 = vrot.slane %v5694, 4
      %v5778 = vsel %vm3655, %v5777, %v5776
      %v5779 = vrot.slane %v5697, 3
      %v5780 = vsel %vm3658, %v5779, %v5778
      %v5781 = vrot.slane %v5700, 2
      %v5782 = vsel %vm3661, %v5781, %v5780
      %v5783 = vrot.slane %v5703, 1
      %v5784 = vsel %vm3664, %v5783, %v5782
      %v5785 = vpack.c.b16 %v5680, %v5719
      %v5786 = vpack.c.b16 %v5681, %v5732
      %v5787 = vpack.c.b16 %v5682, %v5745
      %v5788 = vpack.c.b16 %v5704, %v5758
      %v5789 = vpack.c.b16 %v5705, %v5771
      %v5790 = vpack.c.b16 %v5706, %v5784
      %s5797 = scalar_lea.vmem [#allocation2], 240
      %v5798 = vld [vmem:[%s5797] sm:$0x1f]
      %v5799 = vsel %vm4016, %v5785, %v5798
      %5800 = vst [vmem:[%s5797] sm:$0x1f] %v5799
      %v5801 = vld [vmem:[%s5797 + $0x8] sm:$0x1f]
      %v5802 = vsel %vm4016, %v5786, %v5801
      %5803 = vst [vmem:[%s5797 + $0x8] sm:$0x1f] %v5802
      %v5804 = vld [vmem:[%s5797 + $0x10] sm:$0x1f]
      %v5805 = vsel %vm4016, %v5787, %v5804
      %5806 = vst [vmem:[%s5797 + $0x10] sm:$0x1f] %v5805
      %v5807 = vld [vmem:[%s5797 + $0x18] sm:$0x1f]
      %v5808 = vsel %vm4016, %v5788, %v5807
      %5809 = vst [vmem:[%s5797 + $0x18] sm:$0x1f] %v5808
      %v5810 = vld [vmem:[%s5797 + $0x20] sm:$0x1f]
      %v5811 = vsel %vm4016, %v5789, %v5810
      %5812 = vst [vmem:[%s5797 + $0x20] sm:$0x1f] %v5811
      %v5813 = vld [vmem:[%s5797 + $0x28] sm:$0x1f]
      %v5814 = vsel %vm4016, %v5790, %v5813
      %5815 = vst [vmem:[%s5797 + $0x28] sm:$0x1f] %v5814
      %v5816 = vld [vmem:[#allocation2] sm:$0xff]
      %v5817 = vld [vmem:[#allocation2 + $0x8] sm:$0xff]
      %v5818 = vld [vmem:[#allocation2 + $0x10] sm:$0xff]
      %v5819 = vld [vmem:[#allocation2 + $0x18] sm:$0xff]
      %v5820 = vld [vmem:[#allocation2 + $0x20] sm:$0xff]
      %v5821 = vld [vmem:[#allocation2 + $0x28] sm:$0xff]
      %v5822 = vld [vmem:[#allocation2 + $0x30] sm:$0xff]
      %v5823 = vld [vmem:[#allocation2 + $0x38] sm:$0xff]
      %v5824 = vld [vmem:[#allocation2 + $0x40] sm:$0xff]
      %v5825 = vld [vmem:[#allocation2 + $0x48] sm:$0xff]
      %v5826 = vld [vmem:[#allocation2 + $0x50] sm:$0xff]
      %v5827 = vld [vmem:[#allocation2 + $0x58] sm:$0xff]
      %v5828 = vld [vmem:[#allocation2 + $0x60] sm:$0xff]
      %v5829 = vld [vmem:[#allocation2 + $0x68] sm:$0xff]
      %v5830 = vld [vmem:[#allocation2 + $0x70] sm:$0xff]
      %v5831 = vld [vmem:[#allocation2 + $0x78] sm:$0xff]
      %v5832 = vld [vmem:[#allocation2 + $0x80] sm:$0xff]
      %v5833 = vld [vmem:[#allocation2 + $0x88] sm:$0xff]
      %v5834 = vld [vmem:[#allocation2 + $0x90] sm:$0xff]
      %v5835 = vld [vmem:[#allocation2 + $0x98] sm:$0xff]
      %v5836 = vld [vmem:[#allocation2 + $0xa0] sm:$0xff]
      %v5837 = vld [vmem:[#allocation2 + $0xa8] sm:$0xff]
      %v5838 = vld [vmem:[#allocation2 + $0xb0] sm:$0xff]
      %v5839 = vld [vmem:[#allocation2 + $0xb8] sm:$0xff]
      %v5840 = vld [vmem:[#allocation2 + $0xc0] sm:$0xff]
      %v5841 = vld [vmem:[#allocation2 + $0xc8] sm:$0xff]
      %v5842 = vld [vmem:[#allocation2 + $0xd0] sm:$0xff]
      %v5843 = vld [vmem:[#allocation2 + $0xd8] sm:$0xff]
      %v5844 = vld [vmem:[#allocation2 + $0xe0] sm:$0xff]
      %v5845 = vld [vmem:[#allocation2 + $0xe8] sm:$0xff]
      %v5846 = vld [vmem:[%s3] sm:$0xff]
      %v5847 = vld [vmem:[%s3 + $0x8] sm:$0xff]
      %v5848 = vld [vmem:[%s3 + $0x10] sm:$0xff]
      %v5849 = vld [vmem:[%s3 + $0x18] sm:$0xff]
      %v5850 = vld [vmem:[%s3 + $0x20] sm:$0xff]
      %v5851 = vld [vmem:[%s3 + $0x28] sm:$0xff]
      %v5852 = vld [vmem:[%s3 + $0x30] sm:$0xff]
      %v5853 = vld [vmem:[%s3 + $0x38] sm:$0xff]
      %v5854 = vld [vmem:[%s3 + $0x40] sm:$0xff]
      %v5855 = vld [vmem:[%s3 + $0x48] sm:$0xff]
      %v5856 = vld [vmem:[%s3 + $0x50] sm:$0xff]
      %v5857 = vld [vmem:[%s3 + $0x58] sm:$0xff]
      %v5858 = vld [vmem:[%s3 + $0x60] sm:$0xff]
      %v5859 = vld [vmem:[%s3 + $0x68] sm:$0xff]
      %v5860 = vld [vmem:[%s3 + $0x70] sm:$0xff]
      %v5861 = vld [vmem:[%s3 + $0x78] sm:$0xff]
      %v5862 = vld [vmem:[%s3 + $0x80] sm:$0xff]
      %v5863 = vld [vmem:[%s3 + $0x88] sm:$0xff]
      %v5864 = vld [vmem:[%s3 + $0x90] sm:$0xff]
      %v5865 = vld [vmem:[%s3 + $0x98] sm:$0xff]
      %v5866 = vld [vmem:[%s3 + $0xa0] sm:$0xff]
      %v5867 = vld [vmem:[%s3 + $0xa8] sm:$0xff]
      %v5868 = vld [vmem:[%s3 + $0xb0] sm:$0xff]
      %v5869 = vld [vmem:[%s3 + $0xb8] sm:$0xff]
      %v5870 = vld [vmem:[%s3 + $0xc0] sm:$0xff]
      %v5871 = vld [vmem:[%s3 + $0xc8] sm:$0xff]
      %v5872 = vld [vmem:[%s3 + $0xd0] sm:$0xff]
      %v5873 = vld [vmem:[%s3 + $0xd8] sm:$0xff]
      %v5874 = vld [vmem:[%s3 + $0xe0] sm:$0xff]
      %v5875 = vld [vmem:[%s3 + $0xe8] sm:$0xff]
      %v5876 = vld [vmem:[%s3 + $0xf0] sm:$0xff]
      %v5877 = vld [vmem:[%s3 + $0xf8] sm:$0xff]
      %v5878 = vld [vmem:[%s3 + $0x100] sm:$0xff]
      %v5879 = vld [vmem:[%s3 + $0x108] sm:$0xff]
      %v5880 = vld [vmem:[%s3 + $0x110] sm:$0xff]
      %v5881 = vld [vmem:[%s3 + $0x118] sm:$0xff]
      %v5882 = vld [vmem:[%s3 + $0x120] sm:$0xff]
      %v5883 = vld [vmem:[%s3 + $0x128] sm:$0xff]
      %v5884 = vld [vmem:[%s3 + $0x130] sm:$0xff]
      %v5885 = vld [vmem:[%s3 + $0x138] sm:$0xff]
      %v5886 = vld [vmem:[%s3 + $0x140] sm:$0xff]
      %v5887 = vld [vmem:[%s3 + $0x148] sm:$0xff]
      %v5888 = vld [vmem:[%s3 + $0x150] sm:$0xff]
      %v5889 = vld [vmem:[%s3 + $0x158] sm:$0xff]
      %v5890 = vld [vmem:[%s3 + $0x160] sm:$0xff]
      %v5891 = vld [vmem:[%s3 + $0x168] sm:$0xff]
      %v5892 = vld [vmem:[%s3 + $0x170] sm:$0xff]
      %v5893 = vld [vmem:[%s3 + $0x178] sm:$0xff]
      %s5894 = scalar_lea.vmem [#allocation2], 24
      %v5895 = vld [vmem:[%s5894] sm:$0xff]
      %v5896 = vld [vmem:[%s5894 + $0x8] sm:$0xff]
      %v5897 = vld [vmem:[%s5894 + $0x10] sm:$0xff]
      %v5898 = vld [vmem:[%s5894 + $0x18] sm:$0xff]
      %v5899 = vld [vmem:[%s5894 + $0x20] sm:$0xff]
      %v5900 = vld [vmem:[%s5894 + $0x28] sm:$0xff]
      %v5901 = vld [vmem:[%s5894 + $0x30] sm:$0xff]
      %v5902 = vld [vmem:[%s5894 + $0x38] sm:$0xff]
      %v5903 = vld [vmem:[%s5894 + $0x40] sm:$0xff]
      %v5904 = vld [vmem:[%s5894 + $0x48] sm:$0xff]
      %v5905 = vld [vmem:[%s5894 + $0x50] sm:$0xff]
      %v5906 = vld [vmem:[%s5894 + $0x58] sm:$0xff]
      %v5907 = vld [vmem:[%s5894 + $0x60] sm:$0xff]
      %v5908 = vld [vmem:[%s5894 + $0x68] sm:$0xff]
      %v5909 = vld [vmem:[%s5894 + $0x70] sm:$0xff]
      %v5910 = vld [vmem:[%s5894 + $0x78] sm:$0xff]
      %v5911 = vld [vmem:[%s5894 + $0x80] sm:$0xff]
      %v5912 = vld [vmem:[%s5894 + $0x88] sm:$0xff]
      %v5913 = vld [vmem:[%s5894 + $0x90] sm:$0xff]
      %v5914 = vld [vmem:[%s5894 + $0x98] sm:$0xff]
      %v5915 = vld [vmem:[%s5894 + $0xa0] sm:$0xff]
      %v5916 = vld [vmem:[%s5894 + $0xa8] sm:$0xff]
      %v5917 = vld [vmem:[%s5894 + $0xb0] sm:$0xff]
      %v5918 = vld [vmem:[%s5894 + $0xb8] sm:$0xff]
      %v5919 = vld [vmem:[%s5894 + $0xc0] sm:$0xff]
      %v5920 = vld [vmem:[%s5894 + $0xc8] sm:$0xff]
      %v5921 = vld [vmem:[%s5894 + $0xd0] sm:$0xff]
      %v5922 = vld [vmem:[%s5894 + $0xd8] sm:$0xff]
      %v5923 = vld [vmem:[%s5894 + $0xe0] sm:$0xff]
      %v5924 = vld [vmem:[%s5894 + $0xe8] sm:$0xff]
      %s5925 = scalar_lea.vmem %s3, 384
      %v5926 = vld [vmem:[%s5925] sm:$0xff]
      %v5927 = vld [vmem:[%s5925 + $0x8] sm:$0xff]
      %v5928 = vld [vmem:[%s5925 + $0x10] sm:$0xff]
      %v5929 = vld [vmem:[%s5925 + $0x18] sm:$0xff]
      %v5930 = vld [vmem:[%s5925 + $0x20] sm:$0xff]
      %v5931 = vld [vmem:[%s5925 + $0x28] sm:$0xff]
      %v5932 = vld [vmem:[%s5925 + $0x30] sm:$0xff]
      %v5933 = vld [vmem:[%s5925 + $0x38] sm:$0xff]
      %v5934 = vld [vmem:[%s5925 + $0x40] sm:$0xff]
      %v5935 = vld [vmem:[%s5925 + $0x48] sm:$0xff]
      %v5936 = vld [vmem:[%s5925 + $0x50] sm:$0xff]
      %v5937 = vld [vmem:[%s5925 + $0x58] sm:$0xff]
      %v5938 = vld [vmem:[%s5925 + $0x60] sm:$0xff]
      %v5939 = vld [vmem:[%s5925 + $0x68] sm:$0xff]
      %v5940 = vld [vmem:[%s5925 + $0x70] sm:$0xff]
      %v5941 = vld [vmem:[%s5925 + $0x78] sm:$0xff]
      %v5942 = vld [vmem:[%s5925 + $0x80] sm:$0xff]
      %v5943 = vld [vmem:[%s5925 + $0x88] sm:$0xff]
      %v5944 = vld [vmem:[%s5925 + $0x90] sm:$0xff]
      %v5945 = vld [vmem:[%s5925 + $0x98] sm:$0xff]
      %v5946 = vld [vmem:[%s5925 + $0xa0] sm:$0xff]
      %v5947 = vld [vmem:[%s5925 + $0xa8] sm:$0xff]
      %v5948 = vld [vmem:[%s5925 + $0xb0] sm:$0xff]
      %v5949 = vld [vmem:[%s5925 + $0xb8] sm:$0xff]
      %v5950 = vld [vmem:[%s5925 + $0xc0] sm:$0xff]
      %v5951 = vld [vmem:[%s5925 + $0xc8] sm:$0xff]
      %v5952 = vld [vmem:[%s5925 + $0xd0] sm:$0xff]
      %v5953 = vld [vmem:[%s5925 + $0xd8] sm:$0xff]
      %v5954 = vld [vmem:[%s5925 + $0xe0] sm:$0xff]
      %v5955 = vld [vmem:[%s5925 + $0xe8] sm:$0xff]
      %v5956 = vld [vmem:[%s5925 + $0xf0] sm:$0xff]
      %v5957 = vld [vmem:[%s5925 + $0xf8] sm:$0xff]
      %v5958 = vld [vmem:[%s5925 + $0x100] sm:$0xff]
      %v5959 = vld [vmem:[%s5925 + $0x108] sm:$0xff]
      %v5960 = vld [vmem:[%s5925 + $0x110] sm:$0xff]
      %v5961 = vld [vmem:[%s5925 + $0x118] sm:$0xff]
      %v5962 = vld [vmem:[%s5925 + $0x120] sm:$0xff]
      %v5963 = vld [vmem:[%s5925 + $0x128] sm:$0xff]
      %v5964 = vld [vmem:[%s5925 + $0x130] sm:$0xff]
      %v5965 = vld [vmem:[%s5925 + $0x138] sm:$0xff]
      %v5966 = vld [vmem:[%s5925 + $0x140] sm:$0xff]
      %v5967 = vld [vmem:[%s5925 + $0x148] sm:$0xff]
      %v5968 = vld [vmem:[%s5925 + $0x150] sm:$0xff]
      %v5969 = vld [vmem:[%s5925 + $0x158] sm:$0xff]
      %v5970 = vld [vmem:[%s5925 + $0x160] sm:$0xff]
      %v5971 = vld [vmem:[%s5925 + $0x168] sm:$0xff]
      %v5972 = vld [vmem:[%s5925 + $0x170] sm:$0xff]
      %v5973 = vld [vmem:[%s5925 + $0x178] sm:$0xff]
      %v6022 = vunpack.c.l.b16 %v5926
      %v6023 = vunpack.c.h.b16 %v5926
      %v6024 = vunpack.c.l.b16 %v5927
      %v6025 = vunpack.c.h.b16 %v5927
      %v6026 = vunpack.c.l.b16 %v5928
      %v6027 = vunpack.c.h.b16 %v5928
      %v6028 = vunpack.c.l.b16 %v5929
      %v6029 = vunpack.c.h.b16 %v5929
      %v6030 = vunpack.c.l.b16 %v5930
      %v6031 = vunpack.c.h.b16 %v5930
      %v6032 = vunpack.c.l.b16 %v5931
      %v6033 = vunpack.c.h.b16 %v5931
      %v6034 = vunpack.c.l.b16 %v5932
      %v6035 = vunpack.c.h.b16 %v5932
      %v6036 = vunpack.c.l.b16 %v5933
      %v6037 = vunpack.c.h.b16 %v5933
      %v6038 = vunpack.c.l.b16 %v5934
      %v6039 = vunpack.c.h.b16 %v5934
      %v6040 = vunpack.c.l.b16 %v5935
      %v6041 = vunpack.c.h.b16 %v5935
      %v6042 = vunpack.c.l.b16 %v5936
      %v6043 = vunpack.c.h.b16 %v5936
      %v6044 = vunpack.c.l.b16 %v5937
      %v6045 = vunpack.c.h.b16 %v5937
      %v6046 = vunpack.c.l.b16 %v5938
      %v6047 = vunpack.c.h.b16 %v5938
      %v6048 = vunpack.c.l.b16 %v5939
      %v6049 = vunpack.c.h.b16 %v5939
      %v6050 = vunpack.c.l.b16 %v5940
      %v6051 = vunpack.c.h.b16 %v5940
      %v6052 = vunpack.c.l.b16 %v5941
      %v6053 = vunpack.c.h.b16 %v5941
      %v6054 = vunpack.c.l.b16 %v5942
      %v6055 = vunpack.c.h.b16 %v5942
      %v6056 = vunpack.c.l.b16 %v5943
      %v6057 = vunpack.c.h.b16 %v5943
      %v6058 = vunpack.c.l.b16 %v5944
      %v6059 = vunpack.c.h.b16 %v5944
      %v6060 = vunpack.c.l.b16 %v5945
      %v6061 = vunpack.c.h.b16 %v5945
      %v6062 = vunpack.c.l.b16 %v5946
      %v6063 = vunpack.c.h.b16 %v5946
      %v6064 = vunpack.c.l.b16 %v5947
      %v6065 = vunpack.c.h.b16 %v5947
      %v6066 = vunpack.c.l.b16 %v5948
      %v6067 = vunpack.c.h.b16 %v5948
      %v6068 = vunpack.c.l.b16 %v5949
      %v6069 = vunpack.c.h.b16 %v5949
      %v6070 = vunpack.c.l.b16 %v5950
      %v6071 = vunpack.c.h.b16 %v5950
      %v6072 = vunpack.c.l.b16 %v5951
      %v6073 = vunpack.c.h.b16 %v5951
      %v6074 = vunpack.c.l.b16 %v5952
      %v6075 = vunpack.c.h.b16 %v5952
      %v6076 = vunpack.c.l.b16 %v5953
      %v6077 = vunpack.c.h.b16 %v5953
      %v6078 = vunpack.c.l.b16 %v5954
      %v6079 = vunpack.c.h.b16 %v5954
      %v6080 = vunpack.c.l.b16 %v5955
      %v6081 = vunpack.c.h.b16 %v5955
      %v6082 = vunpack.c.l.b16 %v5956
      %v6083 = vunpack.c.h.b16 %v5956
      %v6084 = vunpack.c.l.b16 %v5957
      %v6085 = vunpack.c.h.b16 %v5957
      %v6086 = vunpack.c.l.b16 %v5958
      %v6087 = vunpack.c.h.b16 %v5958
      %v6088 = vunpack.c.l.b16 %v5959
      %v6089 = vunpack.c.h.b16 %v5959
      %v6090 = vunpack.c.l.b16 %v5960
      %v6091 = vunpack.c.h.b16 %v5960
      %v6092 = vunpack.c.l.b16 %v5961
      %v6093 = vunpack.c.h.b16 %v5961
      %v6094 = vunpack.c.l.b16 %v5962
      %v6095 = vunpack.c.h.b16 %v5962
      %v6096 = vunpack.c.l.b16 %v5963
      %v6097 = vunpack.c.h.b16 %v5963
      %v6098 = vunpack.c.l.b16 %v5964
      %v6099 = vunpack.c.h.b16 %v5964
      %v6100 = vunpack.c.l.b16 %v5965
      %v6101 = vunpack.c.h.b16 %v5965
      %v6102 = vunpack.c.l.b16 %v5966
      %v6103 = vunpack.c.h.b16 %v5966
      %v6104 = vunpack.c.l.b16 %v5967
      %v6105 = vunpack.c.h.b16 %v5967
      %v6106 = vunpack.c.l.b16 %v5968
      %v6107 = vunpack.c.h.b16 %v5968
      %v6108 = vunpack.c.l.b16 %v5969
      %v6109 = vunpack.c.h.b16 %v5969
      %v6110 = vunpack.c.l.b16 %v5970
      %v6111 = vunpack.c.h.b16 %v5970
      %v6112 = vunpack.c.l.b16 %v5971
      %v6113 = vunpack.c.h.b16 %v5971
      %v6114 = vunpack.c.l.b16 %v5972
      %v6115 = vunpack.c.h.b16 %v5972
      %v6116 = vunpack.c.l.b16 %v5973
      %v6117 = vunpack.c.h.b16 %v5973
      %v6118 = vpack.c.b16 %v6024, %v6022
      %v6119 = vpack.c.b16 %v6025, %v6023
      %v6120 = vpack.c.b16 %v6028, %v6026
      %v6121 = vpack.c.b16 %v6029, %v6027
      %v6122 = vpack.c.b16 %v6032, %v6030
      %v6123 = vpack.c.b16 %v6033, %v6031
      %v6124 = vpack.c.b16 %v6036, %v6034
      %v6125 = vpack.c.b16 %v6037, %v6035
      %v6126 = vpack.c.b16 %v6040, %v6038
      %v6127 = vpack.c.b16 %v6041, %v6039
      %v6128 = vpack.c.b16 %v6044, %v6042
      %v6129 = vpack.c.b16 %v6045, %v6043
      %v6130 = vpack.c.b16 %v6048, %v6046
      %v6131 = vpack.c.b16 %v6049, %v6047
      %v6132 = vpack.c.b16 %v6052, %v6050
      %v6133 = vpack.c.b16 %v6053, %v6051
      %v6134 = vpack.c.b16 %v6056, %v6054
      %v6135 = vpack.c.b16 %v6057, %v6055
      %v6136 = vpack.c.b16 %v6060, %v6058
      %v6137 = vpack.c.b16 %v6061, %v6059
      %v6138 = vpack.c.b16 %v6064, %v6062
      %v6139 = vpack.c.b16 %v6065, %v6063
      %v6140 = vpack.c.b16 %v6068, %v6066
      %v6141 = vpack.c.b16 %v6069, %v6067
      %v6142 = vpack.c.b16 %v6072, %v6070
      %v6143 = vpack.c.b16 %v6073, %v6071
      %v6144 = vpack.c.b16 %v6076, %v6074
      %v6145 = vpack.c.b16 %v6077, %v6075
      %v6146 = vpack.c.b16 %v6080, %v6078
      %v6147 = vpack.c.b16 %v6081, %v6079
      %v6148 = vpack.c.b16 %v6084, %v6082
      %v6149 = vpack.c.b16 %v6085, %v6083
      %v6150 = vpack.c.b16 %v6088, %v6086
      %v6151 = vpack.c.b16 %v6089, %v6087
      %v6152 = vpack.c.b16 %v6092, %v6090
      %v6153 = vpack.c.b16 %v6093, %v6091
      %v6154 = vpack.c.b16 %v6096, %v6094
      %v6155 = vpack.c.b16 %v6097, %v6095
      %v6156 = vpack.c.b16 %v6100, %v6098
      %v6157 = vpack.c.b16 %v6101, %v6099
      %v6158 = vpack.c.b16 %v6104, %v6102
      %v6159 = vpack.c.b16 %v6105, %v6103
      %v6160 = vpack.c.b16 %v6108, %v6106
      %v6161 = vpack.c.b16 %v6109, %v6107
      %v6162 = vpack.c.b16 %v6112, %v6110
      %v6163 = vpack.c.b16 %v6113, %v6111
      %v6164 = vpack.c.b16 %v6116, %v6114
      %v6165 = vpack.c.b16 %v6117, %v6115
      %6214 = vmatprep.subr.bf16.mxu0 %v6119
      %6215 = vmatpush1.bf16.msra.mxu0 %v6118
      %6216 = vmatprep.subr.bf16.mxu0 %v6121
      %6217 = vmatpush1.bf16.msra.mxu0 %v6120
      %6218 = vmatprep.subr.bf16.mxu0 %v6123
      %6219 = vmatpush1.bf16.msra.mxu0 %v6122
      %6220 = vmatprep.subr.bf16.mxu0 %v6125
      %6221 = vmatpush1.bf16.msra.mxu0 %v6124
      %6222 = vmatprep.subr.bf16.mxu0 %v6127
      %6223 = vmatpush1.bf16.msra.mxu0 %v6126
      %6224 = vmatprep.subr.bf16.mxu0 %v6129
      %6225 = vmatpush1.bf16.msra.mxu0 %v6128
      %6226 = vmatprep.subr.bf16.mxu0 %v6131
      %6227 = vmatpush1.bf16.msra.mxu0 %v6130
      %6228 = vmatprep.subr.bf16.mxu0 %v6133
      %6229 = vmatpush1.bf16.msra.mxu0 %v6132
      %6230 = vmatprep.subr.bf16.mxu0 %v6135
      %6231 = vmatpush1.bf16.msra.mxu0 %v6134
      %6232 = vmatprep.subr.bf16.mxu0 %v6137
      %6233 = vmatpush1.bf16.msra.mxu0 %v6136
      %6234 = vmatprep.subr.bf16.mxu0 %v6139
      %6235 = vmatpush1.bf16.msra.mxu0 %v6138
      %6236 = vmatprep.subr.bf16.mxu0 %v6141
      %6237 = vmatpush1.bf16.msra.mxu0 %v6140
      %6238 = vmatprep.subr.bf16.mxu0 %v6143
      %6239 = vmatpush1.bf16.msra.mxu0 %v6142
      %6240 = vmatprep.subr.bf16.mxu0 %v6145
      %6241 = vmatpush1.bf16.msra.mxu0 %v6144
      %6242 = vmatprep.subr.bf16.mxu0 %v6147
      %6243 = vmatpush1.bf16.msra.mxu0 %v6146
      %6244 = vmatprep.subr.bf16.mxu0 %v6149
      %6245 = vmatpush1.bf16.msra.mxu0 %v6148
      %6246 = vmatprep.mubr.bf16.mxu0 %v5896
      %6247 = vmatmul.mubr.bf16.gmra.mrb[0].mxu0 %v5895
      %v6248 = vpop.f32.mrb[0].mxu0
      %v6249 = vadd.f32 0.0, %v6248
      %v6250 = vpop.f32.mrb[0].mxu0
      %v6251 = vadd.f32 0.0, %v6250
      %v6252 = vpop.f32.mrb[0].mxu0
      %v6253 = vadd.f32 0.0, %v6252
      %v6254 = vpop.f32.mrb[0].mxu0
      %v6255 = vadd.f32 0.0, %v6254
      %6256 = vmatprep.mubr.bf16.mxu0 %v5899
      %6257 = vmatmul.mubr.bf16.gmra.mrb[0].mxu0 %v5898
      %v6258 = vpop.f32.mrb[0].mxu0
      %v6259 = vadd.f32 0.0, %v6258
      %v6260 = vpop.f32.mrb[0].mxu0
      %v6261 = vadd.f32 0.0, %v6260
      %v6262 = vpop.f32.mrb[0].mxu0
      %v6263 = vadd.f32 0.0, %v6262
      %v6264 = vpop.f32.mrb[0].mxu0
      %v6265 = vadd.f32 0.0, %v6264
      %6266 = vmatprep.mubr.bf16.mxu0 %v5902
      %6267 = vmatmul.mubr.bf16.gmra.mrb[0].mxu0 %v5901
      %v6268 = vpop.f32.mrb[0].mxu0
      %v6269 = vadd.f32 0.0, %v6268
      %v6270 = vpop.f32.mrb[0].mxu0
      %v6271 = vadd.f32 0.0, %v6270
      %v6272 = vpop.f32.mrb[0].mxu0
      %v6273 = vadd.f32 0.0, %v6272
      %v6274 = vpop.f32.mrb[0].mxu0
      %v6275 = vadd.f32 0.0, %v6274
      %6276 = vmatprep.mubr.bf16.mxu0 %v5905
      %6277 = vmatmul.mubr.bf16.gmra.mrb[0].mxu0 %v5904
      %v6278 = vpop.f32.mrb[0].mxu0
      %v6279 = vadd.f32 0.0, %v6278
      %v6280 = vpop.f32.mrb[0].mxu0
      %v6281 = vadd.f32 0.0, %v6280
      %v6282 = vpop.f32.mrb[0].mxu0
      %v6283 = vadd.f32 0.0, %v6282
      %v6284 = vpop.f32.mrb[0].mxu0
      %v6285 = vadd.f32 0.0, %v6284
      %6286 = vmatprep.mubr.bf16.mxu0 %v5908
      %6287 = vmatmul.mubr.bf16.gmra.mrb[0].mxu0 %v5907
      %v6288 = vpop.f32.mrb[0].mxu0
      %v6289 = vadd.f32 0.0, %v6288
      %v6290 = vpop.f32.mrb[0].mxu0
      %v6291 = vadd.f32 0.0, %v6290
      %v6292 = vpop.f32.mrb[0].mxu0
      %v6293 = vadd.f32 0.0, %v6292
      %v6294 = vpop.f32.mrb[0].mxu0
      %v6295 = vadd.f32 0.0, %v6294
      %6296 = vmatprep.mubr.bf16.mxu0 %v5911
      %6297 = vmatmul.mubr.bf16.gmra.mrb[0].mxu0 %v5910
      %v6298 = vpop.f32.mrb[0].mxu0
      %v6299 = vadd.f32 0.0, %v6298
      %v6300 = vpop.f32.mrb[0].mxu0
      %v6301 = vadd.f32 0.0, %v6300
      %v6302 = vpop.f32.mrb[0].mxu0
      %v6303 = vadd.f32 0.0, %v6302
      %v6304 = vpop.f32.mrb[0].mxu0
      %v6305 = vadd.f32 0.0, %v6304
      %6306 = vmatprep.mubr.bf16.mxu0 %v5914
      %6307 = vmatmul.mubr.bf16.gmra.mrb[0].mxu0 %v5913
      %v6308 = vpop.f32.mrb[0].mxu0
      %v6309 = vadd.f32 0.0, %v6308
      %v6310 = vpop.f32.mrb[0].mxu0
      %v6311 = vadd.f32 0.0, %v6310
      %v6312 = vpop.f32.mrb[0].mxu0
      %v6313 = vadd.f32 0.0, %v6312
      %v6314 = vpop.f32.mrb[0].mxu0
      %v6315 = vadd.f32 0.0, %v6314
      %6316 = vmatprep.mubr.bf16.mxu0 %v5917
      %6317 = vmatmul.mubr.bf16.gmra.mrb[0].mxu0 %v5916
      %v6318 = vpop.f32.mrb[0].mxu0
      %v6319 = vadd.f32 0.0, %v6318
      %v6320 = vpop.f32.mrb[0].mxu0
      %v6321 = vadd.f32 0.0, %v6320
      %v6322 = vpop.f32.mrb[0].mxu0
      %v6323 = vadd.f32 0.0, %v6322
      %v6324 = vpop.f32.mrb[0].mxu0
      %v6325 = vadd.f32 0.0, %v6324
      %6326 = vmatprep.mubr.bf16.mxu0 %v5920
      %6327 = vmatmul.mubr.bf16.gmra.mrb[0].mxu0 %v5919
      %v6328 = vpop.f32.mrb[0].mxu0
      %v6329 = vadd.f32 0.0, %v6328
      %v6330 = vpop.f32.mrb[0].mxu0
      %v6331 = vadd.f32 0.0, %v6330
      %v6332 = vpop.f32.mrb[0].mxu0
      %v6333 = vadd.f32 0.0, %v6332
      %v6334 = vpop.f32.mrb[0].mxu0
      %v6335 = vadd.f32 0.0, %v6334
      %6336 = vmatprep.mubr.bf16.mxu0 %v5923
      %6337 = vmatmul.mubr.bf16.gmra.mrb[0].mxu0 %v5922
      %v6338 = vpop.f32.mrb[0].mxu0
      %v6339 = vadd.f32 0.0, %v6338
      %v6340 = vpop.f32.mrb[0].mxu0
      %v6341 = vadd.f32 0.0, %v6340
      %v6342 = vpop.f32.mrb[0].mxu0
      %v6343 = vadd.f32 0.0, %v6342
      %v6344 = vpop.f32.mrb[0].mxu0
      %v6345 = vadd.f32 0.0, %v6344
      %6346 = vdwg.mxu0
      %6347 = vmatprep.subr.bf16.mxu0 %v6151
      %6348 = vmatpush1.bf16.msra.mxu0 %v6150
      %6349 = vmatprep.subr.bf16.mxu0 %v6153
      %6350 = vmatpush1.bf16.msra.mxu0 %v6152
      %6351 = vmatprep.subr.bf16.mxu0 %v6155
      %6352 = vmatpush1.bf16.msra.mxu0 %v6154
      %6353 = vmatprep.subr.bf16.mxu0 %v6157
      %6354 = vmatpush1.bf16.msra.mxu0 %v6156
      %6355 = vmatprep.subr.bf16.mxu0 %v6159
      %6356 = vmatpush1.bf16.msra.mxu0 %v6158
      %6357 = vmatprep.subr.bf16.mxu0 %v6161
      %6358 = vmatpush1.bf16.msra.mxu0 %v6160
      %6359 = vmatprep.subr.bf16.mxu0 %v6163
      %6360 = vmatpush1.bf16.msra.mxu0 %v6162
      %6361 = vmatprep.subr.bf16.mxu0 %v6165
      %6362 = vmatpush1.bf16.msra.mxu0 %v6164
      %6363 = vmatprep.subr.bf16.mxu0 0
      %6364 = vmatpush1.bf16.msra.mxu0 0
      %6365 = vmatprep.subr.bf16.mxu0 0
      %6366 = vmatpush1.bf16.msra.mxu0 0
      %6367 = vmatprep.subr.bf16.mxu0 0
      %6368 = vmatpush1.bf16.msra.mxu0 0
      %6369 = vmatprep.subr.bf16.mxu0 0
      %6370 = vmatpush1.bf16.msra.mxu0 0
      %6371 = vmatprep.subr.bf16.mxu0 0
      %6372 = vmatpush1.bf16.msra.mxu0 0
      %6373 = vmatprep.subr.bf16.mxu0 0
      %6374 = vmatpush1.bf16.msra.mxu0 0
      %6375 = vmatprep.subr.bf16.mxu0 0
      %6376 = vmatpush1.bf16.msra.mxu0 0
      %6377 = vmatprep.subr.bf16.mxu0 0
      %6378 = vmatpush1.bf16.msra.mxu0 0
      %6379 = vmatprep.mubr.bf16.mxu0 0
      %6380 = vmatmul.mubr.bf16.gmra.mrb[0].mxu0 %v5897
      %v6381 = vpop.f32.mrb[0].mxu0
      %v6382 = vadd.f32 %v6249, %v6381
      %v6383 = vpop.f32.mrb[0].mxu0
      %v6384 = vadd.f32 %v6251, %v6383
      %v6385 = vpop.f32.mrb[0].mxu0
      %v6386 = vadd.f32 %v6253, %v6385
      %v6387 = vpop.f32.mrb[0].mxu0
      %v6388 = vadd.f32 %v6255, %v6387
      %6389 = vmatprep.mubr.bf16.mxu0 0
      %6390 = vmatmul.mubr.bf16.gmra.mrb[0].mxu0 %v5900
      %v6391 = vpop.f32.mrb[0].mxu0
      %v6392 = vadd.f32 %v6259, %v6391
      %v6393 = vpop.f32.mrb[0].mxu0
      %v6394 = vadd.f32 %v6261, %v6393
      %v6395 = vpop.f32.mrb[0].mxu0
      %v6396 = vadd.f32 %v6263, %v6395
      %v6397 = vpop.f32.mrb[0].mxu0
      %v6398 = vadd.f32 %v6265, %v6397
      %6399 = vmatprep.mubr.bf16.mxu0 0
      %6400 = vmatmul.mubr.bf16.gmra.mrb[0].mxu0 %v5903
      %v6401 = vpop.f32.mrb[0].mxu0
      %v6402 = vadd.f32 %v6269, %v6401
      %v6403 = vpop.f32.mrb[0].mxu0
      %v6404 = vadd.f32 %v6271, %v6403
      %v6405 = vpop.f32.mrb[0].mxu0
      %v6406 = vadd.f32 %v6273, %v6405
      %v6407 = vpop.f32.mrb[0].mxu0
      %v6408 = vadd.f32 %v6275, %v6407
      %6409 = vmatprep.mubr.bf16.mxu0 0
      %6410 = vmatmul.mubr.bf16.gmra.mrb[0].mxu0 %v5906
      %v6411 = vpop.f32.mrb[0].mxu0
      %v6412 = vadd.f32 %v6279, %v6411
      %v6413 = vpop.f32.mrb[0].mxu0
      %v6414 = vadd.f32 %v6281, %v6413
      %v6415 = vpop.f32.mrb[0].mxu0
      %v6416 = vadd.f32 %v6283, %v6415
      %v6417 = vpop.f32.mrb[0].mxu0
      %v6418 = vadd.f32 %v6285, %v6417
      %6419 = vmatprep.mubr.bf16.mxu0 0
      %6420 = vmatmul.mubr.bf16.gmra.mrb[0].mxu0 %v5909
      %v6421 = vpop.f32.mrb[0].mxu0
      %v6422 = vadd.f32 %v6289, %v6421
      %v6423 = vpop.f32.mrb[0].mxu0
      %v6424 = vadd.f32 %v6291, %v6423
      %v6425 = vpop.f32.mrb[0].mxu0
      %v6426 = vadd.f32 %v6293, %v6425
      %v6427 = vpop.f32.mrb[0].mxu0
      %v6428 = vadd.f32 %v6295, %v6427
      %6429 = vmatprep.mubr.bf16.mxu0 0
      %6430 = vmatmul.mubr.bf16.gmra.mrb[0].mxu0 %v5912
      %v6431 = vpop.f32.mrb[0].mxu0
      %v6432 = vadd.f32 %v6299, %v6431
      %v6433 = vpop.f32.mrb[0].mxu0
      %v6434 = vadd.f32 %v6301, %v6433
      %v6435 = vpop.f32.mrb[0].mxu0
      %v6436 = vadd.f32 %v6303, %v6435
      %v6437 = vpop.f32.mrb[0].mxu0
      %v6438 = vadd.f32 %v6305, %v6437
      %6439 = vmatprep.mubr.bf16.mxu0 0
      %6440 = vmatmul.mubr.bf16.gmra.mrb[0].mxu0 %v5915
      %v6441 = vpop.f32.mrb[0].mxu0
      %v6442 = vadd.f32 %v6309, %v6441
      %v6443 = vpop.f32.mrb[0].mxu0
      %v6444 = vadd.f32 %v6311, %v6443
      %v6445 = vpop.f32.mrb[0].mxu0
      %v6446 = vadd.f32 %v6313, %v6445
      %v6447 = vpop.f32.mrb[0].mxu0
      %v6448 = vadd.f32 %v6315, %v6447
      %6449 = vmatprep.mubr.bf16.mxu0 0
      %6450 = vmatmul.mubr.bf16.gmra.mrb[0].mxu0 %v5918
      %v6451 = vpop.f32.mrb[0].mxu0
      %v6452 = vadd.f32 %v6319, %v6451
      %v6453 = vpop.f32.mrb[0].mxu0
      %v6454 = vadd.f32 %v6321, %v6453
      %v6455 = vpop.f32.mrb[0].mxu0
      %v6456 = vadd.f32 %v6323, %v6455
      %v6457 = vpop.f32.mrb[0].mxu0
      %v6458 = vadd.f32 %v6325, %v6457
      %6459 = vmatprep.mubr.bf16.mxu0 0
      %6460 = vmatmul.mubr.bf16.gmra.mrb[0].mxu0 %v5921
      %v6461 = vpop.f32.mrb[0].mxu0
      %v6462 = vadd.f32 %v6329, %v6461
      %v6463 = vpop.f32.mrb[0].mxu0
      %v6464 = vadd.f32 %v6331, %v6463
      %v6465 = vpop.f32.mrb[0].mxu0
      %v6466 = vadd.f32 %v6333, %v6465
      %v6467 = vpop.f32.mrb[0].mxu0
      %v6468 = vadd.f32 %v6335, %v6467
      %6469 = vmatprep.mubr.bf16.mxu0 0
      %6470 = vmatmul.mubr.bf16.gmra.mrb[0].mxu0 %v5924
      %v6471 = vpop.f32.mrb[0].mxu0
      %v6472 = vadd.f32 %v6339, %v6471
      %v6473 = vpop.f32.mrb[0].mxu0
      %v6474 = vadd.f32 %v6341, %v6473
      %v6475 = vpop.f32.mrb[0].mxu0
      %v6476 = vadd.f32 %v6343, %v6475
      %v6477 = vpop.f32.mrb[0].mxu0
      %v6478 = vadd.f32 %v6345, %v6477
      %6479 = vdwg.mxu0
      %v6528 = vunpack.c.l.b16 %v5846
      %v6529 = vunpack.c.h.b16 %v5846
      %v6530 = vunpack.c.l.b16 %v5847
      %v6531 = vunpack.c.h.b16 %v5847
      %v6532 = vunpack.c.l.b16 %v5848
      %v6533 = vunpack.c.h.b16 %v5848
      %v6534 = vunpack.c.l.b16 %v5849
      %v6535 = vunpack.c.h.b16 %v5849
      %v6536 = vunpack.c.l.b16 %v5850
      %v6537 = vunpack.c.h.b16 %v5850
      %v6538 = vunpack.c.l.b16 %v5851
      %v6539 = vunpack.c.h.b16 %v5851
      %v6540 = vunpack.c.l.b16 %v5852
      %v6541 = vunpack.c.h.b16 %v5852
      %v6542 = vunpack.c.l.b16 %v5853
      %v6543 = vunpack.c.h.b16 %v5853
      %v6544 = vunpack.c.l.b16 %v5854
      %v6545 = vunpack.c.h.b16 %v5854
      %v6546 = vunpack.c.l.b16 %v5855
      %v6547 = vunpack.c.h.b16 %v5855
      %v6548 = vunpack.c.l.b16 %v5856
      %v6549 = vunpack.c.h.b16 %v5856
      %v6550 = vunpack.c.l.b16 %v5857
      %v6551 = vunpack.c.h.b16 %v5857
      %v6552 = vunpack.c.l.b16 %v5858
      %v6553 = vunpack.c.h.b16 %v5858
      %v6554 = vunpack.c.l.b16 %v5859
      %v6555 = vunpack.c.h.b16 %v5859
      %v6556 = vunpack.c.l.b16 %v5860
      %v6557 = vunpack.c.h.b16 %v5860
      %v6558 = vunpack.c.l.b16 %v5861
      %v6559 = vunpack.c.h.b16 %v5861
      %v6560 = vunpack.c.l.b16 %v5862
      %v6561 = vunpack.c.h.b16 %v5862
      %v6562 = vunpack.c.l.b16 %v5863
      %v6563 = vunpack.c.h.b16 %v5863
      %v6564 = vunpack.c.l.b16 %v5864
      %v6565 = vunpack.c.h.b16 %v5864
      %v6566 = vunpack.c.l.b16 %v5865
      %v6567 = vunpack.c.h.b16 %v5865
      %v6568 = vunpack.c.l.b16 %v5866
      %v6569 = vunpack.c.h.b16 %v5866
      %v6570 = vunpack.c.l.b16 %v5867
      %v6571 = vunpack.c.h.b16 %v5867
      %v6572 = vunpack.c.l.b16 %v5868
      %v6573 = vunpack.c.h.b16 %v5868
      %v6574 = vunpack.c.l.b16 %v5869
      %v6575 = vunpack.c.h.b16 %v5869
      %v6576 = vunpack.c.l.b16 %v5870
      %v6577 = vunpack.c.h.b16 %v5870
      %v6578 = vunpack.c.l.b16 %v5871
      %v6579 = vunpack.c.h.b16 %v5871
      %v6580 = vunpack.c.l.b16 %v5872
      %v6581 = vunpack.c.h.b16 %v5872
      %v6582 = vunpack.c.l.b16 %v5873
      %v6583 = vunpack.c.h.b16 %v5873
      %v6584 = vunpack.c.l.b16 %v5874
      %v6585 = vunpack.c.h.b16 %v5874
      %v6586 = vunpack.c.l.b16 %v5875
      %v6587 = vunpack.c.h.b16 %v5875
      %v6588 = vunpack.c.l.b16 %v5876
      %v6589 = vunpack.c.h.b16 %v5876
      %v6590 = vunpack.c.l.b16 %v5877
      %v6591 = vunpack.c.h.b16 %v5877
      %v6592 = vunpack.c.l.b16 %v5878
      %v6593 = vunpack.c.h.b16 %v5878
      %v6594 = vunpack.c.l.b16 %v5879
      %v6595 = vunpack.c.h.b16 %v5879
      %v6596 = vunpack.c.l.b16 %v5880
      %v6597 = vunpack.c.h.b16 %v5880
      %v6598 = vunpack.c.l.b16 %v5881
      %v6599 = vunpack.c.h.b16 %v5881
      %v6600 = vunpack.c.l.b16 %v5882
      %v6601 = vunpack.c.h.b16 %v5882
      %v6602 = vunpack.c.l.b16 %v5883
      %v6603 = vunpack.c.h.b16 %v5883
      %v6604 = vunpack.c.l.b16 %v5884
      %v6605 = vunpack.c.h.b16 %v5884
      %v6606 = vunpack.c.l.b16 %v5885
      %v6607 = vunpack.c.h.b16 %v5885
      %v6608 = vunpack.c.l.b16 %v5886
      %v6609 = vunpack.c.h.b16 %v5886
      %v6610 = vunpack.c.l.b16 %v5887
      %v6611 = vunpack.c.h.b16 %v5887
      %v6612 = vunpack.c.l.b16 %v5888
      %v6613 = vunpack.c.h.b16 %v5888
      %v6614 = vunpack.c.l.b16 %v5889
      %v6615 = vunpack.c.h.b16 %v5889
      %v6616 = vunpack.c.l.b16 %v5890
      %v6617 = vunpack.c.h.b16 %v5890
      %v6618 = vunpack.c.l.b16 %v5891
      %v6619 = vunpack.c.h.b16 %v5891
      %v6620 = vunpack.c.l.b16 %v5892
      %v6621 = vunpack.c.h.b16 %v5892
      %v6622 = vunpack.c.l.b16 %v5893
      %v6623 = vunpack.c.h.b16 %v5893
      %v6624 = vpack.c.b16 %v6530, %v6528
      %v6625 = vpack.c.b16 %v6531, %v6529
      %v6626 = vpack.c.b16 %v6534, %v6532
      %v6627 = vpack.c.b16 %v6535, %v6533
      %v6628 = vpack.c.b16 %v6538, %v6536
      %v6629 = vpack.c.b16 %v6539, %v6537
      %v6630 = vpack.c.b16 %v6542, %v6540
      %v6631 = vpack.c.b16 %v6543, %v6541
      %v6632 = vpack.c.b16 %v6546, %v6544
      %v6633 = vpack.c.b16 %v6547, %v6545
      %v6634 = vpack.c.b16 %v6550, %v6548
      %v6635 = vpack.c.b16 %v6551, %v6549
      %v6636 = vpack.c.b16 %v6554, %v6552
      %v6637 = vpack.c.b16 %v6555, %v6553
      %v6638 = vpack.c.b16 %v6558, %v6556
      %v6639 = vpack.c.b16 %v6559, %v6557
      %v6640 = vpack.c.b16 %v6562, %v6560
      %v6641 = vpack.c.b16 %v6563, %v6561
      %v6642 = vpack.c.b16 %v6566, %v6564
      %v6643 = vpack.c.b16 %v6567, %v6565
      %v6644 = vpack.c.b16 %v6570, %v6568
      %v6645 = vpack.c.b16 %v6571, %v6569
      %v6646 = vpack.c.b16 %v6574, %v6572
      %v6647 = vpack.c.b16 %v6575, %v6573
      %v6648 = vpack.c.b16 %v6578, %v6576
      %v6649 = vpack.c.b16 %v6579, %v6577
      %v6650 = vpack.c.b16 %v6582, %v6580
      %v6651 = vpack.c.b16 %v6583, %v6581
      %v6652 = vpack.c.b16 %v6586, %v6584
      %v6653 = vpack.c.b16 %v6587, %v6585
      %v6654 = vpack.c.b16 %v6590, %v6588
      %v6655 = vpack.c.b16 %v6591, %v6589
      %v6656 = vpack.c.b16 %v6594, %v6592
      %v6657 = vpack.c.b16 %v6595, %v6593
      %v6658 = vpack.c.b16 %v6598, %v6596
      %v6659 = vpack.c.b16 %v6599, %v6597
      %v6660 = vpack.c.b16 %v6602, %v6600
      %v6661 = vpack.c.b16 %v6603, %v6601
      %v6662 = vpack.c.b16 %v6606, %v6604
      %v6663 = vpack.c.b16 %v6607, %v6605
      %v6664 = vpack.c.b16 %v6610, %v6608
      %v6665 = vpack.c.b16 %v6611, %v6609
      %v6666 = vpack.c.b16 %v6614, %v6612
      %v6667 = vpack.c.b16 %v6615, %v6613
      %v6668 = vpack.c.b16 %v6618, %v6616
      %v6669 = vpack.c.b16 %v6619, %v6617
      %v6670 = vpack.c.b16 %v6622, %v6620
      %v6671 = vpack.c.b16 %v6623, %v6621
      %6720 = vmatprep.subr.bf16.mxu0 %v6625
      %6721 = vmatpush1.bf16.msra.mxu0 %v6624
      %6722 = vmatprep.subr.bf16.mxu0 %v6627
      %6723 = vmatpush1.bf16.msra.mxu0 %v6626
      %6724 = vmatprep.subr.bf16.mxu0 %v6629
      %6725 = vmatpush1.bf16.msra.mxu0 %v6628
      %6726 = vmatprep.subr.bf16.mxu0 %v6631
      %6727 = vmatpush1.bf16.msra.mxu0 %v6630
      %6728 = vmatprep.subr.bf16.mxu0 %v6633
      %6729 = vmatpush1.bf16.msra.mxu0 %v6632
      %6730 = vmatprep.subr.bf16.mxu0 %v6635
      %6731 = vmatpush1.bf16.msra.mxu0 %v6634
      %6732 = vmatprep.subr.bf16.mxu0 %v6637
      %6733 = vmatpush1.bf16.msra.mxu0 %v6636
      %6734 = vmatprep.subr.bf16.mxu0 %v6639
      %6735 = vmatpush1.bf16.msra.mxu0 %v6638
      %6736 = vmatprep.subr.bf16.mxu0 %v6641
      %6737 = vmatpush1.bf16.msra.mxu0 %v6640
      %6738 = vmatprep.subr.bf16.mxu0 %v6643
      %6739 = vmatpush1.bf16.msra.mxu0 %v6642
      %6740 = vmatprep.subr.bf16.mxu0 %v6645
      %6741 = vmatpush1.bf16.msra.mxu0 %v6644
      %6742 = vmatprep.subr.bf16.mxu0 %v6647
      %6743 = vmatpush1.bf16.msra.mxu0 %v6646
      %6744 = vmatprep.subr.bf16.mxu0 %v6649
      %6745 = vmatpush1.bf16.msra.mxu0 %v6648
      %6746 = vmatprep.subr.bf16.mxu0 %v6651
      %6747 = vmatpush1.bf16.msra.mxu0 %v6650
      %6748 = vmatprep.subr.bf16.mxu0 %v6653
      %6749 = vmatpush1.bf16.msra.mxu0 %v6652
      %6750 = vmatprep.subr.bf16.mxu0 %v6655
      %6751 = vmatpush1.bf16.msra.mxu0 %v6654
      %6752 = vmatprep.mubr.bf16.mxu0 %v5817
      %6753 = vmatmul.mubr.bf16.gmra.mrb[0].mxu0 %v5816
      %v6754 = vpop.f32.mrb[0].mxu0
      %v6755 = vadd.f32 %v6382, %v6754
      %v6756 = vpop.f32.mrb[0].mxu0
      %v6757 = vadd.f32 %v6384, %v6756
      %v6758 = vpop.f32.mrb[0].mxu0
      %v6759 = vadd.f32 %v6386, %v6758
      %v6760 = vpop.f32.mrb[0].mxu0
      %v6761 = vadd.f32 %v6388, %v6760
      %6762 = vmatprep.mubr.bf16.mxu0 %v5820
      %6763 = vmatmul.mubr.bf16.gmra.mrb[0].mxu0 %v5819
      %v6764 = vpop.f32.mrb[0].mxu0
      %v6765 = vadd.f32 %v6392, %v6764
      %v6766 = vpop.f32.mrb[0].mxu0
      %v6767 = vadd.f32 %v6394, %v6766
      %v6768 = vpop.f32.mrb[0].mxu0
      %v6769 = vadd.f32 %v6396, %v6768
      %v6770 = vpop.f32.mrb[0].mxu0
      %v6771 = vadd.f32 %v6398, %v6770
      %6772 = vmatprep.mubr.bf16.mxu0 %v5823
      %6773 = vmatmul.mubr.bf16.gmra.mrb[0].mxu0 %v5822
      %v6774 = vpop.f32.mrb[0].mxu0
      %v6775 = vadd.f32 %v6402, %v6774
      %v6776 = vpop.f32.mrb[0].mxu0
      %v6777 = vadd.f32 %v6404, %v6776
      %v6778 = vpop.f32.mrb[0].mxu0
      %v6779 = vadd.f32 %v6406, %v6778
      %v6780 = vpop.f32.mrb[0].mxu0
      %v6781 = vadd.f32 %v6408, %v6780
      %6782 = vmatprep.mubr.bf16.mxu0 %v5826
      %6783 = vmatmul.mubr.bf16.gmra.mrb[0].mxu0 %v5825
      %v6784 = vpop.f32.mrb[0].mxu0
      %v6785 = vadd.f32 %v6412, %v6784
      %v6786 = vpop.f32.mrb[0].mxu0
      %v6787 = vadd.f32 %v6414, %v6786
      %v6788 = vpop.f32.mrb[0].mxu0
      %v6789 = vadd.f32 %v6416, %v6788
      %v6790 = vpop.f32.mrb[0].mxu0
      %v6791 = vadd.f32 %v6418, %v6790
      %6792 = vmatprep.mubr.bf16.mxu0 %v5829
      %6793 = vmatmul.mubr.bf16.gmra.mrb[0].mxu0 %v5828
      %v6794 = vpop.f32.mrb[0].mxu0
      %v6795 = vadd.f32 %v6422, %v6794
      %v6796 = vpop.f32.mrb[0].mxu0
      %v6797 = vadd.f32 %v6424, %v6796
      %v6798 = vpop.f32.mrb[0].mxu0
      %v6799 = vadd.f32 %v6426, %v6798
      %v6800 = vpop.f32.mrb[0].mxu0
      %v6801 = vadd.f32 %v6428, %v6800
      %6802 = vmatprep.mubr.bf16.mxu0 %v5832
      %6803 = vmatmul.mubr.bf16.gmra.mrb[0].mxu0 %v5831
      %v6804 = vpop.f32.mrb[0].mxu0
      %v6805 = vadd.f32 %v6432, %v6804
      %v6806 = vpop.f32.mrb[0].mxu0
      %v6807 = vadd.f32 %v6434, %v6806
      %v6808 = vpop.f32.mrb[0].mxu0
      %v6809 = vadd.f32 %v6436, %v6808
      %v6810 = vpop.f32.mrb[0].mxu0
      %v6811 = vadd.f32 %v6438, %v6810
      %6812 = vmatprep.mubr.bf16.mxu0 %v5835
      %6813 = vmatmul.mubr.bf16.gmra.mrb[0].mxu0 %v5834
      %v6814 = vpop.f32.mrb[0].mxu0
      %v6815 = vadd.f32 %v6442, %v6814
      %v6816 = vpop.f32.mrb[0].mxu0
      %v6817 = vadd.f32 %v6444, %v6816
      %v6818 = vpop.f32.mrb[0].mxu0
      %v6819 = vadd.f32 %v6446, %v6818
      %v6820 = vpop.f32.mrb[0].mxu0
      %v6821 = vadd.f32 %v6448, %v6820
      %6822 = vmatprep.mubr.bf16.mxu0 %v5838
      %6823 = vmatmul.mubr.bf16.gmra.mrb[0].mxu0 %v5837
      %v6824 = vpop.f32.mrb[0].mxu0
      %v6825 = vadd.f32 %v6452, %v6824
      %v6826 = vpop.f32.mrb[0].mxu0
      %v6827 = vadd.f32 %v6454, %v6826
      %v6828 = vpop.f32.mrb[0].mxu0
      %v6829 = vadd.f32 %v6456, %v6828
      %v6830 = vpop.f32.mrb[0].mxu0
      %v6831 = vadd.f32 %v6458, %v6830
      %6832 = vmatprep.mubr.bf16.mxu0 %v5841
      %6833 = vmatmul.mubr.bf16.gmra.mrb[0].mxu0 %v5840
      %v6834 = vpop.f32.mrb[0].mxu0
      %v6835 = vadd.f32 %v6462, %v6834
      %v6836 = vpop.f32.mrb[0].mxu0
      %v6837 = vadd.f32 %v6464, %v6836
      %v6838 = vpop.f32.mrb[0].mxu0
      %v6839 = vadd.f32 %v6466, %v6838
      %v6840 = vpop.f32.mrb[0].mxu0
      %v6841 = vadd.f32 %v6468, %v6840
      %6842 = vmatprep.mubr.bf16.mxu0 %v5844
      %6843 = vmatmul.mubr.bf16.gmra.mrb[0].mxu0 %v5843
      %v6844 = vpop.f32.mrb[0].mxu0
      %v6845 = vadd.f32 %v6472, %v6844
      %v6846 = vpop.f32.mrb[0].mxu0
      %v6847 = vadd.f32 %v6474, %v6846
      %v6848 = vpop.f32.mrb[0].mxu0
      %v6849 = vadd.f32 %v6476, %v6848
      %v6850 = vpop.f32.mrb[0].mxu0
      %v6851 = vadd.f32 %v6478, %v6850
      %6852 = vdwg.mxu0
      %6853 = vmatprep.subr.bf16.mxu0 %v6657
      %6854 = vmatpush1.bf16.msra.mxu0 %v6656
      %6855 = vmatprep.subr.bf16.mxu0 %v6659
      %6856 = vmatpush1.bf16.msra.mxu0 %v6658
      %6857 = vmatprep.subr.bf16.mxu0 %v6661
      %6858 = vmatpush1.bf16.msra.mxu0 %v6660
      %6859 = vmatprep.subr.bf16.mxu0 %v6663
      %6860 = vmatpush1.bf16.msra.mxu0 %v6662
      %6861 = vmatprep.subr.bf16.mxu0 %v6665
      %6862 = vmatpush1.bf16.msra.mxu0 %v6664
      %6863 = vmatprep.subr.bf16.mxu0 %v6667
      %6864 = vmatpush1.bf16.msra.mxu0 %v6666
      %6865 = vmatprep.subr.bf16.mxu0 %v6669
      %6866 = vmatpush1.bf16.msra.mxu0 %v6668
      %6867 = vmatprep.subr.bf16.mxu0 %v6671
      %6868 = vmatpush1.bf16.msra.mxu0 %v6670
      %6869 = vmatprep.subr.bf16.mxu0 0
      %6870 = vmatpush1.bf16.msra.mxu0 0
      %6871 = vmatprep.subr.bf16.mxu0 0
      %6872 = vmatpush1.bf16.msra.mxu0 0
      %6873 = vmatprep.subr.bf16.mxu0 0
      %6874 = vmatpush1.bf16.msra.mxu0 0
      %6875 = vmatprep.subr.bf16.mxu0 0
      %6876 = vmatpush1.bf16.msra.mxu0 0
      %6877 = vmatprep.subr.bf16.mxu0 0
      %6878 = vmatpush1.bf16.msra.mxu0 0
      %6879 = vmatprep.subr.bf16.mxu0 0
      %6880 = vmatpush1.bf16.msra.mxu0 0
      %6881 = vmatprep.subr.bf16.mxu0 0
      %6882 = vmatpush1.bf16.msra.mxu0 0
      %6883 = vmatprep.subr.bf16.mxu0 0
      %6884 = vmatpush1.bf16.msra.mxu0 0
      %6885 = vmatprep.mubr.bf16.mxu0 0
      %6886 = vmatmul.mubr.bf16.gmra.mrb[0].mxu0 %v5818
      %v6887 = vpop.f32.mrb[0].mxu0
      %v6888 = vadd.f32 %v6755, %v6887
      %v6889 = vpop.f32.mrb[0].mxu0
      %v6890 = vadd.f32 %v6757, %v6889
      %v6891 = vpop.f32.mrb[0].mxu0
      %v6892 = vadd.f32 %v6759, %v6891
      %v6893 = vpop.f32.mrb[0].mxu0
      %v6894 = vadd.f32 %v6761, %v6893
      %6895 = vmatprep.mubr.bf16.mxu0 0
      %6896 = vmatmul.mubr.bf16.gmra.mrb[0].mxu0 %v5821
      %v6897 = vpop.f32.mrb[0].mxu0
      %v6898 = vadd.f32 %v6765, %v6897
      %v6899 = vpop.f32.mrb[0].mxu0
      %v6900 = vadd.f32 %v6767, %v6899
      %v6901 = vpop.f32.mrb[0].mxu0
      %v6902 = vadd.f32 %v6769, %v6901
      %v6903 = vpop.f32.mrb[0].mxu0
      %v6904 = vadd.f32 %v6771, %v6903
      %6905 = vmatprep.mubr.bf16.mxu0 0
      %6906 = vmatmul.mubr.bf16.gmra.mrb[0].mxu0 %v5824
      %v6907 = vpop.f32.mrb[0].mxu0
      %v6908 = vadd.f32 %v6775, %v6907
      %v6909 = vpop.f32.mrb[0].mxu0
      %v6910 = vadd.f32 %v6777, %v6909
      %v6911 = vpop.f32.mrb[0].mxu0
      %v6912 = vadd.f32 %v6779, %v6911
      %v6913 = vpop.f32.mrb[0].mxu0
      %v6914 = vadd.f32 %v6781, %v6913
      %6915 = vmatprep.mubr.bf16.mxu0 0
      %6916 = vmatmul.mubr.bf16.gmra.mrb[0].mxu0 %v5827
      %v6917 = vpop.f32.mrb[0].mxu0
      %v6918 = vadd.f32 %v6785, %v6917
      %v6919 = vpop.f32.mrb[0].mxu0
      %v6920 = vadd.f32 %v6787, %v6919
      %v6921 = vpop.f32.mrb[0].mxu0
      %v6922 = vadd.f32 %v6789, %v6921
      %v6923 = vpop.f32.mrb[0].mxu0
      %v6924 = vadd.f32 %v6791, %v6923
      %6925 = vmatprep.mubr.bf16.mxu0 0
      %6926 = vmatmul.mubr.bf16.gmra.mrb[0].mxu0 %v5830
      %v6927 = vpop.f32.mrb[0].mxu0
      %v6928 = vadd.f32 %v6795, %v6927
      %v6929 = vpop.f32.mrb[0].mxu0
      %v6930 = vadd.f32 %v6797, %v6929
      %v6931 = vpop.f32.mrb[0].mxu0
      %v6932 = vadd.f32 %v6799, %v6931
      %v6933 = vpop.f32.mrb[0].mxu0
      %v6934 = vadd.f32 %v6801, %v6933
      %6935 = vmatprep.mubr.bf16.mxu0 0
      %6936 = vmatmul.mubr.bf16.gmra.mrb[0].mxu0 %v5833
      %v6937 = vpop.f32.mrb[0].mxu0
      %v6938 = vadd.f32 %v6805, %v6937
      %v6939 = vpop.f32.mrb[0].mxu0
      %v6940 = vadd.f32 %v6807, %v6939
      %v6941 = vpop.f32.mrb[0].mxu0
      %v6942 = vadd.f32 %v6809, %v6941
      %v6943 = vpop.f32.mrb[0].mxu0
      %v6944 = vadd.f32 %v6811, %v6943
      %6945 = vmatprep.mubr.bf16.mxu0 0
      %6946 = vmatmul.mubr.bf16.gmra.mrb[0].mxu0 %v5836
      %v6947 = vpop.f32.mrb[0].mxu0
      %v6948 = vadd.f32 %v6815, %v6947
      %v6949 = vpop.f32.mrb[0].mxu0
      %v6950 = vadd.f32 %v6817, %v6949
      %v6951 = vpop.f32.mrb[0].mxu0
      %v6952 = vadd.f32 %v6819, %v6951
      %v6953 = vpop.f32.mrb[0].mxu0
      %v6954 = vadd.f32 %v6821, %v6953
      %6955 = vmatprep.mubr.bf16.mxu0 0
      %6956 = vmatmul.mubr.bf16.gmra.mrb[0].mxu0 %v5839
      %v6957 = vpop.f32.mrb[0].mxu0
      %v6958 = vadd.f32 %v6825, %v6957
      %v6959 = vpop.f32.mrb[0].mxu0
      %v6960 = vadd.f32 %v6827, %v6959
      %v6961 = vpop.f32.mrb[0].mxu0
      %v6962 = vadd.f32 %v6829, %v6961
      %v6963 = vpop.f32.mrb[0].mxu0
      %v6964 = vadd.f32 %v6831, %v6963
      %6965 = vmatprep.mubr.bf16.mxu0 0
      %6966 = vmatmul.mubr.bf16.gmra.mrb[0].mxu0 %v5842
      %v6967 = vpop.f32.mrb[0].mxu0
      %v6968 = vadd.f32 %v6835, %v6967
      %v6969 = vpop.f32.mrb[0].mxu0
      %v6970 = vadd.f32 %v6837, %v6969
      %v6971 = vpop.f32.mrb[0].mxu0
      %v6972 = vadd.f32 %v6839, %v6971
      %v6973 = vpop.f32.mrb[0].mxu0
      %v6974 = vadd.f32 %v6841, %v6973
      %6975 = vmatprep.mubr.bf16.mxu0 0
      %6976 = vmatmul.mubr.bf16.gmra.mrb[0].mxu0 %v5845
      %v6977 = vpop.f32.mrb[0].mxu0
      %v6978 = vadd.f32 %v6845, %v6977
      %v6979 = vpop.f32.mrb[0].mxu0
      %v6980 = vadd.f32 %v6847, %v6979
      %v6981 = vpop.f32.mrb[0].mxu0
      %v6982 = vadd.f32 %v6849, %v6981
      %v6983 = vpop.f32.mrb[0].mxu0
      %v6984 = vadd.f32 %v6851, %v6983
      %6985 = vdwg.mxu0
      %v6986 = vld [vmem:[%s4013] sm:$0xff]
      %v6987 = vld [vmem:[%s4013 + $0x8] sm:$0xff]
      %v6988 = vld [vmem:[%s4013 + $0x10] sm:$0xff]
      %v6989 = vld [vmem:[%s4013 + $0x18] sm:$0xff]
      %v6990 = vld [vmem:[%s4013 + $0x20] sm:$0xff]
      %v6991 = vld [vmem:[%s4013 + $0x28] sm:$0xff]
      %v6992 = vld [vmem:[%s4013 + $0x30] sm:$0xff]
      %v6993 = vld [vmem:[%s4013 + $0x38] sm:$0xff]
      %v6994 = vld [vmem:[%s4013 + $0x40] sm:$0xff]
      %v6995 = vld [vmem:[%s4013 + $0x48] sm:$0xff]
      %v6996 = vld [vmem:[%s4013 + $0x50] sm:$0xff]
      %v6997 = vld [vmem:[%s4013 + $0x58] sm:$0xff]
      %v6998 = vld [vmem:[%s4013 + $0x60] sm:$0xff]
      %v6999 = vld [vmem:[%s4013 + $0x68] sm:$0xff]
      %v7000 = vld [vmem:[%s4013 + $0x70] sm:$0xff]
      %v7001 = vld [vmem:[%s4013 + $0x78] sm:$0xff]
      %v7002 = vld [vmem:[%s4013 + $0x80] sm:$0xff]
      %v7003 = vld [vmem:[%s4013 + $0x88] sm:$0xff]
      %v7004 = vld [vmem:[%s4013 + $0x90] sm:$0xff]
      %v7005 = vld [vmem:[%s4013 + $0x98] sm:$0xff]
      %v7006 = vld [vmem:[%s4013 + $0xa0] sm:$0xff]
      %v7007 = vld [vmem:[%s4013 + $0xa8] sm:$0xff]
      %v7008 = vld [vmem:[%s4013 + $0xb0] sm:$0xff]
      %v7009 = vld [vmem:[%s4013 + $0xb8] sm:$0xff]
      %v7010 = vld [vmem:[%s4013 + $0xc0] sm:$0xff]
      %v7011 = vld [vmem:[%s4013 + $0xc8] sm:$0xff]
      %v7012 = vld [vmem:[%s4013 + $0xd0] sm:$0xff]
      %v7013 = vld [vmem:[%s4013 + $0xd8] sm:$0xff]
      %v7014 = vld [vmem:[%s4013 + $0xe0] sm:$0xff]
      %v7015 = vld [vmem:[%s4013 + $0xe8] sm:$0xff]
      %s7016 = scalar_lea.vmem %s3, 768
      %v7017 = vld [vmem:[%s7016] sm:$0xff]
      %v7018 = vld [vmem:[%s7016 + $0x8] sm:$0xff]
      %v7019 = vld [vmem:[%s7016 + $0x10] sm:$0xff]
      %v7020 = vld [vmem:[%s7016 + $0x18] sm:$0xff]
      %v7021 = vld [vmem:[%s7016 + $0x20] sm:$0xff]
      %v7022 = vld [vmem:[%s7016 + $0x28] sm:$0xff]
      %v7023 = vld [vmem:[%s7016 + $0x30] sm:$0xff]
      %v7024 = vld [vmem:[%s7016 + $0x38] sm:$0xff]
      %v7025 = vld [vmem:[%s7016 + $0x40] sm:$0xff]
      %v7026 = vld [vmem:[%s7016 + $0x48] sm:$0xff]
      %v7027 = vld [vmem:[%s7016 + $0x50] sm:$0xff]
      %v7028 = vld [vmem:[%s7016 + $0x58] sm:$0xff]
      %v7029 = vld [vmem:[%s7016 + $0x60] sm:$0xff]
      %v7030 = vld [vmem:[%s7016 + $0x68] sm:$0xff]
      %v7031 = vld [vmem:[%s7016 + $0x70] sm:$0xff]
      %v7032 = vld [vmem:[%s7016 + $0x78] sm:$0xff]
      %v7033 = vld [vmem:[%s7016 + $0x80] sm:$0xff]
      %v7034 = vld [vmem:[%s7016 + $0x88] sm:$0xff]
      %v7035 = vld [vmem:[%s7016 + $0x90] sm:$0xff]
      %v7036 = vld [vmem:[%s7016 + $0x98] sm:$0xff]
      %v7037 = vld [vmem:[%s7016 + $0xa0] sm:$0xff]
      %v7038 = vld [vmem:[%s7016 + $0xa8] sm:$0xff]
      %v7039 = vld [vmem:[%s7016 + $0xb0] sm:$0xff]
      %v7040 = vld [vmem:[%s7016 + $0xb8] sm:$0xff]
      %v7041 = vld [vmem:[%s7016 + $0xc0] sm:$0xff]
      %v7042 = vld [vmem:[%s7016 + $0xc8] sm:$0xff]
      %v7043 = vld [vmem:[%s7016 + $0xd0] sm:$0xff]
      %v7044 = vld [vmem:[%s7016 + $0xd8] sm:$0xff]
      %v7045 = vld [vmem:[%s7016 + $0xe0] sm:$0xff]
      %v7046 = vld [vmem:[%s7016 + $0xe8] sm:$0xff]
      %v7047 = vld [vmem:[%s7016 + $0xf0] sm:$0xff]
      %v7048 = vld [vmem:[%s7016 + $0xf8] sm:$0xff]
      %v7049 = vld [vmem:[%s7016 + $0x100] sm:$0xff]
      %v7050 = vld [vmem:[%s7016 + $0x108] sm:$0xff]
      %v7051 = vld [vmem:[%s7016 + $0x110] sm:$0xff]
      %v7052 = vld [vmem:[%s7016 + $0x118] sm:$0xff]
      %v7053 = vld [vmem:[%s7016 + $0x120] sm:$0xff]
      %v7054 = vld [vmem:[%s7016 + $0x128] sm:$0xff]
      %v7055 = vld [vmem:[%s7016 + $0x130] sm:$0xff]
      %v7056 = vld [vmem:[%s7016 + $0x138] sm:$0xff]
      %v7057 = vld [vmem:[%s7016 + $0x140] sm:$0xff]
      %v7058 = vld [vmem:[%s7016 + $0x148] sm:$0xff]
      %v7059 = vld [vmem:[%s7016 + $0x150] sm:$0xff]
      %v7060 = vld [vmem:[%s7016 + $0x158] sm:$0xff]
      %v7061 = vld [vmem:[%s7016 + $0x160] sm:$0xff]
      %v7062 = vld [vmem:[%s7016 + $0x168] sm:$0xff]
      %v7063 = vld [vmem:[%s7016 + $0x170] sm:$0xff]
      %v7064 = vld [vmem:[%s7016 + $0x178] sm:$0xff]
      %v7113 = vunpack.c.l.b16 %v7017
      %v7114 = vunpack.c.h.b16 %v7017
      %v7115 = vunpack.c.l.b16 %v7018
      %v7116 = vunpack.c.h.b16 %v7018
      %v7117 = vunpack.c.l.b16 %v7019
      %v7118 = vunpack.c.h.b16 %v7019
      %v7119 = vunpack.c.l.b16 %v7020
      %v7120 = vunpack.c.h.b16 %v7020
      %v7121 = vunpack.c.l.b16 %v7021
      %v7122 = vunpack.c.h.b16 %v7021
      %v7123 = vunpack.c.l.b16 %v7022
      %v7124 = vunpack.c.h.b16 %v7022
      %v7125 = vunpack.c.l.b16 %v7023
      %v7126 = vunpack.c.h.b16 %v7023
      %v7127 = vunpack.c.l.b16 %v7024
      %v7128 = vunpack.c.h.b16 %v7024
      %v7129 = vunpack.c.l.b16 %v7025
      %v7130 = vunpack.c.h.b16 %v7025
      %v7131 = vunpack.c.l.b16 %v7026
      %v7132 = vunpack.c.h.b16 %v7026
      %v7133 = vunpack.c.l.b16 %v7027
      %v7134 = vunpack.c.h.b16 %v7027
      %v7135 = vunpack.c.l.b16 %v7028
      %v7136 = vunpack.c.h.b16 %v7028
      %v7137 = vunpack.c.l.b16 %v7029
      %v7138 = vunpack.c.h.b16 %v7029
      %v7139 = vunpack.c.l.b16 %v7030
      %v7140 = vunpack.c.h.b16 %v7030
      %v7141 = vunpack.c.l.b16 %v7031
      %v7142 = vunpack.c.h.b16 %v7031
      %v7143 = vunpack.c.l.b16 %v7032
      %v7144 = vunpack.c.h.b16 %v7032
      %v7145 = vunpack.c.l.b16 %v7033
      %v7146 = vunpack.c.h.b16 %v7033
      %v7147 = vunpack.c.l.b16 %v7034
      %v7148 = vunpack.c.h.b16 %v7034
      %v7149 = vunpack.c.l.b16 %v7035
      %v7150 = vunpack.c.h.b16 %v7035
      %v7151 = vunpack.c.l.b16 %v7036
      %v7152 = vunpack.c.h.b16 %v7036
      %v7153 = vunpack.c.l.b16 %v7037
      %v7154 = vunpack.c.h.b16 %v7037
      %v7155 = vunpack.c.l.b16 %v7038
      %v7156 = vunpack.c.h.b16 %v7038
      %v7157 = vunpack.c.l.b16 %v7039
      %v7158 = vunpack.c.h.b16 %v7039
      %v7159 = vunpack.c.l.b16 %v7040
      %v7160 = vunpack.c.h.b16 %v7040
      %v7161 = vunpack.c.l.b16 %v7041
      %v7162 = vunpack.c.h.b16 %v7041
      %v7163 = vunpack.c.l.b16 %v7042
      %v7164 = vunpack.c.h.b16 %v7042
      %v7165 = vunpack.c.l.b16 %v7043
      %v7166 = vunpack.c.h.b16 %v7043
      %v7167 = vunpack.c.l.b16 %v7044
      %v7168 = vunpack.c.h.b16 %v7044
      %v7169 = vunpack.c.l.b16 %v7045
      %v7170 = vunpack.c.h.b16 %v7045
      %v7171 = vunpack.c.l.b16 %v7046
      %v7172 = vunpack.c.h.b16 %v7046
      %v7173 = vunpack.c.l.b16 %v7047
      %v7174 = vunpack.c.h.b16 %v7047
      %v7175 = vunpack.c.l.b16 %v7048
      %v7176 = vunpack.c.h.b16 %v7048
      %v7177 = vunpack.c.l.b16 %v7049
      %v7178 = vunpack.c.h.b16 %v7049
      %v7179 = vunpack.c.l.b16 %v7050
      %v7180 = vunpack.c.h.b16 %v7050
      %v7181 = vunpack.c.l.b16 %v7051
      %v7182 = vunpack.c.h.b16 %v7051
      %v7183 = vunpack.c.l.b16 %v7052
      %v7184 = vunpack.c.h.b16 %v7052
      %v7185 = vunpack.c.l.b16 %v7053
      %v7186 = vunpack.c.h.b16 %v7053
      %v7187 = vunpack.c.l.b16 %v7054
      %v7188 = vunpack.c.h.b16 %v7054
      %v7189 = vunpack.c.l.b16 %v7055
      %v7190 = vunpack.c.h.b16 %v7055
      %v7191 = vunpack.c.l.b16 %v7056
      %v7192 = vunpack.c.h.b16 %v7056
      %v7193 = vunpack.c.l.b16 %v7057
      %v7194 = vunpack.c.h.b16 %v7057
      %v7195 = vunpack.c.l.b16 %v7058
      %v7196 = vunpack.c.h.b16 %v7058
      %v7197 = vunpack.c.l.b16 %v7059
      %v7198 = vunpack.c.h.b16 %v7059
      %v7199 = vunpack.c.l.b16 %v7060
      %v7200 = vunpack.c.h.b16 %v7060
      %v7201 = vunpack.c.l.b16 %v7061
      %v7202 = vunpack.c.h.b16 %v7061
      %v7203 = vunpack.c.l.b16 %v7062
      %v7204 = vunpack.c.h.b16 %v7062
      %v7205 = vunpack.c.l.b16 %v7063
      %v7206 = vunpack.c.h.b16 %v7063
      %v7207 = vunpack.c.l.b16 %v7064
      %v7208 = vunpack.c.h.b16 %v7064
      %v7209 = vpack.c.b16 %v7115, %v7113
      %v7210 = vpack.c.b16 %v7116, %v7114
      %v7211 = vpack.c.b16 %v7119, %v7117
      %v7212 = vpack.c.b16 %v7120, %v7118
      %v7213 = vpack.c.b16 %v7123, %v7121
      %v7214 = vpack.c.b16 %v7124, %v7122
      %v7215 = vpack.c.b16 %v7127, %v7125
      %v7216 = vpack.c.b16 %v7128, %v7126
      %v7217 = vpack.c.b16 %v7131, %v7129
      %v7218 = vpack.c.b16 %v7132, %v7130
      %v7219 = vpack.c.b16 %v7135, %v7133
      %v7220 = vpack.c.b16 %v7136, %v7134
      %v7221 = vpack.c.b16 %v7139, %v7137
      %v7222 = vpack.c.b16 %v7140, %v7138
      %v7223 = vpack.c.b16 %v7143, %v7141
      %v7224 = vpack.c.b16 %v7144, %v7142
      %v7225 = vpack.c.b16 %v7147, %v7145
      %v7226 = vpack.c.b16 %v7148, %v7146
      %v7227 = vpack.c.b16 %v7151, %v7149
      %v7228 = vpack.c.b16 %v7152, %v7150
      %v7229 = vpack.c.b16 %v7155, %v7153
      %v7230 = vpack.c.b16 %v7156, %v7154
      %v7231 = vpack.c.b16 %v7159, %v7157
      %v7232 = vpack.c.b16 %v7160, %v7158
      %v7233 = vpack.c.b16 %v7163, %v7161
      %v7234 = vpack.c.b16 %v7164, %v7162
      %v7235 = vpack.c.b16 %v7167, %v7165
      %v7236 = vpack.c.b16 %v7168, %v7166
      %v7237 = vpack.c.b16 %v7171, %v7169
      %v7238 = vpack.c.b16 %v7172, %v7170
      %v7239 = vpack.c.b16 %v7175, %v7173
      %v7240 = vpack.c.b16 %v7176, %v7174
      %v7241 = vpack.c.b16 %v7179, %v7177
      %v7242 = vpack.c.b16 %v7180, %v7178
      %v7243 = vpack.c.b16 %v7183, %v7181
      %v7244 = vpack.c.b16 %v7184, %v7182
      %v7245 = vpack.c.b16 %v7187, %v7185
      %v7246 = vpack.c.b16 %v7188, %v7186
      %v7247 = vpack.c.b16 %v7191, %v7189
      %v7248 = vpack.c.b16 %v7192, %v7190
      %v7249 = vpack.c.b16 %v7195, %v7193
      %v7250 = vpack.c.b16 %v7196, %v7194
      %v7251 = vpack.c.b16 %v7199, %v7197
      %v7252 = vpack.c.b16 %v7200, %v7198
      %v7253 = vpack.c.b16 %v7203, %v7201
      %v7254 = vpack.c.b16 %v7204, %v7202
      %v7255 = vpack.c.b16 %v7207, %v7205
      %v7256 = vpack.c.b16 %v7208, %v7206
      %7305 = vmatprep.subr.bf16.mxu0 %v7210
      %7306 = vmatpush1.bf16.msra.mxu0 %v7209
      %7307 = vmatprep.subr.bf16.mxu0 %v7212
      %7308 = vmatpush1.bf16.msra.mxu0 %v7211
      %7309 = vmatprep.subr.bf16.mxu0 %v7214
      %7310 = vmatpush1.bf16.msra.mxu0 %v7213
      %7311 = vmatprep.subr.bf16.mxu0 %v7216
      %7312 = vmatpush1.bf16.msra.mxu0 %v7215
      %7313 = vmatprep.subr.bf16.mxu0 %v7218
      %7314 = vmatpush1.bf16.msra.mxu0 %v7217
      %7315 = vmatprep.subr.bf16.mxu0 %v7220
      %7316 = vmatpush1.bf16.msra.mxu0 %v7219
      %7317 = vmatprep.subr.bf16.mxu0 %v7222
      %7318 = vmatpush1.bf16.msra.mxu0 %v7221
      %7319 = vmatprep.subr.bf16.mxu0 %v7224
      %7320 = vmatpush1.bf16.msra.mxu0 %v7223
      %7321 = vmatprep.subr.bf16.mxu0 %v7226
      %7322 = vmatpush1.bf16.msra.mxu0 %v7225
      %7323 = vmatprep.subr.bf16.mxu0 %v7228
      %7324 = vmatpush1.bf16.msra.mxu0 %v7227
      %7325 = vmatprep.subr.bf16.mxu0 %v7230
      %7326 = vmatpush1.bf16.msra.mxu0 %v7229
      %7327 = vmatprep.subr.bf16.mxu0 %v7232
      %7328 = vmatpush1.bf16.msra.mxu0 %v7231
      %7329 = vmatprep.subr.bf16.mxu0 %v7234
      %7330 = vmatpush1.bf16.msra.mxu0 %v7233
      %7331 = vmatprep.subr.bf16.mxu0 %v7236
      %7332 = vmatpush1.bf16.msra.mxu0 %v7235
      %7333 = vmatprep.subr.bf16.mxu0 %v7238
      %7334 = vmatpush1.bf16.msra.mxu0 %v7237
      %7335 = vmatprep.subr.bf16.mxu0 %v7240
      %7336 = vmatpush1.bf16.msra.mxu0 %v7239
      %7337 = vmatprep.mubr.bf16.mxu0 %v6987
      %7338 = vmatmul.mubr.bf16.gmra.mrb[0].mxu0 %v6986
      %v7339 = vpop.f32.mrb[0].mxu0
      %v7340 = vadd.f32 0.0, %v7339
      %v7341 = vpop.f32.mrb[0].mxu0
      %v7342 = vadd.f32 0.0, %v7341
      %v7343 = vpop.f32.mrb[0].mxu0
      %v7344 = vadd.f32 0.0, %v7343
      %v7345 = vpop.f32.mrb[0].mxu0
      %v7346 = vadd.f32 0.0, %v7345
      %7347 = vmatprep.mubr.bf16.mxu0 %v6990
      %7348 = vmatmul.mubr.bf16.gmra.mrb[0].mxu0 %v6989
      %v7349 = vpop.f32.mrb[0].mxu0
      %v7350 = vadd.f32 0.0, %v7349
      %v7351 = vpop.f32.mrb[0].mxu0
      %v7352 = vadd.f32 0.0, %v7351
      %v7353 = vpop.f32.mrb[0].mxu0
      %v7354 = vadd.f32 0.0, %v7353
      %v7355 = vpop.f32.mrb[0].mxu0
      %v7356 = vadd.f32 0.0, %v7355
      %7357 = vmatprep.mubr.bf16.mxu0 %v6993
      %7358 = vmatmul.mubr.bf16.gmra.mrb[0].mxu0 %v6992
      %v7359 = vpop.f32.mrb[0].mxu0
      %v7360 = vadd.f32 0.0, %v7359
      %v7361 = vpop.f32.mrb[0].mxu0
      %v7362 = vadd.f32 0.0, %v7361
      %v7363 = vpop.f32.mrb[0].mxu0
      %v7364 = vadd.f32 0.0, %v7363
      %v7365 = vpop.f32.mrb[0].mxu0
      %v7366 = vadd.f32 0.0, %v7365
      %7367 = vmatprep.mubr.bf16.mxu0 %v6996
      %7368 = vmatmul.mubr.bf16.gmra.mrb[0].mxu0 %v6995
      %v7369 = vpop.f32.mrb[0].mxu0
      %v7370 = vadd.f32 0.0, %v7369
      %v7371 = vpop.f32.mrb[0].mxu0
      %v7372 = vadd.f32 0.0, %v7371
      %v7373 = vpop.f32.mrb[0].mxu0
      %v7374 = vadd.f32 0.0, %v7373
      %v7375 = vpop.f32.mrb[0].mxu0
      %v7376 = vadd.f32 0.0, %v7375
      %7377 = vmatprep.mubr.bf16.mxu0 %v6999
      %7378 = vmatmul.mubr.bf16.gmra.mrb[0].mxu0 %v6998
      %v7379 = vpop.f32.mrb[0].mxu0
      %v7380 = vadd.f32 0.0, %v7379
      %v7381 = vpop.f32.mrb[0].mxu0
      %v7382 = vadd.f32 0.0, %v7381
      %v7383 = vpop.f32.mrb[0].mxu0
      %v7384 = vadd.f32 0.0, %v7383
      %v7385 = vpop.f32.mrb[0].mxu0
      %v7386 = vadd.f32 0.0, %v7385
      %7387 = vmatprep.mubr.bf16.mxu0 %v7002
      %7388 = vmatmul.mubr.bf16.gmra.mrb[0].mxu0 %v7001
      %v7389 = vpop.f32.mrb[0].mxu0
      %v7390 = vadd.f32 0.0, %v7389
      %v7391 = vpop.f32.mrb[0].mxu0
      %v7392 = vadd.f32 0.0, %v7391
      %v7393 = vpop.f32.mrb[0].mxu0
      %v7394 = vadd.f32 0.0, %v7393
      %v7395 = vpop.f32.mrb[0].mxu0
      %v7396 = vadd.f32 0.0, %v7395
      %7397 = vmatprep.mubr.bf16.mxu0 %v7005
      %7398 = vmatmul.mubr.bf16.gmra.mrb[0].mxu0 %v7004
      %v7399 = vpop.f32.mrb[0].mxu0
      %v7400 = vadd.f32 0.0, %v7399
      %v7401 = vpop.f32.mrb[0].mxu0
      %v7402 = vadd.f32 0.0, %v7401
      %v7403 = vpop.f32.mrb[0].mxu0
      %v7404 = vadd.f32 0.0, %v7403
      %v7405 = vpop.f32.mrb[0].mxu0
      %v7406 = vadd.f32 0.0, %v7405
      %7407 = vmatprep.mubr.bf16.mxu0 %v7008
      %7408 = vmatmul.mubr.bf16.gmra.mrb[0].mxu0 %v7007
      %v7409 = vpop.f32.mrb[0].mxu0
      %v7410 = vadd.f32 0.0, %v7409
      %v7411 = vpop.f32.mrb[0].mxu0
      %v7412 = vadd.f32 0.0, %v7411
      %v7413 = vpop.f32.mrb[0].mxu0
      %v7414 = vadd.f32 0.0, %v7413
      %v7415 = vpop.f32.mrb[0].mxu0
      %v7416 = vadd.f32 0.0, %v7415
      %7417 = vmatprep.mubr.bf16.mxu0 %v7011
      %7418 = vmatmul.mubr.bf16.gmra.mrb[0].mxu0 %v7010
      %v7419 = vpop.f32.mrb[0].mxu0
      %v7420 = vadd.f32 0.0, %v7419
      %v7421 = vpop.f32.mrb[0].mxu0
      %v7422 = vadd.f32 0.0, %v7421
      %v7423 = vpop.f32.mrb[0].mxu0
      %v7424 = vadd.f32 0.0, %v7423
      %v7425 = vpop.f32.mrb[0].mxu0
      %v7426 = vadd.f32 0.0, %v7425
      %7427 = vmatprep.mubr.bf16.mxu0 %v7014
      %7428 = vmatmul.mubr.bf16.gmra.mrb[0].mxu0 %v7013
      %v7429 = vpop.f32.mrb[0].mxu0
      %v7430 = vadd.f32 0.0, %v7429
      %v7431 = vpop.f32.mrb[0].mxu0
      %v7432 = vadd.f32 0.0, %v7431
      %v7433 = vpop.f32.mrb[0].mxu0
      %v7434 = vadd.f32 0.0, %v7433
      %v7435 = vpop.f32.mrb[0].mxu0
      %v7436 = vadd.f32 0.0, %v7435
      %7437 = vdwg.mxu0
      %7438 = vmatprep.subr.bf16.mxu0 %v7242
      %7439 = vmatpush1.bf16.msra.mxu0 %v7241
      %7440 = vmatprep.subr.bf16.mxu0 %v7244
      %7441 = vmatpush1.bf16.msra.mxu0 %v7243
      %7442 = vmatprep.subr.bf16.mxu0 %v7246
      %7443 = vmatpush1.bf16.msra.mxu0 %v7245
      %7444 = vmatprep.subr.bf16.mxu0 %v7248
      %7445 = vmatpush1.bf16.msra.mxu0 %v7247
      %7446 = vmatprep.subr.bf16.mxu0 %v7250
      %7447 = vmatpush1.bf16.msra.mxu0 %v7249
      %7448 = vmatprep.subr.bf16.mxu0 %v7252
      %7449 = vmatpush1.bf16.msra.mxu0 %v7251
      %7450 = vmatprep.subr.bf16.mxu0 %v7254
      %7451 = vmatpush1.bf16.msra.mxu0 %v7253
      %7452 = vmatprep.subr.bf16.mxu0 %v7256
      %7453 = vmatpush1.bf16.msra.mxu0 %v7255
      %7454 = vmatprep.subr.bf16.mxu0 0
      %7455 = vmatpush1.bf16.msra.mxu0 0
      %7456 = vmatprep.subr.bf16.mxu0 0
      %7457 = vmatpush1.bf16.msra.mxu0 0
      %7458 = vmatprep.subr.bf16.mxu0 0
      %7459 = vmatpush1.bf16.msra.mxu0 0
      %7460 = vmatprep.subr.bf16.mxu0 0
      %7461 = vmatpush1.bf16.msra.mxu0 0
      %7462 = vmatprep.subr.bf16.mxu0 0
      %7463 = vmatpush1.bf16.msra.mxu0 0
      %7464 = vmatprep.subr.bf16.mxu0 0
      %7465 = vmatpush1.bf16.msra.mxu0 0
      %7466 = vmatprep.subr.bf16.mxu0 0
      %7467 = vmatpush1.bf16.msra.mxu0 0
      %7468 = vmatprep.subr.bf16.mxu0 0
      %7469 = vmatpush1.bf16.msra.mxu0 0
      %7470 = vmatprep.mubr.bf16.mxu0 0
      %7471 = vmatmul.mubr.bf16.gmra.mrb[0].mxu0 %v6988
      %v7472 = vpop.f32.mrb[0].mxu0
      %v7473 = vadd.f32 %v7340, %v7472
      %v7474 = vpop.f32.mrb[0].mxu0
      %v7475 = vadd.f32 %v7342, %v7474
      %v7476 = vpop.f32.mrb[0].mxu0
      %v7477 = vadd.f32 %v7344, %v7476
      %v7478 = vpop.f32.mrb[0].mxu0
      %v7479 = vadd.f32 %v7346, %v7478
      %7480 = vmatprep.mubr.bf16.mxu0 0
      %7481 = vmatmul.mubr.bf16.gmra.mrb[0].mxu0 %v6991
      %v7482 = vpop.f32.mrb[0].mxu0
      %v7483 = vadd.f32 %v7350, %v7482
      %v7484 = vpop.f32.mrb[0].mxu0
      %v7485 = vadd.f32 %v7352, %v7484
      %v7486 = vpop.f32.mrb[0].mxu0
      %v7487 = vadd.f32 %v7354, %v7486
      %v7488 = vpop.f32.mrb[0].mxu0
      %v7489 = vadd.f32 %v7356, %v7488
      %7490 = vmatprep.mubr.bf16.mxu0 0
      %7491 = vmatmul.mubr.bf16.gmra.mrb[0].mxu0 %v6994
      %v7492 = vpop.f32.mrb[0].mxu0
      %v7493 = vadd.f32 %v7360, %v7492
      %v7494 = vpop.f32.mrb[0].mxu0
      %v7495 = vadd.f32 %v7362, %v7494
      %v7496 = vpop.f32.mrb[0].mxu0
      %v7497 = vadd.f32 %v7364, %v7496
      %v7498 = vpop.f32.mrb[0].mxu0
      %v7499 = vadd.f32 %v7366, %v7498
      %7500 = vmatprep.mubr.bf16.mxu0 0
      %7501 = vmatmul.mubr.bf16.gmra.mrb[0].mxu0 %v6997
      %v7502 = vpop.f32.mrb[0].mxu0
      %v7503 = vadd.f32 %v7370, %v7502
      %v7504 = vpop.f32.mrb[0].mxu0
      %v7505 = vadd.f32 %v7372, %v7504
      %v7506 = vpop.f32.mrb[0].mxu0
      %v7507 = vadd.f32 %v7374, %v7506
      %v7508 = vpop.f32.mrb[0].mxu0
      %v7509 = vadd.f32 %v7376, %v7508
      %7510 = vmatprep.mubr.bf16.mxu0 0
      %7511 = vmatmul.mubr.bf16.gmra.mrb[0].mxu0 %v7000
      %v7512 = vpop.f32.mrb[0].mxu0
      %v7513 = vadd.f32 %v7380, %v7512
      %v7514 = vpop.f32.mrb[0].mxu0
      %v7515 = vadd.f32 %v7382, %v7514
      %v7516 = vpop.f32.mrb[0].mxu0
      %v7517 = vadd.f32 %v7384, %v7516
      %v7518 = vpop.f32.mrb[0].mxu0
      %v7519 = vadd.f32 %v7386, %v7518
      %7520 = vmatprep.mubr.bf16.mxu0 0
      %7521 = vmatmul.mubr.bf16.gmra.mrb[0].mxu0 %v7003
      %v7522 = vpop.f32.mrb[0].mxu0
      %v7523 = vadd.f32 %v7390, %v7522
      %v7524 = vpop.f32.mrb[0].mxu0
      %v7525 = vadd.f32 %v7392, %v7524
      %v7526 = vpop.f32.mrb[0].mxu0
      %v7527 = vadd.f32 %v7394, %v7526
      %v7528 = vpop.f32.mrb[0].mxu0
      %v7529 = vadd.f32 %v7396, %v7528
      %7530 = vmatprep.mubr.bf16.mxu0 0
      %7531 = vmatmul.mubr.bf16.gmra.mrb[0].mxu0 %v7006
      %v7532 = vpop.f32.mrb[0].mxu0
      %v7533 = vadd.f32 %v7400, %v7532
      %v7534 = vpop.f32.mrb[0].mxu0
      %v7535 = vadd.f32 %v7402, %v7534
      %v7536 = vpop.f32.mrb[0].mxu0
      %v7537 = vadd.f32 %v7404, %v7536
      %v7538 = vpop.f32.mrb[0].mxu0
      %v7539 = vadd.f32 %v7406, %v7538
      %7540 = vmatprep.mubr.bf16.mxu0 0
      %7541 = vmatmul.mubr.bf16.gmra.mrb[0].mxu0 %v7009
      %v7542 = vpop.f32.mrb[0].mxu0
      %v7543 = vadd.f32 %v7410, %v7542
      %v7544 = vpop.f32.mrb[0].mxu0
      %v7545 = vadd.f32 %v7412, %v7544
      %v7546 = vpop.f32.mrb[0].mxu0
      %v7547 = vadd.f32 %v7414, %v7546
      %v7548 = vpop.f32.mrb[0].mxu0
      %v7549 = vadd.f32 %v7416, %v7548
      %7550 = vmatprep.mubr.bf16.mxu0 0
      %7551 = vmatmul.mubr.bf16.gmra.mrb[0].mxu0 %v7012
      %v7552 = vpop.f32.mrb[0].mxu0
      %v7553 = vadd.f32 %v7420, %v7552
      %v7554 = vpop.f32.mrb[0].mxu0
      %v7555 = vadd.f32 %v7422, %v7554
      %v7556 = vpop.f32.mrb[0].mxu0
      %v7557 = vadd.f32 %v7424, %v7556
      %v7558 = vpop.f32.mrb[0].mxu0
      %v7559 = vadd.f32 %v7426, %v7558
      %7560 = vmatprep.mubr.bf16.mxu0 0
      %7561 = vmatmul.mubr.bf16.gmra.mrb[0].mxu0 %v7015
      %v7562 = vpop.f32.mrb[0].mxu0
      %v7563 = vadd.f32 %v7430, %v7562
      %v7564 = vpop.f32.mrb[0].mxu0
      %v7565 = vadd.f32 %v7432, %v7564
      %v7566 = vpop.f32.mrb[0].mxu0
      %v7567 = vadd.f32 %v7434, %v7566
      %v7568 = vpop.f32.mrb[0].mxu0
      %v7569 = vadd.f32 %v7436, %v7568
      %7570 = vdwg.mxu0
      %v7571 = vadd.f32 %v6888, %v7473
      %v7572 = vadd.f32 %v6890, %v7475
      %v7573 = vadd.f32 %v6892, %v7477
      %v7574 = vadd.f32 %v6894, %v7479
      %v7575 = vadd.f32 %v6898, %v7483
      %v7576 = vadd.f32 %v6900, %v7485
      %v7577 = vadd.f32 %v6902, %v7487
      %v7578 = vadd.f32 %v6904, %v7489
      %v7579 = vadd.f32 %v6908, %v7493
      %v7580 = vadd.f32 %v6910, %v7495
      %v7581 = vadd.f32 %v6912, %v7497
      %v7582 = vadd.f32 %v6914, %v7499
      %v7583 = vadd.f32 %v6918, %v7503
      %v7584 = vadd.f32 %v6920, %v7505
      %v7585 = vadd.f32 %v6922, %v7507
      %v7586 = vadd.f32 %v6924, %v7509
      %v7587 = vadd.f32 %v6928, %v7513
      %v7588 = vadd.f32 %v6930, %v7515
      %v7589 = vadd.f32 %v6932, %v7517
      %v7590 = vadd.f32 %v6934, %v7519
      %v7591 = vadd.f32 %v6938, %v7523
      %v7592 = vadd.f32 %v6940, %v7525
      %v7593 = vadd.f32 %v6942, %v7527
      %v7594 = vadd.f32 %v6944, %v7529
      %v7595 = vadd.f32 %v6948, %v7533
      %v7596 = vadd.f32 %v6950, %v7535
      %v7597 = vadd.f32 %v6952, %v7537
      %v7598 = vadd.f32 %v6954, %v7539
      %v7599 = vadd.f32 %v6958, %v7543
      %v7600 = vadd.f32 %v6960, %v7545
      %v7601 = vadd.f32 %v6962, %v7547
      %v7602 = vadd.f32 %v6964, %v7549
      %v7603 = vadd.f32 %v6968, %v7553
      %v7604 = vadd.f32 %v6970, %v7555
      %v7605 = vadd.f32 %v6972, %v7557
      %v7606 = vadd.f32 %v6974, %v7559
      %v7607 = vadd.f32 %v6978, %v7563
      %v7608 = vadd.f32 %v6980, %v7565
      %v7609 = vadd.f32 %v6982, %v7567
      %v7610 = vadd.f32 %v6984, %v7569
      %vm7631 = vcmask 1046528
      %v7632 = vrot.slane %v7571, 1
      %v7633 = vrot.slane %v7573, 1
      %v7634 = vsel %vm7631, %v7632, %v7633
      %v7635 = vrot.slane %v7575, 1
      %v7636 = vrot.slane %v7577, 1
      %v7637 = vsel %vm7631, %v7635, %v7636
      %v7638 = vrot.slane %v7579, 1
      %v7639 = vrot.slane %v7581, 1
      %v7640 = vsel %vm7631, %v7638, %v7639
      %v7641 = vrot.slane %v7583, 1
      %v7642 = vrot.slane %v7585, 1
      %v7643 = vsel %vm7631, %v7641, %v7642
      %v7644 = vrot.slane %v7587, 1
      %v7645 = vrot.slane %v7589, 1
      %v7646 = vsel %vm7631, %v7644, %v7645
      %v7647 = vrot.slane %v7591, 1
      %v7648 = vrot.slane %v7593, 1
      %v7649 = vsel %vm7631, %v7647, %v7648
      %v7650 = vrot.slane %v7595, 1
      %v7651 = vrot.slane %v7597, 1
      %v7652 = vsel %vm7631, %v7650, %v7651
      %v7653 = vrot.slane %v7599, 1
      %v7654 = vrot.slane %v7601, 1
      %v7655 = vsel %vm7631, %v7653, %v7654
      %v7656 = vrot.slane %v7603, 1
      %v7657 = vrot.slane %v7605, 1
      %v7658 = vsel %vm7631, %v7656, %v7657
      %v7659 = vrot.slane %v7607, 1
      %v7660 = vrot.slane %v7609, 1
      %v7661 = vsel %vm7631, %v7659, %v7660
      %7662 = vrot.lane.b32.xlu0 %v7634, 64
      %v7663 = vpop.permute.xlu0 %7662
      %7664 = vrot.lane.b32.xlu0 %v7637, 64
      %v7665 = vpop.permute.xlu0 %7664
      %7666 = vrot.lane.b32.xlu0 %v7640, 64
      %v7667 = vpop.permute.xlu0 %7666
      %7668 = vrot.lane.b32.xlu0 %v7643, 64
      %v7669 = vpop.permute.xlu0 %7668
      %7670 = vrot.lane.b32.xlu0 %v7646, 64
      %v7671 = vpop.permute.xlu0 %7670
      %7672 = vrot.lane.b32.xlu0 %v7649, 64
      %v7673 = vpop.permute.xlu0 %7672
      %7674 = vrot.lane.b32.xlu0 %v7652, 64
      %v7675 = vpop.permute.xlu0 %7674
      %7676 = vrot.lane.b32.xlu0 %v7655, 64
      %v7677 = vpop.permute.xlu0 %7676
      %7678 = vrot.lane.b32.xlu0 %v7658, 64
      %v7679 = vpop.permute.xlu0 %7678
      %7680 = vrot.lane.b32.xlu0 %v7661, 64
      %v7681 = vpop.permute.xlu0 %7680
      %v7692 = vadd.f32 %v7571, %v7663
      %v7693 = vadd.f32 %v7575, %v7665
      %v7694 = vadd.f32 %v7579, %v7667
      %v7695 = vadd.f32 %v7583, %v7669
      %v7696 = vadd.f32 %v7587, %v7671
      %v7697 = vadd.f32 %v7591, %v7673
      %v7698 = vadd.f32 %v7595, %v7675
      %v7699 = vadd.f32 %v7599, %v7677
      %v7700 = vadd.f32 %v7603, %v7679
      %v7701 = vadd.f32 %v7607, %v7681
      %vm7722 = vcmask 1045504
      %v7723 = vrot.slane %v7572, 2
      %v7724 = vrot.slane %v7574, 2
      %v7725 = vsel %vm7722, %v7723, %v7724
      %v7726 = vrot.slane %v7576, 2
      %v7727 = vrot.slane %v7578, 2
      %v7728 = vsel %vm7722, %v7726, %v7727
      %v7729 = vrot.slane %v7580, 2
      %v7730 = vrot.slane %v7582, 2
      %v7731 = vsel %vm7722, %v7729, %v7730
      %v7732 = vrot.slane %v7584, 2
      %v7733 = vrot.slane %v7586, 2
      %v7734 = vsel %vm7722, %v7732, %v7733
      %v7735 = vrot.slane %v7588, 2
      %v7736 = vrot.slane %v7590, 2
      %v7737 = vsel %vm7722, %v7735, %v7736
      %v7738 = vrot.slane %v7592, 2
      %v7739 = vrot.slane %v7594, 2
      %v7740 = vsel %vm7722, %v7738, %v7739
      %v7741 = vrot.slane %v7596, 2
      %v7742 = vrot.slane %v7598, 2
      %v7743 = vsel %vm7722, %v7741, %v7742
      %v7744 = vrot.slane %v7600, 2
      %v7745 = vrot.slane %v7602, 2
      %v7746 = vsel %vm7722, %v7744, %v7745
      %v7747 = vrot.slane %v7604, 2
      %v7748 = vrot.slane %v7606, 2
      %v7749 = vsel %vm7722, %v7747, %v7748
      %v7750 = vrot.slane %v7608, 2
      %v7751 = vrot.slane %v7610, 2
      %v7752 = vsel %vm7722, %v7750, %v7751
      %v7763 = vadd.f32 %v7692, %v7725
      %v7764 = vadd.f32 %v7693, %v7728
      %v7765 = vadd.f32 %v7694, %v7731
      %v7766 = vadd.f32 %v7695, %v7734
      %v7767 = vadd.f32 %v7696, %v7737
      %v7768 = vadd.f32 %v7697, %v7740
      %v7769 = vadd.f32 %v7698, %v7743
      %v7770 = vadd.f32 %v7699, %v7746
      %v7771 = vadd.f32 %v7700, %v7749
      %v7772 = vadd.f32 %v7701, %v7752
      %v7773 = vld [vmem:[%s4] sm:$0x1]
      %v7775 = vlaneseq
      %v7776 = vshrl.u32 %v7775, 7
      %v7777 = vsub.s32 0, %v7776
      %v7778 = vrot.slane %v7773, %v7777
      %v7780 = vadd.f32 %v7763, %v7778
      %v7781 = vadd.f32 %v7764, %v7778
      %v7782 = vadd.f32 %v7765, %v7778
      %v7783 = vadd.f32 %v7766, %v7778
      %v7784 = vadd.f32 %v7767, %v7778
      %v7785 = vadd.f32 %v7768, %v7778
      %v7786 = vadd.f32 %v7769, %v7778
      %v7787 = vadd.f32 %v7770, %v7778
      %v7788 = vadd.f32 %v7771, %v7778
      %v7789 = vadd.f32 %v7772, %v7778
      %v7790 = vmax.f32 %v7780, 0.0
      %v7791 = vmax.f32 %v7781, 0.0
      %v7792 = vmax.f32 %v7782, 0.0
      %v7793 = vmax.f32 %v7783, 0.0
      %v7794 = vmax.f32 %v7784, 0.0
      %v7795 = vmax.f32 %v7785, 0.0
      %v7796 = vmax.f32 %v7786, 0.0
      %v7797 = vmax.f32 %v7787, 0.0
      %v7798 = vmax.f32 %v7788, 0.0
      %v7799 = vmax.f32 %v7789, 0.0
      %s7800 = ssub.s32 %s480, 1
      %v7801 = vstv %s7800
      %v7802 = vadd.s32 %v7801, 1
      %v7803 = vadd.s32 %v7801, 2
      %v7804 = vadd.s32 %v7801, 3
      %v7805 = vadd.s32 %v7801, 4
      %v7806 = vadd.s32 %v7801, 5
      %v7807 = vadd.s32 %v7801, 6
      %v7808 = vadd.s32 %v7801, 7
      %v7809 = vadd.s32 %v7801, 8
      %v7810 = vadd.s32 %v7801, 9
      %vm7811 = vcmp.ge.s32.totalorder %v7801, 0
      %vm7812 = vcmp.ge.s32.totalorder %v7802, 0
      %vm7813 = vcmp.ge.s32.totalorder %v7803, 0
      %vm7814 = vcmp.ge.s32.totalorder %v7804, 0
      %vm7815 = vcmp.ge.s32.totalorder %v7805, 0
      %vm7816 = vcmp.ge.s32.totalorder %v7806, 0
      %vm7817 = vcmp.ge.s32.totalorder %v7807, 0
      %vm7818 = vcmp.ge.s32.totalorder %v7808, 0
      %vm7819 = vcmp.ge.s32.totalorder %v7809, 0
      %vm7820 = vcmp.ge.s32.totalorder %v7810, 0
      %vm7821 = vcmp.lt.s32.totalorder %v7801, 8
      %vm7822 = vcmp.lt.s32.totalorder %v7802, 8
      %vm7823 = vcmp.lt.s32.totalorder %v7803, 8
      %vm7824 = vcmp.lt.s32.totalorder %v7804, 8
      %vm7825 = vcmp.lt.s32.totalorder %v7805, 8
      %vm7826 = vcmp.lt.s32.totalorder %v7806, 8
      %vm7827 = vcmp.lt.s32.totalorder %v7807, 8
      %vm7828 = vcmp.lt.s32.totalorder %v7808, 8
      %vm7829 = vcmp.lt.s32.totalorder %v7809, 8
      %vm7830 = vcmp.lt.s32.totalorder %v7810, 8
      %vm7831 = vmand %vm7811, %vm7821
      %vm7832 = vmand %vm7812, %vm7822
      %vm7833 = vmand %vm7813, %vm7823
      %vm7834 = vmand %vm7814, %vm7824
      %vm7835 = vmand %vm7815, %vm7825
      %vm7836 = vmand %vm7816, %vm7826
      %vm7837 = vmand %vm7817, %vm7827
      %vm7838 = vmand %vm7818, %vm7828
      %vm7839 = vmand %vm7819, %vm7829
      %vm7840 = vmand %vm7820, %vm7830
      %v7841 = vsel %vm7831, 1, 0
      %v7842 = vsel %vm7832, 1, 0
      %v7843 = vsel %vm7833, 1, 0
      %v7844 = vsel %vm7834, 1, 0
      %v7845 = vsel %vm7835, 1, 0
      %v7846 = vsel %vm7836, 1, 0
      %v7847 = vsel %vm7837, 1, 0
      %v7848 = vsel %vm7838, 1, 0
      %v7849 = vsel %vm7839, 1, 0
      %v7850 = vsel %vm7840, 1, 0
      %vm7851 = vcmp.eq.s32.totalorder %v7841, 1
      %vm7852 = vcmp.eq.s32.totalorder %v7842, 1
      %vm7853 = vcmp.eq.s32.totalorder %v7843, 1
      %vm7854 = vcmp.eq.s32.totalorder %v7844, 1
      %vm7855 = vcmp.eq.s32.totalorder %v7845, 1
      %vm7856 = vcmp.eq.s32.totalorder %v7846, 1
      %vm7857 = vcmp.eq.s32.totalorder %v7847, 1
      %vm7858 = vcmp.eq.s32.totalorder %v7848, 1
      %vm7859 = vcmp.eq.s32.totalorder %v7849, 1
      %vm7860 = vcmp.eq.s32.totalorder %v7850, 1
      %v7861 = vsel %vm7851, %v7790, 0.0
      %v7862 = vsel %vm7852, %v7791, 0.0
      %v7863 = vsel %vm7853, %v7792, 0.0
      %v7864 = vsel %vm7854, %v7793, 0.0
      %v7865 = vsel %vm7855, %v7794, 0.0
      %v7866 = vsel %vm7856, %v7795, 0.0
      %v7867 = vsel %vm7857, %v7796, 0.0
      %v7868 = vsel %vm7858, %v7797, 0.0
      %v7869 = vsel %vm7859, %v7798, 0.0
      %v7870 = vsel %vm7860, %v7799, 0.0
      %v7871 = vpack.c.bf16 %v7861, %v7861
      %v7872 = vpack.c.bf16 %v7862, %v7862
      %v7873 = vpack.c.bf16 %v7863, %v7863
      %v7874 = vpack.c.bf16 %v7864, %v7864
      %v7875 = vpack.c.bf16 %v7865, %v7865
      %v7876 = vpack.c.bf16 %v7866, %v7866
      %v7877 = vpack.c.bf16 %v7867, %v7867
      %v7878 = vpack.c.bf16 %v7868, %v7868
      %v7879 = vpack.c.bf16 %v7869, %v7869
      %v7880 = vpack.c.bf16 %v7870, %v7870
      %v7882 = vshrl.u32 %v7871, 16
      %v7884 = vrot.slane %v7882, 7
      %v7885 = vshll.u32 %v7871, 16
      %v7887 = vor.u32 %v7884, %v7885
      %v7889 = vshrl.u32 %v7872, 16
      %v7891 = vrot.slane %v7889, 7
      %v7892 = vshll.u32 %v7872, 16
      %v7894 = vor.u32 %v7891, %v7892
      %v7896 = vshrl.u32 %v7873, 16
      %v7898 = vrot.slane %v7896, 7
      %v7899 = vshll.u32 %v7873, 16
      %v7901 = vor.u32 %v7898, %v7899
      %v7903 = vshrl.u32 %v7874, 16
      %v7905 = vrot.slane %v7903, 7
      %v7906 = vshll.u32 %v7874, 16
      %v7908 = vor.u32 %v7905, %v7906
      %v7910 = vshrl.u32 %v7875, 16
      %v7912 = vrot.slane %v7910, 7
      %v7913 = vshll.u32 %v7875, 16
      %v7915 = vor.u32 %v7912, %v7913
      %v7917 = vshrl.u32 %v7876, 16
      %v7919 = vrot.slane %v7917, 7
      %v7920 = vshll.u32 %v7876, 16
      %v7922 = vor.u32 %v7919, %v7920
      %v7924 = vshrl.u32 %v7877, 16
      %v7926 = vrot.slane %v7924, 7
      %v7927 = vshll.u32 %v7877, 16
      %v7929 = vor.u32 %v7926, %v7927
      %v7931 = vshrl.u32 %v7878, 16
      %v7933 = vrot.slane %v7931, 7
      %v7934 = vshll.u32 %v7878, 16
      %v7936 = vor.u32 %v7933, %v7934
      %v7938 = vshrl.u32 %v7879, 16
      %v7940 = vrot.slane %v7938, 7
      %v7941 = vshll.u32 %v7879, 16
      %v7943 = vor.u32 %v7940, %v7941
      %v7945 = vshrl.u32 %v7880, 16
      %v7947 = vrot.slane %v7945, 7
      %v7948 = vshll.u32 %v7880, 16
      %v7950 = vor.u32 %v7947, %v7948
      %vm7961 = vcmask 520192
      %vm7962 = vmand %vm7961, %vm4015
      %v7963 = vld [vmem:[#allocation3] sm:$0x1f]
      %v7964 = vsel %vm7962, %v7887, %v7963
      %7965 = vst [vmem:[#allocation3] sm:$0x1f] %v7964
      %v7966 = vld [vmem:[#allocation3 + $0x8] sm:$0x1f]
      %v7967 = vsel %vm7962, %v7894, %v7966
      %7968 = vst [vmem:[#allocation3 + $0x8] sm:$0x1f] %v7967
      %v7969 = vld [vmem:[#allocation3 + $0x10] sm:$0x1f]
      %v7970 = vsel %vm7962, %v7901, %v7969
      %7971 = vst [vmem:[#allocation3 + $0x10] sm:$0x1f] %v7970
      %v7972 = vld [vmem:[#allocation3 + $0x18] sm:$0x1f]
      %v7973 = vsel %vm7962, %v7908, %v7972
      %7974 = vst [vmem:[#allocation3 + $0x18] sm:$0x1f] %v7973
      %v7975 = vld [vmem:[#allocation3 + $0x20] sm:$0x1f]
      %v7976 = vsel %vm7962, %v7915, %v7975
      %7977 = vst [vmem:[#allocation3 + $0x20] sm:$0x1f] %v7976
      %v7978 = vld [vmem:[#allocation3 + $0x28] sm:$0x1f]
      %v7979 = vsel %vm7962, %v7922, %v7978
      %7980 = vst [vmem:[#allocation3 + $0x28] sm:$0x1f] %v7979
      %v7981 = vld [vmem:[#allocation3 + $0x30] sm:$0x1f]
      %v7982 = vsel %vm7962, %v7929, %v7981
      %7983 = vst [vmem:[#allocation3 + $0x30] sm:$0x1f] %v7982
      %v7984 = vld [vmem:[#allocation3 + $0x38] sm:$0x1f]
      %v7985 = vsel %vm7962, %v7936, %v7984
      %7986 = vst [vmem:[#allocation3 + $0x38] sm:$0x1f] %v7985
      %v7987 = vld [vmem:[#allocation3 + $0x40] sm:$0x1f]
      %v7988 = vsel %vm7962, %v7943, %v7987
      %7989 = vst [vmem:[#allocation3 + $0x40] sm:$0x1f] %v7988
      %v7990 = vld [vmem:[#allocation3 + $0x48] sm:$0x1f]
      %v7991 = vsel %vm7962, %v7950, %v7990
      %7992 = vst [vmem:[#allocation3 + $0x48] sm:$0x1f] %v7991
      %v7993 = vld [vmem:[#allocation3] sm:$0xff]
      %v7994 = vld [vmem:[#allocation3 + $0x8] sm:$0xff]
      %v7995 = vld [vmem:[#allocation3 + $0x10] sm:$0xff]
      %v7996 = vld [vmem:[#allocation3 + $0x18] sm:$0xff]
      %v7997 = vld [vmem:[#allocation3 + $0x20] sm:$0xff]
      %v7998 = vld [vmem:[#allocation3 + $0x28] sm:$0xff]
      %v7999 = vld [vmem:[#allocation3 + $0x30] sm:$0xff]
      %v8000 = vld [vmem:[#allocation3 + $0x38] sm:$0xff]
      %s8001 = scalar_lea.vmem [#allocation3], 8
      %v8002 = vld [vmem:[%s8001] sm:$0xff]
      %v8003 = vld [vmem:[%s8001 + $0x8] sm:$0xff]
      %v8004 = vld [vmem:[%s8001 + $0x10] sm:$0xff]
      %v8005 = vld [vmem:[%s8001 + $0x18] sm:$0xff]
      %v8006 = vld [vmem:[%s8001 + $0x20] sm:$0xff]
      %v8007 = vld [vmem:[%s8001 + $0x28] sm:$0xff]
      %v8008 = vld [vmem:[%s8001 + $0x30] sm:$0xff]
      %v8009 = vld [vmem:[%s8001 + $0x38] sm:$0xff]
      %s8010 = scalar_lea.vmem [#allocation3], 16
      %v8011 = vld [vmem:[%s8010] sm:$0xff]
      %v8012 = vld [vmem:[%s8010 + $0x8] sm:$0xff]
      %v8013 = vld [vmem:[%s8010 + $0x10] sm:$0xff]
      %v8014 = vld [vmem:[%s8010 + $0x18] sm:$0xff]
      %v8015 = vld [vmem:[%s8010 + $0x20] sm:$0xff]
      %v8016 = vld [vmem:[%s8010 + $0x28] sm:$0xff]
      %v8017 = vld [vmem:[%s8010 + $0x30] sm:$0xff]
      %v8018 = vld [vmem:[%s8010 + $0x38] sm:$0xff]
      %8027 = vrot.lane.b32.xlu0 %v8002, 64
      %v8028 = vpop.permute.xlu0 %8027
      %8029 = vrot.lane.b32.xlu0 %v8003, 64
      %v8030 = vpop.permute.xlu0 %8029
      %8031 = vrot.lane.b32.xlu0 %v8004, 64
      %v8032 = vpop.permute.xlu0 %8031
      %8033 = vrot.lane.b32.xlu0 %v8005, 64
      %v8034 = vpop.permute.xlu0 %8033
      %8035 = vrot.lane.b32.xlu0 %v8006, 64
      %v8036 = vpop.permute.xlu0 %8035
      %8037 = vrot.lane.b32.xlu0 %v8007, 64
      %v8038 = vpop.permute.xlu0 %8037
      %8039 = vrot.lane.b32.xlu0 %v8008, 64
      %v8040 = vpop.permute.xlu0 %8039
      %8041 = vrot.lane.b32.xlu0 %v8009, 64
      %v8042 = vpop.permute.xlu0 %8041
      %vm8043 = vcmask 523264
      %v8046 = vsel %vm8043, %v7993, %v8028
      %v8050 = vsel %vm8043, %v7994, %v8030
      %v8054 = vsel %vm8043, %v7995, %v8032
      %v8058 = vsel %vm8043, %v7996, %v8034
      %v8062 = vsel %vm8043, %v7997, %v8036
      %v8066 = vsel %vm8043, %v7998, %v8038
      %v8070 = vsel %vm8043, %v7999, %v8040
      %v8074 = vsel %vm8043, %v8000, %v8042
      %v8076 = vld [vmem:[%s5] sm:$0xf]
      %v8077 = vld [vmem:[%s5 + $0x4] sm:$0xf]
      %v8078 = vld [vmem:[%s5 + $0x8] sm:$0xf]
      %v8079 = vld [vmem:[%s5 + $0xc] sm:$0xf]
      %v8080 = vld [vmem:[%s5 + $0x10] sm:$0xf]
      %v8081 = vld [vmem:[%s5 + $0x14] sm:$0xf]
      %v8082 = vld [vmem:[%s5 + $0x18] sm:$0xf]
      %v8083 = vld [vmem:[%s5 + $0x1c] sm:$0xf]
      %v8084 = vld [vmem:[%s5 + $0x20] sm:$0xf]
      %v8085 = vld [vmem:[%s5 + $0x24] sm:$0xf]
      %v8086 = vld [vmem:[%s5 + $0x28] sm:$0xf]
      %v8087 = vld [vmem:[%s5 + $0x2c] sm:$0xf]
      %v8088 = vld [vmem:[%s5 + $0x30] sm:$0xf]
      %v8089 = vld [vmem:[%s5 + $0x34] sm:$0xf]
      %v8090 = vld [vmem:[%s5 + $0x38] sm:$0xf]
      %v8091 = vld [vmem:[%s5 + $0x3c] sm:$0xf]
      %v8092 = vld [vmem:[%s5 + $0x40] sm:$0xf]
      %v8093 = vld [vmem:[%s5 + $0x44] sm:$0xf]
      %v8094 = vld [vmem:[%s5 + $0x48] sm:$0xf]
      %v8095 = vld [vmem:[%s5 + $0x4c] sm:$0xf]
      %v8096 = vld [vmem:[%s5 + $0x50] sm:$0xf]
      %v8097 = vld [vmem:[%s5 + $0x54] sm:$0xf]
      %v8098 = vld [vmem:[%s5 + $0x58] sm:$0xf]
      %v8099 = vld [vmem:[%s5 + $0x5c] sm:$0xf]
      %v8124 = vunpack.c.l.b16 %v8076
      %v8125 = vunpack.c.l.b16 %v8077
      %v8126 = vunpack.c.l.b16 %v8078
      %v8127 = vunpack.c.l.b16 %v8079
      %v8128 = vunpack.c.l.b16 %v8080
      %v8129 = vunpack.c.l.b16 %v8081
      %v8130 = vunpack.c.l.b16 %v8082
      %v8131 = vunpack.c.l.b16 %v8083
      %v8132 = vunpack.c.l.b16 %v8084
      %v8133 = vunpack.c.l.b16 %v8085
      %v8134 = vunpack.c.l.b16 %v8086
      %v8135 = vunpack.c.l.b16 %v8087
      %v8136 = vunpack.c.l.b16 %v8088
      %v8137 = vunpack.c.l.b16 %v8089
      %v8138 = vunpack.c.l.b16 %v8090
      %v8139 = vunpack.c.l.b16 %v8091
      %v8140 = vunpack.c.l.b16 %v8092
      %v8141 = vunpack.c.l.b16 %v8093
      %v8142 = vunpack.c.l.b16 %v8094
      %v8143 = vunpack.c.l.b16 %v8095
      %v8144 = vunpack.c.l.b16 %v8096
      %v8145 = vunpack.c.l.b16 %v8097
      %v8146 = vunpack.c.l.b16 %v8098
      %v8147 = vunpack.c.l.b16 %v8099
      %v8148 = vpack.c.b16 %v8125, %v8124
      %v8149 = vpack.c.b16 %v8127, %v8126
      %v8150 = vpack.c.b16 %v8129, %v8128
      %v8151 = vpack.c.b16 %v8131, %v8130
      %v8152 = vpack.c.b16 %v8133, %v8132
      %v8153 = vpack.c.b16 %v8135, %v8134
      %v8154 = vpack.c.b16 %v8137, %v8136
      %v8155 = vpack.c.b16 %v8139, %v8138
      %v8156 = vpack.c.b16 %v8141, %v8140
      %v8157 = vpack.c.b16 %v8143, %v8142
      %v8158 = vpack.c.b16 %v8145, %v8144
      %v8159 = vpack.c.b16 %v8147, %v8146
      %v8173 = vsel %vm8043, %v8011, 0
      %v8176 = vsel %vm8043, %v8012, 0
      %v8179 = vsel %vm8043, %v8013, 0
      %v8182 = vsel %vm8043, %v8014, 0
      %v8185 = vsel %vm8043, %v8015, 0
      %v8188 = vsel %vm8043, %v8016, 0
      %v8191 = vsel %vm8043, %v8017, 0
      %v8194 = vsel %vm8043, %v8018, 0
      %8196 = vmatprep.subr.bf16.mxu0 0
      %8197 = vmatpush1.bf16.msra.mxu0 %v8148
      %8198 = vmatprep.subr.bf16.mxu0 0
      %8199 = vmatpush1.bf16.msra.mxu0 %v8149
      %8200 = vmatprep.subr.bf16.mxu0 0
      %8201 = vmatpush1.bf16.msra.mxu0 %v8150
      %8202 = vmatprep.subr.bf16.mxu0 0
      %8203 = vmatpush1.bf16.msra.mxu0 %v8151
      %8204 = vmatprep.subr.bf16.mxu0 0
      %8205 = vmatpush1.bf16.msra.mxu0 %v8152
      %8206 = vmatprep.subr.bf16.mxu0 0
      %8207 = vmatpush1.bf16.msra.mxu0 %v8153
      %8208 = vmatprep.subr.bf16.mxu0 0
      %8209 = vmatpush1.bf16.msra.mxu0 %v8154
      %8210 = vmatprep.subr.bf16.mxu0 0
      %8211 = vmatpush1.bf16.msra.mxu0 %v8155
      %8212 = vmatprep.subr.bf16.mxu0 0
      %8213 = vmatpush1.bf16.msra.mxu0 %v8156
      %8214 = vmatprep.subr.bf16.mxu0 0
      %8215 = vmatpush1.bf16.msra.mxu0 %v8157
      %8216 = vmatprep.subr.bf16.mxu0 0
      %8217 = vmatpush1.bf16.msra.mxu0 %v8158
      %8218 = vmatprep.subr.bf16.mxu0 0
      %8219 = vmatpush1.bf16.msra.mxu0 %v8159
      %8220 = vmatprep.subr.bf16.mxu0 0
      %8221 = vmatpush1.bf16.msra.mxu0 0
      %8222 = vmatprep.subr.bf16.mxu0 0
      %8223 = vmatpush1.bf16.msra.mxu0 0
      %8224 = vmatprep.subr.bf16.mxu0 0
      %8225 = vmatpush1.bf16.msra.mxu0 0
      %8226 = vmatprep.subr.bf16.mxu0 0
      %8227 = vmatpush1.bf16.msra.mxu0 0
      %8228 = vmatprep.mubr.bf16.mxu0 %v8173
      %8229 = vmatmul.mubr.bf16.gmra.mrb[0].mxu0 %v8046
      %v8230 = vpop.f32.mrb[0].mxu0
      %v8231 = vadd.f32 0.0, %v8230
      %v8232 = vpop.f32.mrb[0].mxu0
      %v8233 = vpop.f32.mrb[0].mxu0
      %v8234 = vadd.f32 0.0, %v8233
      %v8235 = vpop.f32.mrb[0].mxu0
      %8236 = vmatprep.mubr.bf16.mxu0 %v8176
      %8237 = vmatmul.mubr.bf16.gmra.mrb[0].mxu0 %v8050
      %v8238 = vpop.f32.mrb[0].mxu0
      %v8239 = vadd.f32 0.0, %v8238
      %v8240 = vpop.f32.mrb[0].mxu0
      %v8241 = vpop.f32.mrb[0].mxu0
      %v8242 = vadd.f32 0.0, %v8241
      %v8243 = vpop.f32.mrb[0].mxu0
      %8244 = vmatprep.mubr.bf16.mxu0 %v8179
      %8245 = vmatmul.mubr.bf16.gmra.mrb[0].mxu0 %v8054
      %v8246 = vpop.f32.mrb[0].mxu0
      %v8247 = vadd.f32 0.0, %v8246
      %v8248 = vpop.f32.mrb[0].mxu0
      %v8249 = vpop.f32.mrb[0].mxu0
      %v8250 = vadd.f32 0.0, %v8249
      %v8251 = vpop.f32.mrb[0].mxu0
      %8252 = vmatprep.mubr.bf16.mxu0 %v8182
      %8253 = vmatmul.mubr.bf16.gmra.mrb[0].mxu0 %v8058
      %v8254 = vpop.f32.mrb[0].mxu0
      %v8255 = vadd.f32 0.0, %v8254
      %v8256 = vpop.f32.mrb[0].mxu0
      %v8257 = vpop.f32.mrb[0].mxu0
      %v8258 = vadd.f32 0.0, %v8257
      %v8259 = vpop.f32.mrb[0].mxu0
      %8260 = vmatprep.mubr.bf16.mxu0 %v8185
      %8261 = vmatmul.mubr.bf16.gmra.mrb[0].mxu0 %v8062
      %v8262 = vpop.f32.mrb[0].mxu0
      %v8263 = vadd.f32 0.0, %v8262
      %v8264 = vpop.f32.mrb[0].mxu0
      %v8265 = vpop.f32.mrb[0].mxu0
      %v8266 = vadd.f32 0.0, %v8265
      %v8267 = vpop.f32.mrb[0].mxu0
      %8268 = vmatprep.mubr.bf16.mxu0 %v8188
      %8269 = vmatmul.mubr.bf16.gmra.mrb[0].mxu0 %v8066
      %v8270 = vpop.f32.mrb[0].mxu0
      %v8271 = vadd.f32 0.0, %v8270
      %v8272 = vpop.f32.mrb[0].mxu0
      %v8273 = vpop.f32.mrb[0].mxu0
      %v8274 = vadd.f32 0.0, %v8273
      %v8275 = vpop.f32.mrb[0].mxu0
      %8276 = vmatprep.mubr.bf16.mxu0 %v8191
      %8277 = vmatmul.mubr.bf16.gmra.mrb[0].mxu0 %v8070
      %v8278 = vpop.f32.mrb[0].mxu0
      %v8279 = vadd.f32 0.0, %v8278
      %v8280 = vpop.f32.mrb[0].mxu0
      %v8281 = vpop.f32.mrb[0].mxu0
      %v8282 = vadd.f32 0.0, %v8281
      %v8283 = vpop.f32.mrb[0].mxu0
      %8284 = vmatprep.mubr.bf16.mxu0 %v8194
      %8285 = vmatmul.mubr.bf16.gmra.mrb[0].mxu0 %v8074
      %v8286 = vpop.f32.mrb[0].mxu0
      %v8287 = vadd.f32 0.0, %v8286
      %v8288 = vpop.f32.mrb[0].mxu0
      %v8289 = vpop.f32.mrb[0].mxu0
      %v8290 = vadd.f32 0.0, %v8289
      %v8291 = vpop.f32.mrb[0].mxu0
      %8292 = vdwg.mxu0
      %v8309 = vrot.slane %v8231, 1
      %v8310 = vrot.slane %v8234, 1
      %v8311 = vsel %vm7631, %v8309, %v8310
      %v8312 = vrot.slane %v8239, 1
      %v8313 = vrot.slane %v8242, 1
      %v8314 = vsel %vm7631, %v8312, %v8313
      %v8315 = vrot.slane %v8247, 1
      %v8316 = vrot.slane %v8250, 1
      %v8317 = vsel %vm7631, %v8315, %v8316
      %v8318 = vrot.slane %v8255, 1
      %v8319 = vrot.slane %v8258, 1
      %v8320 = vsel %vm7631, %v8318, %v8319
      %v8321 = vrot.slane %v8263, 1
      %v8322 = vrot.slane %v8266, 1
      %v8323 = vsel %vm7631, %v8321, %v8322
      %v8324 = vrot.slane %v8271, 1
      %v8325 = vrot.slane %v8274, 1
      %v8326 = vsel %vm7631, %v8324, %v8325
      %v8327 = vrot.slane %v8279, 1
      %v8328 = vrot.slane %v8282, 1
      %v8329 = vsel %vm7631, %v8327, %v8328
      %v8330 = vrot.slane %v8287, 1
      %v8331 = vrot.slane %v8290, 1
      %v8332 = vsel %vm7631, %v8330, %v8331
      %8333 = vrot.lane.b32.xlu0 %v8311, 125
      %v8334 = vpop.permute.xlu0 %8333
      %8335 = vrot.lane.b32.xlu0 %v8314, 125
      %v8336 = vpop.permute.xlu0 %8335
      %8337 = vrot.lane.b32.xlu0 %v8317, 125
      %v8338 = vpop.permute.xlu0 %8337
      %8339 = vrot.lane.b32.xlu0 %v8320, 125
      %v8340 = vpop.permute.xlu0 %8339
      %8341 = vrot.lane.b32.xlu0 %v8323, 125
      %v8342 = vpop.permute.xlu0 %8341
      %8343 = vrot.lane.b32.xlu0 %v8326, 125
      %v8344 = vpop.permute.xlu0 %8343
      %8345 = vrot.lane.b32.xlu0 %v8329, 125
      %v8346 = vpop.permute.xlu0 %8345
      %8347 = vrot.lane.b32.xlu0 %v8332, 125
      %v8348 = vpop.permute.xlu0 %8347
      %v8357 = vadd.f32 %v8231, %v8334
      %v8358 = vadd.f32 %v8239, %v8336
      %v8359 = vadd.f32 %v8247, %v8338
      %v8360 = vadd.f32 %v8255, %v8340
      %v8361 = vadd.f32 %v8263, %v8342
      %v8362 = vadd.f32 %v8271, %v8344
      %v8363 = vadd.f32 %v8279, %v8346
      %v8364 = vadd.f32 %v8287, %v8348
      %v8365 = vrot.slane %v8231, 2
      %v8366 = vrot.slane %v8234, 2
      %v8367 = vsel %vm7722, %v8365, %v8366
      %v8368 = vrot.slane %v8239, 2
      %v8369 = vrot.slane %v8242, 2
      %v8370 = vsel %vm7722, %v8368, %v8369
      %v8371 = vrot.slane %v8247, 2
      %v8372 = vrot.slane %v8250, 2
      %v8373 = vsel %vm7722, %v8371, %v8372
      %v8374 = vrot.slane %v8255, 2
      %v8375 = vrot.slane %v8258, 2
      %v8376 = vsel %vm7722, %v8374, %v8375
      %v8377 = vrot.slane %v8263, 2
      %v8378 = vrot.slane %v8266, 2
      %v8379 = vsel %vm7722, %v8377, %v8378
      %v8380 = vrot.slane %v8271, 2
      %v8381 = vrot.slane %v8274, 2
      %v8382 = vsel %vm7722, %v8380, %v8381
      %v8383 = vrot.slane %v8279, 2
      %v8384 = vrot.slane %v8282, 2
      %v8385 = vsel %vm7722, %v8383, %v8384
      %v8386 = vrot.slane %v8287, 2
      %v8387 = vrot.slane %v8290, 2
      %v8388 = vsel %vm7722, %v8386, %v8387
      %8389 = vrot.lane.b32.xlu0 %v8367, 122
      %v8390 = vpop.permute.xlu0 %8389
      %8391 = vrot.lane.b32.xlu0 %v8370, 122
      %v8392 = vpop.permute.xlu0 %8391
      %8393 = vrot.lane.b32.xlu0 %v8373, 122
      %v8394 = vpop.permute.xlu0 %8393
      %8395 = vrot.lane.b32.xlu0 %v8376, 122
      %v8396 = vpop.permute.xlu0 %8395
      %8397 = vrot.lane.b32.xlu0 %v8379, 122
      %v8398 = vpop.permute.xlu0 %8397
      %8399 = vrot.lane.b32.xlu0 %v8382, 122
      %v8400 = vpop.permute.xlu0 %8399
      %8401 = vrot.lane.b32.xlu0 %v8385, 122
      %v8402 = vpop.permute.xlu0 %8401
      %8403 = vrot.lane.b32.xlu0 %v8388, 122
      %v8404 = vpop.permute.xlu0 %8403
      %v8413 = vadd.f32 %v8357, %v8390
      %v8414 = vadd.f32 %v8358, %v8392
      %v8415 = vadd.f32 %v8359, %v8394
      %v8416 = vadd.f32 %v8360, %v8396
      %v8417 = vadd.f32 %v8361, %v8398
      %v8418 = vadd.f32 %v8362, %v8400
      %v8419 = vadd.f32 %v8363, %v8402
      %v8420 = vadd.f32 %v8364, %v8404
      %v8421 = vld [vmem:[%s6] sm:$0x1]
      %v8423 = vlaneseq
      %v8424 = vshrl.u32 %v8423, 7
      %v8425 = vsub.s32 0, %v8424
      %v8426 = vrot.slane %v8421, %v8425
      %v8428 = vadd.f32 %v8413, %v8426
      %v8429 = vadd.f32 %v8414, %v8426
      %v8430 = vadd.f32 %v8415, %v8426
      %v8431 = vadd.f32 %v8416, %v8426
      %v8432 = vadd.f32 %v8417, %v8426
      %v8433 = vadd.f32 %v8418, %v8426
      %v8434 = vadd.f32 %v8419, %v8426
      %v8435 = vadd.f32 %v8420, %v8426
      %8436 = vxpose.xlu0.b32.start [1/16] %v8428, 128
      %8437 = vxpose.xlu0.b32.cont [2/16] %v8429, 128
      %8438 = vxpose.xlu0.b32.cont [3/16] %v8430, 128
      %8439 = vxpose.xlu0.b32.cont [4/16] %v8431, 128
      %8440 = vxpose.xlu0.b32.cont [5/16] %v8432, 128
      %8441 = vxpose.xlu0.b32.cont [6/16] %v8433, 128
      %8442 = vxpose.xlu0.b32.cont [7/16] %v8434, 128
      %8443 = vxpose.xlu0.b32.cont [8/16] %v8435, 128
      %8444 = vxpose.xlu0.b32.cont [9/16] 0.0, 128
      %8445 = vxpose.xlu0.b32.cont [10/16] 0.0, 128
      %8446 = vxpose.xlu0.b32.cont [11/16] 0.0, 128
      %8447 = vxpose.xlu0.b32.cont [12/16] 0.0, 128
      %8448 = vxpose.xlu0.b32.cont [13/16] 0.0, 128
      %8449 = vxpose.xlu0.b32.cont [14/16] 0.0, 128
      %8450 = vxpose.xlu0.b32.cont [15/16] 0.0, 128
      %8451 = vxpose.xlu0.b32.end [16/16] 0.0, 128
      %v8452 = vpop.trf.xlu0
      %v8453 = vpop.trf.xlu0
      %v8454 = vpop.trf.xlu0
      %v8455 = vpop.trf.xlu0
      %v8456 = vpop.trf.xlu0
      %v8457 = vpop.trf.xlu0
      %v8458 = vpop.trf.xlu0
      %v8459 = vpop.trf.xlu0
      %v8460 = vpop.trf.xlu0
      %v8461 = vpop.trf.xlu0
      %v8462 = vpop.trf.xlu0
      %v8463 = vpop.trf.xlu0
      %v8464 = vpop.trf.xlu0
      %v8465 = vpop.trf.xlu0
      %v8466 = vpop.trf.xlu0
      %v8467 = vpop.trf.xlu0
      %vm8468 = vcmask 518144
      %8469 = vst.msk [vmem:[%s477] sm:$0x7] %vm8468, %v8452
      %p8470 = scmp.lt.s32.totalorder %s22, 1
      %s8471 = scalar_select %p8470, %s22, 1
      %p8472 = scmp.lt.s32.totalorder %s23, 0
      %s8473 = scalar_select %p8472, %s23, 0
      %s8474 = sadd.s32 %s8473, %s8471
      %s8475 = smul.addr %s8474, 4
      %s8476 = scalar_lea.vmem %s7, %s8475
      // Predicated region
      $region49: #{decoder_vit_forward.1} parent=47 // pred_check
        %p8477 = pneg %p242
      $region50: #{decoder_vit_forward.1} parent=47 // pred_check_branch
        %8479 = sbr.rel (%p8477) target = $region52
      $region51: #{decoder_vit_forward.1} parent=47 // pred_region
        _
      $region52: #{decoder_vit_forward.1} parent=47 // pred_fallthru
        _
    $region48: #{decoder_vit_forward.1} parent=5 // pred_fallthru
      _
    %p8480 = scmp.le.s32.totalorder 2, %s13
    // Predicated region
    $region53: #{decoder_vit_forward.1} parent=5 // pred_check
      %p8481 = pneg %p8480
    $region54: #{decoder_vit_forward.1} parent=5 // pred_check_branch
      %8483 = sbr.rel (%p8481) target = $region56
    $region55: #{decoder_vit_forward.1} parent=5 // pred_region
      %s8484 = ssub.s32 %s13, 2
      // Predicated region
      $region57: #{decoder_vit_forward.1} parent=55 // pred_check
        %p8485 = pneg %p248
      $region58: #{decoder_vit_forward.1} parent=55 // pred_check_branch
        %8487 = sbr.rel (%p8485) target = $region60
      $region59: #{decoder_vit_forward.1} parent=55 // pred_region
        %p8488 = scmp.lt.s32.totalorder %s24, 1
        %s8489 = scalar_select %p8488, %s24, 1
        %p8490 = scmp.lt.s32.totalorder %s25, 0
        %s8491 = scalar_select %p8490, %s25, 0
        %s8492 = sadd.s32 %s8491, %s8489
        %s8493 = smul.addr %s8492, 4
        %s8494 = scalar_lea.vmem %s7, %s8493
      $region60: #{decoder_vit_forward.1} parent=55 // pred_fallthru
        _
    $region56: #{decoder_vit_forward.1} parent=5 // pred_fallthru
      _
  $region6: #{decoder_vit_forward.1} parent=0 // loop_footer
    %s17 = sadd.s32 1, %s13
  $region7: #{decoder_vit_forward.1} parent=0 // loop_footer_branch
    %12 = sbr.rel target = $region3
  $region8: #{decoder_vit_forward.1} parent=0 // loop_exit
    _

</llo_original>
